<compile_context>
chip_gen: v7x
topology: tpu7x:2x2x1
jax: 0.10.0
libtpu: 0.0.40
codegen_flags: <defaults>
</compile_context>

<pallas_src>
import functools

import jax
import jax.numpy as jnp
import numpy as np
from jax import lax
from jax.experimental import pallas as pl
from jax.experimental.pallas import tpu as pltpu


# ---------------------------------------------------------------------------
# Fused kernel: per-time-chunk input projection + recurrence + FC epilogue.
# ---------------------------------------------------------------------------
def _fused_lstm_kernel(x_ref, w_ih_ref, w_hh_ref, b_ref, w_fc_ref, b_fc_ref,
                       logits_ref, h_out_ref, c_out_ref,
                       h_sc, c_sc, gates_sc, hseq_sc, *, unroll):
    tc = pl.program_id(0)
    Tc, B, _E = x_ref.shape
    H = w_hh_ref.shape[0]
    V = w_fc_ref.shape[1]

    # Initialize the (h, c) carry once (PyTorch hidden=None -> zeros).
    @pl.when(tc == 0)
    def _():
        h_sc[...] = jnp.zeros_like(h_sc)
        c_sc[...] = jnp.zeros_like(c_sc)

    # ---- fused input projection for the whole chunk: one batched MXU matmul.
    # x is already bf16; accumulate in f32, add (b_ih + b_hh) once.
    x_flat = x_ref[...].reshape(Tc * B, x_ref.shape[2])
    gates_x = jnp.dot(x_flat, w_ih_ref[...],
                      preferred_element_type=jnp.float32) + b_ref[...]
    gates_sc[...] = gates_x.reshape(Tc, B, 4 * H)

    # ---- serial recurrence over the chunk (only h @ W_hh left in the loop).
    def step(t, carry):
        h, c = carry
        gates = gates_sc[t] + jnp.dot(h.astype(jnp.bfloat16), w_hh_ref[...],
                                      preferred_element_type=jnp.float32)
        # Gate columns were permuted offline to [i, f, o, g]:
        ifo = jax.nn.sigmoid(gates[:, :3 * H])   # one wide EUP slab (B, 3H)
        g_g = jnp.tanh(gates[:, 3 * H:])
        i_g = ifo[:, 0 * H:1 * H]
        f_g = ifo[:, 1 * H:2 * H]
        o_g = ifo[:, 2 * H:3 * H]
        c_new = f_g * c + i_g * g_g              # f32 state math (v5e-safe)
        h_new = o_g * jnp.tanh(c_new)
        hseq_sc[t] = h_new                       # dense (B, H) VMEM store
        return (h_new, c_new)

    h_fin, c_fin = lax.fori_loop(0, Tc, step, (h_sc[...], c_sc[...]),
                                 unroll=unroll)
    h_sc[...] = h_fin
    c_sc[...] = c_fin

    # ---- fused output projection epilogue for the chunk (one MXU matmul).
    h_flat = hseq_sc[...].reshape(Tc * B, H).astype(jnp.bfloat16)
    logits = jnp.dot(h_flat, w_fc_ref[...],
                     preferred_element_type=jnp.float32) + b_fc_ref[...]
    logits_ref[...] = logits.reshape(Tc, B, V).astype(logits_ref.dtype)

    # Final state written once, on the last chunk.
    @pl.when(tc == pl.num_programs(0) - 1)
    def _():
        h_out_ref[...] = h_fin
        c_out_ref[...] = c_fin


# ---------------------------------------------------------------------------
# Sizing helpers (chunk / unroll / VMEM budget).
# ---------------------------------------------------------------------------
def _chunk_vmem_bytes(tc, B, E, H, V):
    f32, bf16 = 4, 2
    x_in = 2 * tc * B * E * bf16                       # pipelined input chunk
    logits_out = 2 * tc * B * V * f32                  # pipelined logits chunk
    weights = (E * 4 * H + H * 4 * H + H * V) * bf16   # single-buffered weights
    biases = (4 * H + V) * f32
    state_out = 2 * 2 * B * H * f32                    # h_n / c_n output blocks
    scratch = (tc * B * 4 * H + tc * B * H + 2 * B * H) * f32
    return x_in + logits_out + weights + biases + state_out + scratch


def _pick_time_chunk(T, B, E, H, V, budget_bytes=6 << 20):
    """Largest divisor of T whose per-chunk VMEM footprint fits the budget."""
    best = 1
    for tc in range(1, T + 1):
        if T % tc == 0 and _chunk_vmem_bytes(tc, B, E, H, V) <= budget_bytes:
            best = tc
    return best


def _pick_unroll(t_chunk, B, H):
    """Gate the fori_loop unroll on vreg pressure of the per-step gates value."""
    gates_vregs = max(1, (B * 4 * H) // 1024)
    if gates_vregs <= 8:
        u = 8
    elif gates_vregs <= 16:
        u = 4
    else:
        u = 2
    return max(1, min(u, t_chunk))


# ---------------------------------------------------------------------------
# Full forward pass (matches PyTorch LSTMPoet.forward semantics).
# ---------------------------------------------------------------------------
def lstm_poet_forward(tokens, kparams):
    """tokens: int32 [B, T].  Returns (logits [B,T,V], (h_n [1,B,H], c_n [1,B,H]))."""
    emb = kparams["embedding"]            # (V, E)  f32
    w_ih = kparams["w_ih"]                # (E, 4H) bf16, gate cols [i,f,o,g]
    w_hh = kparams["w_hh"]                # (H, 4H) bf16, gate cols [i,f,o,g]
    b = kparams["b"]                      # (1, 4H) f32,  gate cols [i,f,o,g]
    w_fc = kparams["w_fc"]                # (H, V)  bf16
    b_fc = kparams["b_fc"]                # (1, V)  f32

    B, T = tokens.shape
    V, E = emb.shape
    H = w_hh.shape[0]
    assert B % 8 == 0, "batch must be a multiple of 8 (sublane constraint)"
    assert E % 128 == 0 and H % 128 == 0 and V % 128 == 0, \
        "E, H, V must be multiples of 128 (lane constraint)"

    # Embedding lookup, gathered time-major; cast to bf16 for the MXU LHS.
    x_tm = emb[tokens.T].astype(jnp.bfloat16)          # (T, B, E)

    Tc = _pick_time_chunk(T, B, E, H, V)
    n_chunks = T // Tc
    unroll = _pick_unroll(Tc, B, H)
    vmem_limit = int(min(max(32 << 20,
                             2 * _chunk_vmem_bytes(Tc, B, E, H, V) + (8 << 20)),
                         96 << 20))

    const = lambda t: (0, 0)  # noqa: E731  (resident weight/bias blocks)

    logits_tm, h_n, c_n = pl.pallas_call(
        functools.partial(_fused_lstm_kernel, unroll=unroll),
        out_shape=(
            jax.ShapeDtypeStruct((T, B, V), jnp.float32),   # time-major logits
            jax.ShapeDtypeStruct((B, H), jnp.float32),      # h_n
            jax.ShapeDtypeStruct((B, H), jnp.float32),      # c_n
        ),
        grid_spec=pltpu.PrefetchScalarGridSpec(
            num_scalar_prefetch=0,
            grid=(n_chunks,),
            in_specs=[
                pl.BlockSpec((Tc, B, E), lambda t: (t, 0, 0)),
                pl.BlockSpec((E, 4 * H), const, pipeline_mode=pl.Buffered(1)),
                pl.BlockSpec((H, 4 * H), const, pipeline_mode=pl.Buffered(1)),
                pl.BlockSpec((1, 4 * H), const, pipeline_mode=pl.Buffered(1)),
                pl.BlockSpec((H, V), const, pipeline_mode=pl.Buffered(1)),
                pl.BlockSpec((1, V), const, pipeline_mode=pl.Buffered(1)),
            ],
            out_specs=[
                pl.BlockSpec((Tc, B, V), lambda t: (t, 0, 0)),
                pl.BlockSpec((B, H), const),
                pl.BlockSpec((B, H), const),
            ],
            scratch_shapes=[
                pltpu.VMEM((B, H), jnp.float32),            # h carry
                pltpu.VMEM((B, H), jnp.float32),            # c carry
                pltpu.VMEM((Tc, B, 4 * H), jnp.float32),    # chunk gate pre-acts
                pltpu.VMEM((Tc, B, H), jnp.float32),        # chunk hidden seq
            ],
        ),
        compiler_params=pltpu.CompilerParams(
            dimension_semantics=("arbitrary",),             # sequential carry
            vmem_limit_bytes=vmem_limit),
    )(x_tm, w_ih, w_hh, b, w_fc, b_fc)

    # Single XLA permute time-major -> batch-first (cheap at these shapes;
    # a time-major consumer could skip it entirely).
    logits = jnp.transpose(logits_tm, (1, 0, 2))            # (B, T, V)
    return logits, (h_n[None, :, :], c_n[None, :, :])


# ---------------------------------------------------------------------------
# Parameter prep: PyTorch-ordered f32 params -> kernel params
# (gate columns permuted [i,f,g,o] -> [i,f,o,g], weights cast to bf16).
# ---------------------------------------------------------------------------
def _permute_gate_cols(w):
    H = w.shape[-1] // 4
    w4 = w.reshape(w.shape[:-1] + (4, H))
    w4 = jnp.concatenate([w4[..., 0:2, :], w4[..., 3:4, :], w4[..., 2:3, :]],
                         axis=-2)                           # [i, f, o, g]
    return w4.reshape(w.shape[:-1] + (4 * H,))


def prepare_kernel_params(params):
    return {
        "embedding": params["embedding"],
        "w_ih": _permute_gate_cols(params["w_ih"]).astype(jnp.bfloat16),
        "w_hh": _permute_gate_cols(params["w_hh"]).astype(jnp.bfloat16),
        "b": _permute_gate_cols(params["b"]).astype(jnp.float32),
        "w_fc": params["w_fc"].astype(jnp.bfloat16),
        "b_fc": params["b_fc"].astype(jnp.float32),
    }


# ---------------------------------------------------------------------------
# Pure-JAX f32 reference matching PyTorch nn.LSTM / nn.Linear semantics.
# ---------------------------------------------------------------------------
def reference_forward(tokens, params):
    emb = params["embedding"]
    w_ih, w_hh, b = params["w_ih"], params["w_hh"], params["b"]
    w_fc, b_fc = params["w_fc"], params["b_fc"]
    H = w_hh.shape[0]
    x = emb[tokens]                                       # (B, T, E)
    B = x.shape[0]

    def step(carry, x_t):
        h, c = carry
        gates = x_t @ w_ih + h @ w_hh + b
        i = jax.nn.sigmoid(gates[:, 0 * H:1 * H])
        f = jax.nn.sigmoid(gates[:, 1 * H:2 * H])
        g = jnp.tanh(gates[:, 2 * H:3 * H])
        o = jax.nn.sigmoid(gates[:, 3 * H:4 * H])
        c_new = f * c + i * g
        h_new = o * jnp.tanh(c_new)
        return (h_new, c_new), h_new

    init = (jnp.zeros((B, H), jnp.float32), jnp.zeros((B, H), jnp.float32))
    (h_n, c_n), hs = jax.lax.scan(step, init, jnp.transpose(x, (1, 0, 2)))
    out = jnp.transpose(hs, (1, 0, 2)) @ w_fc + b_fc
    return out, (h_n[None], c_n[None])


def make_params(key, vocab_size, embedding_dim, hidden_dim):
    """Deterministic synthetic parameter init (PyTorch-like uniform scaling)."""
    ks = jax.random.split(key, 8)
    k = 1.0 / np.sqrt(hidden_dim)
    emb = jax.random.normal(ks[0], (vocab_size, embedding_dim), jnp.float32)
    w_ih = jax.random.uniform(ks[1], (embedding_dim, 4 * hidden_dim),
                              jnp.float32, -k, k)
    w_hh = jax.random.uniform(ks[2], (hidden_dim, 4 * hidden_dim),
                              jnp.float32, -k, k)
    b_ih = jax.random.uniform(ks[3], (4 * hidden_dim,), jnp.float32, -k, k)
    b_hh = jax.random.uniform(ks[4], (4 * hidden_dim,), jnp.float32, -k, k)
    w_fc = jax.random.uniform(ks[5], (hidden_dim, vocab_size),
                              jnp.float32, -k, k)
    b_fc = jax.random.uniform(ks[6], (vocab_size,), jnp.float32, -k, k)
    return {
        "embedding": emb,
        "w_ih": w_ih,                    # PyTorch gate order [i, f, g, o]
        "w_hh": w_hh,
        "b": (b_ih + b_hh)[None, :],
        "w_fc": w_fc,
        "b_fc": b_fc[None, :],
    }


if __name__ == "__main__":
    # Small shapes consistent with the module (char-level LM).
    vocab_size = 128
    embedding_dim = 128
    hidden_dim = 256
    batch = 8
    seq = 8

    key = jax.random.PRNGKey(0)
    kp, kx = jax.random.split(key)
    params = make_params(kp, vocab_size, embedding_dim, hidden_dim)
    kparams = prepare_kernel_params(params)
    tokens = jax.random.randint(kx, (batch, seq), 0, vocab_size, jnp.int32)

    logits, (h_n, c_n) = jax.jit(lstm_poet_forward)(tokens, kparams)
    jax.block_until_ready((logits, h_n, c_n))

    # Verify against the f32 pure-JAX reference of the PyTorch forward.
    # Tolerance loosened for the bf16 MXU operands (f32 accumulation + f32 state).
    ref_logits, (ref_h, ref_c) = reference_forward(tokens, params)
    np.testing.assert_allclose(np.asarray(logits), np.asarray(ref_logits),
                               atol=2e-2, rtol=2e-2)
    np.testing.assert_allclose(np.asarray(h_n), np.asarray(ref_h),
                               atol=2e-2, rtol=2e-2)
    np.testing.assert_allclose(np.asarray(c_n), np.asarray(ref_c),
                               atol=2e-2, rtol=2e-2)

    # TODO(synk): for B >= 16 on v7x, add a core-parallel batch split of the
    # recurrence across the two TensorCores (not worthwhile at B=8).
    print("KERNEL_OK")
</pallas_src>

<mosaic_0001>
module attributes {stable_mosaic.version = 11 : i64} {
  func.func @_fused_lstm_kernel(%arg0: i32, %arg1: memref<8x8x128xbf16, #tpu.memory_space<vmem>>, %arg2: memref<128x1024xbf16, #tpu.memory_space<vmem>>, %arg3: memref<256x1024xbf16, #tpu.memory_space<vmem>>, %arg4: memref<1x1024xf32, #tpu.memory_space<vmem>>, %arg5: memref<256x128xbf16, #tpu.memory_space<vmem>>, %arg6: memref<1x128xf32, #tpu.memory_space<vmem>>, %arg7: memref<8x8x128xf32, #tpu.memory_space<vmem>>, %arg8: memref<8x256xf32, #tpu.memory_space<vmem>>, %arg9: memref<8x256xf32, #tpu.memory_space<vmem>>, %arg10: memref<8x256xf32, #tpu.memory_space<vmem>>, %arg11: memref<8x256xf32, #tpu.memory_space<vmem>>, %arg12: memref<8x8x1024xf32, #tpu.memory_space<vmem>>, %arg13: memref<8x8x256xf32, #tpu.memory_space<vmem>>) attributes {dimension_semantics = [#tpu.dimension_semantics<arbitrary>], iteration_bounds = array<i64: 1>, scalar_prefetch = 0 : i64, scratch_operands = 4 : i64, tpu.core_type = #tpu.core_type<tc>, window_params = [{transform_indices = @transform_0, window_bounds = array<i64: 8, 8, 128>}, {pipeline_mode = #tpu.pipeline_mode<synchronous>, transform_indices = @transform_1, window_bounds = array<i64: 128, 1024>}, {pipeline_mode = #tpu.pipeline_mode<synchronous>, transform_indices = @transform_2, window_bounds = array<i64: 256, 1024>}, {pipeline_mode = #tpu.pipeline_mode<synchronous>, transform_indices = @transform_3, window_bounds = array<i64: 1, 1024>}, {pipeline_mode = #tpu.pipeline_mode<synchronous>, transform_indices = @transform_4, window_bounds = array<i64: 256, 128>}, {pipeline_mode = #tpu.pipeline_mode<synchronous>, transform_indices = @transform_5, window_bounds = array<i64: 1, 128>}, {transform_indices = @transform_6, window_bounds = array<i64: 8, 8, 128>}, {pipeline_mode = #tpu.pipeline_mode<synchronous>, transform_indices = @transform_7, window_bounds = array<i64: 8, 256>}, {pipeline_mode = #tpu.pipeline_mode<synchronous>, transform_indices = @transform_8, window_bounds = array<i64: 8, 256>}]} {
    %c0_i32 = arith.constant 0 : i32
    %0 = arith.cmpi eq, %arg0, %c0_i32 : i32
    %1 = arith.extui %0 : i1 to i32
    %c0_i32_0 = arith.constant 0 : i32
    %2 = arith.cmpi ne, %1, %c0_i32_0 : i32
    scf.if %2 {
      %cst_96 = arith.constant 0.000000e+00 : f32
      %245 = vector.broadcast %cst_96 : f32 to vector<8x256xf32>
      %c0_97 = arith.constant 0 : index
      %c0_98 = arith.constant 0 : index
      %246 = vector.load %arg10[%c0_97, %c0_98] : memref<8x256xf32, #tpu.memory_space<vmem>>, vector<8x256xf32>
      tpu.vector_store %arg10[%c0_97, %c0_98], %245 {strides = array<i32>} : memref<8x256xf32, #tpu.memory_space<vmem>>, vector<8x256xf32>,
      %cst_99 = arith.constant 0.000000e+00 : f32
      %247 = vector.broadcast %cst_99 : f32 to vector<8x256xf32>
      %c0_100 = arith.constant 0 : index
      %c0_101 = arith.constant 0 : index
      %248 = vector.load %arg11[%c0_100, %c0_101] : memref<8x256xf32, #tpu.memory_space<vmem>>, vector<8x256xf32>
      tpu.vector_store %arg11[%c0_100, %c0_101], %247 {strides = array<i32>} : memref<8x256xf32, #tpu.memory_space<vmem>>, vector<8x256xf32>,
    } else {
    }
    %c0 = arith.constant 0 : index
    %c0_1 = arith.constant 0 : index
    %c0_2 = arith.constant 0 : index
    %3 = vector.load %arg1[%c0, %c0_1, %c0_2] : memref<8x8x128xbf16, #tpu.memory_space<vmem>>, vector<8x8x128xbf16>
    %4 = vector.shape_cast %3 : vector<8x8x128xbf16> to vector<64x128xbf16>
    %c0_3 = arith.constant 0 : index
    %c0_4 = arith.constant 0 : index
    %5 = vector.load %arg2[%c0_3, %c0_4] : memref<128x1024xbf16, #tpu.memory_space<vmem>>, vector<128x1024xbf16>
    %cst = arith.constant dense<0.000000e+00> : vector<64x1024xf32>
    %6 = tpu.matmul %4, %5, %cst {dimension_numbers = #tpu.dot_dimension_numbers<[1], [0], [0], [1], [0, 0, 1, 1], [], []>} : vector<64x128xbf16>, vector<128x1024xbf16>, vector<64x1024xf32> -> vector<64x1024xf32>
    %c0_5 = arith.constant 0 : index
    %c0_6 = arith.constant 0 : index
    %7 = vector.load %arg4[%c0_5, %c0_6] : memref<1x1024xf32, #tpu.memory_space<vmem>>, vector<1x1024xf32>
    %8 = vector.broadcast %7 : vector<1x1024xf32> to vector<64x1024xf32>
    %9 = arith.addf %6, %8 : vector<64x1024xf32>
    %10 = vector.shape_cast %9 : vector<64x1024xf32> to vector<8x8x1024xf32>
    %c0_7 = arith.constant 0 : index
    %c0_8 = arith.constant 0 : index
    %c0_9 = arith.constant 0 : index
    %11 = vector.load %arg12[%c0_7, %c0_8, %c0_9] : memref<8x8x1024xf32, #tpu.memory_space<vmem>>, vector<8x8x1024xf32>
    tpu.vector_store %arg12[%c0_7, %c0_8, %c0_9], %10 {strides = array<i32>} : memref<8x8x1024xf32, #tpu.memory_space<vmem>>, vector<8x8x1024xf32>,
    %c0_10 = arith.constant 0 : index
    %c0_11 = arith.constant 0 : index
    %12 = vector.load %arg10[%c0_10, %c0_11] : memref<8x256xf32, #tpu.memory_space<vmem>>, vector<8x256xf32>
    %c0_12 = arith.constant 0 : index
    %c0_13 = arith.constant 0 : index
    %13 = vector.load %arg11[%c0_12, %c0_13] : memref<8x256xf32, #tpu.memory_space<vmem>>, vector<8x256xf32>
    %c0_i32_14 = arith.constant 0 : i32
    %14 = arith.index_cast %c0_i32_14 : i32 to index
    %c0_15 = arith.constant 0 : index
    %c0_16 = arith.constant 0 : index
    %15 = vector.load %arg12[%14, %c0_15, %c0_16] : memref<8x8x1024xf32, #tpu.memory_space<vmem>>, vector<1x8x1024xf32>
    %16 = vector.shape_cast %15 : vector<1x8x1024xf32> to vector<8x1024xf32>
    %17 = arith.truncf %12 : vector<8x256xf32> to vector<8x256xbf16>
    %c0_17 = arith.constant 0 : index
    %c0_18 = arith.constant 0 : index
    %18 = vector.load %arg3[%c0_17, %c0_18] : memref<256x1024xbf16, #tpu.memory_space<vmem>>, vector<256x1024xbf16>
    %cst_19 = arith.constant dense<0.000000e+00> : vector<8x1024xf32>
    %19 = tpu.matmul %17, %18, %cst_19 {dimension_numbers = #tpu.dot_dimension_numbers<[1], [0], [0], [1], [0, 0, 1, 1], [], []>} : vector<8x256xbf16>, vector<256x1024xbf16>, vector<8x1024xf32> -> vector<8x1024xf32>
    %20 = arith.addf %16, %19 : vector<8x1024xf32>
    %21 = vector.extract_strided_slice %20 {offsets = [0, 0], sizes = [8, 768], strides = [1, 1]} : vector<8x1024xf32> to vector<8x768xf32>
    %22 = arith.negf %21 : vector<8x768xf32>
    %23 = math.exp %22 : vector<8x768xf32>
    %cst_20 = arith.constant 1.000000e+00 : f32
    %24 = vector.broadcast %cst_20 : f32 to vector<8x768xf32>
    %25 = arith.addf %24, %23 : vector<8x768xf32>
    %26 = arith.divf %24, %25 : vector<8x768xf32>
    %27 = vector.extract_strided_slice %20 {offsets = [0, 768], sizes = [8, 256], strides = [1, 1]} : vector<8x1024xf32> to vector<8x256xf32>
    %28 = math.tanh %27 : vector<8x256xf32>
    %29 = vector.extract_strided_slice %26 {offsets = [0, 0], sizes = [8, 256], strides = [1, 1]} : vector<8x768xf32> to vector<8x256xf32>
    %30 = vector.extract_strided_slice %26 {offsets = [0, 256], sizes = [8, 256], strides = [1, 1]} : vector<8x768xf32> to vector<8x256xf32>
    %31 = vector.extract_strided_slice %26 {offsets = [0, 512], sizes = [8, 256], strides = [1, 1]} : vector<8x768xf32> to vector<8x256xf32>
    %32 = arith.mulf %30, %13 : vector<8x256xf32>
    %33 = arith.mulf %29, %28 : vector<8x256xf32>
    %34 = arith.addf %32, %33 : vector<8x256xf32>
    %35 = math.tanh %34 : vector<8x256xf32>
    %36 = arith.mulf %31, %35 : vector<8x256xf32>
    %37 = arith.index_cast %c0_i32_14 : i32 to index
    %c0_21 = arith.constant 0 : index
    %c0_22 = arith.constant 0 : index
    %38 = vector.load %arg13[%37, %c0_21, %c0_22] : memref<8x8x256xf32, #tpu.memory_space<vmem>>, vector<1x8x256xf32>
    %39 = vector.shape_cast %38 : vector<1x8x256xf32> to vector<8x256xf32>
    %40 = vector.shape_cast %36 : vector<8x256xf32> to vector<1x8x256xf32>
    tpu.vector_store %arg13[%37, %c0_21, %c0_22], %40 {strides = array<i32>} : memref<8x8x256xf32, #tpu.memory_space<vmem>>, vector<1x8x256xf32>,
    %c1_i32 = arith.constant 1 : i32
    %41 = arith.index_cast %c1_i32 : i32 to index
    %c0_23 = arith.constant 0 : index
    %c0_24 = arith.constant 0 : index
    %42 = vector.load %arg12[%41, %c0_23, %c0_24] : memref<8x8x1024xf32, #tpu.memory_space<vmem>>, vector<1x8x1024xf32>
    %43 = vector.shape_cast %42 : vector<1x8x1024xf32> to vector<8x1024xf32>
    %44 = arith.truncf %36 : vector<8x256xf32> to vector<8x256xbf16>
    %c0_25 = arith.constant 0 : index
    %c0_26 = arith.constant 0 : index
    %45 = vector.load %arg3[%c0_25, %c0_26] : memref<256x1024xbf16, #tpu.memory_space<vmem>>, vector<256x1024xbf16>
    %cst_27 = arith.constant dense<0.000000e+00> : vector<8x1024xf32>
    %46 = tpu.matmul %44, %45, %cst_27 {dimension_numbers = #tpu.dot_dimension_numbers<[1], [0], [0], [1], [0, 0, 1, 1], [], []>} : vector<8x256xbf16>, vector<256x1024xbf16>, vector<8x1024xf32> -> vector<8x1024xf32>
    %47 = arith.addf %43, %46 : vector<8x1024xf32>
    %48 = vector.extract_strided_slice %47 {offsets = [0, 0], sizes = [8, 768], strides = [1, 1]} : vector<8x1024xf32> to vector<8x768xf32>
    %49 = arith.negf %48 : vector<8x768xf32>
    %50 = math.exp %49 : vector<8x768xf32>
    %cst_28 = arith.constant 1.000000e+00 : f32
    %51 = vector.broadcast %cst_28 : f32 to vector<8x768xf32>
    %52 = arith.addf %51, %50 : vector<8x768xf32>
    %53 = arith.divf %51, %52 : vector<8x768xf32>
    %54 = vector.extract_strided_slice %47 {offsets = [0, 768], sizes = [8, 256], strides = [1, 1]} : vector<8x1024xf32> to vector<8x256xf32>
    %55 = math.tanh %54 : vector<8x256xf32>
    %56 = vector.extract_strided_slice %53 {offsets = [0, 0], sizes = [8, 256], strides = [1, 1]} : vector<8x768xf32> to vector<8x256xf32>
    %57 = vector.extract_strided_slice %53 {offsets = [0, 256], sizes = [8, 256], strides = [1, 1]} : vector<8x768xf32> to vector<8x256xf32>
    %58 = vector.extract_strided_slice %53 {offsets = [0, 512], sizes = [8, 256], strides = [1, 1]} : vector<8x768xf32> to vector<8x256xf32>
    %59 = arith.mulf %57, %34 : vector<8x256xf32>
    %60 = arith.mulf %56, %55 : vector<8x256xf32>
    %61 = arith.addf %59, %60 : vector<8x256xf32>
    %62 = math.tanh %61 : vector<8x256xf32>
    %63 = arith.mulf %58, %62 : vector<8x256xf32>
    %64 = arith.index_cast %c1_i32 : i32 to index
    %c0_29 = arith.constant 0 : index
    %c0_30 = arith.constant 0 : index
    %65 = vector.load %arg13[%64, %c0_29, %c0_30] : memref<8x8x256xf32, #tpu.memory_space<vmem>>, vector<1x8x256xf32>
    %66 = vector.shape_cast %65 : vector<1x8x256xf32> to vector<8x256xf32>
    %67 = vector.shape_cast %63 : vector<8x256xf32> to vector<1x8x256xf32>
    tpu.vector_store %arg13[%64, %c0_29, %c0_30], %67 {strides = array<i32>} : memref<8x8x256xf32, #tpu.memory_space<vmem>>, vector<1x8x256xf32>,
    %c2_i32 = arith.constant 2 : i32
    %68 = arith.index_cast %c2_i32 : i32 to index
    %c0_31 = arith.constant 0 : index
    %c0_32 = arith.constant 0 : index
    %69 = vector.load %arg12[%68, %c0_31, %c0_32] : memref<8x8x1024xf32, #tpu.memory_space<vmem>>, vector<1x8x1024xf32>
    %70 = vector.shape_cast %69 : vector<1x8x1024xf32> to vector<8x1024xf32>
    %71 = arith.truncf %63 : vector<8x256xf32> to vector<8x256xbf16>
    %c0_33 = arith.constant 0 : index
    %c0_34 = arith.constant 0 : index
    %72 = vector.load %arg3[%c0_33, %c0_34] : memref<256x1024xbf16, #tpu.memory_space<vmem>>, vector<256x1024xbf16>
    %cst_35 = arith.constant dense<0.000000e+00> : vector<8x1024xf32>
    %73 = tpu.matmul %71, %72, %cst_35 {dimension_numbers = #tpu.dot_dimension_numbers<[1], [0], [0], [1], [0, 0, 1, 1], [], []>} : vector<8x256xbf16>, vector<256x1024xbf16>, vector<8x1024xf32> -> vector<8x1024xf32>
    %74 = arith.addf %70, %73 : vector<8x1024xf32>
    %75 = vector.extract_strided_slice %74 {offsets = [0, 0], sizes = [8, 768], strides = [1, 1]} : vector<8x1024xf32> to vector<8x768xf32>
    %76 = arith.negf %75 : vector<8x768xf32>
    %77 = math.exp %76 : vector<8x768xf32>
    %cst_36 = arith.constant 1.000000e+00 : f32
    %78 = vector.broadcast %cst_36 : f32 to vector<8x768xf32>
    %79 = arith.addf %78, %77 : vector<8x768xf32>
    %80 = arith.divf %78, %79 : vector<8x768xf32>
    %81 = vector.extract_strided_slice %74 {offsets = [0, 768], sizes = [8, 256], strides = [1, 1]} : vector<8x1024xf32> to vector<8x256xf32>
    %82 = math.tanh %81 : vector<8x256xf32>
    %83 = vector.extract_strided_slice %80 {offsets = [0, 0], sizes = [8, 256], strides = [1, 1]} : vector<8x768xf32> to vector<8x256xf32>
    %84 = vector.extract_strided_slice %80 {offsets = [0, 256], sizes = [8, 256], strides = [1, 1]} : vector<8x768xf32> to vector<8x256xf32>
    %85 = vector.extract_strided_slice %80 {offsets = [0, 512], sizes = [8, 256], strides = [1, 1]} : vector<8x768xf32> to vector<8x256xf32>
    %86 = arith.mulf %84, %61 : vector<8x256xf32>
    %87 = arith.mulf %83, %82 : vector<8x256xf32>
    %88 = arith.addf %86, %87 : vector<8x256xf32>
    %89 = math.tanh %88 : vector<8x256xf32>
    %90 = arith.mulf %85, %89 : vector<8x256xf32>
    %91 = arith.index_cast %c2_i32 : i32 to index
    %c0_37 = arith.constant 0 : index
    %c0_38 = arith.constant 0 : index
    %92 = vector.load %arg13[%91, %c0_37, %c0_38] : memref<8x8x256xf32, #tpu.memory_space<vmem>>, vector<1x8x256xf32>
    %93 = vector.shape_cast %92 : vector<1x8x256xf32> to vector<8x256xf32>
    %94 = vector.shape_cast %90 : vector<8x256xf32> to vector<1x8x256xf32>
    tpu.vector_store %arg13[%91, %c0_37, %c0_38], %94 {strides = array<i32>} : memref<8x8x256xf32, #tpu.memory_space<vmem>>, vector<1x8x256xf32>,
    %c3_i32 = arith.constant 3 : i32
    %95 = arith.index_cast %c3_i32 : i32 to index
    %c0_39 = arith.constant 0 : index
    %c0_40 = arith.constant 0 : index
    %96 = vector.load %arg12[%95, %c0_39, %c0_40] : memref<8x8x1024xf32, #tpu.memory_space<vmem>>, vector<1x8x1024xf32>
    %97 = vector.shape_cast %96 : vector<1x8x1024xf32> to vector<8x1024xf32>
    %98 = arith.truncf %90 : vector<8x256xf32> to vector<8x256xbf16>
    %c0_41 = arith.constant 0 : index
    %c0_42 = arith.constant 0 : index
    %99 = vector.load %arg3[%c0_41, %c0_42] : memref<256x1024xbf16, #tpu.memory_space<vmem>>, vector<256x1024xbf16>
    %cst_43 = arith.constant dense<0.000000e+00> : vector<8x1024xf32>
    %100 = tpu.matmul %98, %99, %cst_43 {dimension_numbers = #tpu.dot_dimension_numbers<[1], [0], [0], [1], [0, 0, 1, 1], [], []>} : vector<8x256xbf16>, vector<256x1024xbf16>, vector<8x1024xf32> -> vector<8x1024xf32>
    %101 = arith.addf %97, %100 : vector<8x1024xf32>
    %102 = vector.extract_strided_slice %101 {offsets = [0, 0], sizes = [8, 768], strides = [1, 1]} : vector<8x1024xf32> to vector<8x768xf32>
    %103 = arith.negf %102 : vector<8x768xf32>
    %104 = math.exp %103 : vector<8x768xf32>
    %cst_44 = arith.constant 1.000000e+00 : f32
    %105 = vector.broadcast %cst_44 : f32 to vector<8x768xf32>
    %106 = arith.addf %105, %104 : vector<8x768xf32>
    %107 = arith.divf %105, %106 : vector<8x768xf32>
    %108 = vector.extract_strided_slice %101 {offsets = [0, 768], sizes = [8, 256], strides = [1, 1]} : vector<8x1024xf32> to vector<8x256xf32>
    %109 = math.tanh %108 : vector<8x256xf32>
    %110 = vector.extract_strided_slice %107 {offsets = [0, 0], sizes = [8, 256], strides = [1, 1]} : vector<8x768xf32> to vector<8x256xf32>
    %111 = vector.extract_strided_slice %107 {offsets = [0, 256], sizes = [8, 256], strides = [1, 1]} : vector<8x768xf32> to vector<8x256xf32>
    %112 = vector.extract_strided_slice %107 {offsets = [0, 512], sizes = [8, 256], strides = [1, 1]} : vector<8x768xf32> to vector<8x256xf32>
    %113 = arith.mulf %111, %88 : vector<8x256xf32>
    %114 = arith.mulf %110, %109 : vector<8x256xf32>
    %115 = arith.addf %113, %114 : vector<8x256xf32>
    %116 = math.tanh %115 : vector<8x256xf32>
    %117 = arith.mulf %112, %116 : vector<8x256xf32>
    %118 = arith.index_cast %c3_i32 : i32 to index
    %c0_45 = arith.constant 0 : index
    %c0_46 = arith.constant 0 : index
    %119 = vector.load %arg13[%118, %c0_45, %c0_46] : memref<8x8x256xf32, #tpu.memory_space<vmem>>, vector<1x8x256xf32>
    %120 = vector.shape_cast %119 : vector<1x8x256xf32> to vector<8x256xf32>
    %121 = vector.shape_cast %117 : vector<8x256xf32> to vector<1x8x256xf32>
    tpu.vector_store %arg13[%118, %c0_45, %c0_46], %121 {strides = array<i32>} : memref<8x8x256xf32, #tpu.memory_space<vmem>>, vector<1x8x256xf32>,
    %c4_i32 = arith.constant 4 : i32
    %122 = arith.index_cast %c4_i32 : i32 to index
    %c0_47 = arith.constant 0 : index
    %c0_48 = arith.constant 0 : index
    %123 = vector.load %arg12[%122, %c0_47, %c0_48] : memref<8x8x1024xf32, #tpu.memory_space<vmem>>, vector<1x8x1024xf32>
    %124 = vector.shape_cast %123 : vector<1x8x1024xf32> to vector<8x1024xf32>
    %125 = arith.truncf %117 : vector<8x256xf32> to vector<8x256xbf16>
    %c0_49 = arith.constant 0 : index
    %c0_50 = arith.constant 0 : index
    %126 = vector.load %arg3[%c0_49, %c0_50] : memref<256x1024xbf16, #tpu.memory_space<vmem>>, vector<256x1024xbf16>
    %cst_51 = arith.constant dense<0.000000e+00> : vector<8x1024xf32>
    %127 = tpu.matmul %125, %126, %cst_51 {dimension_numbers = #tpu.dot_dimension_numbers<[1], [0], [0], [1], [0, 0, 1, 1], [], []>} : vector<8x256xbf16>, vector<256x1024xbf16>, vector<8x1024xf32> -> vector<8x1024xf32>
    %128 = arith.addf %124, %127 : vector<8x1024xf32>
    %129 = vector.extract_strided_slice %128 {offsets = [0, 0], sizes = [8, 768], strides = [1, 1]} : vector<8x1024xf32> to vector<8x768xf32>
    %130 = arith.negf %129 : vector<8x768xf32>
    %131 = math.exp %130 : vector<8x768xf32>
    %cst_52 = arith.constant 1.000000e+00 : f32
    %132 = vector.broadcast %cst_52 : f32 to vector<8x768xf32>
    %133 = arith.addf %132, %131 : vector<8x768xf32>
    %134 = arith.divf %132, %133 : vector<8x768xf32>
    %135 = vector.extract_strided_slice %128 {offsets = [0, 768], sizes = [8, 256], strides = [1, 1]} : vector<8x1024xf32> to vector<8x256xf32>
    %136 = math.tanh %135 : vector<8x256xf32>
    %137 = vector.extract_strided_slice %134 {offsets = [0, 0], sizes = [8, 256], strides = [1, 1]} : vector<8x768xf32> to vector<8x256xf32>
    %138 = vector.extract_strided_slice %134 {offsets = [0, 256], sizes = [8, 256], strides = [1, 1]} : vector<8x768xf32> to vector<8x256xf32>
    %139 = vector.extract_strided_slice %134 {offsets = [0, 512], sizes = [8, 256], strides = [1, 1]} : vector<8x768xf32> to vector<8x256xf32>
    %140 = arith.mulf %138, %115 : vector<8x256xf32>
    %141 = arith.mulf %137, %136 : vector<8x256xf32>
    %142 = arith.addf %140, %141 : vector<8x256xf32>
    %143 = math.tanh %142 : vector<8x256xf32>
    %144 = arith.mulf %139, %143 : vector<8x256xf32>
    %145 = arith.index_cast %c4_i32 : i32 to index
    %c0_53 = arith.constant 0 : index
    %c0_54 = arith.constant 0 : index
    %146 = vector.load %arg13[%145, %c0_53, %c0_54] : memref<8x8x256xf32, #tpu.memory_space<vmem>>, vector<1x8x256xf32>
    %147 = vector.shape_cast %146 : vector<1x8x256xf32> to vector<8x256xf32>
    %148 = vector.shape_cast %144 : vector<8x256xf32> to vector<1x8x256xf32>
    tpu.vector_store %arg13[%145, %c0_53, %c0_54], %148 {strides = array<i32>} : memref<8x8x256xf32, #tpu.memory_space<vmem>>, vector<1x8x256xf32>,
    %c5_i32 = arith.constant 5 : i32
    %149 = arith.index_cast %c5_i32 : i32 to index
    %c0_55 = arith.constant 0 : index
    %c0_56 = arith.constant 0 : index
    %150 = vector.load %arg12[%149, %c0_55, %c0_56] : memref<8x8x1024xf32, #tpu.memory_space<vmem>>, vector<1x8x1024xf32>
    %151 = vector.shape_cast %150 : vector<1x8x1024xf32> to vector<8x1024xf32>
    %152 = arith.truncf %144 : vector<8x256xf32> to vector<8x256xbf16>
    %c0_57 = arith.constant 0 : index
    %c0_58 = arith.constant 0 : index
    %153 = vector.load %arg3[%c0_57, %c0_58] : memref<256x1024xbf16, #tpu.memory_space<vmem>>, vector<256x1024xbf16>
    %cst_59 = arith.constant dense<0.000000e+00> : vector<8x1024xf32>
    %154 = tpu.matmul %152, %153, %cst_59 {dimension_numbers = #tpu.dot_dimension_numbers<[1], [0], [0], [1], [0, 0, 1, 1], [], []>} : vector<8x256xbf16>, vector<256x1024xbf16>, vector<8x1024xf32> -> vector<8x1024xf32>
    %155 = arith.addf %151, %154 : vector<8x1024xf32>
    %156 = vector.extract_strided_slice %155 {offsets = [0, 0], sizes = [8, 768], strides = [1, 1]} : vector<8x1024xf32> to vector<8x768xf32>
    %157 = arith.negf %156 : vector<8x768xf32>
    %158 = math.exp %157 : vector<8x768xf32>
    %cst_60 = arith.constant 1.000000e+00 : f32
    %159 = vector.broadcast %cst_60 : f32 to vector<8x768xf32>
    %160 = arith.addf %159, %158 : vector<8x768xf32>
    %161 = arith.divf %159, %160 : vector<8x768xf32>
    %162 = vector.extract_strided_slice %155 {offsets = [0, 768], sizes = [8, 256], strides = [1, 1]} : vector<8x1024xf32> to vector<8x256xf32>
    %163 = math.tanh %162 : vector<8x256xf32>
    %164 = vector.extract_strided_slice %161 {offsets = [0, 0], sizes = [8, 256], strides = [1, 1]} : vector<8x768xf32> to vector<8x256xf32>
    %165 = vector.extract_strided_slice %161 {offsets = [0, 256], sizes = [8, 256], strides = [1, 1]} : vector<8x768xf32> to vector<8x256xf32>
    %166 = vector.extract_strided_slice %161 {offsets = [0, 512], sizes = [8, 256], strides = [1, 1]} : vector<8x768xf32> to vector<8x256xf32>
    %167 = arith.mulf %165, %142 : vector<8x256xf32>
    %168 = arith.mulf %164, %163 : vector<8x256xf32>
    %169 = arith.addf %167, %168 : vector<8x256xf32>
    %170 = math.tanh %169 : vector<8x256xf32>
    %171 = arith.mulf %166, %170 : vector<8x256xf32>
    %172 = arith.index_cast %c5_i32 : i32 to index
    %c0_61 = arith.constant 0 : index
    %c0_62 = arith.constant 0 : index
    %173 = vector.load %arg13[%172, %c0_61, %c0_62] : memref<8x8x256xf32, #tpu.memory_space<vmem>>, vector<1x8x256xf32>
    %174 = vector.shape_cast %173 : vector<1x8x256xf32> to vector<8x256xf32>
    %175 = vector.shape_cast %171 : vector<8x256xf32> to vector<1x8x256xf32>
    tpu.vector_store %arg13[%172, %c0_61, %c0_62], %175 {strides = array<i32>} : memref<8x8x256xf32, #tpu.memory_space<vmem>>, vector<1x8x256xf32>,
    %c6_i32 = arith.constant 6 : i32
    %176 = arith.index_cast %c6_i32 : i32 to index
    %c0_63 = arith.constant 0 : index
    %c0_64 = arith.constant 0 : index
    %177 = vector.load %arg12[%176, %c0_63, %c0_64] : memref<8x8x1024xf32, #tpu.memory_space<vmem>>, vector<1x8x1024xf32>
    %178 = vector.shape_cast %177 : vector<1x8x1024xf32> to vector<8x1024xf32>
    %179 = arith.truncf %171 : vector<8x256xf32> to vector<8x256xbf16>
    %c0_65 = arith.constant 0 : index
    %c0_66 = arith.constant 0 : index
    %180 = vector.load %arg3[%c0_65, %c0_66] : memref<256x1024xbf16, #tpu.memory_space<vmem>>, vector<256x1024xbf16>
    %cst_67 = arith.constant dense<0.000000e+00> : vector<8x1024xf32>
    %181 = tpu.matmul %179, %180, %cst_67 {dimension_numbers = #tpu.dot_dimension_numbers<[1], [0], [0], [1], [0, 0, 1, 1], [], []>} : vector<8x256xbf16>, vector<256x1024xbf16>, vector<8x1024xf32> -> vector<8x1024xf32>
    %182 = arith.addf %178, %181 : vector<8x1024xf32>
    %183 = vector.extract_strided_slice %182 {offsets = [0, 0], sizes = [8, 768], strides = [1, 1]} : vector<8x1024xf32> to vector<8x768xf32>
    %184 = arith.negf %183 : vector<8x768xf32>
    %185 = math.exp %184 : vector<8x768xf32>
    %cst_68 = arith.constant 1.000000e+00 : f32
    %186 = vector.broadcast %cst_68 : f32 to vector<8x768xf32>
    %187 = arith.addf %186, %185 : vector<8x768xf32>
    %188 = arith.divf %186, %187 : vector<8x768xf32>
    %189 = vector.extract_strided_slice %182 {offsets = [0, 768], sizes = [8, 256], strides = [1, 1]} : vector<8x1024xf32> to vector<8x256xf32>
    %190 = math.tanh %189 : vector<8x256xf32>
    %191 = vector.extract_strided_slice %188 {offsets = [0, 0], sizes = [8, 256], strides = [1, 1]} : vector<8x768xf32> to vector<8x256xf32>
    %192 = vector.extract_strided_slice %188 {offsets = [0, 256], sizes = [8, 256], strides = [1, 1]} : vector<8x768xf32> to vector<8x256xf32>
    %193 = vector.extract_strided_slice %188 {offsets = [0, 512], sizes = [8, 256], strides = [1, 1]} : vector<8x768xf32> to vector<8x256xf32>
    %194 = arith.mulf %192, %169 : vector<8x256xf32>
    %195 = arith.mulf %191, %190 : vector<8x256xf32>
    %196 = arith.addf %194, %195 : vector<8x256xf32>
    %197 = math.tanh %196 : vector<8x256xf32>
    %198 = arith.mulf %193, %197 : vector<8x256xf32>
    %199 = arith.index_cast %c6_i32 : i32 to index
    %c0_69 = arith.constant 0 : index
    %c0_70 = arith.constant 0 : index
    %200 = vector.load %arg13[%199, %c0_69, %c0_70] : memref<8x8x256xf32, #tpu.memory_space<vmem>>, vector<1x8x256xf32>
    %201 = vector.shape_cast %200 : vector<1x8x256xf32> to vector<8x256xf32>
    %202 = vector.shape_cast %198 : vector<8x256xf32> to vector<1x8x256xf32>
    tpu.vector_store %arg13[%199, %c0_69, %c0_70], %202 {strides = array<i32>} : memref<8x8x256xf32, #tpu.memory_space<vmem>>, vector<1x8x256xf32>,
    %c7_i32 = arith.constant 7 : i32
    %203 = arith.index_cast %c7_i32 : i32 to index
    %c0_71 = arith.constant 0 : index
    %c0_72 = arith.constant 0 : index
    %204 = vector.load %arg12[%203, %c0_71, %c0_72] : memref<8x8x1024xf32, #tpu.memory_space<vmem>>, vector<1x8x1024xf32>
    %205 = vector.shape_cast %204 : vector<1x8x1024xf32> to vector<8x1024xf32>
    %206 = arith.truncf %198 : vector<8x256xf32> to vector<8x256xbf16>
    %c0_73 = arith.constant 0 : index
    %c0_74 = arith.constant 0 : index
    %207 = vector.load %arg3[%c0_73, %c0_74] : memref<256x1024xbf16, #tpu.memory_space<vmem>>, vector<256x1024xbf16>
    %cst_75 = arith.constant dense<0.000000e+00> : vector<8x1024xf32>
    %208 = tpu.matmul %206, %207, %cst_75 {dimension_numbers = #tpu.dot_dimension_numbers<[1], [0], [0], [1], [0, 0, 1, 1], [], []>} : vector<8x256xbf16>, vector<256x1024xbf16>, vector<8x1024xf32> -> vector<8x1024xf32>
    %209 = arith.addf %205, %208 : vector<8x1024xf32>
    %210 = vector.extract_strided_slice %209 {offsets = [0, 0], sizes = [8, 768], strides = [1, 1]} : vector<8x1024xf32> to vector<8x768xf32>
    %211 = arith.negf %210 : vector<8x768xf32>
    %212 = math.exp %211 : vector<8x768xf32>
    %cst_76 = arith.constant 1.000000e+00 : f32
    %213 = vector.broadcast %cst_76 : f32 to vector<8x768xf32>
    %214 = arith.addf %213, %212 : vector<8x768xf32>
    %215 = arith.divf %213, %214 : vector<8x768xf32>
    %216 = vector.extract_strided_slice %209 {offsets = [0, 768], sizes = [8, 256], strides = [1, 1]} : vector<8x1024xf32> to vector<8x256xf32>
    %217 = math.tanh %216 : vector<8x256xf32>
    %218 = vector.extract_strided_slice %215 {offsets = [0, 0], sizes = [8, 256], strides = [1, 1]} : vector<8x768xf32> to vector<8x256xf32>
    %219 = vector.extract_strided_slice %215 {offsets = [0, 256], sizes = [8, 256], strides = [1, 1]} : vector<8x768xf32> to vector<8x256xf32>
    %220 = vector.extract_strided_slice %215 {offsets = [0, 512], sizes = [8, 256], strides = [1, 1]} : vector<8x768xf32> to vector<8x256xf32>
    %221 = arith.mulf %219, %196 : vector<8x256xf32>
    %222 = arith.mulf %218, %217 : vector<8x256xf32>
    %223 = arith.addf %221, %222 : vector<8x256xf32>
    %224 = math.tanh %223 : vector<8x256xf32>
    %225 = arith.mulf %220, %224 : vector<8x256xf32>
    %226 = arith.index_cast %c7_i32 : i32 to index
    %c0_77 = arith.constant 0 : index
    %c0_78 = arith.constant 0 : index
    %227 = vector.load %arg13[%226, %c0_77, %c0_78] : memref<8x8x256xf32, #tpu.memory_space<vmem>>, vector<1x8x256xf32>
    %228 = vector.shape_cast %227 : vector<1x8x256xf32> to vector<8x256xf32>
    %229 = vector.shape_cast %225 : vector<8x256xf32> to vector<1x8x256xf32>
    tpu.vector_store %arg13[%226, %c0_77, %c0_78], %229 {strides = array<i32>} : memref<8x8x256xf32, #tpu.memory_space<vmem>>, vector<1x8x256xf32>,
    %c8_i32 = arith.constant 8 : i32
    %c0_79 = arith.constant 0 : index
    %c0_80 = arith.constant 0 : index
    %230 = vector.load %arg10[%c0_79, %c0_80] : memref<8x256xf32, #tpu.memory_space<vmem>>, vector<8x256xf32>
    tpu.vector_store %arg10[%c0_79, %c0_80], %225 {strides = array<i32>} : memref<8x256xf32, #tpu.memory_space<vmem>>, vector<8x256xf32>,
    %c0_81 = arith.constant 0 : index
    %c0_82 = arith.constant 0 : index
    %231 = vector.load %arg11[%c0_81, %c0_82] : memref<8x256xf32, #tpu.memory_space<vmem>>, vector<8x256xf32>
    tpu.vector_store %arg11[%c0_81, %c0_82], %223 {strides = array<i32>} : memref<8x256xf32, #tpu.memory_space<vmem>>, vector<8x256xf32>,
    %c0_83 = arith.constant 0 : index
    %c0_84 = arith.constant 0 : index
    %c0_85 = arith.constant 0 : index
    %232 = vector.load %arg13[%c0_83, %c0_84, %c0_85] : memref<8x8x256xf32, #tpu.memory_space<vmem>>, vector<8x8x256xf32>
    %233 = vector.shape_cast %232 : vector<8x8x256xf32> to vector<64x256xf32>
    %234 = arith.truncf %233 : vector<64x256xf32> to vector<64x256xbf16>
    %c0_86 = arith.constant 0 : index
    %c0_87 = arith.constant 0 : index
    %235 = vector.load %arg5[%c0_86, %c0_87] : memref<256x128xbf16, #tpu.memory_space<vmem>>, vector<256x128xbf16>
    %cst_88 = arith.constant dense<0.000000e+00> : vector<64x128xf32>
    %236 = tpu.matmul %234, %235, %cst_88 {dimension_numbers = #tpu.dot_dimension_numbers<[1], [0], [0], [1], [0, 0, 1, 1], [], []>} : vector<64x256xbf16>, vector<256x128xbf16>, vector<64x128xf32> -> vector<64x128xf32>
    %c0_89 = arith.constant 0 : index
    %c0_90 = arith.constant 0 : index
    %237 = vector.load %arg6[%c0_89, %c0_90] : memref<1x128xf32, #tpu.memory_space<vmem>>, vector<1x128xf32>
    %238 = vector.broadcast %237 : vector<1x128xf32> to vector<64x128xf32>
    %239 = arith.addf %236, %238 : vector<64x128xf32>
    %240 = vector.shape_cast %239 : vector<64x128xf32> to vector<8x8x128xf32>
    %c0_91 = arith.constant 0 : index
    %c0_92 = arith.constant 0 : index
    %c0_93 = arith.constant 0 : index
    %241 = vector.load %arg7[%c0_91, %c0_92, %c0_93] : memref<8x8x128xf32, #tpu.memory_space<vmem>>, vector<8x8x128xf32>
    tpu.vector_store %arg7[%c0_91, %c0_92, %c0_93], %240 {strides = array<i32>} : memref<8x8x128xf32, #tpu.memory_space<vmem>>, vector<8x8x128xf32>,
    %c0_i32_94 = arith.constant 0 : i32
    %242 = arith.cmpi eq, %arg0, %c0_i32_94 : i32
    %243 = arith.extui %242 : i1 to i32
    %c0_i32_95 = arith.constant 0 : i32
    %244 = arith.cmpi ne, %243, %c0_i32_95 : i32
    scf.if %244 {
      %c0_96 = arith.constant 0 : index
      %c0_97 = arith.constant 0 : index
      %245 = vector.load %arg8[%c0_96, %c0_97] : memref<8x256xf32, #tpu.memory_space<vmem>>, vector<8x256xf32>
      tpu.vector_store %arg8[%c0_96, %c0_97], %225 {strides = array<i32>} : memref<8x256xf32, #tpu.memory_space<vmem>>, vector<8x256xf32>,
      %c0_98 = arith.constant 0 : index
      %c0_99 = arith.constant 0 : index
      %246 = vector.load %arg9[%c0_98, %c0_99] : memref<8x256xf32, #tpu.memory_space<vmem>>, vector<8x256xf32>
      tpu.vector_store %arg9[%c0_98, %c0_99], %223 {strides = array<i32>} : memref<8x256xf32, #tpu.memory_space<vmem>>, vector<8x256xf32>,
    } else {
    }
    return
  }
  func.func @transform_0(%arg0: i32) -> (i32, i32, i32) {
    %c0_i32 = arith.constant 0 : i32
    %c0_i32_0 = arith.constant 0 : i32
    %c0_i32_1 = arith.constant 0 : i32
    return %arg0, %c0_i32, %c0_i32_0 : i32, i32, i32
  }
  func.func @transform_1(%arg0: i32) -> (i32, i32) {
    %c0_i32 = arith.constant 0 : i32
    %c0_i32_0 = arith.constant 0 : i32
    %c0_i32_1 = arith.constant 0 : i32
    return %c0_i32, %c0_i32_0 : i32, i32
  }
  func.func @transform_2(%arg0: i32) -> (i32, i32) {
    %c0_i32 = arith.constant 0 : i32
    %c0_i32_0 = arith.constant 0 : i32
    %c0_i32_1 = arith.constant 0 : i32
    return %c0_i32, %c0_i32_0 : i32, i32
  }
  func.func @transform_3(%arg0: i32) -> (i32, i32) {
    %c0_i32 = arith.constant 0 : i32
    %c0_i32_0 = arith.constant 0 : i32
    %c0_i32_1 = arith.constant 0 : i32
    return %c0_i32, %c0_i32_0 : i32, i32
  }
  func.func @transform_4(%arg0: i32) -> (i32, i32) {
    %c0_i32 = arith.constant 0 : i32
    %c0_i32_0 = arith.constant 0 : i32
    %c0_i32_1 = arith.constant 0 : i32
    return %c0_i32, %c0_i32_0 : i32, i32
  }
  func.func @transform_5(%arg0: i32) -> (i32, i32) {
    %c0_i32 = arith.constant 0 : i32
    %c0_i32_0 = arith.constant 0 : i32
    %c0_i32_1 = arith.constant 0 : i32
    return %c0_i32, %c0_i32_0 : i32, i32
  }
  func.func @transform_6(%arg0: i32) -> (i32, i32, i32) {
    %c0_i32 = arith.constant 0 : i32
    %c0_i32_0 = arith.constant 0 : i32
    %c0_i32_1 = arith.constant 0 : i32
    return %arg0, %c0_i32, %c0_i32_0 : i32, i32, i32
  }
  func.func @transform_7(%arg0: i32) -> (i32, i32) {
    %c0_i32 = arith.constant 0 : i32
    %c0_i32_0 = arith.constant 0 : i32
    %c0_i32_1 = arith.constant 0 : i32
    return %c0_i32, %c0_i32_0 : i32, i32
  }
  func.func @transform_8(%arg0: i32) -> (i32, i32) {
    %c0_i32 = arith.constant 0 : i32
    %c0_i32_0 = arith.constant 0 : i32
    %c0_i32_1 = arith.constant 0 : i32
    return %c0_i32, %c0_i32_0 : i32, i32
  }
}

</mosaic_0001>

<llo_original>
// kernel: lstm_poet_forward.1
$region0: #{lstm_poet_forward.1}
  #allocation0 [shape = 'u32[]', space=smem, size = 0x4, offset = 0x4, fixed_abs, tag = 'smem constant byte address 0x4 - core index']
  #allocation1 [shape = 'u32[144,128]{1,0:T(1,128)}', space=vmem, size = 0x12000, scoped, tag = 'internal scratch']
  #allocation2 [shape = 'f32[8,256]{1,0:T(8,128)}', space=vmem, size = 0x2000, scoped, tag = 'scratch operand']
  #allocation3 [shape = 'f32[8,256]{1,0:T(8,128)}', space=vmem, size = 0x2000, scoped, tag = 'scratch operand']
  #allocation4 [shape = 'f32[8,8,1024]{2,1,0:T(8,128)}', space=vmem, size = 0x40000, scoped, tag = 'scratch operand']
  #allocation5 [shape = 'f32[8,8,256]{2,1,0:T(8,128)}', space=vmem, size = 0x10000, scoped, tag = 'scratch operand']
  %s0 = inlined_call_operand.vmem [shape: bf16[8,8,128], index: 0, kind: input, shape index: {}]
  %s1 = inlined_call_operand.hbm [shape: bf16[128,1024], index: 1, kind: input, shape index: {}]
  %s2 = inlined_call_operand.hbm [shape: bf16[256,1024], index: 2, kind: input, shape index: {}]
  %s3 = inlined_call_operand.vmem [shape: f32[1,1024], index: 3, kind: input, shape index: {}]
  %s4 = inlined_call_operand.vmem [shape: bf16[256,128], index: 4, kind: input, shape index: {}]
  %s5 = inlined_call_operand.vmem [shape: f32[1,128], index: 5, kind: input, shape index: {}]
  %s6 = inlined_call_operand.vmem [shape: f32[8,8,128], index: 6, kind: output, shape index: {0}]
  %s7 = inlined_call_operand.hbm [shape: f32[8,256], index: 7, kind: output, shape index: {1}]
  %s8 = inlined_call_operand.hbm [shape: f32[8,256], index: 8, kind: output, shape index: {2}]
  %9 = xla_tuple %s6, %s7, %s8
  %s10 = sld [smem:[#allocation0]]
  $region66: #{lstm_poet_forward.1} parent=0
    _
  %s12 = ssub.s32 1, %s10
  %s13 = scalar_select 0, %s12, %s10
  $region1: #{lstm_poet_forward.1} parent=0
    #allocation6 [shape = 'u8[262144]{0}', space=vmem, size = 0x40000, scoped, tag = 'input window, operand 1, single buffered']
    #allocation7 [shape = 's32[1]{0}', space=sflag, size = 0x4, scoped, tag = 'scoped memory for lstm_poet_forward.1']
    #allocation8 [shape = 's32[1]{0}', space=sflag, size = 0x4, scoped, tag = 'scoped memory for lstm_poet_forward.1']
    #allocation9 [shape = 'u8[524288]{0}', space=vmem, size = 0x80000, scoped, tag = 'input window, operand 2, single buffered']
    #allocation10 [shape = 's32[1]{0}', space=sflag, size = 0x4, scoped, tag = 'scoped memory for lstm_poet_forward.1']
    #allocation11 [shape = 'u8[8192]{0}', space=vmem, size = 0x2000, scoped, tag = 'output window, operand 1, single buffered']
    #allocation12 [shape = 'u8[8192]{0}', space=vmem, size = 0x2000, scoped, tag = 'output window, operand 2, single buffered']
    #allocation13 [shape = 's32[1]{0}', space=sflag, size = 0x4, scoped, tag = 'scoped memory for lstm_poet_forward.1']
    %14 = vsyncpa [#allocation7], 0
    %15 = vsyncpa [#allocation10], 0
    %16 = vsyncpa [#allocation8], 0
    %17 = vsyncpa [#allocation13], 0
    // Predicated region
    $region2: #{lstm_poet_forward.1} parent=1 // pred_check
      _
    $region3: #{lstm_poet_forward.1} parent=1 // pred_check_branch
      %19 = sbr.rel (0) target = $region5
    $region4: #{lstm_poet_forward.1} parent=1 // pred_region
      _
    $region5: #{lstm_poet_forward.1} parent=1 // pred_fallthru
      _
    // Predicated region
    $region6: #{lstm_poet_forward.1} parent=1 // pred_check
      _
    $region7: #{lstm_poet_forward.1} parent=1 // pred_check_branch
      %21 = sbr.rel (0) target = $region9
    $region8: #{lstm_poet_forward.1} parent=1 // pred_region
      %s23 = ssub.s32 8192, 8192
      %24 = vsyncadd [#allocation7], %s23
      %s25 = sshll.u32 [#allocation6], 4
      %s26 = int_to_ptr.vmem [resolvable:$true] %s25
      %31 = dma.hbm_to_vmem [thread:$0]  %s1, 8192, %s26, [#allocation7], 512, 512, 32
    $region9: #{lstm_poet_forward.1} parent=1 // pred_fallthru
      _
    // Predicated region
    $region10: #{lstm_poet_forward.1} parent=1 // pred_check
      _
    $region11: #{lstm_poet_forward.1} parent=1 // pred_check_branch
      %33 = sbr.rel (0) target = $region13
    $region12: #{lstm_poet_forward.1} parent=1 // pred_region
      %s35 = ssub.s32 16384, 16384
      %36 = vsyncadd [#allocation10], %s35
      %s37 = sshll.u32 [#allocation9], 4
      %s38 = int_to_ptr.vmem [resolvable:$true] %s37
      %43 = dma.hbm_to_vmem [thread:$0]  %s2, 16384, %s38, [#allocation10], 512, 512, 32
    $region13: #{lstm_poet_forward.1} parent=1 // pred_fallthru
      _
    // Predicated region
    $region14: #{lstm_poet_forward.1} parent=1 // pred_check
      _
    $region15: #{lstm_poet_forward.1} parent=1 // pred_check_branch
      %45 = sbr.rel (0) target = $region17
    $region16: #{lstm_poet_forward.1} parent=1 // pred_region
      _
    $region17: #{lstm_poet_forward.1} parent=1 // pred_fallthru
      _
    // Predicated region
    $region18: #{lstm_poet_forward.1} parent=1 // pred_check
      _
    $region19: #{lstm_poet_forward.1} parent=1 // pred_check_branch
      %47 = sbr.rel (0) target = $region21
    $region20: #{lstm_poet_forward.1} parent=1 // pred_region
      _
    $region21: #{lstm_poet_forward.1} parent=1 // pred_fallthru
      _
    // Predicated region
    $region22: #{lstm_poet_forward.1} parent=1 // pred_check
      _
    $region23: #{lstm_poet_forward.1} parent=1 // pred_check_branch
      %49 = sbr.rel (0) target = $region25
    $region24: #{lstm_poet_forward.1} parent=1 // pred_region
      _
    $region25: #{lstm_poet_forward.1} parent=1 // pred_fallthru
      _
    // Predicated region
    $region26: #{lstm_poet_forward.1} parent=1 // pred_check
      _
    $region27: #{lstm_poet_forward.1} parent=1 // pred_check_branch
      %51 = sbr.rel (0) target = $region29
    $region28: #{lstm_poet_forward.1} parent=1 // pred_region
      %52 = dma.done [#allocation7], 8192
    $region29: #{lstm_poet_forward.1} parent=1 // pred_fallthru
      _
    // Predicated region
    $region30: #{lstm_poet_forward.1} parent=1 // pred_check
      _
    $region31: #{lstm_poet_forward.1} parent=1 // pred_check_branch
      %54 = sbr.rel (0) target = $region33
    $region32: #{lstm_poet_forward.1} parent=1 // pred_region
      %55 = dma.done [#allocation10], 16384
    $region33: #{lstm_poet_forward.1} parent=1 // pred_fallthru
      _
    %p57 = scmp.eq.s32.totalorder 0, 0
    // Predicated region
    $region34: #{lstm_poet_forward.1} parent=1 // pred_check
      %p58 = pneg %p57
    $region35: #{lstm_poet_forward.1} parent=1 // pred_check_branch
      %60 = sbr.rel (%p58) target = $region37
    $region36: #{lstm_poet_forward.1} parent=1 // pred_region
      %61 = vst [vmem:[#allocation2] sm:$0xff] 0.0
      %62 = vst [vmem:[#allocation2 + $0x8] sm:$0xff] 0.0
      %63 = vst [vmem:[#allocation3] sm:$0xff] 0.0
      %64 = vst [vmem:[#allocation3 + $0x8] sm:$0xff] 0.0
    $region37: #{lstm_poet_forward.1} parent=1 // pred_fallthru
      _
    %v65 = vld [vmem:[%s0] sm:$0xf]
    %v66 = vld [vmem:[%s0 + $0x4] sm:$0xf]
    %v67 = vld [vmem:[%s0 + $0x8] sm:$0xf]
    %v68 = vld [vmem:[%s0 + $0xc] sm:$0xf]
    %v69 = vld [vmem:[%s0 + $0x10] sm:$0xf]
    %v70 = vld [vmem:[%s0 + $0x14] sm:$0xf]
    %v71 = vld [vmem:[%s0 + $0x18] sm:$0xf]
    %v72 = vld [vmem:[%s0 + $0x1c] sm:$0xf]
    %v73 = vld [vmem:[#allocation6] sm:$0xff]
    %v74 = vld [vmem:[#allocation6 + $0x8] sm:$0xff]
    %v75 = vld [vmem:[#allocation6 + $0x10] sm:$0xff]
    %v76 = vld [vmem:[#allocation6 + $0x18] sm:$0xff]
    %v77 = vld [vmem:[#allocation6 + $0x20] sm:$0xff]
    %v78 = vld [vmem:[#allocation6 + $0x28] sm:$0xff]
    %v79 = vld [vmem:[#allocation6 + $0x30] sm:$0xff]
    %v80 = vld [vmem:[#allocation6 + $0x38] sm:$0xff]
    %v81 = vld [vmem:[#allocation6 + $0x40] sm:$0xff]
    %v82 = vld [vmem:[#allocation6 + $0x48] sm:$0xff]
    %v83 = vld [vmem:[#allocation6 + $0x50] sm:$0xff]
    %v84 = vld [vmem:[#allocation6 + $0x58] sm:$0xff]
    %v85 = vld [vmem:[#allocation6 + $0x60] sm:$0xff]
    %v86 = vld [vmem:[#allocation6 + $0x68] sm:$0xff]
    %v87 = vld [vmem:[#allocation6 + $0x70] sm:$0xff]
    %v88 = vld [vmem:[#allocation6 + $0x78] sm:$0xff]
    %v89 = vld [vmem:[#allocation6 + $0x80] sm:$0xff]
    %v90 = vld [vmem:[#allocation6 + $0x88] sm:$0xff]
    %v91 = vld [vmem:[#allocation6 + $0x90] sm:$0xff]
    %v92 = vld [vmem:[#allocation6 + $0x98] sm:$0xff]
    %v93 = vld [vmem:[#allocation6 + $0xa0] sm:$0xff]
    %v94 = vld [vmem:[#allocation6 + $0xa8] sm:$0xff]
    %v95 = vld [vmem:[#allocation6 + $0xb0] sm:$0xff]
    %v96 = vld [vmem:[#allocation6 + $0xb8] sm:$0xff]
    %v97 = vld [vmem:[#allocation6 + $0xc0] sm:$0xff]
    %v98 = vld [vmem:[#allocation6 + $0xc8] sm:$0xff]
    %v99 = vld [vmem:[#allocation6 + $0xd0] sm:$0xff]
    %v100 = vld [vmem:[#allocation6 + $0xd8] sm:$0xff]
    %v101 = vld [vmem:[#allocation6 + $0xe0] sm:$0xff]
    %v102 = vld [vmem:[#allocation6 + $0xe8] sm:$0xff]
    %v103 = vld [vmem:[#allocation6 + $0xf0] sm:$0xff]
    %v104 = vld [vmem:[#allocation6 + $0xf8] sm:$0xff]
    %v105 = vld [vmem:[#allocation6 + $0x100] sm:$0xff]
    %v106 = vld [vmem:[#allocation6 + $0x108] sm:$0xff]
    %v107 = vld [vmem:[#allocation6 + $0x110] sm:$0xff]
    %v108 = vld [vmem:[#allocation6 + $0x118] sm:$0xff]
    %v109 = vld [vmem:[#allocation6 + $0x120] sm:$0xff]
    %v110 = vld [vmem:[#allocation6 + $0x128] sm:$0xff]
    %v111 = vld [vmem:[#allocation6 + $0x130] sm:$0xff]
    %v112 = vld [vmem:[#allocation6 + $0x138] sm:$0xff]
    %v113 = vld [vmem:[#allocation6 + $0x140] sm:$0xff]
    %v114 = vld [vmem:[#allocation6 + $0x148] sm:$0xff]
    %v115 = vld [vmem:[#allocation6 + $0x150] sm:$0xff]
    %v116 = vld [vmem:[#allocation6 + $0x158] sm:$0xff]
    %v117 = vld [vmem:[#allocation6 + $0x160] sm:$0xff]
    %v118 = vld [vmem:[#allocation6 + $0x168] sm:$0xff]
    %v119 = vld [vmem:[#allocation6 + $0x170] sm:$0xff]
    %v120 = vld [vmem:[#allocation6 + $0x178] sm:$0xff]
    %v121 = vld [vmem:[#allocation6 + $0x180] sm:$0xff]
    %v122 = vld [vmem:[#allocation6 + $0x188] sm:$0xff]
    %v123 = vld [vmem:[#allocation6 + $0x190] sm:$0xff]
    %v124 = vld [vmem:[#allocation6 + $0x198] sm:$0xff]
    %v125 = vld [vmem:[#allocation6 + $0x1a0] sm:$0xff]
    %v126 = vld [vmem:[#allocation6 + $0x1a8] sm:$0xff]
    %v127 = vld [vmem:[#allocation6 + $0x1b0] sm:$0xff]
    %v128 = vld [vmem:[#allocation6 + $0x1b8] sm:$0xff]
    %v129 = vld [vmem:[#allocation6 + $0x1c0] sm:$0xff]
    %v130 = vld [vmem:[#allocation6 + $0x1c8] sm:$0xff]
    %v131 = vld [vmem:[#allocation6 + $0x1d0] sm:$0xff]
    %v132 = vld [vmem:[#allocation6 + $0x1d8] sm:$0xff]
    %v133 = vld [vmem:[#allocation6 + $0x1e0] sm:$0xff]
    %v134 = vld [vmem:[#allocation6 + $0x1e8] sm:$0xff]
    %v135 = vld [vmem:[#allocation6 + $0x1f0] sm:$0xff]
    %v136 = vld [vmem:[#allocation6 + $0x1f8] sm:$0xff]
    %v137 = vld [vmem:[%s3] sm:$0xff]
    %v139 = vlaneseq
    %v140 = vshrl.u32 %v139, 7
    %v141 = vsub.s32 0, %v140
    %v142 = vrot.slane %v137, %v141
    %v143 = vlaneseq
    %v144 = vshrl.u32 %v143, 7
    %v145 = vsub.s32 1, %v144
    %v146 = vrot.slane %v137, %v145
    %v147 = vlaneseq
    %v148 = vshrl.u32 %v147, 7
    %v149 = vsub.s32 2, %v148
    %v150 = vrot.slane %v137, %v149
    %v151 = vlaneseq
    %v152 = vshrl.u32 %v151, 7
    %v153 = vsub.s32 3, %v152
    %v154 = vrot.slane %v137, %v153
    %v155 = vlaneseq
    %v156 = vshrl.u32 %v155, 7
    %v157 = vsub.s32 4, %v156
    %v158 = vrot.slane %v137, %v157
    %v159 = vlaneseq
    %v160 = vshrl.u32 %v159, 7
    %v161 = vsub.s32 5, %v160
    %v162 = vrot.slane %v137, %v161
    %v163 = vlaneseq
    %v164 = vshrl.u32 %v163, 7
    %v165 = vsub.s32 6, %v164
    %v166 = vrot.slane %v137, %v165
    %v167 = vlaneseq
    %v168 = vshrl.u32 %v167, 7
    %v169 = vsub.s32 7, %v168
    %v170 = vrot.slane %v137, %v169
    %v187 = vunpack.c.l.b16 %v65
    %v188 = vunpack.c.l.b16 %v66
    %v189 = vunpack.c.l.b16 %v67
    %v190 = vunpack.c.l.b16 %v68
    %v191 = vunpack.c.l.b16 %v69
    %v192 = vunpack.c.l.b16 %v70
    %v193 = vunpack.c.l.b16 %v71
    %v194 = vunpack.c.l.b16 %v72
    %v195 = vpack.c.b16 %v188, %v187
    %v196 = vpack.c.b16 %v190, %v189
    %v197 = vpack.c.b16 %v192, %v191
    %v198 = vpack.c.b16 %v194, %v193
    %v267 = vunpack.c.l.b16 %v73
    %v268 = vunpack.c.h.b16 %v73
    %v269 = vunpack.c.l.b16 %v74
    %v270 = vunpack.c.h.b16 %v74
    %v271 = vunpack.c.l.b16 %v75
    %v272 = vunpack.c.h.b16 %v75
    %v273 = vunpack.c.l.b16 %v76
    %v274 = vunpack.c.h.b16 %v76
    %v275 = vunpack.c.l.b16 %v77
    %v276 = vunpack.c.h.b16 %v77
    %v277 = vunpack.c.l.b16 %v78
    %v278 = vunpack.c.h.b16 %v78
    %v279 = vunpack.c.l.b16 %v79
    %v280 = vunpack.c.h.b16 %v79
    %v281 = vunpack.c.l.b16 %v80
    %v282 = vunpack.c.h.b16 %v80
    %v283 = vunpack.c.l.b16 %v81
    %v284 = vunpack.c.h.b16 %v81
    %v285 = vunpack.c.l.b16 %v82
    %v286 = vunpack.c.h.b16 %v82
    %v287 = vunpack.c.l.b16 %v83
    %v288 = vunpack.c.h.b16 %v83
    %v289 = vunpack.c.l.b16 %v84
    %v290 = vunpack.c.h.b16 %v84
    %v291 = vunpack.c.l.b16 %v85
    %v292 = vunpack.c.h.b16 %v85
    %v293 = vunpack.c.l.b16 %v86
    %v294 = vunpack.c.h.b16 %v86
    %v295 = vunpack.c.l.b16 %v87
    %v296 = vunpack.c.h.b16 %v87
    %v297 = vunpack.c.l.b16 %v88
    %v298 = vunpack.c.h.b16 %v88
    %v299 = vunpack.c.l.b16 %v89
    %v300 = vunpack.c.h.b16 %v89
    %v301 = vunpack.c.l.b16 %v90
    %v302 = vunpack.c.h.b16 %v90
    %v303 = vunpack.c.l.b16 %v91
    %v304 = vunpack.c.h.b16 %v91
    %v305 = vunpack.c.l.b16 %v92
    %v306 = vunpack.c.h.b16 %v92
    %v307 = vunpack.c.l.b16 %v93
    %v308 = vunpack.c.h.b16 %v93
    %v309 = vunpack.c.l.b16 %v94
    %v310 = vunpack.c.h.b16 %v94
    %v311 = vunpack.c.l.b16 %v95
    %v312 = vunpack.c.h.b16 %v95
    %v313 = vunpack.c.l.b16 %v96
    %v314 = vunpack.c.h.b16 %v96
    %v315 = vunpack.c.l.b16 %v97
    %v316 = vunpack.c.h.b16 %v97
    %v317 = vunpack.c.l.b16 %v98
    %v318 = vunpack.c.h.b16 %v98
    %v319 = vunpack.c.l.b16 %v99
    %v320 = vunpack.c.h.b16 %v99
    %v321 = vunpack.c.l.b16 %v100
    %v322 = vunpack.c.h.b16 %v100
    %v323 = vunpack.c.l.b16 %v101
    %v324 = vunpack.c.h.b16 %v101
    %v325 = vunpack.c.l.b16 %v102
    %v326 = vunpack.c.h.b16 %v102
    %v327 = vunpack.c.l.b16 %v103
    %v328 = vunpack.c.h.b16 %v103
    %v329 = vunpack.c.l.b16 %v104
    %v330 = vunpack.c.h.b16 %v104
    %v331 = vunpack.c.l.b16 %v105
    %v332 = vunpack.c.h.b16 %v105
    %v333 = vunpack.c.l.b16 %v106
    %v334 = vunpack.c.h.b16 %v106
    %v335 = vunpack.c.l.b16 %v107
    %v336 = vunpack.c.h.b16 %v107
    %v337 = vunpack.c.l.b16 %v108
    %v338 = vunpack.c.h.b16 %v108
    %v339 = vunpack.c.l.b16 %v109
    %v340 = vunpack.c.h.b16 %v109
    %v341 = vunpack.c.l.b16 %v110
    %v342 = vunpack.c.h.b16 %v110
    %v343 = vunpack.c.l.b16 %v111
    %v344 = vunpack.c.h.b16 %v111
    %v345 = vunpack.c.l.b16 %v112
    %v346 = vunpack.c.h.b16 %v112
    %v347 = vunpack.c.l.b16 %v113
    %v348 = vunpack.c.h.b16 %v113
    %v349 = vunpack.c.l.b16 %v114
    %v350 = vunpack.c.h.b16 %v114
    %v351 = vunpack.c.l.b16 %v115
    %v352 = vunpack.c.h.b16 %v115
    %v353 = vunpack.c.l.b16 %v116
    %v354 = vunpack.c.h.b16 %v116
    %v355 = vunpack.c.l.b16 %v117
    %v356 = vunpack.c.h.b16 %v117
    %v357 = vunpack.c.l.b16 %v118
    %v358 = vunpack.c.h.b16 %v118
    %v359 = vunpack.c.l.b16 %v119
    %v360 = vunpack.c.h.b16 %v119
    %v361 = vunpack.c.l.b16 %v120
    %v362 = vunpack.c.h.b16 %v120
    %v363 = vunpack.c.l.b16 %v121
    %v364 = vunpack.c.h.b16 %v121
    %v365 = vunpack.c.l.b16 %v122
    %v366 = vunpack.c.h.b16 %v122
    %v367 = vunpack.c.l.b16 %v123
    %v368 = vunpack.c.h.b16 %v123
    %v369 = vunpack.c.l.b16 %v124
    %v370 = vunpack.c.h.b16 %v124
    %v371 = vunpack.c.l.b16 %v125
    %v372 = vunpack.c.h.b16 %v125
    %v373 = vunpack.c.l.b16 %v126
    %v374 = vunpack.c.h.b16 %v126
    %v375 = vunpack.c.l.b16 %v127
    %v376 = vunpack.c.h.b16 %v127
    %v377 = vunpack.c.l.b16 %v128
    %v378 = vunpack.c.h.b16 %v128
    %v379 = vunpack.c.l.b16 %v129
    %v380 = vunpack.c.h.b16 %v129
    %v381 = vunpack.c.l.b16 %v130
    %v382 = vunpack.c.h.b16 %v130
    %v383 = vunpack.c.l.b16 %v131
    %v384 = vunpack.c.h.b16 %v131
    %v385 = vunpack.c.l.b16 %v132
    %v386 = vunpack.c.h.b16 %v132
    %v387 = vunpack.c.l.b16 %v133
    %v388 = vunpack.c.h.b16 %v133
    %v389 = vunpack.c.l.b16 %v134
    %v390 = vunpack.c.h.b16 %v134
    %v391 = vunpack.c.l.b16 %v135
    %v392 = vunpack.c.h.b16 %v135
    %v393 = vunpack.c.l.b16 %v136
    %v394 = vunpack.c.h.b16 %v136
    %v395 = vpack.c.b16 %v275, %v267
    %v396 = vpack.c.b16 %v276, %v268
    %v397 = vpack.c.b16 %v277, %v269
    %v398 = vpack.c.b16 %v278, %v270
    %v399 = vpack.c.b16 %v279, %v271
    %v400 = vpack.c.b16 %v280, %v272
    %v401 = vpack.c.b16 %v281, %v273
    %v402 = vpack.c.b16 %v282, %v274
    %v403 = vpack.c.b16 %v291, %v283
    %v404 = vpack.c.b16 %v292, %v284
    %v405 = vpack.c.b16 %v293, %v285
    %v406 = vpack.c.b16 %v294, %v286
    %v407 = vpack.c.b16 %v295, %v287
    %v408 = vpack.c.b16 %v296, %v288
    %v409 = vpack.c.b16 %v297, %v289
    %v410 = vpack.c.b16 %v298, %v290
    %v411 = vpack.c.b16 %v307, %v299
    %v412 = vpack.c.b16 %v308, %v300
    %v413 = vpack.c.b16 %v309, %v301
    %v414 = vpack.c.b16 %v310, %v302
    %v415 = vpack.c.b16 %v311, %v303
    %v416 = vpack.c.b16 %v312, %v304
    %v417 = vpack.c.b16 %v313, %v305
    %v418 = vpack.c.b16 %v314, %v306
    %v419 = vpack.c.b16 %v323, %v315
    %v420 = vpack.c.b16 %v324, %v316
    %v421 = vpack.c.b16 %v325, %v317
    %v422 = vpack.c.b16 %v326, %v318
    %v423 = vpack.c.b16 %v327, %v319
    %v424 = vpack.c.b16 %v328, %v320
    %v425 = vpack.c.b16 %v329, %v321
    %v426 = vpack.c.b16 %v330, %v322
    %v427 = vpack.c.b16 %v339, %v331
    %v428 = vpack.c.b16 %v340, %v332
    %v429 = vpack.c.b16 %v341, %v333
    %v430 = vpack.c.b16 %v342, %v334
    %v431 = vpack.c.b16 %v343, %v335
    %v432 = vpack.c.b16 %v344, %v336
    %v433 = vpack.c.b16 %v345, %v337
    %v434 = vpack.c.b16 %v346, %v338
    %v435 = vpack.c.b16 %v355, %v347
    %v436 = vpack.c.b16 %v356, %v348
    %v437 = vpack.c.b16 %v357, %v349
    %v438 = vpack.c.b16 %v358, %v350
    %v439 = vpack.c.b16 %v359, %v351
    %v440 = vpack.c.b16 %v360, %v352
    %v441 = vpack.c.b16 %v361, %v353
    %v442 = vpack.c.b16 %v362, %v354
    %v443 = vpack.c.b16 %v371, %v363
    %v444 = vpack.c.b16 %v372, %v364
    %v445 = vpack.c.b16 %v373, %v365
    %v446 = vpack.c.b16 %v374, %v366
    %v447 = vpack.c.b16 %v375, %v367
    %v448 = vpack.c.b16 %v376, %v368
    %v449 = vpack.c.b16 %v377, %v369
    %v450 = vpack.c.b16 %v378, %v370
    %v451 = vpack.c.b16 %v387, %v379
    %v452 = vpack.c.b16 %v388, %v380
    %v453 = vpack.c.b16 %v389, %v381
    %v454 = vpack.c.b16 %v390, %v382
    %v455 = vpack.c.b16 %v391, %v383
    %v456 = vpack.c.b16 %v392, %v384
    %v457 = vpack.c.b16 %v393, %v385
    %v458 = vpack.c.b16 %v394, %v386
    %523 = vmatprep.subr.bf16.mxu0 %v396
    %524 = vmatpush1.bf16.msra.mxu0 %v395
    %525 = vmatprep.subr.bf16.mxu0 %v404
    %526 = vmatpush1.bf16.msra.mxu0 %v403
    %527 = vmatprep.subr.bf16.mxu0 %v412
    %528 = vmatpush1.bf16.msra.mxu0 %v411
    %529 = vmatprep.subr.bf16.mxu0 %v420
    %530 = vmatpush1.bf16.msra.mxu0 %v419
    %531 = vmatprep.subr.bf16.mxu0 %v428
    %532 = vmatpush1.bf16.msra.mxu0 %v427
    %533 = vmatprep.subr.bf16.mxu0 %v436
    %534 = vmatpush1.bf16.msra.mxu0 %v435
    %535 = vmatprep.subr.bf16.mxu0 %v444
    %536 = vmatpush1.bf16.msra.mxu0 %v443
    %537 = vmatprep.subr.bf16.mxu0 %v452
    %538 = vmatpush1.bf16.msra.mxu0 %v451
    %539 = vmatprep.subr.bf16.mxu0 0
    %540 = vmatpush1.bf16.msra.mxu0 0
    %541 = vmatprep.subr.bf16.mxu0 0
    %542 = vmatpush1.bf16.msra.mxu0 0
    %543 = vmatprep.subr.bf16.mxu0 0
    %544 = vmatpush1.bf16.msra.mxu0 0
    %545 = vmatprep.subr.bf16.mxu0 0
    %546 = vmatpush1.bf16.msra.mxu0 0
    %547 = vmatprep.subr.bf16.mxu0 0
    %548 = vmatpush1.bf16.msra.mxu0 0
    %549 = vmatprep.subr.bf16.mxu0 0
    %550 = vmatpush1.bf16.msra.mxu0 0
    %551 = vmatprep.subr.bf16.mxu0 0
    %552 = vmatpush1.bf16.msra.mxu0 0
    %553 = vmatprep.subr.bf16.mxu0 0
    %554 = vmatpush1.bf16.msra.mxu0 0
    %555 = vmatprep.mubr.bf16.mxu0 0
    %556 = vmatmul.mubr.bf16.gmra.mrb[0].mxu0 %v195
    %v557 = vpop.f32.mrb[0].mxu0
    %v558 = vadd.f32 %v142, %v557
    %v559 = vpop.f32.mrb[0].mxu0
    %v560 = vadd.f32 %v146, %v559
    %v561 = vpop.f32.mrb[0].mxu0
    %v562 = vadd.f32 %v142, %v561
    %v563 = vpop.f32.mrb[0].mxu0
    %v564 = vadd.f32 %v146, %v563
    %565 = vmatprep.mubr.bf16.mxu0 0
    %566 = vmatmul.mubr.bf16.gmra.mrb[0].mxu0 %v196
    %v567 = vpop.f32.mrb[0].mxu0
    %v568 = vadd.f32 %v142, %v567
    %v569 = vpop.f32.mrb[0].mxu0
    %v570 = vadd.f32 %v146, %v569
    %v571 = vpop.f32.mrb[0].mxu0
    %v572 = vadd.f32 %v142, %v571
    %v573 = vpop.f32.mrb[0].mxu0
    %v574 = vadd.f32 %v146, %v573
    %575 = vmatprep.mubr.bf16.mxu0 0
    %576 = vmatmul.mubr.bf16.gmra.mrb[0].mxu0 %v197
    %v577 = vpop.f32.mrb[0].mxu0
    %v578 = vadd.f32 %v142, %v577
    %v579 = vpop.f32.mrb[0].mxu0
    %v580 = vadd.f32 %v146, %v579
    %v581 = vpop.f32.mrb[0].mxu0
    %v582 = vadd.f32 %v142, %v581
    %v583 = vpop.f32.mrb[0].mxu0
    %v584 = vadd.f32 %v146, %v583
    %585 = vmatprep.mubr.bf16.mxu0 0
    %586 = vmatmul.mubr.bf16.gmra.mrb[0].mxu0 %v198
    %v587 = vpop.f32.mrb[0].mxu0
    %v588 = vadd.f32 %v142, %v587
    %v589 = vpop.f32.mrb[0].mxu0
    %v590 = vadd.f32 %v146, %v589
    %v591 = vpop.f32.mrb[0].mxu0
    %v592 = vadd.f32 %v142, %v591
    %v593 = vpop.f32.mrb[0].mxu0
    %v594 = vadd.f32 %v146, %v593
    %595 = vdwg.mxu0
    %596 = vmatprep.subr.bf16.mxu0 %v398
    %597 = vmatpush1.bf16.msra.mxu0 %v397
    %598 = vmatprep.subr.bf16.mxu0 %v406
    %599 = vmatpush1.bf16.msra.mxu0 %v405
    %600 = vmatprep.subr.bf16.mxu0 %v414
    %601 = vmatpush1.bf16.msra.mxu0 %v413
    %602 = vmatprep.subr.bf16.mxu0 %v422
    %603 = vmatpush1.bf16.msra.mxu0 %v421
    %604 = vmatprep.subr.bf16.mxu0 %v430
    %605 = vmatpush1.bf16.msra.mxu0 %v429
    %606 = vmatprep.subr.bf16.mxu0 %v438
    %607 = vmatpush1.bf16.msra.mxu0 %v437
    %608 = vmatprep.subr.bf16.mxu0 %v446
    %609 = vmatpush1.bf16.msra.mxu0 %v445
    %610 = vmatprep.subr.bf16.mxu0 %v454
    %611 = vmatpush1.bf16.msra.mxu0 %v453
    %612 = vmatprep.subr.bf16.mxu0 0
    %613 = vmatpush1.bf16.msra.mxu0 0
    %614 = vmatprep.subr.bf16.mxu0 0
    %615 = vmatpush1.bf16.msra.mxu0 0
    %616 = vmatprep.subr.bf16.mxu0 0
    %617 = vmatpush1.bf16.msra.mxu0 0
    %618 = vmatprep.subr.bf16.mxu0 0
    %619 = vmatpush1.bf16.msra.mxu0 0
    %620 = vmatprep.subr.bf16.mxu0 0
    %621 = vmatpush1.bf16.msra.mxu0 0
    %622 = vmatprep.subr.bf16.mxu0 0
    %623 = vmatpush1.bf16.msra.mxu0 0
    %624 = vmatprep.subr.bf16.mxu0 0
    %625 = vmatpush1.bf16.msra.mxu0 0
    %626 = vmatprep.subr.bf16.mxu0 0
    %627 = vmatpush1.bf16.msra.mxu0 0
    %628 = vmatprep.mubr.bf16.mxu0 0
    %629 = vmatmul.mubr.bf16.gmra.mrb[0].mxu0 %v195
    %v630 = vpop.f32.mrb[0].mxu0
    %v631 = vadd.f32 %v150, %v630
    %v632 = vpop.f32.mrb[0].mxu0
    %v633 = vadd.f32 %v154, %v632
    %v634 = vpop.f32.mrb[0].mxu0
    %v635 = vadd.f32 %v150, %v634
    %v636 = vpop.f32.mrb[0].mxu0
    %v637 = vadd.f32 %v154, %v636
    %638 = vmatprep.mubr.bf16.mxu0 0
    %639 = vmatmul.mubr.bf16.gmra.mrb[0].mxu0 %v196
    %v640 = vpop.f32.mrb[0].mxu0
    %v641 = vadd.f32 %v150, %v640
    %v642 = vpop.f32.mrb[0].mxu0
    %v643 = vadd.f32 %v154, %v642
    %v644 = vpop.f32.mrb[0].mxu0
    %v645 = vadd.f32 %v150, %v644
    %v646 = vpop.f32.mrb[0].mxu0
    %v647 = vadd.f32 %v154, %v646
    %648 = vmatprep.mubr.bf16.mxu0 0
    %649 = vmatmul.mubr.bf16.gmra.mrb[0].mxu0 %v197
    %v650 = vpop.f32.mrb[0].mxu0
    %v651 = vadd.f32 %v150, %v650
    %v652 = vpop.f32.mrb[0].mxu0
    %v653 = vadd.f32 %v154, %v652
    %v654 = vpop.f32.mrb[0].mxu0
    %v655 = vadd.f32 %v150, %v654
    %v656 = vpop.f32.mrb[0].mxu0
    %v657 = vadd.f32 %v154, %v656
    %658 = vmatprep.mubr.bf16.mxu0 0
    %659 = vmatmul.mubr.bf16.gmra.mrb[0].mxu0 %v198
    %v660 = vpop.f32.mrb[0].mxu0
    %v661 = vadd.f32 %v150, %v660
    %v662 = vpop.f32.mrb[0].mxu0
    %v663 = vadd.f32 %v154, %v662
    %v664 = vpop.f32.mrb[0].mxu0
    %v665 = vadd.f32 %v150, %v664
    %v666 = vpop.f32.mrb[0].mxu0
    %v667 = vadd.f32 %v154, %v666
    %668 = vdwg.mxu0
    %669 = vmatprep.subr.bf16.mxu0 %v400
    %670 = vmatpush1.bf16.msra.mxu0 %v399
    %671 = vmatprep.subr.bf16.mxu0 %v408
    %672 = vmatpush1.bf16.msra.mxu0 %v407
    %673 = vmatprep.subr.bf16.mxu0 %v416
    %674 = vmatpush1.bf16.msra.mxu0 %v415
    %675 = vmatprep.subr.bf16.mxu0 %v424
    %676 = vmatpush1.bf16.msra.mxu0 %v423
    %677 = vmatprep.subr.bf16.mxu0 %v432
    %678 = vmatpush1.bf16.msra.mxu0 %v431
    %679 = vmatprep.subr.bf16.mxu0 %v440
    %680 = vmatpush1.bf16.msra.mxu0 %v439
    %681 = vmatprep.subr.bf16.mxu0 %v448
    %682 = vmatpush1.bf16.msra.mxu0 %v447
    %683 = vmatprep.subr.bf16.mxu0 %v456
    %684 = vmatpush1.bf16.msra.mxu0 %v455
    %685 = vmatprep.subr.bf16.mxu0 0
    %686 = vmatpush1.bf16.msra.mxu0 0
    %687 = vmatprep.subr.bf16.mxu0 0
    %688 = vmatpush1.bf16.msra.mxu0 0
    %689 = vmatprep.subr.bf16.mxu0 0
    %690 = vmatpush1.bf16.msra.mxu0 0
    %691 = vmatprep.subr.bf16.mxu0 0
    %692 = vmatpush1.bf16.msra.mxu0 0
    %693 = vmatprep.subr.bf16.mxu0 0
    %694 = vmatpush1.bf16.msra.mxu0 0
    %695 = vmatprep.subr.bf16.mxu0 0
    %696 = vmatpush1.bf16.msra.mxu0 0
    %697 = vmatprep.subr.bf16.mxu0 0
    %698 = vmatpush1.bf16.msra.mxu0 0
    %699 = vmatprep.subr.bf16.mxu0 0
    %700 = vmatpush1.bf16.msra.mxu0 0
    %701 = vmatprep.mubr.bf16.mxu0 0
    %702 = vmatmul.mubr.bf16.gmra.mrb[0].mxu0 %v195
    %v703 = vpop.f32.mrb[0].mxu0
    %v704 = vadd.f32 %v158, %v703
    %v705 = vpop.f32.mrb[0].mxu0
    %v706 = vadd.f32 %v162, %v705
    %v707 = vpop.f32.mrb[0].mxu0
    %v708 = vadd.f32 %v158, %v707
    %v709 = vpop.f32.mrb[0].mxu0
    %v710 = vadd.f32 %v162, %v709
    %711 = vmatprep.mubr.bf16.mxu0 0
    %712 = vmatmul.mubr.bf16.gmra.mrb[0].mxu0 %v196
    %v713 = vpop.f32.mrb[0].mxu0
    %v714 = vadd.f32 %v158, %v713
    %v715 = vpop.f32.mrb[0].mxu0
    %v716 = vadd.f32 %v162, %v715
    %v717 = vpop.f32.mrb[0].mxu0
    %v718 = vadd.f32 %v158, %v717
    %v719 = vpop.f32.mrb[0].mxu0
    %v720 = vadd.f32 %v162, %v719
    %721 = vmatprep.mubr.bf16.mxu0 0
    %722 = vmatmul.mubr.bf16.gmra.mrb[0].mxu0 %v197
    %v723 = vpop.f32.mrb[0].mxu0
    %v724 = vadd.f32 %v158, %v723
    %v725 = vpop.f32.mrb[0].mxu0
    %v726 = vadd.f32 %v162, %v725
    %v727 = vpop.f32.mrb[0].mxu0
    %v728 = vadd.f32 %v158, %v727
    %v729 = vpop.f32.mrb[0].mxu0
    %v730 = vadd.f32 %v162, %v729
    %731 = vmatprep.mubr.bf16.mxu0 0
    %732 = vmatmul.mubr.bf16.gmra.mrb[0].mxu0 %v198
    %v733 = vpop.f32.mrb[0].mxu0
    %v734 = vadd.f32 %v158, %v733
    %v735 = vpop.f32.mrb[0].mxu0
    %v736 = vadd.f32 %v162, %v735
    %v737 = vpop.f32.mrb[0].mxu0
    %v738 = vadd.f32 %v158, %v737
    %v739 = vpop.f32.mrb[0].mxu0
    %v740 = vadd.f32 %v162, %v739
    %741 = vdwg.mxu0
    %742 = vmatprep.subr.bf16.mxu0 %v402
    %743 = vmatpush1.bf16.msra.mxu0 %v401
    %744 = vmatprep.subr.bf16.mxu0 %v410
    %745 = vmatpush1.bf16.msra.mxu0 %v409
    %746 = vmatprep.subr.bf16.mxu0 %v418
    %747 = vmatpush1.bf16.msra.mxu0 %v417
    %748 = vmatprep.subr.bf16.mxu0 %v426
    %749 = vmatpush1.bf16.msra.mxu0 %v425
    %750 = vmatprep.subr.bf16.mxu0 %v434
    %751 = vmatpush1.bf16.msra.mxu0 %v433
    %752 = vmatprep.subr.bf16.mxu0 %v442
    %753 = vmatpush1.bf16.msra.mxu0 %v441
    %754 = vmatprep.subr.bf16.mxu0 %v450
    %755 = vmatpush1.bf16.msra.mxu0 %v449
    %756 = vmatprep.subr.bf16.mxu0 %v458
    %757 = vmatpush1.bf16.msra.mxu0 %v457
    %758 = vmatprep.subr.bf16.mxu0 0
    %759 = vmatpush1.bf16.msra.mxu0 0
    %760 = vmatprep.subr.bf16.mxu0 0
    %761 = vmatpush1.bf16.msra.mxu0 0
    %762 = vmatprep.subr.bf16.mxu0 0
    %763 = vmatpush1.bf16.msra.mxu0 0
    %764 = vmatprep.subr.bf16.mxu0 0
    %765 = vmatpush1.bf16.msra.mxu0 0
    %766 = vmatprep.subr.bf16.mxu0 0
    %767 = vmatpush1.bf16.msra.mxu0 0
    %768 = vmatprep.subr.bf16.mxu0 0
    %769 = vmatpush1.bf16.msra.mxu0 0
    %770 = vmatprep.subr.bf16.mxu0 0
    %771 = vmatpush1.bf16.msra.mxu0 0
    %772 = vmatprep.subr.bf16.mxu0 0
    %773 = vmatpush1.bf16.msra.mxu0 0
    %774 = vmatprep.mubr.bf16.mxu0 0
    %775 = vmatmul.mubr.bf16.gmra.mrb[0].mxu0 %v195
    %v776 = vpop.f32.mrb[0].mxu0
    %v777 = vadd.f32 %v166, %v776
    %v778 = vpop.f32.mrb[0].mxu0
    %v779 = vadd.f32 %v170, %v778
    %v780 = vpop.f32.mrb[0].mxu0
    %v781 = vadd.f32 %v166, %v780
    %v782 = vpop.f32.mrb[0].mxu0
    %v783 = vadd.f32 %v170, %v782
    %784 = vmatprep.mubr.bf16.mxu0 0
    %785 = vmatmul.mubr.bf16.gmra.mrb[0].mxu0 %v196
    %v786 = vpop.f32.mrb[0].mxu0
    %v787 = vadd.f32 %v166, %v786
    %v788 = vpop.f32.mrb[0].mxu0
    %v789 = vadd.f32 %v170, %v788
    %v790 = vpop.f32.mrb[0].mxu0
    %v791 = vadd.f32 %v166, %v790
    %v792 = vpop.f32.mrb[0].mxu0
    %v793 = vadd.f32 %v170, %v792
    %794 = vmatprep.mubr.bf16.mxu0 0
    %795 = vmatmul.mubr.bf16.gmra.mrb[0].mxu0 %v197
    %v796 = vpop.f32.mrb[0].mxu0
    %v797 = vadd.f32 %v166, %v796
    %v798 = vpop.f32.mrb[0].mxu0
    %v799 = vadd.f32 %v170, %v798
    %v800 = vpop.f32.mrb[0].mxu0
    %v801 = vadd.f32 %v166, %v800
    %v802 = vpop.f32.mrb[0].mxu0
    %v803 = vadd.f32 %v170, %v802
    %804 = vmatprep.mubr.bf16.mxu0 0
    %805 = vmatmul.mubr.bf16.gmra.mrb[0].mxu0 %v198
    %v806 = vpop.f32.mrb[0].mxu0
    %v807 = vadd.f32 %v166, %v806
    %v808 = vpop.f32.mrb[0].mxu0
    %v809 = vadd.f32 %v170, %v808
    %v810 = vpop.f32.mrb[0].mxu0
    %v811 = vadd.f32 %v166, %v810
    %v812 = vpop.f32.mrb[0].mxu0
    %v813 = vadd.f32 %v170, %v812
    %814 = vdwg.mxu0
    %815 = vst [vmem:[#allocation4] sm:$0xff] %v558
    %816 = vst [vmem:[#allocation4 + $0x8] sm:$0xff] %v560
    %817 = vst [vmem:[#allocation4 + $0x10] sm:$0xff] %v631
    %818 = vst [vmem:[#allocation4 + $0x18] sm:$0xff] %v633
    %819 = vst [vmem:[#allocation4 + $0x20] sm:$0xff] %v704
    %820 = vst [vmem:[#allocation4 + $0x28] sm:$0xff] %v706
    %821 = vst [vmem:[#allocation4 + $0x30] sm:$0xff] %v777
    %822 = vst [vmem:[#allocation4 + $0x38] sm:$0xff] %v779
    %823 = vst [vmem:[#allocation4 + $0x40] sm:$0xff] %v562
    %824 = vst [vmem:[#allocation4 + $0x48] sm:$0xff] %v564
    %825 = vst [vmem:[#allocation4 + $0x50] sm:$0xff] %v635
    %826 = vst [vmem:[#allocation4 + $0x58] sm:$0xff] %v637
    %827 = vst [vmem:[#allocation4 + $0x60] sm:$0xff] %v708
    %828 = vst [vmem:[#allocation4 + $0x68] sm:$0xff] %v710
    %829 = vst [vmem:[#allocation4 + $0x70] sm:$0xff] %v781
    %830 = vst [vmem:[#allocation4 + $0x78] sm:$0xff] %v783
    %831 = vst [vmem:[#allocation4 + $0x80] sm:$0xff] %v568
    %832 = vst [vmem:[#allocation4 + $0x88] sm:$0xff] %v570
    %833 = vst [vmem:[#allocation4 + $0x90] sm:$0xff] %v641
    %834 = vst [vmem:[#allocation4 + $0x98] sm:$0xff] %v643
    %835 = vst [vmem:[#allocation4 + $0xa0] sm:$0xff] %v714
    %836 = vst [vmem:[#allocation4 + $0xa8] sm:$0xff] %v716
    %837 = vst [vmem:[#allocation4 + $0xb0] sm:$0xff] %v787
    %838 = vst [vmem:[#allocation4 + $0xb8] sm:$0xff] %v789
    %839 = vst [vmem:[#allocation4 + $0xc0] sm:$0xff] %v572
    %840 = vst [vmem:[#allocation4 + $0xc8] sm:$0xff] %v574
    %841 = vst [vmem:[#allocation4 + $0xd0] sm:$0xff] %v645
    %842 = vst [vmem:[#allocation4 + $0xd8] sm:$0xff] %v647
    %843 = vst [vmem:[#allocation4 + $0xe0] sm:$0xff] %v718
    %844 = vst [vmem:[#allocation4 + $0xe8] sm:$0xff] %v720
    %845 = vst [vmem:[#allocation4 + $0xf0] sm:$0xff] %v791
    %846 = vst [vmem:[#allocation4 + $0xf8] sm:$0xff] %v793
    %847 = vst [vmem:[#allocation4 + $0x100] sm:$0xff] %v578
    %848 = vst [vmem:[#allocation4 + $0x108] sm:$0xff] %v580
    %849 = vst [vmem:[#allocation4 + $0x110] sm:$0xff] %v651
    %850 = vst [vmem:[#allocation4 + $0x118] sm:$0xff] %v653
    %851 = vst [vmem:[#allocation4 + $0x120] sm:$0xff] %v724
    %852 = vst [vmem:[#allocation4 + $0x128] sm:$0xff] %v726
    %853 = vst [vmem:[#allocation4 + $0x130] sm:$0xff] %v797
    %854 = vst [vmem:[#allocation4 + $0x138] sm:$0xff] %v799
    %855 = vst [vmem:[#allocation4 + $0x140] sm:$0xff] %v582
    %856 = vst [vmem:[#allocation4 + $0x148] sm:$0xff] %v584
    %857 = vst [vmem:[#allocation4 + $0x150] sm:$0xff] %v655
    %858 = vst [vmem:[#allocation4 + $0x158] sm:$0xff] %v657
    %859 = vst [vmem:[#allocation4 + $0x160] sm:$0xff] %v728
    %860 = vst [vmem:[#allocation4 + $0x168] sm:$0xff] %v730
    %861 = vst [vmem:[#allocation4 + $0x170] sm:$0xff] %v801
    %862 = vst [vmem:[#allocation4 + $0x178] sm:$0xff] %v803
    %863 = vst [vmem:[#allocation4 + $0x180] sm:$0xff] %v588
    %864 = vst [vmem:[#allocation4 + $0x188] sm:$0xff] %v590
    %865 = vst [vmem:[#allocation4 + $0x190] sm:$0xff] %v661
    %866 = vst [vmem:[#allocation4 + $0x198] sm:$0xff] %v663
    %867 = vst [vmem:[#allocation4 + $0x1a0] sm:$0xff] %v734
    %868 = vst [vmem:[#allocation4 + $0x1a8] sm:$0xff] %v736
    %869 = vst [vmem:[#allocation4 + $0x1b0] sm:$0xff] %v807
    %870 = vst [vmem:[#allocation4 + $0x1b8] sm:$0xff] %v809
    %871 = vst [vmem:[#allocation4 + $0x1c0] sm:$0xff] %v592
    %872 = vst [vmem:[#allocation4 + $0x1c8] sm:$0xff] %v594
    %873 = vst [vmem:[#allocation4 + $0x1d0] sm:$0xff] %v665
    %874 = vst [vmem:[#allocation4 + $0x1d8] sm:$0xff] %v667
    %875 = vst [vmem:[#allocation4 + $0x1e0] sm:$0xff] %v738
    %876 = vst [vmem:[#allocation4 + $0x1e8] sm:$0xff] %v740
    %877 = vst [vmem:[#allocation4 + $0x1f0] sm:$0xff] %v811
    %878 = vst [vmem:[#allocation4 + $0x1f8] sm:$0xff] %v813
    %v879 = vld [vmem:[#allocation2] sm:$0xff]
    %v880 = vld [vmem:[#allocation2 + $0x8] sm:$0xff]
    %v881 = vld [vmem:[#allocation3] sm:$0xff]
    %v882 = vld [vmem:[#allocation3 + $0x8] sm:$0xff]
    %v883 = vld [vmem:[#allocation4] sm:$0xff]
    %v884 = vld [vmem:[#allocation4 + $0x8] sm:$0xff]
    %v885 = vld [vmem:[#allocation4 + $0x10] sm:$0xff]
    %v886 = vld [vmem:[#allocation4 + $0x18] sm:$0xff]
    %v887 = vld [vmem:[#allocation4 + $0x20] sm:$0xff]
    %v888 = vld [vmem:[#allocation4 + $0x28] sm:$0xff]
    %v889 = vld [vmem:[#allocation4 + $0x30] sm:$0xff]
    %v890 = vld [vmem:[#allocation4 + $0x38] sm:$0xff]
    %v891 = vpack.c.bf16 %v879, %v879
    %v892 = vpack.c.bf16 %v880, %v880
    %v893 = vld [vmem:[#allocation9] sm:$0xff]
    %v894 = vld [vmem:[#allocation9 + $0x8] sm:$0xff]
    %v895 = vld [vmem:[#allocation9 + $0x10] sm:$0xff]
    %v896 = vld [vmem:[#allocation9 + $0x18] sm:$0xff]
    %v897 = vld [vmem:[#allocation9 + $0x20] sm:$0xff]
    %v898 = vld [vmem:[#allocation9 + $0x28] sm:$0xff]
    %v899 = vld [vmem:[#allocation9 + $0x30] sm:$0xff]
    %v900 = vld [vmem:[#allocation9 + $0x38] sm:$0xff]
    %v901 = vld [vmem:[#allocation9 + $0x40] sm:$0xff]
    %v902 = vld [vmem:[#allocation9 + $0x48] sm:$0xff]
    %v903 = vld [vmem:[#allocation9 + $0x50] sm:$0xff]
    %v904 = vld [vmem:[#allocation9 + $0x58] sm:$0xff]
    %v905 = vld [vmem:[#allocation9 + $0x60] sm:$0xff]
    %v906 = vld [vmem:[#allocation9 + $0x68] sm:$0xff]
    %v907 = vld [vmem:[#allocation9 + $0x70] sm:$0xff]
    %v908 = vld [vmem:[#allocation9 + $0x78] sm:$0xff]
    %v909 = vld [vmem:[#allocation9 + $0x80] sm:$0xff]
    %v910 = vld [vmem:[#allocation9 + $0x88] sm:$0xff]
    %v911 = vld [vmem:[#allocation9 + $0x90] sm:$0xff]
    %v912 = vld [vmem:[#allocation9 + $0x98] sm:$0xff]
    %v913 = vld [vmem:[#allocation9 + $0xa0] sm:$0xff]
    %v914 = vld [vmem:[#allocation9 + $0xa8] sm:$0xff]
    %v915 = vld [vmem:[#allocation9 + $0xb0] sm:$0xff]
    %v916 = vld [vmem:[#allocation9 + $0xb8] sm:$0xff]
    %v917 = vld [vmem:[#allocation9 + $0xc0] sm:$0xff]
    %v918 = vld [vmem:[#allocation9 + $0xc8] sm:$0xff]
    %v919 = vld [vmem:[#allocation9 + $0xd0] sm:$0xff]
    %v920 = vld [vmem:[#allocation9 + $0xd8] sm:$0xff]
    %v921 = vld [vmem:[#allocation9 + $0xe0] sm:$0xff]
    %v922 = vld [vmem:[#allocation9 + $0xe8] sm:$0xff]
    %v923 = vld [vmem:[#allocation9 + $0xf0] sm:$0xff]
    %v924 = vld [vmem:[#allocation9 + $0xf8] sm:$0xff]
    %v925 = vld [vmem:[#allocation9 + $0x100] sm:$0xff]
    %v926 = vld [vmem:[#allocation9 + $0x108] sm:$0xff]
    %v927 = vld [vmem:[#allocation9 + $0x110] sm:$0xff]
    %v928 = vld [vmem:[#allocation9 + $0x118] sm:$0xff]
    %v929 = vld [vmem:[#allocation9 + $0x120] sm:$0xff]
    %v930 = vld [vmem:[#allocation9 + $0x128] sm:$0xff]
    %v931 = vld [vmem:[#allocation9 + $0x130] sm:$0xff]
    %v932 = vld [vmem:[#allocation9 + $0x138] sm:$0xff]
    %v933 = vld [vmem:[#allocation9 + $0x140] sm:$0xff]
    %v934 = vld [vmem:[#allocation9 + $0x148] sm:$0xff]
    %v935 = vld [vmem:[#allocation9 + $0x150] sm:$0xff]
    %v936 = vld [vmem:[#allocation9 + $0x158] sm:$0xff]
    %v937 = vld [vmem:[#allocation9 + $0x160] sm:$0xff]
    %v938 = vld [vmem:[#allocation9 + $0x168] sm:$0xff]
    %v939 = vld [vmem:[#allocation9 + $0x170] sm:$0xff]
    %v940 = vld [vmem:[#allocation9 + $0x178] sm:$0xff]
    %v941 = vld [vmem:[#allocation9 + $0x180] sm:$0xff]
    %v942 = vld [vmem:[#allocation9 + $0x188] sm:$0xff]
    %v943 = vld [vmem:[#allocation9 + $0x190] sm:$0xff]
    %v944 = vld [vmem:[#allocation9 + $0x198] sm:$0xff]
    %v945 = vld [vmem:[#allocation9 + $0x1a0] sm:$0xff]
    %v946 = vld [vmem:[#allocation9 + $0x1a8] sm:$0xff]
    %v947 = vld [vmem:[#allocation9 + $0x1b0] sm:$0xff]
    %v948 = vld [vmem:[#allocation9 + $0x1b8] sm:$0xff]
    %v949 = vld [vmem:[#allocation9 + $0x1c0] sm:$0xff]
    %v950 = vld [vmem:[#allocation9 + $0x1c8] sm:$0xff]
    %v951 = vld [vmem:[#allocation9 + $0x1d0] sm:$0xff]
    %v952 = vld [vmem:[#allocation9 + $0x1d8] sm:$0xff]
    %v953 = vld [vmem:[#allocation9 + $0x1e0] sm:$0xff]
    %v954 = vld [vmem:[#allocation9 + $0x1e8] sm:$0xff]
    %v955 = vld [vmem:[#allocation9 + $0x1f0] sm:$0xff]
    %v956 = vld [vmem:[#allocation9 + $0x1f8] sm:$0xff]
    %v957 = vld [vmem:[#allocation9 + $0x200] sm:$0xff]
    %v958 = vld [vmem:[#allocation9 + $0x208] sm:$0xff]
    %v959 = vld [vmem:[#allocation9 + $0x210] sm:$0xff]
    %v960 = vld [vmem:[#allocation9 + $0x218] sm:$0xff]
    %v961 = vld [vmem:[#allocation9 + $0x220] sm:$0xff]
    %v962 = vld [vmem:[#allocation9 + $0x228] sm:$0xff]
    %v963 = vld [vmem:[#allocation9 + $0x230] sm:$0xff]
    %v964 = vld [vmem:[#allocation9 + $0x238] sm:$0xff]
    %v965 = vld [vmem:[#allocation9 + $0x240] sm:$0xff]
    %v966 = vld [vmem:[#allocation9 + $0x248] sm:$0xff]
    %v967 = vld [vmem:[#allocation9 + $0x250] sm:$0xff]
    %v968 = vld [vmem:[#allocation9 + $0x258] sm:$0xff]
    %v969 = vld [vmem:[#allocation9 + $0x260] sm:$0xff]
    %v970 = vld [vmem:[#allocation9 + $0x268] sm:$0xff]
    %v971 = vld [vmem:[#allocation9 + $0x270] sm:$0xff]
    %v972 = vld [vmem:[#allocation9 + $0x278] sm:$0xff]
    %v973 = vld [vmem:[#allocation9 + $0x280] sm:$0xff]
    %v974 = vld [vmem:[#allocation9 + $0x288] sm:$0xff]
    %v975 = vld [vmem:[#allocation9 + $0x290] sm:$0xff]
    %v976 = vld [vmem:[#allocation9 + $0x298] sm:$0xff]
    %v977 = vld [vmem:[#allocation9 + $0x2a0] sm:$0xff]
    %v978 = vld [vmem:[#allocation9 + $0x2a8] sm:$0xff]
    %v979 = vld [vmem:[#allocation9 + $0x2b0] sm:$0xff]
    %v980 = vld [vmem:[#allocation9 + $0x2b8] sm:$0xff]
    %v981 = vld [vmem:[#allocation9 + $0x2c0] sm:$0xff]
    %v982 = vld [vmem:[#allocation9 + $0x2c8] sm:$0xff]
    %v983 = vld [vmem:[#allocation9 + $0x2d0] sm:$0xff]
    %v984 = vld [vmem:[#allocation9 + $0x2d8] sm:$0xff]
    %v985 = vld [vmem:[#allocation9 + $0x2e0] sm:$0xff]
    %v986 = vld [vmem:[#allocation9 + $0x2e8] sm:$0xff]
    %v987 = vld [vmem:[#allocation9 + $0x2f0] sm:$0xff]
    %v988 = vld [vmem:[#allocation9 + $0x2f8] sm:$0xff]
    %v989 = vld [vmem:[#allocation9 + $0x300] sm:$0xff]
    %v990 = vld [vmem:[#allocation9 + $0x308] sm:$0xff]
    %v991 = vld [vmem:[#allocation9 + $0x310] sm:$0xff]
    %v992 = vld [vmem:[#allocation9 + $0x318] sm:$0xff]
    %v993 = vld [vmem:[#allocation9 + $0x320] sm:$0xff]
    %v994 = vld [vmem:[#allocation9 + $0x328] sm:$0xff]
    %v995 = vld [vmem:[#allocation9 + $0x330] sm:$0xff]
    %v996 = vld [vmem:[#allocation9 + $0x338] sm:$0xff]
    %v997 = vld [vmem:[#allocation9 + $0x340] sm:$0xff]
    %v998 = vld [vmem:[#allocation9 + $0x348] sm:$0xff]
    %v999 = vld [vmem:[#allocation9 + $0x350] sm:$0xff]
    %v1000 = vld [vmem:[#allocation9 + $0x358] sm:$0xff]
    %v1001 = vld [vmem:[#allocation9 + $0x360] sm:$0xff]
    %v1002 = vld [vmem:[#allocation9 + $0x368] sm:$0xff]
    %v1003 = vld [vmem:[#allocation9 + $0x370] sm:$0xff]
    %v1004 = vld [vmem:[#allocation9 + $0x378] sm:$0xff]
    %v1005 = vld [vmem:[#allocation9 + $0x380] sm:$0xff]
    %v1006 = vld [vmem:[#allocation9 + $0x388] sm:$0xff]
    %v1007 = vld [vmem:[#allocation9 + $0x390] sm:$0xff]
    %v1008 = vld [vmem:[#allocation9 + $0x398] sm:$0xff]
    %v1009 = vld [vmem:[#allocation9 + $0x3a0] sm:$0xff]
    %v1010 = vld [vmem:[#allocation9 + $0x3a8] sm:$0xff]
    %v1011 = vld [vmem:[#allocation9 + $0x3b0] sm:$0xff]
    %v1012 = vld [vmem:[#allocation9 + $0x3b8] sm:$0xff]
    %v1013 = vld [vmem:[#allocation9 + $0x3c0] sm:$0xff]
    %v1014 = vld [vmem:[#allocation9 + $0x3c8] sm:$0xff]
    %v1015 = vld [vmem:[#allocation9 + $0x3d0] sm:$0xff]
    %v1016 = vld [vmem:[#allocation9 + $0x3d8] sm:$0xff]
    %v1017 = vld [vmem:[#allocation9 + $0x3e0] sm:$0xff]
    %v1018 = vld [vmem:[#allocation9 + $0x3e8] sm:$0xff]
    %v1019 = vld [vmem:[#allocation9 + $0x3f0] sm:$0xff]
    %v1020 = vld [vmem:[#allocation9 + $0x3f8] sm:$0xff]
    %v1149 = vunpack.c.l.b16 %v893
    %v1150 = vunpack.c.h.b16 %v893
    %v1151 = vunpack.c.l.b16 %v894
    %v1152 = vunpack.c.h.b16 %v894
    %v1153 = vunpack.c.l.b16 %v895
    %v1154 = vunpack.c.h.b16 %v895
    %v1155 = vunpack.c.l.b16 %v896
    %v1156 = vunpack.c.h.b16 %v896
    %v1157 = vunpack.c.l.b16 %v897
    %v1158 = vunpack.c.h.b16 %v897
    %v1159 = vunpack.c.l.b16 %v898
    %v1160 = vunpack.c.h.b16 %v898
    %v1161 = vunpack.c.l.b16 %v899
    %v1162 = vunpack.c.h.b16 %v899
    %v1163 = vunpack.c.l.b16 %v900
    %v1164 = vunpack.c.h.b16 %v900
    %v1165 = vunpack.c.l.b16 %v901
    %v1166 = vunpack.c.h.b16 %v901
    %v1167 = vunpack.c.l.b16 %v902
    %v1168 = vunpack.c.h.b16 %v902
    %v1169 = vunpack.c.l.b16 %v903
    %v1170 = vunpack.c.h.b16 %v903
    %v1171 = vunpack.c.l.b16 %v904
    %v1172 = vunpack.c.h.b16 %v904
    %v1173 = vunpack.c.l.b16 %v905
    %v1174 = vunpack.c.h.b16 %v905
    %v1175 = vunpack.c.l.b16 %v906
    %v1176 = vunpack.c.h.b16 %v906
    %v1177 = vunpack.c.l.b16 %v907
    %v1178 = vunpack.c.h.b16 %v907
    %v1179 = vunpack.c.l.b16 %v908
    %v1180 = vunpack.c.h.b16 %v908
    %v1181 = vunpack.c.l.b16 %v909
    %v1182 = vunpack.c.h.b16 %v909
    %v1183 = vunpack.c.l.b16 %v910
    %v1184 = vunpack.c.h.b16 %v910
    %v1185 = vunpack.c.l.b16 %v911
    %v1186 = vunpack.c.h.b16 %v911
    %v1187 = vunpack.c.l.b16 %v912
    %v1188 = vunpack.c.h.b16 %v912
    %v1189 = vunpack.c.l.b16 %v913
    %v1190 = vunpack.c.h.b16 %v913
    %v1191 = vunpack.c.l.b16 %v914
    %v1192 = vunpack.c.h.b16 %v914
    %v1193 = vunpack.c.l.b16 %v915
    %v1194 = vunpack.c.h.b16 %v915
    %v1195 = vunpack.c.l.b16 %v916
    %v1196 = vunpack.c.h.b16 %v916
    %v1197 = vunpack.c.l.b16 %v917
    %v1198 = vunpack.c.h.b16 %v917
    %v1199 = vunpack.c.l.b16 %v918
    %v1200 = vunpack.c.h.b16 %v918
    %v1201 = vunpack.c.l.b16 %v919
    %v1202 = vunpack.c.h.b16 %v919
    %v1203 = vunpack.c.l.b16 %v920
    %v1204 = vunpack.c.h.b16 %v920
    %v1205 = vunpack.c.l.b16 %v921
    %v1206 = vunpack.c.h.b16 %v921
    %v1207 = vunpack.c.l.b16 %v922
    %v1208 = vunpack.c.h.b16 %v922
    %v1209 = vunpack.c.l.b16 %v923
    %v1210 = vunpack.c.h.b16 %v923
    %v1211 = vunpack.c.l.b16 %v924
    %v1212 = vunpack.c.h.b16 %v924
    %v1213 = vunpack.c.l.b16 %v925
    %v1214 = vunpack.c.h.b16 %v925
    %v1215 = vunpack.c.l.b16 %v926
    %v1216 = vunpack.c.h.b16 %v926
    %v1217 = vunpack.c.l.b16 %v927
    %v1218 = vunpack.c.h.b16 %v927
    %v1219 = vunpack.c.l.b16 %v928
    %v1220 = vunpack.c.h.b16 %v928
    %v1221 = vunpack.c.l.b16 %v929
    %v1222 = vunpack.c.h.b16 %v929
    %v1223 = vunpack.c.l.b16 %v930
    %v1224 = vunpack.c.h.b16 %v930
    %v1225 = vunpack.c.l.b16 %v931
    %v1226 = vunpack.c.h.b16 %v931
    %v1227 = vunpack.c.l.b16 %v932
    %v1228 = vunpack.c.h.b16 %v932
    %v1229 = vunpack.c.l.b16 %v933
    %v1230 = vunpack.c.h.b16 %v933
    %v1231 = vunpack.c.l.b16 %v934
    %v1232 = vunpack.c.h.b16 %v934
    %v1233 = vunpack.c.l.b16 %v935
    %v1234 = vunpack.c.h.b16 %v935
    %v1235 = vunpack.c.l.b16 %v936
    %v1236 = vunpack.c.h.b16 %v936
    %v1237 = vunpack.c.l.b16 %v937
    %v1238 = vunpack.c.h.b16 %v937
    %v1239 = vunpack.c.l.b16 %v938
    %v1240 = vunpack.c.h.b16 %v938
    %v1241 = vunpack.c.l.b16 %v939
    %v1242 = vunpack.c.h.b16 %v939
    %v1243 = vunpack.c.l.b16 %v940
    %v1244 = vunpack.c.h.b16 %v940
    %v1245 = vunpack.c.l.b16 %v941
    %v1246 = vunpack.c.h.b16 %v941
    %v1247 = vunpack.c.l.b16 %v942
    %v1248 = vunpack.c.h.b16 %v942
    %v1249 = vunpack.c.l.b16 %v943
    %v1250 = vunpack.c.h.b16 %v943
    %v1251 = vunpack.c.l.b16 %v944
    %v1252 = vunpack.c.h.b16 %v944
    %v1253 = vunpack.c.l.b16 %v945
    %v1254 = vunpack.c.h.b16 %v945
    %v1255 = vunpack.c.l.b16 %v946
    %v1256 = vunpack.c.h.b16 %v946
    %v1257 = vunpack.c.l.b16 %v947
    %v1258 = vunpack.c.h.b16 %v947
    %v1259 = vunpack.c.l.b16 %v948
    %v1260 = vunpack.c.h.b16 %v948
    %v1261 = vunpack.c.l.b16 %v949
    %v1262 = vunpack.c.h.b16 %v949
    %v1263 = vunpack.c.l.b16 %v950
    %v1264 = vunpack.c.h.b16 %v950
    %v1265 = vunpack.c.l.b16 %v951
    %v1266 = vunpack.c.h.b16 %v951
    %v1267 = vunpack.c.l.b16 %v952
    %v1268 = vunpack.c.h.b16 %v952
    %v1269 = vunpack.c.l.b16 %v953
    %v1270 = vunpack.c.h.b16 %v953
    %v1271 = vunpack.c.l.b16 %v954
    %v1272 = vunpack.c.h.b16 %v954
    %v1273 = vunpack.c.l.b16 %v955
    %v1274 = vunpack.c.h.b16 %v955
    %v1275 = vunpack.c.l.b16 %v956
    %v1276 = vunpack.c.h.b16 %v956
    %v1277 = vunpack.c.l.b16 %v957
    %v1278 = vunpack.c.h.b16 %v957
    %v1279 = vunpack.c.l.b16 %v958
    %v1280 = vunpack.c.h.b16 %v958
    %v1281 = vunpack.c.l.b16 %v959
    %v1282 = vunpack.c.h.b16 %v959
    %v1283 = vunpack.c.l.b16 %v960
    %v1284 = vunpack.c.h.b16 %v960
    %v1285 = vunpack.c.l.b16 %v961
    %v1286 = vunpack.c.h.b16 %v961
    %v1287 = vunpack.c.l.b16 %v962
    %v1288 = vunpack.c.h.b16 %v962
    %v1289 = vunpack.c.l.b16 %v963
    %v1290 = vunpack.c.h.b16 %v963
    %v1291 = vunpack.c.l.b16 %v964
    %v1292 = vunpack.c.h.b16 %v964
    %v1293 = vunpack.c.l.b16 %v965
    %v1294 = vunpack.c.h.b16 %v965
    %v1295 = vunpack.c.l.b16 %v966
    %v1296 = vunpack.c.h.b16 %v966
    %v1297 = vunpack.c.l.b16 %v967
    %v1298 = vunpack.c.h.b16 %v967
    %v1299 = vunpack.c.l.b16 %v968
    %v1300 = vunpack.c.h.b16 %v968
    %v1301 = vunpack.c.l.b16 %v969
    %v1302 = vunpack.c.h.b16 %v969
    %v1303 = vunpack.c.l.b16 %v970
    %v1304 = vunpack.c.h.b16 %v970
    %v1305 = vunpack.c.l.b16 %v971
    %v1306 = vunpack.c.h.b16 %v971
    %v1307 = vunpack.c.l.b16 %v972
    %v1308 = vunpack.c.h.b16 %v972
    %v1309 = vunpack.c.l.b16 %v973
    %v1310 = vunpack.c.h.b16 %v973
    %v1311 = vunpack.c.l.b16 %v974
    %v1312 = vunpack.c.h.b16 %v974
    %v1313 = vunpack.c.l.b16 %v975
    %v1314 = vunpack.c.h.b16 %v975
    %v1315 = vunpack.c.l.b16 %v976
    %v1316 = vunpack.c.h.b16 %v976
    %v1317 = vunpack.c.l.b16 %v977
    %v1318 = vunpack.c.h.b16 %v977
    %v1319 = vunpack.c.l.b16 %v978
    %v1320 = vunpack.c.h.b16 %v978
    %v1321 = vunpack.c.l.b16 %v979
    %v1322 = vunpack.c.h.b16 %v979
    %v1323 = vunpack.c.l.b16 %v980
    %v1324 = vunpack.c.h.b16 %v980
    %v1325 = vunpack.c.l.b16 %v981
    %v1326 = vunpack.c.h.b16 %v981
    %v1327 = vunpack.c.l.b16 %v982
    %v1328 = vunpack.c.h.b16 %v982
    %v1329 = vunpack.c.l.b16 %v983
    %v1330 = vunpack.c.h.b16 %v983
    %v1331 = vunpack.c.l.b16 %v984
    %v1332 = vunpack.c.h.b16 %v984
    %v1333 = vunpack.c.l.b16 %v985
    %v1334 = vunpack.c.h.b16 %v985
    %v1335 = vunpack.c.l.b16 %v986
    %v1336 = vunpack.c.h.b16 %v986
    %v1337 = vunpack.c.l.b16 %v987
    %v1338 = vunpack.c.h.b16 %v987
    %v1339 = vunpack.c.l.b16 %v988
    %v1340 = vunpack.c.h.b16 %v988
    %v1341 = vunpack.c.l.b16 %v989
    %v1342 = vunpack.c.h.b16 %v989
    %v1343 = vunpack.c.l.b16 %v990
    %v1344 = vunpack.c.h.b16 %v990
    %v1345 = vunpack.c.l.b16 %v991
    %v1346 = vunpack.c.h.b16 %v991
    %v1347 = vunpack.c.l.b16 %v992
    %v1348 = vunpack.c.h.b16 %v992
    %v1349 = vunpack.c.l.b16 %v993
    %v1350 = vunpack.c.h.b16 %v993
    %v1351 = vunpack.c.l.b16 %v994
    %v1352 = vunpack.c.h.b16 %v994
    %v1353 = vunpack.c.l.b16 %v995
    %v1354 = vunpack.c.h.b16 %v995
    %v1355 = vunpack.c.l.b16 %v996
    %v1356 = vunpack.c.h.b16 %v996
    %v1357 = vunpack.c.l.b16 %v997
    %v1358 = vunpack.c.h.b16 %v997
    %v1359 = vunpack.c.l.b16 %v998
    %v1360 = vunpack.c.h.b16 %v998
    %v1361 = vunpack.c.l.b16 %v999
    %v1362 = vunpack.c.h.b16 %v999
    %v1363 = vunpack.c.l.b16 %v1000
    %v1364 = vunpack.c.h.b16 %v1000
    %v1365 = vunpack.c.l.b16 %v1001
    %v1366 = vunpack.c.h.b16 %v1001
    %v1367 = vunpack.c.l.b16 %v1002
    %v1368 = vunpack.c.h.b16 %v1002
    %v1369 = vunpack.c.l.b16 %v1003
    %v1370 = vunpack.c.h.b16 %v1003
    %v1371 = vunpack.c.l.b16 %v1004
    %v1372 = vunpack.c.h.b16 %v1004
    %v1373 = vunpack.c.l.b16 %v1005
    %v1374 = vunpack.c.h.b16 %v1005
    %v1375 = vunpack.c.l.b16 %v1006
    %v1376 = vunpack.c.h.b16 %v1006
    %v1377 = vunpack.c.l.b16 %v1007
    %v1378 = vunpack.c.h.b16 %v1007
    %v1379 = vunpack.c.l.b16 %v1008
    %v1380 = vunpack.c.h.b16 %v1008
    %v1381 = vunpack.c.l.b16 %v1009
    %v1382 = vunpack.c.h.b16 %v1009
    %v1383 = vunpack.c.l.b16 %v1010
    %v1384 = vunpack.c.h.b16 %v1010
    %v1385 = vunpack.c.l.b16 %v1011
    %v1386 = vunpack.c.h.b16 %v1011
    %v1387 = vunpack.c.l.b16 %v1012
    %v1388 = vunpack.c.h.b16 %v1012
    %v1389 = vunpack.c.l.b16 %v1013
    %v1390 = vunpack.c.h.b16 %v1013
    %v1391 = vunpack.c.l.b16 %v1014
    %v1392 = vunpack.c.h.b16 %v1014
    %v1393 = vunpack.c.l.b16 %v1015
    %v1394 = vunpack.c.h.b16 %v1015
    %v1395 = vunpack.c.l.b16 %v1016
    %v1396 = vunpack.c.h.b16 %v1016
    %v1397 = vunpack.c.l.b16 %v1017
    %v1398 = vunpack.c.h.b16 %v1017
    %v1399 = vunpack.c.l.b16 %v1018
    %v1400 = vunpack.c.h.b16 %v1018
    %v1401 = vunpack.c.l.b16 %v1019
    %v1402 = vunpack.c.h.b16 %v1019
    %v1403 = vunpack.c.l.b16 %v1020
    %v1404 = vunpack.c.h.b16 %v1020
    %v1405 = vpack.c.b16 %v1157, %v1149
    %v1406 = vpack.c.b16 %v1158, %v1150
    %v1407 = vpack.c.b16 %v1159, %v1151
    %v1408 = vpack.c.b16 %v1160, %v1152
    %v1409 = vpack.c.b16 %v1161, %v1153
    %v1410 = vpack.c.b16 %v1162, %v1154
    %v1411 = vpack.c.b16 %v1163, %v1155
    %v1412 = vpack.c.b16 %v1164, %v1156
    %v1413 = vpack.c.b16 %v1173, %v1165
    %v1414 = vpack.c.b16 %v1174, %v1166
    %v1415 = vpack.c.b16 %v1175, %v1167
    %v1416 = vpack.c.b16 %v1176, %v1168
    %v1417 = vpack.c.b16 %v1177, %v1169
    %v1418 = vpack.c.b16 %v1178, %v1170
    %v1419 = vpack.c.b16 %v1179, %v1171
    %v1420 = vpack.c.b16 %v1180, %v1172
    %v1421 = vpack.c.b16 %v1189, %v1181
    %v1422 = vpack.c.b16 %v1190, %v1182
    %v1423 = vpack.c.b16 %v1191, %v1183
    %v1424 = vpack.c.b16 %v1192, %v1184
    %v1425 = vpack.c.b16 %v1193, %v1185
    %v1426 = vpack.c.b16 %v1194, %v1186
    %v1427 = vpack.c.b16 %v1195, %v1187
    %v1428 = vpack.c.b16 %v1196, %v1188
    %v1429 = vpack.c.b16 %v1205, %v1197
    %v1430 = vpack.c.b16 %v1206, %v1198
    %v1431 = vpack.c.b16 %v1207, %v1199
    %v1432 = vpack.c.b16 %v1208, %v1200
    %v1433 = vpack.c.b16 %v1209, %v1201
    %v1434 = vpack.c.b16 %v1210, %v1202
    %v1435 = vpack.c.b16 %v1211, %v1203
    %v1436 = vpack.c.b16 %v1212, %v1204
    %v1437 = vpack.c.b16 %v1221, %v1213
    %v1438 = vpack.c.b16 %v1222, %v1214
    %v1439 = vpack.c.b16 %v1223, %v1215
    %v1440 = vpack.c.b16 %v1224, %v1216
    %v1441 = vpack.c.b16 %v1225, %v1217
    %v1442 = vpack.c.b16 %v1226, %v1218
    %v1443 = vpack.c.b16 %v1227, %v1219
    %v1444 = vpack.c.b16 %v1228, %v1220
    %v1445 = vpack.c.b16 %v1237, %v1229
    %v1446 = vpack.c.b16 %v1238, %v1230
    %v1447 = vpack.c.b16 %v1239, %v1231
    %v1448 = vpack.c.b16 %v1240, %v1232
    %v1449 = vpack.c.b16 %v1241, %v1233
    %v1450 = vpack.c.b16 %v1242, %v1234
    %v1451 = vpack.c.b16 %v1243, %v1235
    %v1452 = vpack.c.b16 %v1244, %v1236
    %v1453 = vpack.c.b16 %v1253, %v1245
    %v1454 = vpack.c.b16 %v1254, %v1246
    %v1455 = vpack.c.b16 %v1255, %v1247
    %v1456 = vpack.c.b16 %v1256, %v1248
    %v1457 = vpack.c.b16 %v1257, %v1249
    %v1458 = vpack.c.b16 %v1258, %v1250
    %v1459 = vpack.c.b16 %v1259, %v1251
    %v1460 = vpack.c.b16 %v1260, %v1252
    %v1461 = vpack.c.b16 %v1269, %v1261
    %v1462 = vpack.c.b16 %v1270, %v1262
    %v1463 = vpack.c.b16 %v1271, %v1263
    %v1464 = vpack.c.b16 %v1272, %v1264
    %v1465 = vpack.c.b16 %v1273, %v1265
    %v1466 = vpack.c.b16 %v1274, %v1266
    %v1467 = vpack.c.b16 %v1275, %v1267
    %v1468 = vpack.c.b16 %v1276, %v1268
    %v1469 = vpack.c.b16 %v1285, %v1277
    %v1470 = vpack.c.b16 %v1286, %v1278
    %v1471 = vpack.c.b16 %v1287, %v1279
    %v1472 = vpack.c.b16 %v1288, %v1280
    %v1473 = vpack.c.b16 %v1289, %v1281
    %v1474 = vpack.c.b16 %v1290, %v1282
    %v1475 = vpack.c.b16 %v1291, %v1283
    %v1476 = vpack.c.b16 %v1292, %v1284
    %v1477 = vpack.c.b16 %v1301, %v1293
    %v1478 = vpack.c.b16 %v1302, %v1294
    %v1479 = vpack.c.b16 %v1303, %v1295
    %v1480 = vpack.c.b16 %v1304, %v1296
    %v1481 = vpack.c.b16 %v1305, %v1297
    %v1482 = vpack.c.b16 %v1306, %v1298
    %v1483 = vpack.c.b16 %v1307, %v1299
    %v1484 = vpack.c.b16 %v1308, %v1300
    %v1485 = vpack.c.b16 %v1317, %v1309
    %v1486 = vpack.c.b16 %v1318, %v1310
    %v1487 = vpack.c.b16 %v1319, %v1311
    %v1488 = vpack.c.b16 %v1320, %v1312
    %v1489 = vpack.c.b16 %v1321, %v1313
    %v1490 = vpack.c.b16 %v1322, %v1314
    %v1491 = vpack.c.b16 %v1323, %v1315
    %v1492 = vpack.c.b16 %v1324, %v1316
    %v1493 = vpack.c.b16 %v1333, %v1325
    %v1494 = vpack.c.b16 %v1334, %v1326
    %v1495 = vpack.c.b16 %v1335, %v1327
    %v1496 = vpack.c.b16 %v1336, %v1328
    %v1497 = vpack.c.b16 %v1337, %v1329
    %v1498 = vpack.c.b16 %v1338, %v1330
    %v1499 = vpack.c.b16 %v1339, %v1331
    %v1500 = vpack.c.b16 %v1340, %v1332
    %v1501 = vpack.c.b16 %v1349, %v1341
    %v1502 = vpack.c.b16 %v1350, %v1342
    %v1503 = vpack.c.b16 %v1351, %v1343
    %v1504 = vpack.c.b16 %v1352, %v1344
    %v1505 = vpack.c.b16 %v1353, %v1345
    %v1506 = vpack.c.b16 %v1354, %v1346
    %v1507 = vpack.c.b16 %v1355, %v1347
    %v1508 = vpack.c.b16 %v1356, %v1348
    %v1509 = vpack.c.b16 %v1365, %v1357
    %v1510 = vpack.c.b16 %v1366, %v1358
    %v1511 = vpack.c.b16 %v1367, %v1359
    %v1512 = vpack.c.b16 %v1368, %v1360
    %v1513 = vpack.c.b16 %v1369, %v1361
    %v1514 = vpack.c.b16 %v1370, %v1362
    %v1515 = vpack.c.b16 %v1371, %v1363
    %v1516 = vpack.c.b16 %v1372, %v1364
    %v1517 = vpack.c.b16 %v1381, %v1373
    %v1518 = vpack.c.b16 %v1382, %v1374
    %v1519 = vpack.c.b16 %v1383, %v1375
    %v1520 = vpack.c.b16 %v1384, %v1376
    %v1521 = vpack.c.b16 %v1385, %v1377
    %v1522 = vpack.c.b16 %v1386, %v1378
    %v1523 = vpack.c.b16 %v1387, %v1379
    %v1524 = vpack.c.b16 %v1388, %v1380
    %v1525 = vpack.c.b16 %v1397, %v1389
    %v1526 = vpack.c.b16 %v1398, %v1390
    %v1527 = vpack.c.b16 %v1399, %v1391
    %v1528 = vpack.c.b16 %v1400, %v1392
    %v1529 = vpack.c.b16 %v1401, %v1393
    %v1530 = vpack.c.b16 %v1402, %v1394
    %v1531 = vpack.c.b16 %v1403, %v1395
    %v1532 = vpack.c.b16 %v1404, %v1396
    %1661 = vmatprep.subr.bf16.mxu0 %v1406
    %1662 = vmatpush1.bf16.msra.mxu0 %v1405
    %1663 = vmatprep.subr.bf16.mxu0 %v1414
    %1664 = vmatpush1.bf16.msra.mxu0 %v1413
    %1665 = vmatprep.subr.bf16.mxu0 %v1422
    %1666 = vmatpush1.bf16.msra.mxu0 %v1421
    %1667 = vmatprep.subr.bf16.mxu0 %v1430
    %1668 = vmatpush1.bf16.msra.mxu0 %v1429
    %1669 = vmatprep.subr.bf16.mxu0 %v1438
    %1670 = vmatpush1.bf16.msra.mxu0 %v1437
    %1671 = vmatprep.subr.bf16.mxu0 %v1446
    %1672 = vmatpush1.bf16.msra.mxu0 %v1445
    %1673 = vmatprep.subr.bf16.mxu0 %v1454
    %1674 = vmatpush1.bf16.msra.mxu0 %v1453
    %1675 = vmatprep.subr.bf16.mxu0 %v1462
    %1676 = vmatpush1.bf16.msra.mxu0 %v1461
    %1677 = vmatprep.subr.bf16.mxu0 %v1470
    %1678 = vmatpush1.bf16.msra.mxu0 %v1469
    %1679 = vmatprep.subr.bf16.mxu0 %v1478
    %1680 = vmatpush1.bf16.msra.mxu0 %v1477
    %1681 = vmatprep.subr.bf16.mxu0 %v1486
    %1682 = vmatpush1.bf16.msra.mxu0 %v1485
    %1683 = vmatprep.subr.bf16.mxu0 %v1494
    %1684 = vmatpush1.bf16.msra.mxu0 %v1493
    %1685 = vmatprep.subr.bf16.mxu0 %v1502
    %1686 = vmatpush1.bf16.msra.mxu0 %v1501
    %1687 = vmatprep.subr.bf16.mxu0 %v1510
    %1688 = vmatpush1.bf16.msra.mxu0 %v1509
    %1689 = vmatprep.subr.bf16.mxu0 %v1518
    %1690 = vmatpush1.bf16.msra.mxu0 %v1517
    %1691 = vmatprep.subr.bf16.mxu0 %v1526
    %1692 = vmatpush1.bf16.msra.mxu0 %v1525
    %1693 = vmatprep.mubr.bf16.mxu0 %v892
    %1694 = vmatmul.mubr.bf16.gmra.mrb[0].mxu0 %v891
    %v1695 = vpop.f32.mrb[0].mxu0
    %v1696 = vadd.f32 0.0, %v1695
    %v1697 = vpop.f32.mrb[0].mxu0
    %v1698 = vadd.f32 0.0, %v1697
    %v1699 = vpop.f32.mrb[0].mxu0
    %v1700 = vpop.f32.mrb[0].mxu0
    %1701 = vdwg.mxu0
    %1702 = vmatprep.subr.bf16.mxu0 %v1408
    %1703 = vmatpush1.bf16.msra.mxu0 %v1407
    %1704 = vmatprep.subr.bf16.mxu0 %v1416
    %1705 = vmatpush1.bf16.msra.mxu0 %v1415
    %1706 = vmatprep.subr.bf16.mxu0 %v1424
    %1707 = vmatpush1.bf16.msra.mxu0 %v1423
    %1708 = vmatprep.subr.bf16.mxu0 %v1432
    %1709 = vmatpush1.bf16.msra.mxu0 %v1431
    %1710 = vmatprep.subr.bf16.mxu0 %v1440
    %1711 = vmatpush1.bf16.msra.mxu0 %v1439
    %1712 = vmatprep.subr.bf16.mxu0 %v1448
    %1713 = vmatpush1.bf16.msra.mxu0 %v1447
    %1714 = vmatprep.subr.bf16.mxu0 %v1456
    %1715 = vmatpush1.bf16.msra.mxu0 %v1455
    %1716 = vmatprep.subr.bf16.mxu0 %v1464
    %1717 = vmatpush1.bf16.msra.mxu0 %v1463
    %1718 = vmatprep.subr.bf16.mxu0 %v1472
    %1719 = vmatpush1.bf16.msra.mxu0 %v1471
    %1720 = vmatprep.subr.bf16.mxu0 %v1480
    %1721 = vmatpush1.bf16.msra.mxu0 %v1479
    %1722 = vmatprep.subr.bf16.mxu0 %v1488
    %1723 = vmatpush1.bf16.msra.mxu0 %v1487
    %1724 = vmatprep.subr.bf16.mxu0 %v1496
    %1725 = vmatpush1.bf16.msra.mxu0 %v1495
    %1726 = vmatprep.subr.bf16.mxu0 %v1504
    %1727 = vmatpush1.bf16.msra.mxu0 %v1503
    %1728 = vmatprep.subr.bf16.mxu0 %v1512
    %1729 = vmatpush1.bf16.msra.mxu0 %v1511
    %1730 = vmatprep.subr.bf16.mxu0 %v1520
    %1731 = vmatpush1.bf16.msra.mxu0 %v1519
    %1732 = vmatprep.subr.bf16.mxu0 %v1528
    %1733 = vmatpush1.bf16.msra.mxu0 %v1527
    %1734 = vmatprep.mubr.bf16.mxu0 %v892
    %1735 = vmatmul.mubr.bf16.gmra.mrb[0].mxu0 %v891
    %v1736 = vpop.f32.mrb[0].mxu0
    %v1737 = vadd.f32 0.0, %v1736
    %v1738 = vpop.f32.mrb[0].mxu0
    %v1739 = vadd.f32 0.0, %v1738
    %v1740 = vpop.f32.mrb[0].mxu0
    %v1741 = vpop.f32.mrb[0].mxu0
    %1742 = vdwg.mxu0
    %1743 = vmatprep.subr.bf16.mxu0 %v1410
    %1744 = vmatpush1.bf16.msra.mxu0 %v1409
    %1745 = vmatprep.subr.bf16.mxu0 %v1418
    %1746 = vmatpush1.bf16.msra.mxu0 %v1417
    %1747 = vmatprep.subr.bf16.mxu0 %v1426
    %1748 = vmatpush1.bf16.msra.mxu0 %v1425
    %1749 = vmatprep.subr.bf16.mxu0 %v1434
    %1750 = vmatpush1.bf16.msra.mxu0 %v1433
    %1751 = vmatprep.subr.bf16.mxu0 %v1442
    %1752 = vmatpush1.bf16.msra.mxu0 %v1441
    %1753 = vmatprep.subr.bf16.mxu0 %v1450
    %1754 = vmatpush1.bf16.msra.mxu0 %v1449
    %1755 = vmatprep.subr.bf16.mxu0 %v1458
    %1756 = vmatpush1.bf16.msra.mxu0 %v1457
    %1757 = vmatprep.subr.bf16.mxu0 %v1466
    %1758 = vmatpush1.bf16.msra.mxu0 %v1465
    %1759 = vmatprep.subr.bf16.mxu0 %v1474
    %1760 = vmatpush1.bf16.msra.mxu0 %v1473
    %1761 = vmatprep.subr.bf16.mxu0 %v1482
    %1762 = vmatpush1.bf16.msra.mxu0 %v1481
    %1763 = vmatprep.subr.bf16.mxu0 %v1490
    %1764 = vmatpush1.bf16.msra.mxu0 %v1489
    %1765 = vmatprep.subr.bf16.mxu0 %v1498
    %1766 = vmatpush1.bf16.msra.mxu0 %v1497
    %1767 = vmatprep.subr.bf16.mxu0 %v1506
    %1768 = vmatpush1.bf16.msra.mxu0 %v1505
    %1769 = vmatprep.subr.bf16.mxu0 %v1514
    %1770 = vmatpush1.bf16.msra.mxu0 %v1513
    %1771 = vmatprep.subr.bf16.mxu0 %v1522
    %1772 = vmatpush1.bf16.msra.mxu0 %v1521
    %1773 = vmatprep.subr.bf16.mxu0 %v1530
    %1774 = vmatpush1.bf16.msra.mxu0 %v1529
    %1775 = vmatprep.mubr.bf16.mxu0 %v892
    %1776 = vmatmul.mubr.bf16.gmra.mrb[0].mxu0 %v891
    %v1777 = vpop.f32.mrb[0].mxu0
    %v1778 = vadd.f32 0.0, %v1777
    %v1779 = vpop.f32.mrb[0].mxu0
    %v1780 = vadd.f32 0.0, %v1779
    %v1781 = vpop.f32.mrb[0].mxu0
    %v1782 = vpop.f32.mrb[0].mxu0
    %1783 = vdwg.mxu0
    %1784 = vmatprep.subr.bf16.mxu0 %v1412
    %1785 = vmatpush1.bf16.msra.mxu0 %v1411
    %1786 = vmatprep.subr.bf16.mxu0 %v1420
    %1787 = vmatpush1.bf16.msra.mxu0 %v1419
    %1788 = vmatprep.subr.bf16.mxu0 %v1428
    %1789 = vmatpush1.bf16.msra.mxu0 %v1427
    %1790 = vmatprep.subr.bf16.mxu0 %v1436
    %1791 = vmatpush1.bf16.msra.mxu0 %v1435
    %1792 = vmatprep.subr.bf16.mxu0 %v1444
    %1793 = vmatpush1.bf16.msra.mxu0 %v1443
    %1794 = vmatprep.subr.bf16.mxu0 %v1452
    %1795 = vmatpush1.bf16.msra.mxu0 %v1451
    %1796 = vmatprep.subr.bf16.mxu0 %v1460
    %1797 = vmatpush1.bf16.msra.mxu0 %v1459
    %1798 = vmatprep.subr.bf16.mxu0 %v1468
    %1799 = vmatpush1.bf16.msra.mxu0 %v1467
    %1800 = vmatprep.subr.bf16.mxu0 %v1476
    %1801 = vmatpush1.bf16.msra.mxu0 %v1475
    %1802 = vmatprep.subr.bf16.mxu0 %v1484
    %1803 = vmatpush1.bf16.msra.mxu0 %v1483
    %1804 = vmatprep.subr.bf16.mxu0 %v1492
    %1805 = vmatpush1.bf16.msra.mxu0 %v1491
    %1806 = vmatprep.subr.bf16.mxu0 %v1500
    %1807 = vmatpush1.bf16.msra.mxu0 %v1499
    %1808 = vmatprep.subr.bf16.mxu0 %v1508
    %1809 = vmatpush1.bf16.msra.mxu0 %v1507
    %1810 = vmatprep.subr.bf16.mxu0 %v1516
    %1811 = vmatpush1.bf16.msra.mxu0 %v1515
    %1812 = vmatprep.subr.bf16.mxu0 %v1524
    %1813 = vmatpush1.bf16.msra.mxu0 %v1523
    %1814 = vmatprep.subr.bf16.mxu0 %v1532
    %1815 = vmatpush1.bf16.msra.mxu0 %v1531
    %1816 = vmatprep.mubr.bf16.mxu0 %v892
    %1817 = vmatmul.mubr.bf16.gmra.mrb[0].mxu0 %v891
    %v1818 = vpop.f32.mrb[0].mxu0
    %v1819 = vadd.f32 0.0, %v1818
    %v1820 = vpop.f32.mrb[0].mxu0
    %v1821 = vadd.f32 0.0, %v1820
    %v1822 = vpop.f32.mrb[0].mxu0
    %v1823 = vpop.f32.mrb[0].mxu0
    %1824 = vdwg.mxu0
    %v1825 = vadd.f32 %v883, %v1696
    %v1826 = vadd.f32 %v884, %v1698
    %v1827 = vadd.f32 %v885, %v1737
    %v1828 = vadd.f32 %v886, %v1739
    %v1829 = vadd.f32 %v887, %v1778
    %v1830 = vadd.f32 %v888, %v1780
    %v1831 = vadd.f32 %v889, %v1819
    %v1832 = vadd.f32 %v890, %v1821
    %v1833 = vxor.u32 %v1825, 2147483648
    %v1834 = vxor.u32 %v1826, 2147483648
    %v1835 = vxor.u32 %v1827, 2147483648
    %v1836 = vxor.u32 %v1828, 2147483648
    %v1837 = vxor.u32 %v1829, 2147483648
    %v1838 = vxor.u32 %v1830, 2147483648
    %v1839 = vmul.f32 %v1833, 1.442695
    %v1840 = vpow.pop %v1839
    %v1841 = vmul.f32 %v1834, 1.442695
    %v1842 = vpow.pop %v1841
    %v1843 = vmul.f32 %v1835, 1.442695
    %v1844 = vpow.pop %v1843
    %v1845 = vmul.f32 %v1836, 1.442695
    %v1846 = vpow.pop %v1845
    %v1847 = vmul.f32 %v1837, 1.442695
    %v1848 = vpow.pop %v1847
    %v1849 = vmul.f32 %v1838, 1.442695
    %v1850 = vpow.pop %v1849
    %v1851 = vadd.f32 %v1840, 1.0
    %v1852 = vadd.f32 %v1842, 1.0
    %v1853 = vadd.f32 %v1844, 1.0
    %v1854 = vadd.f32 %v1846, 1.0
    %v1855 = vadd.f32 %v1848, 1.0
    %v1856 = vadd.f32 %v1850, 1.0
    %v1857 = vrcp.pop %v1851
    %v1858 = vmul.f32 1.0, %v1857
    %v1859 = vrcp.pop %v1852
    %v1860 = vmul.f32 1.0, %v1859
    %v1861 = vrcp.pop %v1853
    %v1862 = vmul.f32 1.0, %v1861
    %v1863 = vrcp.pop %v1854
    %v1864 = vmul.f32 1.0, %v1863
    %v1865 = vrcp.pop %v1855
    %v1866 = vmul.f32 1.0, %v1865
    %v1867 = vrcp.pop %v1856
    %v1868 = vmul.f32 1.0, %v1867
    %v1869 = vtanh.pop %v1831
    %v1870 = vtanh.pop %v1832
    %v1871 = vmul.f32 %v1862, %v881
    %v1872 = vmul.f32 %v1864, %v882
    %v1873 = vmul.f32 %v1858, %v1869
    %v1874 = vmul.f32 %v1860, %v1870
    %v1875 = vadd.f32 %v1871, %v1873
    %v1876 = vadd.f32 %v1872, %v1874
    %v1877 = vtanh.pop %v1875
    %v1878 = vtanh.pop %v1876
    %v1879 = vmul.f32 %v1866, %v1877
    %v1880 = vmul.f32 %v1868, %v1878
    %1881 = vst [vmem:[#allocation5] sm:$0xff] %v1879
    %1882 = vst [vmem:[#allocation5 + $0x8] sm:$0xff] %v1880
    %s1883 = scalar_lea.vmem [#allocation4], 64
    %v1884 = vld [vmem:[%s1883] sm:$0xff]
    %v1885 = vld [vmem:[%s1883 + $0x8] sm:$0xff]
    %v1886 = vld [vmem:[%s1883 + $0x10] sm:$0xff]
    %v1887 = vld [vmem:[%s1883 + $0x18] sm:$0xff]
    %v1888 = vld [vmem:[%s1883 + $0x20] sm:$0xff]
    %v1889 = vld [vmem:[%s1883 + $0x28] sm:$0xff]
    %v1890 = vld [vmem:[%s1883 + $0x30] sm:$0xff]
    %v1891 = vld [vmem:[%s1883 + $0x38] sm:$0xff]
    %v1892 = vpack.c.bf16 %v1879, %v1879
    %v1893 = vpack.c.bf16 %v1880, %v1880
    %v1894 = vld [vmem:[#allocation9] sm:$0xff]
    %v1895 = vld [vmem:[#allocation9 + $0x8] sm:$0xff]
    %v1896 = vld [vmem:[#allocation9 + $0x10] sm:$0xff]
    %v1897 = vld [vmem:[#allocation9 + $0x18] sm:$0xff]
    %v1898 = vld [vmem:[#allocation9 + $0x20] sm:$0xff]
    %v1899 = vld [vmem:[#allocation9 + $0x28] sm:$0xff]
    %v1900 = vld [vmem:[#allocation9 + $0x30] sm:$0xff]
    %v1901 = vld [vmem:[#allocation9 + $0x38] sm:$0xff]
    %v1902 = vld [vmem:[#allocation9 + $0x40] sm:$0xff]
    %v1903 = vld [vmem:[#allocation9 + $0x48] sm:$0xff]
    %v1904 = vld [vmem:[#allocation9 + $0x50] sm:$0xff]
    %v1905 = vld [vmem:[#allocation9 + $0x58] sm:$0xff]
    %v1906 = vld [vmem:[#allocation9 + $0x60] sm:$0xff]
    %v1907 = vld [vmem:[#allocation9 + $0x68] sm:$0xff]
    %v1908 = vld [vmem:[#allocation9 + $0x70] sm:$0xff]
    %v1909 = vld [vmem:[#allocation9 + $0x78] sm:$0xff]
    %v1910 = vld [vmem:[#allocation9 + $0x80] sm:$0xff]
    %v1911 = vld [vmem:[#allocation9 + $0x88] sm:$0xff]
    %v1912 = vld [vmem:[#allocation9 + $0x90] sm:$0xff]
    %v1913 = vld [vmem:[#allocation9 + $0x98] sm:$0xff]
    %v1914 = vld [vmem:[#allocation9 + $0xa0] sm:$0xff]
    %v1915 = vld [vmem:[#allocation9 + $0xa8] sm:$0xff]
    %v1916 = vld [vmem:[#allocation9 + $0xb0] sm:$0xff]
    %v1917 = vld [vmem:[#allocation9 + $0xb8] sm:$0xff]
    %v1918 = vld [vmem:[#allocation9 + $0xc0] sm:$0xff]
    %v1919 = vld [vmem:[#allocation9 + $0xc8] sm:$0xff]
    %v1920 = vld [vmem:[#allocation9 + $0xd0] sm:$0xff]
    %v1921 = vld [vmem:[#allocation9 + $0xd8] sm:$0xff]
    %v1922 = vld [vmem:[#allocation9 + $0xe0] sm:$0xff]
    %v1923 = vld [vmem:[#allocation9 + $0xe8] sm:$0xff]
    %v1924 = vld [vmem:[#allocation9 + $0xf0] sm:$0xff]
    %v1925 = vld [vmem:[#allocation9 + $0xf8] sm:$0xff]
    %v1926 = vld [vmem:[#allocation9 + $0x100] sm:$0xff]
    %v1927 = vld [vmem:[#allocation9 + $0x108] sm:$0xff]
    %v1928 = vld [vmem:[#allocation9 + $0x110] sm:$0xff]
    %v1929 = vld [vmem:[#allocation9 + $0x118] sm:$0xff]
    %v1930 = vld [vmem:[#allocation9 + $0x120] sm:$0xff]
    %v1931 = vld [vmem:[#allocation9 + $0x128] sm:$0xff]
    %v1932 = vld [vmem:[#allocation9 + $0x130] sm:$0xff]
    %v1933 = vld [vmem:[#allocation9 + $0x138] sm:$0xff]
    %v1934 = vld [vmem:[#allocation9 + $0x140] sm:$0xff]
    %v1935 = vld [vmem:[#allocation9 + $0x148] sm:$0xff]
    %v1936 = vld [vmem:[#allocation9 + $0x150] sm:$0xff]
    %v1937 = vld [vmem:[#allocation9 + $0x158] sm:$0xff]
    %v1938 = vld [vmem:[#allocation9 + $0x160] sm:$0xff]
    %v1939 = vld [vmem:[#allocation9 + $0x168] sm:$0xff]
    %v1940 = vld [vmem:[#allocation9 + $0x170] sm:$0xff]
    %v1941 = vld [vmem:[#allocation9 + $0x178] sm:$0xff]
    %v1942 = vld [vmem:[#allocation9 + $0x180] sm:$0xff]
    %v1943 = vld [vmem:[#allocation9 + $0x188] sm:$0xff]
    %v1944 = vld [vmem:[#allocation9 + $0x190] sm:$0xff]
    %v1945 = vld [vmem:[#allocation9 + $0x198] sm:$0xff]
    %v1946 = vld [vmem:[#allocation9 + $0x1a0] sm:$0xff]
    %v1947 = vld [vmem:[#allocation9 + $0x1a8] sm:$0xff]
    %v1948 = vld [vmem:[#allocation9 + $0x1b0] sm:$0xff]
    %v1949 = vld [vmem:[#allocation9 + $0x1b8] sm:$0xff]
    %v1950 = vld [vmem:[#allocation9 + $0x1c0] sm:$0xff]
    %v1951 = vld [vmem:[#allocation9 + $0x1c8] sm:$0xff]
    %v1952 = vld [vmem:[#allocation9 + $0x1d0] sm:$0xff]
    %v1953 = vld [vmem:[#allocation9 + $0x1d8] sm:$0xff]
    %v1954 = vld [vmem:[#allocation9 + $0x1e0] sm:$0xff]
    %v1955 = vld [vmem:[#allocation9 + $0x1e8] sm:$0xff]
    %v1956 = vld [vmem:[#allocation9 + $0x1f0] sm:$0xff]
    %v1957 = vld [vmem:[#allocation9 + $0x1f8] sm:$0xff]
    %v1958 = vld [vmem:[#allocation9 + $0x200] sm:$0xff]
    %v1959 = vld [vmem:[#allocation9 + $0x208] sm:$0xff]
    %v1960 = vld [vmem:[#allocation9 + $0x210] sm:$0xff]
    %v1961 = vld [vmem:[#allocation9 + $0x218] sm:$0xff]
    %v1962 = vld [vmem:[#allocation9 + $0x220] sm:$0xff]
    %v1963 = vld [vmem:[#allocation9 + $0x228] sm:$0xff]
    %v1964 = vld [vmem:[#allocation9 + $0x230] sm:$0xff]
    %v1965 = vld [vmem:[#allocation9 + $0x238] sm:$0xff]
    %v1966 = vld [vmem:[#allocation9 + $0x240] sm:$0xff]
    %v1967 = vld [vmem:[#allocation9 + $0x248] sm:$0xff]
    %v1968 = vld [vmem:[#allocation9 + $0x250] sm:$0xff]
    %v1969 = vld [vmem:[#allocation9 + $0x258] sm:$0xff]
    %v1970 = vld [vmem:[#allocation9 + $0x260] sm:$0xff]
    %v1971 = vld [vmem:[#allocation9 + $0x268] sm:$0xff]
    %v1972 = vld [vmem:[#allocation9 + $0x270] sm:$0xff]
    %v1973 = vld [vmem:[#allocation9 + $0x278] sm:$0xff]
    %v1974 = vld [vmem:[#allocation9 + $0x280] sm:$0xff]
    %v1975 = vld [vmem:[#allocation9 + $0x288] sm:$0xff]
    %v1976 = vld [vmem:[#allocation9 + $0x290] sm:$0xff]
    %v1977 = vld [vmem:[#allocation9 + $0x298] sm:$0xff]
    %v1978 = vld [vmem:[#allocation9 + $0x2a0] sm:$0xff]
    %v1979 = vld [vmem:[#allocation9 + $0x2a8] sm:$0xff]
    %v1980 = vld [vmem:[#allocation9 + $0x2b0] sm:$0xff]
    %v1981 = vld [vmem:[#allocation9 + $0x2b8] sm:$0xff]
    %v1982 = vld [vmem:[#allocation9 + $0x2c0] sm:$0xff]
    %v1983 = vld [vmem:[#allocation9 + $0x2c8] sm:$0xff]
    %v1984 = vld [vmem:[#allocation9 + $0x2d0] sm:$0xff]
    %v1985 = vld [vmem:[#allocation9 + $0x2d8] sm:$0xff]
    %v1986 = vld [vmem:[#allocation9 + $0x2e0] sm:$0xff]
    %v1987 = vld [vmem:[#allocation9 + $0x2e8] sm:$0xff]
    %v1988 = vld [vmem:[#allocation9 + $0x2f0] sm:$0xff]
    %v1989 = vld [vmem:[#allocation9 + $0x2f8] sm:$0xff]
    %v1990 = vld [vmem:[#allocation9 + $0x300] sm:$0xff]
    %v1991 = vld [vmem:[#allocation9 + $0x308] sm:$0xff]
    %v1992 = vld [vmem:[#allocation9 + $0x310] sm:$0xff]
    %v1993 = vld [vmem:[#allocation9 + $0x318] sm:$0xff]
    %v1994 = vld [vmem:[#allocation9 + $0x320] sm:$0xff]
    %v1995 = vld [vmem:[#allocation9 + $0x328] sm:$0xff]
    %v1996 = vld [vmem:[#allocation9 + $0x330] sm:$0xff]
    %v1997 = vld [vmem:[#allocation9 + $0x338] sm:$0xff]
    %v1998 = vld [vmem:[#allocation9 + $0x340] sm:$0xff]
    %v1999 = vld [vmem:[#allocation9 + $0x348] sm:$0xff]
    %v2000 = vld [vmem:[#allocation9 + $0x350] sm:$0xff]
    %v2001 = vld [vmem:[#allocation9 + $0x358] sm:$0xff]
    %v2002 = vld [vmem:[#allocation9 + $0x360] sm:$0xff]
    %v2003 = vld [vmem:[#allocation9 + $0x368] sm:$0xff]
    %v2004 = vld [vmem:[#allocation9 + $0x370] sm:$0xff]
    %v2005 = vld [vmem:[#allocation9 + $0x378] sm:$0xff]
    %v2006 = vld [vmem:[#allocation9 + $0x380] sm:$0xff]
    %v2007 = vld [vmem:[#allocation9 + $0x388] sm:$0xff]
    %v2008 = vld [vmem:[#allocation9 + $0x390] sm:$0xff]
    %v2009 = vld [vmem:[#allocation9 + $0x398] sm:$0xff]
    %v2010 = vld [vmem:[#allocation9 + $0x3a0] sm:$0xff]
    %v2011 = vld [vmem:[#allocation9 + $0x3a8] sm:$0xff]
    %v2012 = vld [vmem:[#allocation9 + $0x3b0] sm:$0xff]
    %v2013 = vld [vmem:[#allocation9 + $0x3b8] sm:$0xff]
    %v2014 = vld [vmem:[#allocation9 + $0x3c0] sm:$0xff]
    %v2015 = vld [vmem:[#allocation9 + $0x3c8] sm:$0xff]
    %v2016 = vld [vmem:[#allocation9 + $0x3d0] sm:$0xff]
    %v2017 = vld [vmem:[#allocation9 + $0x3d8] sm:$0xff]
    %v2018 = vld [vmem:[#allocation9 + $0x3e0] sm:$0xff]
    %v2019 = vld [vmem:[#allocation9 + $0x3e8] sm:$0xff]
    %v2020 = vld [vmem:[#allocation9 + $0x3f0] sm:$0xff]
    %v2021 = vld [vmem:[#allocation9 + $0x3f8] sm:$0xff]
    %v2150 = vunpack.c.l.b16 %v1894
    %v2151 = vunpack.c.h.b16 %v1894
    %v2152 = vunpack.c.l.b16 %v1895
    %v2153 = vunpack.c.h.b16 %v1895
    %v2154 = vunpack.c.l.b16 %v1896
    %v2155 = vunpack.c.h.b16 %v1896
    %v2156 = vunpack.c.l.b16 %v1897
    %v2157 = vunpack.c.h.b16 %v1897
    %v2158 = vunpack.c.l.b16 %v1898
    %v2159 = vunpack.c.h.b16 %v1898
    %v2160 = vunpack.c.l.b16 %v1899
    %v2161 = vunpack.c.h.b16 %v1899
    %v2162 = vunpack.c.l.b16 %v1900
    %v2163 = vunpack.c.h.b16 %v1900
    %v2164 = vunpack.c.l.b16 %v1901
    %v2165 = vunpack.c.h.b16 %v1901
    %v2166 = vunpack.c.l.b16 %v1902
    %v2167 = vunpack.c.h.b16 %v1902
    %v2168 = vunpack.c.l.b16 %v1903
    %v2169 = vunpack.c.h.b16 %v1903
    %v2170 = vunpack.c.l.b16 %v1904
    %v2171 = vunpack.c.h.b16 %v1904
    %v2172 = vunpack.c.l.b16 %v1905
    %v2173 = vunpack.c.h.b16 %v1905
    %v2174 = vunpack.c.l.b16 %v1906
    %v2175 = vunpack.c.h.b16 %v1906
    %v2176 = vunpack.c.l.b16 %v1907
    %v2177 = vunpack.c.h.b16 %v1907
    %v2178 = vunpack.c.l.b16 %v1908
    %v2179 = vunpack.c.h.b16 %v1908
    %v2180 = vunpack.c.l.b16 %v1909
    %v2181 = vunpack.c.h.b16 %v1909
    %v2182 = vunpack.c.l.b16 %v1910
    %v2183 = vunpack.c.h.b16 %v1910
    %v2184 = vunpack.c.l.b16 %v1911
    %v2185 = vunpack.c.h.b16 %v1911
    %v2186 = vunpack.c.l.b16 %v1912
    %v2187 = vunpack.c.h.b16 %v1912
    %v2188 = vunpack.c.l.b16 %v1913
    %v2189 = vunpack.c.h.b16 %v1913
    %v2190 = vunpack.c.l.b16 %v1914
    %v2191 = vunpack.c.h.b16 %v1914
    %v2192 = vunpack.c.l.b16 %v1915
    %v2193 = vunpack.c.h.b16 %v1915
    %v2194 = vunpack.c.l.b16 %v1916
    %v2195 = vunpack.c.h.b16 %v1916
    %v2196 = vunpack.c.l.b16 %v1917
    %v2197 = vunpack.c.h.b16 %v1917
    %v2198 = vunpack.c.l.b16 %v1918
    %v2199 = vunpack.c.h.b16 %v1918
    %v2200 = vunpack.c.l.b16 %v1919
    %v2201 = vunpack.c.h.b16 %v1919
    %v2202 = vunpack.c.l.b16 %v1920
    %v2203 = vunpack.c.h.b16 %v1920
    %v2204 = vunpack.c.l.b16 %v1921
    %v2205 = vunpack.c.h.b16 %v1921
    %v2206 = vunpack.c.l.b16 %v1922
    %v2207 = vunpack.c.h.b16 %v1922
    %v2208 = vunpack.c.l.b16 %v1923
    %v2209 = vunpack.c.h.b16 %v1923
    %v2210 = vunpack.c.l.b16 %v1924
    %v2211 = vunpack.c.h.b16 %v1924
    %v2212 = vunpack.c.l.b16 %v1925
    %v2213 = vunpack.c.h.b16 %v1925
    %v2214 = vunpack.c.l.b16 %v1926
    %v2215 = vunpack.c.h.b16 %v1926
    %v2216 = vunpack.c.l.b16 %v1927
    %v2217 = vunpack.c.h.b16 %v1927
    %v2218 = vunpack.c.l.b16 %v1928
    %v2219 = vunpack.c.h.b16 %v1928
    %v2220 = vunpack.c.l.b16 %v1929
    %v2221 = vunpack.c.h.b16 %v1929
    %v2222 = vunpack.c.l.b16 %v1930
    %v2223 = vunpack.c.h.b16 %v1930
    %v2224 = vunpack.c.l.b16 %v1931
    %v2225 = vunpack.c.h.b16 %v1931
    %v2226 = vunpack.c.l.b16 %v1932
    %v2227 = vunpack.c.h.b16 %v1932
    %v2228 = vunpack.c.l.b16 %v1933
    %v2229 = vunpack.c.h.b16 %v1933
    %v2230 = vunpack.c.l.b16 %v1934
    %v2231 = vunpack.c.h.b16 %v1934
    %v2232 = vunpack.c.l.b16 %v1935
    %v2233 = vunpack.c.h.b16 %v1935
    %v2234 = vunpack.c.l.b16 %v1936
    %v2235 = vunpack.c.h.b16 %v1936
    %v2236 = vunpack.c.l.b16 %v1937
    %v2237 = vunpack.c.h.b16 %v1937
    %v2238 = vunpack.c.l.b16 %v1938
    %v2239 = vunpack.c.h.b16 %v1938
    %v2240 = vunpack.c.l.b16 %v1939
    %v2241 = vunpack.c.h.b16 %v1939
    %v2242 = vunpack.c.l.b16 %v1940
    %v2243 = vunpack.c.h.b16 %v1940
    %v2244 = vunpack.c.l.b16 %v1941
    %v2245 = vunpack.c.h.b16 %v1941
    %v2246 = vunpack.c.l.b16 %v1942
    %v2247 = vunpack.c.h.b16 %v1942
    %v2248 = vunpack.c.l.b16 %v1943
    %v2249 = vunpack.c.h.b16 %v1943
    %v2250 = vunpack.c.l.b16 %v1944
    %v2251 = vunpack.c.h.b16 %v1944
    %v2252 = vunpack.c.l.b16 %v1945
    %v2253 = vunpack.c.h.b16 %v1945
    %v2254 = vunpack.c.l.b16 %v1946
    %v2255 = vunpack.c.h.b16 %v1946
    %v2256 = vunpack.c.l.b16 %v1947
    %v2257 = vunpack.c.h.b16 %v1947
    %v2258 = vunpack.c.l.b16 %v1948
    %v2259 = vunpack.c.h.b16 %v1948
    %v2260 = vunpack.c.l.b16 %v1949
    %v2261 = vunpack.c.h.b16 %v1949
    %v2262 = vunpack.c.l.b16 %v1950
    %v2263 = vunpack.c.h.b16 %v1950
    %v2264 = vunpack.c.l.b16 %v1951
    %v2265 = vunpack.c.h.b16 %v1951
    %v2266 = vunpack.c.l.b16 %v1952
    %v2267 = vunpack.c.h.b16 %v1952
    %v2268 = vunpack.c.l.b16 %v1953
    %v2269 = vunpack.c.h.b16 %v1953
    %v2270 = vunpack.c.l.b16 %v1954
    %v2271 = vunpack.c.h.b16 %v1954
    %v2272 = vunpack.c.l.b16 %v1955
    %v2273 = vunpack.c.h.b16 %v1955
    %v2274 = vunpack.c.l.b16 %v1956
    %v2275 = vunpack.c.h.b16 %v1956
    %v2276 = vunpack.c.l.b16 %v1957
    %v2277 = vunpack.c.h.b16 %v1957
    %v2278 = vunpack.c.l.b16 %v1958
    %v2279 = vunpack.c.h.b16 %v1958
    %v2280 = vunpack.c.l.b16 %v1959
    %v2281 = vunpack.c.h.b16 %v1959
    %v2282 = vunpack.c.l.b16 %v1960
    %v2283 = vunpack.c.h.b16 %v1960
    %v2284 = vunpack.c.l.b16 %v1961
    %v2285 = vunpack.c.h.b16 %v1961
    %v2286 = vunpack.c.l.b16 %v1962
    %v2287 = vunpack.c.h.b16 %v1962
    %v2288 = vunpack.c.l.b16 %v1963
    %v2289 = vunpack.c.h.b16 %v1963
    %v2290 = vunpack.c.l.b16 %v1964
    %v2291 = vunpack.c.h.b16 %v1964
    %v2292 = vunpack.c.l.b16 %v1965
    %v2293 = vunpack.c.h.b16 %v1965
    %v2294 = vunpack.c.l.b16 %v1966
    %v2295 = vunpack.c.h.b16 %v1966
    %v2296 = vunpack.c.l.b16 %v1967
    %v2297 = vunpack.c.h.b16 %v1967
    %v2298 = vunpack.c.l.b16 %v1968
    %v2299 = vunpack.c.h.b16 %v1968
    %v2300 = vunpack.c.l.b16 %v1969
    %v2301 = vunpack.c.h.b16 %v1969
    %v2302 = vunpack.c.l.b16 %v1970
    %v2303 = vunpack.c.h.b16 %v1970
    %v2304 = vunpack.c.l.b16 %v1971
    %v2305 = vunpack.c.h.b16 %v1971
    %v2306 = vunpack.c.l.b16 %v1972
    %v2307 = vunpack.c.h.b16 %v1972
    %v2308 = vunpack.c.l.b16 %v1973
    %v2309 = vunpack.c.h.b16 %v1973
    %v2310 = vunpack.c.l.b16 %v1974
    %v2311 = vunpack.c.h.b16 %v1974
    %v2312 = vunpack.c.l.b16 %v1975
    %v2313 = vunpack.c.h.b16 %v1975
    %v2314 = vunpack.c.l.b16 %v1976
    %v2315 = vunpack.c.h.b16 %v1976
    %v2316 = vunpack.c.l.b16 %v1977
    %v2317 = vunpack.c.h.b16 %v1977
    %v2318 = vunpack.c.l.b16 %v1978
    %v2319 = vunpack.c.h.b16 %v1978
    %v2320 = vunpack.c.l.b16 %v1979
    %v2321 = vunpack.c.h.b16 %v1979
    %v2322 = vunpack.c.l.b16 %v1980
    %v2323 = vunpack.c.h.b16 %v1980
    %v2324 = vunpack.c.l.b16 %v1981
    %v2325 = vunpack.c.h.b16 %v1981
    %v2326 = vunpack.c.l.b16 %v1982
    %v2327 = vunpack.c.h.b16 %v1982
    %v2328 = vunpack.c.l.b16 %v1983
    %v2329 = vunpack.c.h.b16 %v1983
    %v2330 = vunpack.c.l.b16 %v1984
    %v2331 = vunpack.c.h.b16 %v1984
    %v2332 = vunpack.c.l.b16 %v1985
    %v2333 = vunpack.c.h.b16 %v1985
    %v2334 = vunpack.c.l.b16 %v1986
    %v2335 = vunpack.c.h.b16 %v1986
    %v2336 = vunpack.c.l.b16 %v1987
    %v2337 = vunpack.c.h.b16 %v1987
    %v2338 = vunpack.c.l.b16 %v1988
    %v2339 = vunpack.c.h.b16 %v1988
    %v2340 = vunpack.c.l.b16 %v1989
    %v2341 = vunpack.c.h.b16 %v1989
    %v2342 = vunpack.c.l.b16 %v1990
    %v2343 = vunpack.c.h.b16 %v1990
    %v2344 = vunpack.c.l.b16 %v1991
    %v2345 = vunpack.c.h.b16 %v1991
    %v2346 = vunpack.c.l.b16 %v1992
    %v2347 = vunpack.c.h.b16 %v1992
    %v2348 = vunpack.c.l.b16 %v1993
    %v2349 = vunpack.c.h.b16 %v1993
    %v2350 = vunpack.c.l.b16 %v1994
    %v2351 = vunpack.c.h.b16 %v1994
    %v2352 = vunpack.c.l.b16 %v1995
    %v2353 = vunpack.c.h.b16 %v1995
    %v2354 = vunpack.c.l.b16 %v1996
    %v2355 = vunpack.c.h.b16 %v1996
    %v2356 = vunpack.c.l.b16 %v1997
    %v2357 = vunpack.c.h.b16 %v1997
    %v2358 = vunpack.c.l.b16 %v1998
    %v2359 = vunpack.c.h.b16 %v1998
    %v2360 = vunpack.c.l.b16 %v1999
    %v2361 = vunpack.c.h.b16 %v1999
    %v2362 = vunpack.c.l.b16 %v2000
    %v2363 = vunpack.c.h.b16 %v2000
    %v2364 = vunpack.c.l.b16 %v2001
    %v2365 = vunpack.c.h.b16 %v2001
    %v2366 = vunpack.c.l.b16 %v2002
    %v2367 = vunpack.c.h.b16 %v2002
    %v2368 = vunpack.c.l.b16 %v2003
    %v2369 = vunpack.c.h.b16 %v2003
    %v2370 = vunpack.c.l.b16 %v2004
    %v2371 = vunpack.c.h.b16 %v2004
    %v2372 = vunpack.c.l.b16 %v2005
    %v2373 = vunpack.c.h.b16 %v2005
    %v2374 = vunpack.c.l.b16 %v2006
    %v2375 = vunpack.c.h.b16 %v2006
    %v2376 = vunpack.c.l.b16 %v2007
    %v2377 = vunpack.c.h.b16 %v2007
    %v2378 = vunpack.c.l.b16 %v2008
    %v2379 = vunpack.c.h.b16 %v2008
    %v2380 = vunpack.c.l.b16 %v2009
    %v2381 = vunpack.c.h.b16 %v2009
    %v2382 = vunpack.c.l.b16 %v2010
    %v2383 = vunpack.c.h.b16 %v2010
    %v2384 = vunpack.c.l.b16 %v2011
    %v2385 = vunpack.c.h.b16 %v2011
    %v2386 = vunpack.c.l.b16 %v2012
    %v2387 = vunpack.c.h.b16 %v2012
    %v2388 = vunpack.c.l.b16 %v2013
    %v2389 = vunpack.c.h.b16 %v2013
    %v2390 = vunpack.c.l.b16 %v2014
    %v2391 = vunpack.c.h.b16 %v2014
    %v2392 = vunpack.c.l.b16 %v2015
    %v2393 = vunpack.c.h.b16 %v2015
    %v2394 = vunpack.c.l.b16 %v2016
    %v2395 = vunpack.c.h.b16 %v2016
    %v2396 = vunpack.c.l.b16 %v2017
    %v2397 = vunpack.c.h.b16 %v2017
    %v2398 = vunpack.c.l.b16 %v2018
    %v2399 = vunpack.c.h.b16 %v2018
    %v2400 = vunpack.c.l.b16 %v2019
    %v2401 = vunpack.c.h.b16 %v2019
    %v2402 = vunpack.c.l.b16 %v2020
    %v2403 = vunpack.c.h.b16 %v2020
    %v2404 = vunpack.c.l.b16 %v2021
    %v2405 = vunpack.c.h.b16 %v2021
    %v2406 = vpack.c.b16 %v2158, %v2150
    %v2407 = vpack.c.b16 %v2159, %v2151
    %v2408 = vpack.c.b16 %v2160, %v2152
    %v2409 = vpack.c.b16 %v2161, %v2153
    %v2410 = vpack.c.b16 %v2162, %v2154
    %v2411 = vpack.c.b16 %v2163, %v2155
    %v2412 = vpack.c.b16 %v2164, %v2156
    %v2413 = vpack.c.b16 %v2165, %v2157
    %v2414 = vpack.c.b16 %v2174, %v2166
    %v2415 = vpack.c.b16 %v2175, %v2167
    %v2416 = vpack.c.b16 %v2176, %v2168
    %v2417 = vpack.c.b16 %v2177, %v2169
    %v2418 = vpack.c.b16 %v2178, %v2170
    %v2419 = vpack.c.b16 %v2179, %v2171
    %v2420 = vpack.c.b16 %v2180, %v2172
    %v2421 = vpack.c.b16 %v2181, %v2173
    %v2422 = vpack.c.b16 %v2190, %v2182
    %v2423 = vpack.c.b16 %v2191, %v2183
    %v2424 = vpack.c.b16 %v2192, %v2184
    %v2425 = vpack.c.b16 %v2193, %v2185
    %v2426 = vpack.c.b16 %v2194, %v2186
    %v2427 = vpack.c.b16 %v2195, %v2187
    %v2428 = vpack.c.b16 %v2196, %v2188
    %v2429 = vpack.c.b16 %v2197, %v2189
    %v2430 = vpack.c.b16 %v2206, %v2198
    %v2431 = vpack.c.b16 %v2207, %v2199
    %v2432 = vpack.c.b16 %v2208, %v2200
    %v2433 = vpack.c.b16 %v2209, %v2201
    %v2434 = vpack.c.b16 %v2210, %v2202
    %v2435 = vpack.c.b16 %v2211, %v2203
    %v2436 = vpack.c.b16 %v2212, %v2204
    %v2437 = vpack.c.b16 %v2213, %v2205
    %v2438 = vpack.c.b16 %v2222, %v2214
    %v2439 = vpack.c.b16 %v2223, %v2215
    %v2440 = vpack.c.b16 %v2224, %v2216
    %v2441 = vpack.c.b16 %v2225, %v2217
    %v2442 = vpack.c.b16 %v2226, %v2218
    %v2443 = vpack.c.b16 %v2227, %v2219
    %v2444 = vpack.c.b16 %v2228, %v2220
    %v2445 = vpack.c.b16 %v2229, %v2221
    %v2446 = vpack.c.b16 %v2238, %v2230
    %v2447 = vpack.c.b16 %v2239, %v2231
    %v2448 = vpack.c.b16 %v2240, %v2232
    %v2449 = vpack.c.b16 %v2241, %v2233
    %v2450 = vpack.c.b16 %v2242, %v2234
    %v2451 = vpack.c.b16 %v2243, %v2235
    %v2452 = vpack.c.b16 %v2244, %v2236
    %v2453 = vpack.c.b16 %v2245, %v2237
    %v2454 = vpack.c.b16 %v2254, %v2246
    %v2455 = vpack.c.b16 %v2255, %v2247
    %v2456 = vpack.c.b16 %v2256, %v2248
    %v2457 = vpack.c.b16 %v2257, %v2249
    %v2458 = vpack.c.b16 %v2258, %v2250
    %v2459 = vpack.c.b16 %v2259, %v2251
    %v2460 = vpack.c.b16 %v2260, %v2252
    %v2461 = vpack.c.b16 %v2261, %v2253
    %v2462 = vpack.c.b16 %v2270, %v2262
    %v2463 = vpack.c.b16 %v2271, %v2263
    %v2464 = vpack.c.b16 %v2272, %v2264
    %v2465 = vpack.c.b16 %v2273, %v2265
    %v2466 = vpack.c.b16 %v2274, %v2266
    %v2467 = vpack.c.b16 %v2275, %v2267
    %v2468 = vpack.c.b16 %v2276, %v2268
    %v2469 = vpack.c.b16 %v2277, %v2269
    %v2470 = vpack.c.b16 %v2286, %v2278
    %v2471 = vpack.c.b16 %v2287, %v2279
    %v2472 = vpack.c.b16 %v2288, %v2280
    %v2473 = vpack.c.b16 %v2289, %v2281
    %v2474 = vpack.c.b16 %v2290, %v2282
    %v2475 = vpack.c.b16 %v2291, %v2283
    %v2476 = vpack.c.b16 %v2292, %v2284
    %v2477 = vpack.c.b16 %v2293, %v2285
    %v2478 = vpack.c.b16 %v2302, %v2294
    %v2479 = vpack.c.b16 %v2303, %v2295
    %v2480 = vpack.c.b16 %v2304, %v2296
    %v2481 = vpack.c.b16 %v2305, %v2297
    %v2482 = vpack.c.b16 %v2306, %v2298
    %v2483 = vpack.c.b16 %v2307, %v2299
    %v2484 = vpack.c.b16 %v2308, %v2300
    %v2485 = vpack.c.b16 %v2309, %v2301
    %v2486 = vpack.c.b16 %v2318, %v2310
    %v2487 = vpack.c.b16 %v2319, %v2311
    %v2488 = vpack.c.b16 %v2320, %v2312
    %v2489 = vpack.c.b16 %v2321, %v2313
    %v2490 = vpack.c.b16 %v2322, %v2314
    %v2491 = vpack.c.b16 %v2323, %v2315
    %v2492 = vpack.c.b16 %v2324, %v2316
    %v2493 = vpack.c.b16 %v2325, %v2317
    %v2494 = vpack.c.b16 %v2334, %v2326
    %v2495 = vpack.c.b16 %v2335, %v2327
    %v2496 = vpack.c.b16 %v2336, %v2328
    %v2497 = vpack.c.b16 %v2337, %v2329
    %v2498 = vpack.c.b16 %v2338, %v2330
    %v2499 = vpack.c.b16 %v2339, %v2331
    %v2500 = vpack.c.b16 %v2340, %v2332
    %v2501 = vpack.c.b16 %v2341, %v2333
    %v2502 = vpack.c.b16 %v2350, %v2342
    %v2503 = vpack.c.b16 %v2351, %v2343
    %v2504 = vpack.c.b16 %v2352, %v2344
    %v2505 = vpack.c.b16 %v2353, %v2345
    %v2506 = vpack.c.b16 %v2354, %v2346
    %v2507 = vpack.c.b16 %v2355, %v2347
    %v2508 = vpack.c.b16 %v2356, %v2348
    %v2509 = vpack.c.b16 %v2357, %v2349
    %v2510 = vpack.c.b16 %v2366, %v2358
    %v2511 = vpack.c.b16 %v2367, %v2359
    %v2512 = vpack.c.b16 %v2368, %v2360
    %v2513 = vpack.c.b16 %v2369, %v2361
    %v2514 = vpack.c.b16 %v2370, %v2362
    %v2515 = vpack.c.b16 %v2371, %v2363
    %v2516 = vpack.c.b16 %v2372, %v2364
    %v2517 = vpack.c.b16 %v2373, %v2365
    %v2518 = vpack.c.b16 %v2382, %v2374
    %v2519 = vpack.c.b16 %v2383, %v2375
    %v2520 = vpack.c.b16 %v2384, %v2376
    %v2521 = vpack.c.b16 %v2385, %v2377
    %v2522 = vpack.c.b16 %v2386, %v2378
    %v2523 = vpack.c.b16 %v2387, %v2379
    %v2524 = vpack.c.b16 %v2388, %v2380
    %v2525 = vpack.c.b16 %v2389, %v2381
    %v2526 = vpack.c.b16 %v2398, %v2390
    %v2527 = vpack.c.b16 %v2399, %v2391
    %v2528 = vpack.c.b16 %v2400, %v2392
    %v2529 = vpack.c.b16 %v2401, %v2393
    %v2530 = vpack.c.b16 %v2402, %v2394
    %v2531 = vpack.c.b16 %v2403, %v2395
    %v2532 = vpack.c.b16 %v2404, %v2396
    %v2533 = vpack.c.b16 %v2405, %v2397
    %2662 = vmatprep.subr.bf16.mxu0 %v2407
    %2663 = vmatpush1.bf16.msra.mxu0 %v2406
    %2664 = vmatprep.subr.bf16.mxu0 %v2415
    %2665 = vmatpush1.bf16.msra.mxu0 %v2414
    %2666 = vmatprep.subr.bf16.mxu0 %v2423
    %2667 = vmatpush1.bf16.msra.mxu0 %v2422
    %2668 = vmatprep.subr.bf16.mxu0 %v2431
    %2669 = vmatpush1.bf16.msra.mxu0 %v2430
    %2670 = vmatprep.subr.bf16.mxu0 %v2439
    %2671 = vmatpush1.bf16.msra.mxu0 %v2438
    %2672 = vmatprep.subr.bf16.mxu0 %v2447
    %2673 = vmatpush1.bf16.msra.mxu0 %v2446
    %2674 = vmatprep.subr.bf16.mxu0 %v2455
    %2675 = vmatpush1.bf16.msra.mxu0 %v2454
    %2676 = vmatprep.subr.bf16.mxu0 %v2463
    %2677 = vmatpush1.bf16.msra.mxu0 %v2462
    %2678 = vmatprep.subr.bf16.mxu0 %v2471
    %2679 = vmatpush1.bf16.msra.mxu0 %v2470
    %2680 = vmatprep.subr.bf16.mxu0 %v2479
    %2681 = vmatpush1.bf16.msra.mxu0 %v2478
    %2682 = vmatprep.subr.bf16.mxu0 %v2487
    %2683 = vmatpush1.bf16.msra.mxu0 %v2486
    %2684 = vmatprep.subr.bf16.mxu0 %v2495
    %2685 = vmatpush1.bf16.msra.mxu0 %v2494
    %2686 = vmatprep.subr.bf16.mxu0 %v2503
    %2687 = vmatpush1.bf16.msra.mxu0 %v2502
    %2688 = vmatprep.subr.bf16.mxu0 %v2511
    %2689 = vmatpush1.bf16.msra.mxu0 %v2510
    %2690 = vmatprep.subr.bf16.mxu0 %v2519
    %2691 = vmatpush1.bf16.msra.mxu0 %v2518
    %2692 = vmatprep.subr.bf16.mxu0 %v2527
    %2693 = vmatpush1.bf16.msra.mxu0 %v2526
    %2694 = vmatprep.mubr.bf16.mxu0 %v1893
    %2695 = vmatmul.mubr.bf16.gmra.mrb[0].mxu0 %v1892
    %v2696 = vpop.f32.mrb[0].mxu0
    %v2697 = vadd.f32 0.0, %v2696
    %v2698 = vpop.f32.mrb[0].mxu0
    %v2699 = vadd.f32 0.0, %v2698
    %v2700 = vpop.f32.mrb[0].mxu0
    %v2701 = vpop.f32.mrb[0].mxu0
    %2702 = vdwg.mxu0
    %2703 = vmatprep.subr.bf16.mxu0 %v2409
    %2704 = vmatpush1.bf16.msra.mxu0 %v2408
    %2705 = vmatprep.subr.bf16.mxu0 %v2417
    %2706 = vmatpush1.bf16.msra.mxu0 %v2416
    %2707 = vmatprep.subr.bf16.mxu0 %v2425
    %2708 = vmatpush1.bf16.msra.mxu0 %v2424
    %2709 = vmatprep.subr.bf16.mxu0 %v2433
    %2710 = vmatpush1.bf16.msra.mxu0 %v2432
    %2711 = vmatprep.subr.bf16.mxu0 %v2441
    %2712 = vmatpush1.bf16.msra.mxu0 %v2440
    %2713 = vmatprep.subr.bf16.mxu0 %v2449
    %2714 = vmatpush1.bf16.msra.mxu0 %v2448
    %2715 = vmatprep.subr.bf16.mxu0 %v2457
    %2716 = vmatpush1.bf16.msra.mxu0 %v2456
    %2717 = vmatprep.subr.bf16.mxu0 %v2465
    %2718 = vmatpush1.bf16.msra.mxu0 %v2464
    %2719 = vmatprep.subr.bf16.mxu0 %v2473
    %2720 = vmatpush1.bf16.msra.mxu0 %v2472
    %2721 = vmatprep.subr.bf16.mxu0 %v2481
    %2722 = vmatpush1.bf16.msra.mxu0 %v2480
    %2723 = vmatprep.subr.bf16.mxu0 %v2489
    %2724 = vmatpush1.bf16.msra.mxu0 %v2488
    %2725 = vmatprep.subr.bf16.mxu0 %v2497
    %2726 = vmatpush1.bf16.msra.mxu0 %v2496
    %2727 = vmatprep.subr.bf16.mxu0 %v2505
    %2728 = vmatpush1.bf16.msra.mxu0 %v2504
    %2729 = vmatprep.subr.bf16.mxu0 %v2513
    %2730 = vmatpush1.bf16.msra.mxu0 %v2512
    %2731 = vmatprep.subr.bf16.mxu0 %v2521
    %2732 = vmatpush1.bf16.msra.mxu0 %v2520
    %2733 = vmatprep.subr.bf16.mxu0 %v2529
    %2734 = vmatpush1.bf16.msra.mxu0 %v2528
    %2735 = vmatprep.mubr.bf16.mxu0 %v1893
    %2736 = vmatmul.mubr.bf16.gmra.mrb[0].mxu0 %v1892
    %v2737 = vpop.f32.mrb[0].mxu0
    %v2738 = vadd.f32 0.0, %v2737
    %v2739 = vpop.f32.mrb[0].mxu0
    %v2740 = vadd.f32 0.0, %v2739
    %v2741 = vpop.f32.mrb[0].mxu0
    %v2742 = vpop.f32.mrb[0].mxu0
    %2743 = vdwg.mxu0
    %2744 = vmatprep.subr.bf16.mxu0 %v2411
    %2745 = vmatpush1.bf16.msra.mxu0 %v2410
    %2746 = vmatprep.subr.bf16.mxu0 %v2419
    %2747 = vmatpush1.bf16.msra.mxu0 %v2418
    %2748 = vmatprep.subr.bf16.mxu0 %v2427
    %2749 = vmatpush1.bf16.msra.mxu0 %v2426
    %2750 = vmatprep.subr.bf16.mxu0 %v2435
    %2751 = vmatpush1.bf16.msra.mxu0 %v2434
    %2752 = vmatprep.subr.bf16.mxu0 %v2443
    %2753 = vmatpush1.bf16.msra.mxu0 %v2442
    %2754 = vmatprep.subr.bf16.mxu0 %v2451
    %2755 = vmatpush1.bf16.msra.mxu0 %v2450
    %2756 = vmatprep.subr.bf16.mxu0 %v2459
    %2757 = vmatpush1.bf16.msra.mxu0 %v2458
    %2758 = vmatprep.subr.bf16.mxu0 %v2467
    %2759 = vmatpush1.bf16.msra.mxu0 %v2466
    %2760 = vmatprep.subr.bf16.mxu0 %v2475
    %2761 = vmatpush1.bf16.msra.mxu0 %v2474
    %2762 = vmatprep.subr.bf16.mxu0 %v2483
    %2763 = vmatpush1.bf16.msra.mxu0 %v2482
    %2764 = vmatprep.subr.bf16.mxu0 %v2491
    %2765 = vmatpush1.bf16.msra.mxu0 %v2490
    %2766 = vmatprep.subr.bf16.mxu0 %v2499
    %2767 = vmatpush1.bf16.msra.mxu0 %v2498
    %2768 = vmatprep.subr.bf16.mxu0 %v2507
    %2769 = vmatpush1.bf16.msra.mxu0 %v2506
    %2770 = vmatprep.subr.bf16.mxu0 %v2515
    %2771 = vmatpush1.bf16.msra.mxu0 %v2514
    %2772 = vmatprep.subr.bf16.mxu0 %v2523
    %2773 = vmatpush1.bf16.msra.mxu0 %v2522
    %2774 = vmatprep.subr.bf16.mxu0 %v2531
    %2775 = vmatpush1.bf16.msra.mxu0 %v2530
    %2776 = vmatprep.mubr.bf16.mxu0 %v1893
    %2777 = vmatmul.mubr.bf16.gmra.mrb[0].mxu0 %v1892
    %v2778 = vpop.f32.mrb[0].mxu0
    %v2779 = vadd.f32 0.0, %v2778
    %v2780 = vpop.f32.mrb[0].mxu0
    %v2781 = vadd.f32 0.0, %v2780
    %v2782 = vpop.f32.mrb[0].mxu0
    %v2783 = vpop.f32.mrb[0].mxu0
    %2784 = vdwg.mxu0
    %2785 = vmatprep.subr.bf16.mxu0 %v2413
    %2786 = vmatpush1.bf16.msra.mxu0 %v2412
    %2787 = vmatprep.subr.bf16.mxu0 %v2421
    %2788 = vmatpush1.bf16.msra.mxu0 %v2420
    %2789 = vmatprep.subr.bf16.mxu0 %v2429
    %2790 = vmatpush1.bf16.msra.mxu0 %v2428
    %2791 = vmatprep.subr.bf16.mxu0 %v2437
    %2792 = vmatpush1.bf16.msra.mxu0 %v2436
    %2793 = vmatprep.subr.bf16.mxu0 %v2445
    %2794 = vmatpush1.bf16.msra.mxu0 %v2444
    %2795 = vmatprep.subr.bf16.mxu0 %v2453
    %2796 = vmatpush1.bf16.msra.mxu0 %v2452
    %2797 = vmatprep.subr.bf16.mxu0 %v2461
    %2798 = vmatpush1.bf16.msra.mxu0 %v2460
    %2799 = vmatprep.subr.bf16.mxu0 %v2469
    %2800 = vmatpush1.bf16.msra.mxu0 %v2468
    %2801 = vmatprep.subr.bf16.mxu0 %v2477
    %2802 = vmatpush1.bf16.msra.mxu0 %v2476
    %2803 = vmatprep.subr.bf16.mxu0 %v2485
    %2804 = vmatpush1.bf16.msra.mxu0 %v2484
    %2805 = vmatprep.subr.bf16.mxu0 %v2493
    %2806 = vmatpush1.bf16.msra.mxu0 %v2492
    %2807 = vmatprep.subr.bf16.mxu0 %v2501
    %2808 = vmatpush1.bf16.msra.mxu0 %v2500
    %2809 = vmatprep.subr.bf16.mxu0 %v2509
    %2810 = vmatpush1.bf16.msra.mxu0 %v2508
    %2811 = vmatprep.subr.bf16.mxu0 %v2517
    %2812 = vmatpush1.bf16.msra.mxu0 %v2516
    %2813 = vmatprep.subr.bf16.mxu0 %v2525
    %2814 = vmatpush1.bf16.msra.mxu0 %v2524
    %2815 = vmatprep.subr.bf16.mxu0 %v2533
    %2816 = vmatpush1.bf16.msra.mxu0 %v2532
    %2817 = vmatprep.mubr.bf16.mxu0 %v1893
    %2818 = vmatmul.mubr.bf16.gmra.mrb[0].mxu0 %v1892
    %v2819 = vpop.f32.mrb[0].mxu0
    %v2820 = vadd.f32 0.0, %v2819
    %v2821 = vpop.f32.mrb[0].mxu0
    %v2822 = vadd.f32 0.0, %v2821
    %v2823 = vpop.f32.mrb[0].mxu0
    %v2824 = vpop.f32.mrb[0].mxu0
    %2825 = vdwg.mxu0
    %v2826 = vadd.f32 %v1884, %v2697
    %v2827 = vadd.f32 %v1885, %v2699
    %v2828 = vadd.f32 %v1886, %v2738
    %v2829 = vadd.f32 %v1887, %v2740
    %v2830 = vadd.f32 %v1888, %v2779
    %v2831 = vadd.f32 %v1889, %v2781
    %v2832 = vadd.f32 %v1890, %v2820
    %v2833 = vadd.f32 %v1891, %v2822
    %v2834 = vxor.u32 %v2826, 2147483648
    %v2835 = vxor.u32 %v2827, 2147483648
    %v2836 = vxor.u32 %v2828, 2147483648
    %v2837 = vxor.u32 %v2829, 2147483648
    %v2838 = vxor.u32 %v2830, 2147483648
    %v2839 = vxor.u32 %v2831, 2147483648
    %v2840 = vmul.f32 %v2834, 1.442695
    %v2841 = vpow.pop %v2840
    %v2842 = vmul.f32 %v2835, 1.442695
    %v2843 = vpow.pop %v2842
    %v2844 = vmul.f32 %v2836, 1.442695
    %v2845 = vpow.pop %v2844
    %v2846 = vmul.f32 %v2837, 1.442695
    %v2847 = vpow.pop %v2846
    %v2848 = vmul.f32 %v2838, 1.442695
    %v2849 = vpow.pop %v2848
    %v2850 = vmul.f32 %v2839, 1.442695
    %v2851 = vpow.pop %v2850
    %v2852 = vadd.f32 %v2841, 1.0
    %v2853 = vadd.f32 %v2843, 1.0
    %v2854 = vadd.f32 %v2845, 1.0
    %v2855 = vadd.f32 %v2847, 1.0
    %v2856 = vadd.f32 %v2849, 1.0
    %v2857 = vadd.f32 %v2851, 1.0
    %v2858 = vrcp.pop %v2852
    %v2859 = vmul.f32 1.0, %v2858
    %v2860 = vrcp.pop %v2853
    %v2861 = vmul.f32 1.0, %v2860
    %v2862 = vrcp.pop %v2854
    %v2863 = vmul.f32 1.0, %v2862
    %v2864 = vrcp.pop %v2855
    %v2865 = vmul.f32 1.0, %v2864
    %v2866 = vrcp.pop %v2856
    %v2867 = vmul.f32 1.0, %v2866
    %v2868 = vrcp.pop %v2857
    %v2869 = vmul.f32 1.0, %v2868
    %v2870 = vtanh.pop %v2832
    %v2871 = vtanh.pop %v2833
    %v2872 = vmul.f32 %v2863, %v1875
    %v2873 = vmul.f32 %v2865, %v1876
    %v2874 = vmul.f32 %v2859, %v2870
    %v2875 = vmul.f32 %v2861, %v2871
    %v2876 = vadd.f32 %v2872, %v2874
    %v2877 = vadd.f32 %v2873, %v2875
    %v2878 = vtanh.pop %v2876
    %v2879 = vtanh.pop %v2877
    %v2880 = vmul.f32 %v2867, %v2878
    %v2881 = vmul.f32 %v2869, %v2879
    %s2882 = scalar_lea.vmem [#allocation5], 16
    %2883 = vst [vmem:[%s2882] sm:$0xff] %v2880
    %2884 = vst [vmem:[%s2882 + $0x8] sm:$0xff] %v2881
    %s2885 = scalar_lea.vmem [#allocation4], 128
    %v2886 = vld [vmem:[%s2885] sm:$0xff]
    %v2887 = vld [vmem:[%s2885 + $0x8] sm:$0xff]
    %v2888 = vld [vmem:[%s2885 + $0x10] sm:$0xff]
    %v2889 = vld [vmem:[%s2885 + $0x18] sm:$0xff]
    %v2890 = vld [vmem:[%s2885 + $0x20] sm:$0xff]
    %v2891 = vld [vmem:[%s2885 + $0x28] sm:$0xff]
    %v2892 = vld [vmem:[%s2885 + $0x30] sm:$0xff]
    %v2893 = vld [vmem:[%s2885 + $0x38] sm:$0xff]
    %v2894 = vpack.c.bf16 %v2880, %v2880
    %v2895 = vpack.c.bf16 %v2881, %v2881
    %v2896 = vld [vmem:[#allocation9] sm:$0xff]
    %v2897 = vld [vmem:[#allocation9 + $0x8] sm:$0xff]
    %v2898 = vld [vmem:[#allocation9 + $0x10] sm:$0xff]
    %v2899 = vld [vmem:[#allocation9 + $0x18] sm:$0xff]
    %v2900 = vld [vmem:[#allocation9 + $0x20] sm:$0xff]
    %v2901 = vld [vmem:[#allocation9 + $0x28] sm:$0xff]
    %v2902 = vld [vmem:[#allocation9 + $0x30] sm:$0xff]
    %v2903 = vld [vmem:[#allocation9 + $0x38] sm:$0xff]
    %v2904 = vld [vmem:[#allocation9 + $0x40] sm:$0xff]
    %v2905 = vld [vmem:[#allocation9 + $0x48] sm:$0xff]
    %v2906 = vld [vmem:[#allocation9 + $0x50] sm:$0xff]
    %v2907 = vld [vmem:[#allocation9 + $0x58] sm:$0xff]
    %v2908 = vld [vmem:[#allocation9 + $0x60] sm:$0xff]
    %v2909 = vld [vmem:[#allocation9 + $0x68] sm:$0xff]
    %v2910 = vld [vmem:[#allocation9 + $0x70] sm:$0xff]
    %v2911 = vld [vmem:[#allocation9 + $0x78] sm:$0xff]
    %v2912 = vld [vmem:[#allocation9 + $0x80] sm:$0xff]
    %v2913 = vld [vmem:[#allocation9 + $0x88] sm:$0xff]
    %v2914 = vld [vmem:[#allocation9 + $0x90] sm:$0xff]
    %v2915 = vld [vmem:[#allocation9 + $0x98] sm:$0xff]
    %v2916 = vld [vmem:[#allocation9 + $0xa0] sm:$0xff]
    %v2917 = vld [vmem:[#allocation9 + $0xa8] sm:$0xff]
    %v2918 = vld [vmem:[#allocation9 + $0xb0] sm:$0xff]
    %v2919 = vld [vmem:[#allocation9 + $0xb8] sm:$0xff]
    %v2920 = vld [vmem:[#allocation9 + $0xc0] sm:$0xff]
    %v2921 = vld [vmem:[#allocation9 + $0xc8] sm:$0xff]
    %v2922 = vld [vmem:[#allocation9 + $0xd0] sm:$0xff]
    %v2923 = vld [vmem:[#allocation9 + $0xd8] sm:$0xff]
    %v2924 = vld [vmem:[#allocation9 + $0xe0] sm:$0xff]
    %v2925 = vld [vmem:[#allocation9 + $0xe8] sm:$0xff]
    %v2926 = vld [vmem:[#allocation9 + $0xf0] sm:$0xff]
    %v2927 = vld [vmem:[#allocation9 + $0xf8] sm:$0xff]
    %v2928 = vld [vmem:[#allocation9 + $0x100] sm:$0xff]
    %v2929 = vld [vmem:[#allocation9 + $0x108] sm:$0xff]
    %v2930 = vld [vmem:[#allocation9 + $0x110] sm:$0xff]
    %v2931 = vld [vmem:[#allocation9 + $0x118] sm:$0xff]
    %v2932 = vld [vmem:[#allocation9 + $0x120] sm:$0xff]
    %v2933 = vld [vmem:[#allocation9 + $0x128] sm:$0xff]
    %v2934 = vld [vmem:[#allocation9 + $0x130] sm:$0xff]
    %v2935 = vld [vmem:[#allocation9 + $0x138] sm:$0xff]
    %v2936 = vld [vmem:[#allocation9 + $0x140] sm:$0xff]
    %v2937 = vld [vmem:[#allocation9 + $0x148] sm:$0xff]
    %v2938 = vld [vmem:[#allocation9 + $0x150] sm:$0xff]
    %v2939 = vld [vmem:[#allocation9 + $0x158] sm:$0xff]
    %v2940 = vld [vmem:[#allocation9 + $0x160] sm:$0xff]
    %v2941 = vld [vmem:[#allocation9 + $0x168] sm:$0xff]
    %v2942 = vld [vmem:[#allocation9 + $0x170] sm:$0xff]
    %v2943 = vld [vmem:[#allocation9 + $0x178] sm:$0xff]
    %v2944 = vld [vmem:[#allocation9 + $0x180] sm:$0xff]
    %v2945 = vld [vmem:[#allocation9 + $0x188] sm:$0xff]
    %v2946 = vld [vmem:[#allocation9 + $0x190] sm:$0xff]
    %v2947 = vld [vmem:[#allocation9 + $0x198] sm:$0xff]
    %v2948 = vld [vmem:[#allocation9 + $0x1a0] sm:$0xff]
    %v2949 = vld [vmem:[#allocation9 + $0x1a8] sm:$0xff]
    %v2950 = vld [vmem:[#allocation9 + $0x1b0] sm:$0xff]
    %v2951 = vld [vmem:[#allocation9 + $0x1b8] sm:$0xff]
    %v2952 = vld [vmem:[#allocation9 + $0x1c0] sm:$0xff]
    %v2953 = vld [vmem:[#allocation9 + $0x1c8] sm:$0xff]
    %v2954 = vld [vmem:[#allocation9 + $0x1d0] sm:$0xff]
    %v2955 = vld [vmem:[#allocation9 + $0x1d8] sm:$0xff]
    %v2956 = vld [vmem:[#allocation9 + $0x1e0] sm:$0xff]
    %v2957 = vld [vmem:[#allocation9 + $0x1e8] sm:$0xff]
    %v2958 = vld [vmem:[#allocation9 + $0x1f0] sm:$0xff]
    %v2959 = vld [vmem:[#allocation9 + $0x1f8] sm:$0xff]
    %v2960 = vld [vmem:[#allocation9 + $0x200] sm:$0xff]
    %v2961 = vld [vmem:[#allocation9 + $0x208] sm:$0xff]
    %v2962 = vld [vmem:[#allocation9 + $0x210] sm:$0xff]
    %v2963 = vld [vmem:[#allocation9 + $0x218] sm:$0xff]
    %v2964 = vld [vmem:[#allocation9 + $0x220] sm:$0xff]
    %v2965 = vld [vmem:[#allocation9 + $0x228] sm:$0xff]
    %v2966 = vld [vmem:[#allocation9 + $0x230] sm:$0xff]
    %v2967 = vld [vmem:[#allocation9 + $0x238] sm:$0xff]
    %v2968 = vld [vmem:[#allocation9 + $0x240] sm:$0xff]
    %v2969 = vld [vmem:[#allocation9 + $0x248] sm:$0xff]
    %v2970 = vld [vmem:[#allocation9 + $0x250] sm:$0xff]
    %v2971 = vld [vmem:[#allocation9 + $0x258] sm:$0xff]
    %v2972 = vld [vmem:[#allocation9 + $0x260] sm:$0xff]
    %v2973 = vld [vmem:[#allocation9 + $0x268] sm:$0xff]
    %v2974 = vld [vmem:[#allocation9 + $0x270] sm:$0xff]
    %v2975 = vld [vmem:[#allocation9 + $0x278] sm:$0xff]
    %v2976 = vld [vmem:[#allocation9 + $0x280] sm:$0xff]
    %v2977 = vld [vmem:[#allocation9 + $0x288] sm:$0xff]
    %v2978 = vld [vmem:[#allocation9 + $0x290] sm:$0xff]
    %v2979 = vld [vmem:[#allocation9 + $0x298] sm:$0xff]
    %v2980 = vld [vmem:[#allocation9 + $0x2a0] sm:$0xff]
    %v2981 = vld [vmem:[#allocation9 + $0x2a8] sm:$0xff]
    %v2982 = vld [vmem:[#allocation9 + $0x2b0] sm:$0xff]
    %v2983 = vld [vmem:[#allocation9 + $0x2b8] sm:$0xff]
    %v2984 = vld [vmem:[#allocation9 + $0x2c0] sm:$0xff]
    %v2985 = vld [vmem:[#allocation9 + $0x2c8] sm:$0xff]
    %v2986 = vld [vmem:[#allocation9 + $0x2d0] sm:$0xff]
    %v2987 = vld [vmem:[#allocation9 + $0x2d8] sm:$0xff]
    %v2988 = vld [vmem:[#allocation9 + $0x2e0] sm:$0xff]
    %v2989 = vld [vmem:[#allocation9 + $0x2e8] sm:$0xff]
    %v2990 = vld [vmem:[#allocation9 + $0x2f0] sm:$0xff]
    %v2991 = vld [vmem:[#allocation9 + $0x2f8] sm:$0xff]
    %v2992 = vld [vmem:[#allocation9 + $0x300] sm:$0xff]
    %v2993 = vld [vmem:[#allocation9 + $0x308] sm:$0xff]
    %v2994 = vld [vmem:[#allocation9 + $0x310] sm:$0xff]
    %v2995 = vld [vmem:[#allocation9 + $0x318] sm:$0xff]
    %v2996 = vld [vmem:[#allocation9 + $0x320] sm:$0xff]
    %v2997 = vld [vmem:[#allocation9 + $0x328] sm:$0xff]
    %v2998 = vld [vmem:[#allocation9 + $0x330] sm:$0xff]
    %v2999 = vld [vmem:[#allocation9 + $0x338] sm:$0xff]
    %v3000 = vld [vmem:[#allocation9 + $0x340] sm:$0xff]
    %v3001 = vld [vmem:[#allocation9 + $0x348] sm:$0xff]
    %v3002 = vld [vmem:[#allocation9 + $0x350] sm:$0xff]
    %v3003 = vld [vmem:[#allocation9 + $0x358] sm:$0xff]
    %v3004 = vld [vmem:[#allocation9 + $0x360] sm:$0xff]
    %v3005 = vld [vmem:[#allocation9 + $0x368] sm:$0xff]
    %v3006 = vld [vmem:[#allocation9 + $0x370] sm:$0xff]
    %v3007 = vld [vmem:[#allocation9 + $0x378] sm:$0xff]
    %v3008 = vld [vmem:[#allocation9 + $0x380] sm:$0xff]
    %v3009 = vld [vmem:[#allocation9 + $0x388] sm:$0xff]
    %v3010 = vld [vmem:[#allocation9 + $0x390] sm:$0xff]
    %v3011 = vld [vmem:[#allocation9 + $0x398] sm:$0xff]
    %v3012 = vld [vmem:[#allocation9 + $0x3a0] sm:$0xff]
    %v3013 = vld [vmem:[#allocation9 + $0x3a8] sm:$0xff]
    %v3014 = vld [vmem:[#allocation9 + $0x3b0] sm:$0xff]
    %v3015 = vld [vmem:[#allocation9 + $0x3b8] sm:$0xff]
    %v3016 = vld [vmem:[#allocation9 + $0x3c0] sm:$0xff]
    %v3017 = vld [vmem:[#allocation9 + $0x3c8] sm:$0xff]
    %v3018 = vld [vmem:[#allocation9 + $0x3d0] sm:$0xff]
    %v3019 = vld [vmem:[#allocation9 + $0x3d8] sm:$0xff]
    %v3020 = vld [vmem:[#allocation9 + $0x3e0] sm:$0xff]
    %v3021 = vld [vmem:[#allocation9 + $0x3e8] sm:$0xff]
    %v3022 = vld [vmem:[#allocation9 + $0x3f0] sm:$0xff]
    %v3023 = vld [vmem:[#allocation9 + $0x3f8] sm:$0xff]
    %v3152 = vunpack.c.l.b16 %v2896
    %v3153 = vunpack.c.h.b16 %v2896
    %v3154 = vunpack.c.l.b16 %v2897
    %v3155 = vunpack.c.h.b16 %v2897
    %v3156 = vunpack.c.l.b16 %v2898
    %v3157 = vunpack.c.h.b16 %v2898
    %v3158 = vunpack.c.l.b16 %v2899
    %v3159 = vunpack.c.h.b16 %v2899
    %v3160 = vunpack.c.l.b16 %v2900
    %v3161 = vunpack.c.h.b16 %v2900
    %v3162 = vunpack.c.l.b16 %v2901
    %v3163 = vunpack.c.h.b16 %v2901
    %v3164 = vunpack.c.l.b16 %v2902
    %v3165 = vunpack.c.h.b16 %v2902
    %v3166 = vunpack.c.l.b16 %v2903
    %v3167 = vunpack.c.h.b16 %v2903
    %v3168 = vunpack.c.l.b16 %v2904
    %v3169 = vunpack.c.h.b16 %v2904
    %v3170 = vunpack.c.l.b16 %v2905
    %v3171 = vunpack.c.h.b16 %v2905
    %v3172 = vunpack.c.l.b16 %v2906
    %v3173 = vunpack.c.h.b16 %v2906
    %v3174 = vunpack.c.l.b16 %v2907
    %v3175 = vunpack.c.h.b16 %v2907
    %v3176 = vunpack.c.l.b16 %v2908
    %v3177 = vunpack.c.h.b16 %v2908
    %v3178 = vunpack.c.l.b16 %v2909
    %v3179 = vunpack.c.h.b16 %v2909
    %v3180 = vunpack.c.l.b16 %v2910
    %v3181 = vunpack.c.h.b16 %v2910
    %v3182 = vunpack.c.l.b16 %v2911
    %v3183 = vunpack.c.h.b16 %v2911
    %v3184 = vunpack.c.l.b16 %v2912
    %v3185 = vunpack.c.h.b16 %v2912
    %v3186 = vunpack.c.l.b16 %v2913
    %v3187 = vunpack.c.h.b16 %v2913
    %v3188 = vunpack.c.l.b16 %v2914
    %v3189 = vunpack.c.h.b16 %v2914
    %v3190 = vunpack.c.l.b16 %v2915
    %v3191 = vunpack.c.h.b16 %v2915
    %v3192 = vunpack.c.l.b16 %v2916
    %v3193 = vunpack.c.h.b16 %v2916
    %v3194 = vunpack.c.l.b16 %v2917
    %v3195 = vunpack.c.h.b16 %v2917
    %v3196 = vunpack.c.l.b16 %v2918
    %v3197 = vunpack.c.h.b16 %v2918
    %v3198 = vunpack.c.l.b16 %v2919
    %v3199 = vunpack.c.h.b16 %v2919
    %v3200 = vunpack.c.l.b16 %v2920
    %v3201 = vunpack.c.h.b16 %v2920
    %v3202 = vunpack.c.l.b16 %v2921
    %v3203 = vunpack.c.h.b16 %v2921
    %v3204 = vunpack.c.l.b16 %v2922
    %v3205 = vunpack.c.h.b16 %v2922
    %v3206 = vunpack.c.l.b16 %v2923
    %v3207 = vunpack.c.h.b16 %v2923
    %v3208 = vunpack.c.l.b16 %v2924
    %v3209 = vunpack.c.h.b16 %v2924
    %v3210 = vunpack.c.l.b16 %v2925
    %v3211 = vunpack.c.h.b16 %v2925
    %v3212 = vunpack.c.l.b16 %v2926
    %v3213 = vunpack.c.h.b16 %v2926
    %v3214 = vunpack.c.l.b16 %v2927
    %v3215 = vunpack.c.h.b16 %v2927
    %v3216 = vunpack.c.l.b16 %v2928
    %v3217 = vunpack.c.h.b16 %v2928
    %v3218 = vunpack.c.l.b16 %v2929
    %v3219 = vunpack.c.h.b16 %v2929
    %v3220 = vunpack.c.l.b16 %v2930
    %v3221 = vunpack.c.h.b16 %v2930
    %v3222 = vunpack.c.l.b16 %v2931
    %v3223 = vunpack.c.h.b16 %v2931
    %v3224 = vunpack.c.l.b16 %v2932
    %v3225 = vunpack.c.h.b16 %v2932
    %v3226 = vunpack.c.l.b16 %v2933
    %v3227 = vunpack.c.h.b16 %v2933
    %v3228 = vunpack.c.l.b16 %v2934
    %v3229 = vunpack.c.h.b16 %v2934
    %v3230 = vunpack.c.l.b16 %v2935
    %v3231 = vunpack.c.h.b16 %v2935
    %v3232 = vunpack.c.l.b16 %v2936
    %v3233 = vunpack.c.h.b16 %v2936
    %v3234 = vunpack.c.l.b16 %v2937
    %v3235 = vunpack.c.h.b16 %v2937
    %v3236 = vunpack.c.l.b16 %v2938
    %v3237 = vunpack.c.h.b16 %v2938
    %v3238 = vunpack.c.l.b16 %v2939
    %v3239 = vunpack.c.h.b16 %v2939
    %v3240 = vunpack.c.l.b16 %v2940
    %v3241 = vunpack.c.h.b16 %v2940
    %v3242 = vunpack.c.l.b16 %v2941
    %v3243 = vunpack.c.h.b16 %v2941
    %v3244 = vunpack.c.l.b16 %v2942
    %v3245 = vunpack.c.h.b16 %v2942
    %v3246 = vunpack.c.l.b16 %v2943
    %v3247 = vunpack.c.h.b16 %v2943
    %v3248 = vunpack.c.l.b16 %v2944
    %v3249 = vunpack.c.h.b16 %v2944
    %v3250 = vunpack.c.l.b16 %v2945
    %v3251 = vunpack.c.h.b16 %v2945
    %v3252 = vunpack.c.l.b16 %v2946
    %v3253 = vunpack.c.h.b16 %v2946
    %v3254 = vunpack.c.l.b16 %v2947
    %v3255 = vunpack.c.h.b16 %v2947
    %v3256 = vunpack.c.l.b16 %v2948
    %v3257 = vunpack.c.h.b16 %v2948
    %v3258 = vunpack.c.l.b16 %v2949
    %v3259 = vunpack.c.h.b16 %v2949
    %v3260 = vunpack.c.l.b16 %v2950
    %v3261 = vunpack.c.h.b16 %v2950
    %v3262 = vunpack.c.l.b16 %v2951
    %v3263 = vunpack.c.h.b16 %v2951
    %v3264 = vunpack.c.l.b16 %v2952
    %v3265 = vunpack.c.h.b16 %v2952
    %v3266 = vunpack.c.l.b16 %v2953
    %v3267 = vunpack.c.h.b16 %v2953
    %v3268 = vunpack.c.l.b16 %v2954
    %v3269 = vunpack.c.h.b16 %v2954
    %v3270 = vunpack.c.l.b16 %v2955
    %v3271 = vunpack.c.h.b16 %v2955
    %v3272 = vunpack.c.l.b16 %v2956
    %v3273 = vunpack.c.h.b16 %v2956
    %v3274 = vunpack.c.l.b16 %v2957
    %v3275 = vunpack.c.h.b16 %v2957
    %v3276 = vunpack.c.l.b16 %v2958
    %v3277 = vunpack.c.h.b16 %v2958
    %v3278 = vunpack.c.l.b16 %v2959
    %v3279 = vunpack.c.h.b16 %v2959
    %v3280 = vunpack.c.l.b16 %v2960
    %v3281 = vunpack.c.h.b16 %v2960
    %v3282 = vunpack.c.l.b16 %v2961
    %v3283 = vunpack.c.h.b16 %v2961
    %v3284 = vunpack.c.l.b16 %v2962
    %v3285 = vunpack.c.h.b16 %v2962
    %v3286 = vunpack.c.l.b16 %v2963
    %v3287 = vunpack.c.h.b16 %v2963
    %v3288 = vunpack.c.l.b16 %v2964
    %v3289 = vunpack.c.h.b16 %v2964
    %v3290 = vunpack.c.l.b16 %v2965
    %v3291 = vunpack.c.h.b16 %v2965
    %v3292 = vunpack.c.l.b16 %v2966
    %v3293 = vunpack.c.h.b16 %v2966
    %v3294 = vunpack.c.l.b16 %v2967
    %v3295 = vunpack.c.h.b16 %v2967
    %v3296 = vunpack.c.l.b16 %v2968
    %v3297 = vunpack.c.h.b16 %v2968
    %v3298 = vunpack.c.l.b16 %v2969
    %v3299 = vunpack.c.h.b16 %v2969
    %v3300 = vunpack.c.l.b16 %v2970
    %v3301 = vunpack.c.h.b16 %v2970
    %v3302 = vunpack.c.l.b16 %v2971
    %v3303 = vunpack.c.h.b16 %v2971
    %v3304 = vunpack.c.l.b16 %v2972
    %v3305 = vunpack.c.h.b16 %v2972
    %v3306 = vunpack.c.l.b16 %v2973
    %v3307 = vunpack.c.h.b16 %v2973
    %v3308 = vunpack.c.l.b16 %v2974
    %v3309 = vunpack.c.h.b16 %v2974
    %v3310 = vunpack.c.l.b16 %v2975
    %v3311 = vunpack.c.h.b16 %v2975
    %v3312 = vunpack.c.l.b16 %v2976
    %v3313 = vunpack.c.h.b16 %v2976
    %v3314 = vunpack.c.l.b16 %v2977
    %v3315 = vunpack.c.h.b16 %v2977
    %v3316 = vunpack.c.l.b16 %v2978
    %v3317 = vunpack.c.h.b16 %v2978
    %v3318 = vunpack.c.l.b16 %v2979
    %v3319 = vunpack.c.h.b16 %v2979
    %v3320 = vunpack.c.l.b16 %v2980
    %v3321 = vunpack.c.h.b16 %v2980
    %v3322 = vunpack.c.l.b16 %v2981
    %v3323 = vunpack.c.h.b16 %v2981
    %v3324 = vunpack.c.l.b16 %v2982
    %v3325 = vunpack.c.h.b16 %v2982
    %v3326 = vunpack.c.l.b16 %v2983
    %v3327 = vunpack.c.h.b16 %v2983
    %v3328 = vunpack.c.l.b16 %v2984
    %v3329 = vunpack.c.h.b16 %v2984
    %v3330 = vunpack.c.l.b16 %v2985
    %v3331 = vunpack.c.h.b16 %v2985
    %v3332 = vunpack.c.l.b16 %v2986
    %v3333 = vunpack.c.h.b16 %v2986
    %v3334 = vunpack.c.l.b16 %v2987
    %v3335 = vunpack.c.h.b16 %v2987
    %v3336 = vunpack.c.l.b16 %v2988
    %v3337 = vunpack.c.h.b16 %v2988
    %v3338 = vunpack.c.l.b16 %v2989
    %v3339 = vunpack.c.h.b16 %v2989
    %v3340 = vunpack.c.l.b16 %v2990
    %v3341 = vunpack.c.h.b16 %v2990
    %v3342 = vunpack.c.l.b16 %v2991
    %v3343 = vunpack.c.h.b16 %v2991
    %v3344 = vunpack.c.l.b16 %v2992
    %v3345 = vunpack.c.h.b16 %v2992
    %v3346 = vunpack.c.l.b16 %v2993
    %v3347 = vunpack.c.h.b16 %v2993
    %v3348 = vunpack.c.l.b16 %v2994
    %v3349 = vunpack.c.h.b16 %v2994
    %v3350 = vunpack.c.l.b16 %v2995
    %v3351 = vunpack.c.h.b16 %v2995
    %v3352 = vunpack.c.l.b16 %v2996
    %v3353 = vunpack.c.h.b16 %v2996
    %v3354 = vunpack.c.l.b16 %v2997
    %v3355 = vunpack.c.h.b16 %v2997
    %v3356 = vunpack.c.l.b16 %v2998
    %v3357 = vunpack.c.h.b16 %v2998
    %v3358 = vunpack.c.l.b16 %v2999
    %v3359 = vunpack.c.h.b16 %v2999
    %v3360 = vunpack.c.l.b16 %v3000
    %v3361 = vunpack.c.h.b16 %v3000
    %v3362 = vunpack.c.l.b16 %v3001
    %v3363 = vunpack.c.h.b16 %v3001
    %v3364 = vunpack.c.l.b16 %v3002
    %v3365 = vunpack.c.h.b16 %v3002
    %v3366 = vunpack.c.l.b16 %v3003
    %v3367 = vunpack.c.h.b16 %v3003
    %v3368 = vunpack.c.l.b16 %v3004
    %v3369 = vunpack.c.h.b16 %v3004
    %v3370 = vunpack.c.l.b16 %v3005
    %v3371 = vunpack.c.h.b16 %v3005
    %v3372 = vunpack.c.l.b16 %v3006
    %v3373 = vunpack.c.h.b16 %v3006
    %v3374 = vunpack.c.l.b16 %v3007
    %v3375 = vunpack.c.h.b16 %v3007
    %v3376 = vunpack.c.l.b16 %v3008
    %v3377 = vunpack.c.h.b16 %v3008
    %v3378 = vunpack.c.l.b16 %v3009
    %v3379 = vunpack.c.h.b16 %v3009
    %v3380 = vunpack.c.l.b16 %v3010
    %v3381 = vunpack.c.h.b16 %v3010
    %v3382 = vunpack.c.l.b16 %v3011
    %v3383 = vunpack.c.h.b16 %v3011
    %v3384 = vunpack.c.l.b16 %v3012
    %v3385 = vunpack.c.h.b16 %v3012
    %v3386 = vunpack.c.l.b16 %v3013
    %v3387 = vunpack.c.h.b16 %v3013
    %v3388 = vunpack.c.l.b16 %v3014
    %v3389 = vunpack.c.h.b16 %v3014
    %v3390 = vunpack.c.l.b16 %v3015
    %v3391 = vunpack.c.h.b16 %v3015
    %v3392 = vunpack.c.l.b16 %v3016
    %v3393 = vunpack.c.h.b16 %v3016
    %v3394 = vunpack.c.l.b16 %v3017
    %v3395 = vunpack.c.h.b16 %v3017
    %v3396 = vunpack.c.l.b16 %v3018
    %v3397 = vunpack.c.h.b16 %v3018
    %v3398 = vunpack.c.l.b16 %v3019
    %v3399 = vunpack.c.h.b16 %v3019
    %v3400 = vunpack.c.l.b16 %v3020
    %v3401 = vunpack.c.h.b16 %v3020
    %v3402 = vunpack.c.l.b16 %v3021
    %v3403 = vunpack.c.h.b16 %v3021
    %v3404 = vunpack.c.l.b16 %v3022
    %v3405 = vunpack.c.h.b16 %v3022
    %v3406 = vunpack.c.l.b16 %v3023
    %v3407 = vunpack.c.h.b16 %v3023
    %v3408 = vpack.c.b16 %v3160, %v3152
    %v3409 = vpack.c.b16 %v3161, %v3153
    %v3410 = vpack.c.b16 %v3162, %v3154
    %v3411 = vpack.c.b16 %v3163, %v3155
    %v3412 = vpack.c.b16 %v3164, %v3156
    %v3413 = vpack.c.b16 %v3165, %v3157
    %v3414 = vpack.c.b16 %v3166, %v3158
    %v3415 = vpack.c.b16 %v3167, %v3159
    %v3416 = vpack.c.b16 %v3176, %v3168
    %v3417 = vpack.c.b16 %v3177, %v3169
    %v3418 = vpack.c.b16 %v3178, %v3170
    %v3419 = vpack.c.b16 %v3179, %v3171
    %v3420 = vpack.c.b16 %v3180, %v3172
    %v3421 = vpack.c.b16 %v3181, %v3173
    %v3422 = vpack.c.b16 %v3182, %v3174
    %v3423 = vpack.c.b16 %v3183, %v3175
    %v3424 = vpack.c.b16 %v3192, %v3184
    %v3425 = vpack.c.b16 %v3193, %v3185
    %v3426 = vpack.c.b16 %v3194, %v3186
    %v3427 = vpack.c.b16 %v3195, %v3187
    %v3428 = vpack.c.b16 %v3196, %v3188
    %v3429 = vpack.c.b16 %v3197, %v3189
    %v3430 = vpack.c.b16 %v3198, %v3190
    %v3431 = vpack.c.b16 %v3199, %v3191
    %v3432 = vpack.c.b16 %v3208, %v3200
    %v3433 = vpack.c.b16 %v3209, %v3201
    %v3434 = vpack.c.b16 %v3210, %v3202
    %v3435 = vpack.c.b16 %v3211, %v3203
    %v3436 = vpack.c.b16 %v3212, %v3204
    %v3437 = vpack.c.b16 %v3213, %v3205
    %v3438 = vpack.c.b16 %v3214, %v3206
    %v3439 = vpack.c.b16 %v3215, %v3207
    %v3440 = vpack.c.b16 %v3224, %v3216
    %v3441 = vpack.c.b16 %v3225, %v3217
    %v3442 = vpack.c.b16 %v3226, %v3218
    %v3443 = vpack.c.b16 %v3227, %v3219
    %v3444 = vpack.c.b16 %v3228, %v3220
    %v3445 = vpack.c.b16 %v3229, %v3221
    %v3446 = vpack.c.b16 %v3230, %v3222
    %v3447 = vpack.c.b16 %v3231, %v3223
    %v3448 = vpack.c.b16 %v3240, %v3232
    %v3449 = vpack.c.b16 %v3241, %v3233
    %v3450 = vpack.c.b16 %v3242, %v3234
    %v3451 = vpack.c.b16 %v3243, %v3235
    %v3452 = vpack.c.b16 %v3244, %v3236
    %v3453 = vpack.c.b16 %v3245, %v3237
    %v3454 = vpack.c.b16 %v3246, %v3238
    %v3455 = vpack.c.b16 %v3247, %v3239
    %v3456 = vpack.c.b16 %v3256, %v3248
    %v3457 = vpack.c.b16 %v3257, %v3249
    %v3458 = vpack.c.b16 %v3258, %v3250
    %v3459 = vpack.c.b16 %v3259, %v3251
    %v3460 = vpack.c.b16 %v3260, %v3252
    %v3461 = vpack.c.b16 %v3261, %v3253
    %v3462 = vpack.c.b16 %v3262, %v3254
    %v3463 = vpack.c.b16 %v3263, %v3255
    %v3464 = vpack.c.b16 %v3272, %v3264
    %v3465 = vpack.c.b16 %v3273, %v3265
    %v3466 = vpack.c.b16 %v3274, %v3266
    %v3467 = vpack.c.b16 %v3275, %v3267
    %v3468 = vpack.c.b16 %v3276, %v3268
    %v3469 = vpack.c.b16 %v3277, %v3269
    %v3470 = vpack.c.b16 %v3278, %v3270
    %v3471 = vpack.c.b16 %v3279, %v3271
    %v3472 = vpack.c.b16 %v3288, %v3280
    %v3473 = vpack.c.b16 %v3289, %v3281
    %v3474 = vpack.c.b16 %v3290, %v3282
    %v3475 = vpack.c.b16 %v3291, %v3283
    %v3476 = vpack.c.b16 %v3292, %v3284
    %v3477 = vpack.c.b16 %v3293, %v3285
    %v3478 = vpack.c.b16 %v3294, %v3286
    %v3479 = vpack.c.b16 %v3295, %v3287
    %v3480 = vpack.c.b16 %v3304, %v3296
    %v3481 = vpack.c.b16 %v3305, %v3297
    %v3482 = vpack.c.b16 %v3306, %v3298
    %v3483 = vpack.c.b16 %v3307, %v3299
    %v3484 = vpack.c.b16 %v3308, %v3300
    %v3485 = vpack.c.b16 %v3309, %v3301
    %v3486 = vpack.c.b16 %v3310, %v3302
    %v3487 = vpack.c.b16 %v3311, %v3303
    %v3488 = vpack.c.b16 %v3320, %v3312
    %v3489 = vpack.c.b16 %v3321, %v3313
    %v3490 = vpack.c.b16 %v3322, %v3314
    %v3491 = vpack.c.b16 %v3323, %v3315
    %v3492 = vpack.c.b16 %v3324, %v3316
    %v3493 = vpack.c.b16 %v3325, %v3317
    %v3494 = vpack.c.b16 %v3326, %v3318
    %v3495 = vpack.c.b16 %v3327, %v3319
    %v3496 = vpack.c.b16 %v3336, %v3328
    %v3497 = vpack.c.b16 %v3337, %v3329
    %v3498 = vpack.c.b16 %v3338, %v3330
    %v3499 = vpack.c.b16 %v3339, %v3331
    %v3500 = vpack.c.b16 %v3340, %v3332
    %v3501 = vpack.c.b16 %v3341, %v3333
    %v3502 = vpack.c.b16 %v3342, %v3334
    %v3503 = vpack.c.b16 %v3343, %v3335
    %v3504 = vpack.c.b16 %v3352, %v3344
    %v3505 = vpack.c.b16 %v3353, %v3345
    %v3506 = vpack.c.b16 %v3354, %v3346
    %v3507 = vpack.c.b16 %v3355, %v3347
    %v3508 = vpack.c.b16 %v3356, %v3348
    %v3509 = vpack.c.b16 %v3357, %v3349
    %v3510 = vpack.c.b16 %v3358, %v3350
    %v3511 = vpack.c.b16 %v3359, %v3351
    %v3512 = vpack.c.b16 %v3368, %v3360
    %v3513 = vpack.c.b16 %v3369, %v3361
    %v3514 = vpack.c.b16 %v3370, %v3362
    %v3515 = vpack.c.b16 %v3371, %v3363
    %v3516 = vpack.c.b16 %v3372, %v3364
    %v3517 = vpack.c.b16 %v3373, %v3365
    %v3518 = vpack.c.b16 %v3374, %v3366
    %v3519 = vpack.c.b16 %v3375, %v3367
    %v3520 = vpack.c.b16 %v3384, %v3376
    %v3521 = vpack.c.b16 %v3385, %v3377
    %v3522 = vpack.c.b16 %v3386, %v3378
    %v3523 = vpack.c.b16 %v3387, %v3379
    %v3524 = vpack.c.b16 %v3388, %v3380
    %v3525 = vpack.c.b16 %v3389, %v3381
    %v3526 = vpack.c.b16 %v3390, %v3382
    %v3527 = vpack.c.b16 %v3391, %v3383
    %v3528 = vpack.c.b16 %v3400, %v3392
    %v3529 = vpack.c.b16 %v3401, %v3393
    %v3530 = vpack.c.b16 %v3402, %v3394
    %v3531 = vpack.c.b16 %v3403, %v3395
    %v3532 = vpack.c.b16 %v3404, %v3396
    %v3533 = vpack.c.b16 %v3405, %v3397
    %v3534 = vpack.c.b16 %v3406, %v3398
    %v3535 = vpack.c.b16 %v3407, %v3399
    %3664 = vmatprep.subr.bf16.mxu0 %v3409
    %3665 = vmatpush1.bf16.msra.mxu0 %v3408
    %3666 = vmatprep.subr.bf16.mxu0 %v3417
    %3667 = vmatpush1.bf16.msra.mxu0 %v3416
    %3668 = vmatprep.subr.bf16.mxu0 %v3425
    %3669 = vmatpush1.bf16.msra.mxu0 %v3424
    %3670 = vmatprep.subr.bf16.mxu0 %v3433
    %3671 = vmatpush1.bf16.msra.mxu0 %v3432
    %3672 = vmatprep.subr.bf16.mxu0 %v3441
    %3673 = vmatpush1.bf16.msra.mxu0 %v3440
    %3674 = vmatprep.subr.bf16.mxu0 %v3449
    %3675 = vmatpush1.bf16.msra.mxu0 %v3448
    %3676 = vmatprep.subr.bf16.mxu0 %v3457
    %3677 = vmatpush1.bf16.msra.mxu0 %v3456
    %3678 = vmatprep.subr.bf16.mxu0 %v3465
    %3679 = vmatpush1.bf16.msra.mxu0 %v3464
    %3680 = vmatprep.subr.bf16.mxu0 %v3473
    %3681 = vmatpush1.bf16.msra.mxu0 %v3472
    %3682 = vmatprep.subr.bf16.mxu0 %v3481
    %3683 = vmatpush1.bf16.msra.mxu0 %v3480
    %3684 = vmatprep.subr.bf16.mxu0 %v3489
    %3685 = vmatpush1.bf16.msra.mxu0 %v3488
    %3686 = vmatprep.subr.bf16.mxu0 %v3497
    %3687 = vmatpush1.bf16.msra.mxu0 %v3496
    %3688 = vmatprep.subr.bf16.mxu0 %v3505
    %3689 = vmatpush1.bf16.msra.mxu0 %v3504
    %3690 = vmatprep.subr.bf16.mxu0 %v3513
    %3691 = vmatpush1.bf16.msra.mxu0 %v3512
    %3692 = vmatprep.subr.bf16.mxu0 %v3521
    %3693 = vmatpush1.bf16.msra.mxu0 %v3520
    %3694 = vmatprep.subr.bf16.mxu0 %v3529
    %3695 = vmatpush1.bf16.msra.mxu0 %v3528
    %3696 = vmatprep.mubr.bf16.mxu0 %v2895
    %3697 = vmatmul.mubr.bf16.gmra.mrb[0].mxu0 %v2894
    %v3698 = vpop.f32.mrb[0].mxu0
    %v3699 = vadd.f32 0.0, %v3698
    %v3700 = vpop.f32.mrb[0].mxu0
    %v3701 = vadd.f32 0.0, %v3700
    %v3702 = vpop.f32.mrb[0].mxu0
    %v3703 = vpop.f32.mrb[0].mxu0
    %3704 = vdwg.mxu0
    %3705 = vmatprep.subr.bf16.mxu0 %v3411
    %3706 = vmatpush1.bf16.msra.mxu0 %v3410
    %3707 = vmatprep.subr.bf16.mxu0 %v3419
    %3708 = vmatpush1.bf16.msra.mxu0 %v3418
    %3709 = vmatprep.subr.bf16.mxu0 %v3427
    %3710 = vmatpush1.bf16.msra.mxu0 %v3426
    %3711 = vmatprep.subr.bf16.mxu0 %v3435
    %3712 = vmatpush1.bf16.msra.mxu0 %v3434
    %3713 = vmatprep.subr.bf16.mxu0 %v3443
    %3714 = vmatpush1.bf16.msra.mxu0 %v3442
    %3715 = vmatprep.subr.bf16.mxu0 %v3451
    %3716 = vmatpush1.bf16.msra.mxu0 %v3450
    %3717 = vmatprep.subr.bf16.mxu0 %v3459
    %3718 = vmatpush1.bf16.msra.mxu0 %v3458
    %3719 = vmatprep.subr.bf16.mxu0 %v3467
    %3720 = vmatpush1.bf16.msra.mxu0 %v3466
    %3721 = vmatprep.subr.bf16.mxu0 %v3475
    %3722 = vmatpush1.bf16.msra.mxu0 %v3474
    %3723 = vmatprep.subr.bf16.mxu0 %v3483
    %3724 = vmatpush1.bf16.msra.mxu0 %v3482
    %3725 = vmatprep.subr.bf16.mxu0 %v3491
    %3726 = vmatpush1.bf16.msra.mxu0 %v3490
    %3727 = vmatprep.subr.bf16.mxu0 %v3499
    %3728 = vmatpush1.bf16.msra.mxu0 %v3498
    %3729 = vmatprep.subr.bf16.mxu0 %v3507
    %3730 = vmatpush1.bf16.msra.mxu0 %v3506
    %3731 = vmatprep.subr.bf16.mxu0 %v3515
    %3732 = vmatpush1.bf16.msra.mxu0 %v3514
    %3733 = vmatprep.subr.bf16.mxu0 %v3523
    %3734 = vmatpush1.bf16.msra.mxu0 %v3522
    %3735 = vmatprep.subr.bf16.mxu0 %v3531
    %3736 = vmatpush1.bf16.msra.mxu0 %v3530
    %3737 = vmatprep.mubr.bf16.mxu0 %v2895
    %3738 = vmatmul.mubr.bf16.gmra.mrb[0].mxu0 %v2894
    %v3739 = vpop.f32.mrb[0].mxu0
    %v3740 = vadd.f32 0.0, %v3739
    %v3741 = vpop.f32.mrb[0].mxu0
    %v3742 = vadd.f32 0.0, %v3741
    %v3743 = vpop.f32.mrb[0].mxu0
    %v3744 = vpop.f32.mrb[0].mxu0
    %3745 = vdwg.mxu0
    %3746 = vmatprep.subr.bf16.mxu0 %v3413
    %3747 = vmatpush1.bf16.msra.mxu0 %v3412
    %3748 = vmatprep.subr.bf16.mxu0 %v3421
    %3749 = vmatpush1.bf16.msra.mxu0 %v3420
    %3750 = vmatprep.subr.bf16.mxu0 %v3429
    %3751 = vmatpush1.bf16.msra.mxu0 %v3428
    %3752 = vmatprep.subr.bf16.mxu0 %v3437
    %3753 = vmatpush1.bf16.msra.mxu0 %v3436
    %3754 = vmatprep.subr.bf16.mxu0 %v3445
    %3755 = vmatpush1.bf16.msra.mxu0 %v3444
    %3756 = vmatprep.subr.bf16.mxu0 %v3453
    %3757 = vmatpush1.bf16.msra.mxu0 %v3452
    %3758 = vmatprep.subr.bf16.mxu0 %v3461
    %3759 = vmatpush1.bf16.msra.mxu0 %v3460
    %3760 = vmatprep.subr.bf16.mxu0 %v3469
    %3761 = vmatpush1.bf16.msra.mxu0 %v3468
    %3762 = vmatprep.subr.bf16.mxu0 %v3477
    %3763 = vmatpush1.bf16.msra.mxu0 %v3476
    %3764 = vmatprep.subr.bf16.mxu0 %v3485
    %3765 = vmatpush1.bf16.msra.mxu0 %v3484
    %3766 = vmatprep.subr.bf16.mxu0 %v3493
    %3767 = vmatpush1.bf16.msra.mxu0 %v3492
    %3768 = vmatprep.subr.bf16.mxu0 %v3501
    %3769 = vmatpush1.bf16.msra.mxu0 %v3500
    %3770 = vmatprep.subr.bf16.mxu0 %v3509
    %3771 = vmatpush1.bf16.msra.mxu0 %v3508
    %3772 = vmatprep.subr.bf16.mxu0 %v3517
    %3773 = vmatpush1.bf16.msra.mxu0 %v3516
    %3774 = vmatprep.subr.bf16.mxu0 %v3525
    %3775 = vmatpush1.bf16.msra.mxu0 %v3524
    %3776 = vmatprep.subr.bf16.mxu0 %v3533
    %3777 = vmatpush1.bf16.msra.mxu0 %v3532
    %3778 = vmatprep.mubr.bf16.mxu0 %v2895
    %3779 = vmatmul.mubr.bf16.gmra.mrb[0].mxu0 %v2894
    %v3780 = vpop.f32.mrb[0].mxu0
    %v3781 = vadd.f32 0.0, %v3780
    %v3782 = vpop.f32.mrb[0].mxu0
    %v3783 = vadd.f32 0.0, %v3782
    %v3784 = vpop.f32.mrb[0].mxu0
    %v3785 = vpop.f32.mrb[0].mxu0
    %3786 = vdwg.mxu0
    %3787 = vmatprep.subr.bf16.mxu0 %v3415
    %3788 = vmatpush1.bf16.msra.mxu0 %v3414
    %3789 = vmatprep.subr.bf16.mxu0 %v3423
    %3790 = vmatpush1.bf16.msra.mxu0 %v3422
    %3791 = vmatprep.subr.bf16.mxu0 %v3431
    %3792 = vmatpush1.bf16.msra.mxu0 %v3430
    %3793 = vmatprep.subr.bf16.mxu0 %v3439
    %3794 = vmatpush1.bf16.msra.mxu0 %v3438
    %3795 = vmatprep.subr.bf16.mxu0 %v3447
    %3796 = vmatpush1.bf16.msra.mxu0 %v3446
    %3797 = vmatprep.subr.bf16.mxu0 %v3455
    %3798 = vmatpush1.bf16.msra.mxu0 %v3454
    %3799 = vmatprep.subr.bf16.mxu0 %v3463
    %3800 = vmatpush1.bf16.msra.mxu0 %v3462
    %3801 = vmatprep.subr.bf16.mxu0 %v3471
    %3802 = vmatpush1.bf16.msra.mxu0 %v3470
    %3803 = vmatprep.subr.bf16.mxu0 %v3479
    %3804 = vmatpush1.bf16.msra.mxu0 %v3478
    %3805 = vmatprep.subr.bf16.mxu0 %v3487
    %3806 = vmatpush1.bf16.msra.mxu0 %v3486
    %3807 = vmatprep.subr.bf16.mxu0 %v3495
    %3808 = vmatpush1.bf16.msra.mxu0 %v3494
    %3809 = vmatprep.subr.bf16.mxu0 %v3503
    %3810 = vmatpush1.bf16.msra.mxu0 %v3502
    %3811 = vmatprep.subr.bf16.mxu0 %v3511
    %3812 = vmatpush1.bf16.msra.mxu0 %v3510
    %3813 = vmatprep.subr.bf16.mxu0 %v3519
    %3814 = vmatpush1.bf16.msra.mxu0 %v3518
    %3815 = vmatprep.subr.bf16.mxu0 %v3527
    %3816 = vmatpush1.bf16.msra.mxu0 %v3526
    %3817 = vmatprep.subr.bf16.mxu0 %v3535
    %3818 = vmatpush1.bf16.msra.mxu0 %v3534
    %3819 = vmatprep.mubr.bf16.mxu0 %v2895
    %3820 = vmatmul.mubr.bf16.gmra.mrb[0].mxu0 %v2894
    %v3821 = vpop.f32.mrb[0].mxu0
    %v3822 = vadd.f32 0.0, %v3821
    %v3823 = vpop.f32.mrb[0].mxu0
    %v3824 = vadd.f32 0.0, %v3823
    %v3825 = vpop.f32.mrb[0].mxu0
    %v3826 = vpop.f32.mrb[0].mxu0
    %3827 = vdwg.mxu0
    %v3828 = vadd.f32 %v2886, %v3699
    %v3829 = vadd.f32 %v2887, %v3701
    %v3830 = vadd.f32 %v2888, %v3740
    %v3831 = vadd.f32 %v2889, %v3742
    %v3832 = vadd.f32 %v2890, %v3781
    %v3833 = vadd.f32 %v2891, %v3783
    %v3834 = vadd.f32 %v2892, %v3822
    %v3835 = vadd.f32 %v2893, %v3824
    %v3836 = vxor.u32 %v3828, 2147483648
    %v3837 = vxor.u32 %v3829, 2147483648
    %v3838 = vxor.u32 %v3830, 2147483648
    %v3839 = vxor.u32 %v3831, 2147483648
    %v3840 = vxor.u32 %v3832, 2147483648
    %v3841 = vxor.u32 %v3833, 2147483648
    %v3842 = vmul.f32 %v3836, 1.442695
    %v3843 = vpow.pop %v3842
    %v3844 = vmul.f32 %v3837, 1.442695
    %v3845 = vpow.pop %v3844
    %v3846 = vmul.f32 %v3838, 1.442695
    %v3847 = vpow.pop %v3846
    %v3848 = vmul.f32 %v3839, 1.442695
    %v3849 = vpow.pop %v3848
    %v3850 = vmul.f32 %v3840, 1.442695
    %v3851 = vpow.pop %v3850
    %v3852 = vmul.f32 %v3841, 1.442695
    %v3853 = vpow.pop %v3852
    %v3854 = vadd.f32 %v3843, 1.0
    %v3855 = vadd.f32 %v3845, 1.0
    %v3856 = vadd.f32 %v3847, 1.0
    %v3857 = vadd.f32 %v3849, 1.0
    %v3858 = vadd.f32 %v3851, 1.0
    %v3859 = vadd.f32 %v3853, 1.0
    %v3860 = vrcp.pop %v3854
    %v3861 = vmul.f32 1.0, %v3860
    %v3862 = vrcp.pop %v3855
    %v3863 = vmul.f32 1.0, %v3862
    %v3864 = vrcp.pop %v3856
    %v3865 = vmul.f32 1.0, %v3864
    %v3866 = vrcp.pop %v3857
    %v3867 = vmul.f32 1.0, %v3866
    %v3868 = vrcp.pop %v3858
    %v3869 = vmul.f32 1.0, %v3868
    %v3870 = vrcp.pop %v3859
    %v3871 = vmul.f32 1.0, %v3870
    %v3872 = vtanh.pop %v3834
    %v3873 = vtanh.pop %v3835
    %v3874 = vmul.f32 %v3865, %v2876
    %v3875 = vmul.f32 %v3867, %v2877
    %v3876 = vmul.f32 %v3861, %v3872
    %v3877 = vmul.f32 %v3863, %v3873
    %v3878 = vadd.f32 %v3874, %v3876
    %v3879 = vadd.f32 %v3875, %v3877
    %v3880 = vtanh.pop %v3878
    %v3881 = vtanh.pop %v3879
    %v3882 = vmul.f32 %v3869, %v3880
    %v3883 = vmul.f32 %v3871, %v3881
    %s3884 = scalar_lea.vmem [#allocation5], 32
    %3885 = vst [vmem:[%s3884] sm:$0xff] %v3882
    %3886 = vst [vmem:[%s3884 + $0x8] sm:$0xff] %v3883
    %s3887 = scalar_lea.vmem [#allocation4], 192
    %v3888 = vld [vmem:[%s3887] sm:$0xff]
    %v3889 = vld [vmem:[%s3887 + $0x8] sm:$0xff]
    %v3890 = vld [vmem:[%s3887 + $0x10] sm:$0xff]
    %v3891 = vld [vmem:[%s3887 + $0x18] sm:$0xff]
    %v3892 = vld [vmem:[%s3887 + $0x20] sm:$0xff]
    %v3893 = vld [vmem:[%s3887 + $0x28] sm:$0xff]
    %v3894 = vld [vmem:[%s3887 + $0x30] sm:$0xff]
    %v3895 = vld [vmem:[%s3887 + $0x38] sm:$0xff]
    %v3896 = vpack.c.bf16 %v3882, %v3882
    %v3897 = vpack.c.bf16 %v3883, %v3883
    %v3898 = vld [vmem:[#allocation9] sm:$0xff]
    %v3899 = vld [vmem:[#allocation9 + $0x8] sm:$0xff]
    %v3900 = vld [vmem:[#allocation9 + $0x10] sm:$0xff]
    %v3901 = vld [vmem:[#allocation9 + $0x18] sm:$0xff]
    %v3902 = vld [vmem:[#allocation9 + $0x20] sm:$0xff]
    %v3903 = vld [vmem:[#allocation9 + $0x28] sm:$0xff]
    %v3904 = vld [vmem:[#allocation9 + $0x30] sm:$0xff]
    %v3905 = vld [vmem:[#allocation9 + $0x38] sm:$0xff]
    %v3906 = vld [vmem:[#allocation9 + $0x40] sm:$0xff]
    %v3907 = vld [vmem:[#allocation9 + $0x48] sm:$0xff]
    %v3908 = vld [vmem:[#allocation9 + $0x50] sm:$0xff]
    %v3909 = vld [vmem:[#allocation9 + $0x58] sm:$0xff]
    %v3910 = vld [vmem:[#allocation9 + $0x60] sm:$0xff]
    %v3911 = vld [vmem:[#allocation9 + $0x68] sm:$0xff]
    %v3912 = vld [vmem:[#allocation9 + $0x70] sm:$0xff]
    %v3913 = vld [vmem:[#allocation9 + $0x78] sm:$0xff]
    %v3914 = vld [vmem:[#allocation9 + $0x80] sm:$0xff]
    %v3915 = vld [vmem:[#allocation9 + $0x88] sm:$0xff]
    %v3916 = vld [vmem:[#allocation9 + $0x90] sm:$0xff]
    %v3917 = vld [vmem:[#allocation9 + $0x98] sm:$0xff]
    %v3918 = vld [vmem:[#allocation9 + $0xa0] sm:$0xff]
    %v3919 = vld [vmem:[#allocation9 + $0xa8] sm:$0xff]
    %v3920 = vld [vmem:[#allocation9 + $0xb0] sm:$0xff]
    %v3921 = vld [vmem:[#allocation9 + $0xb8] sm:$0xff]
    %v3922 = vld [vmem:[#allocation9 + $0xc0] sm:$0xff]
    %v3923 = vld [vmem:[#allocation9 + $0xc8] sm:$0xff]
    %v3924 = vld [vmem:[#allocation9 + $0xd0] sm:$0xff]
    %v3925 = vld [vmem:[#allocation9 + $0xd8] sm:$0xff]
    %v3926 = vld [vmem:[#allocation9 + $0xe0] sm:$0xff]
    %v3927 = vld [vmem:[#allocation9 + $0xe8] sm:$0xff]
    %v3928 = vld [vmem:[#allocation9 + $0xf0] sm:$0xff]
    %v3929 = vld [vmem:[#allocation9 + $0xf8] sm:$0xff]
    %v3930 = vld [vmem:[#allocation9 + $0x100] sm:$0xff]
    %v3931 = vld [vmem:[#allocation9 + $0x108] sm:$0xff]
    %v3932 = vld [vmem:[#allocation9 + $0x110] sm:$0xff]
    %v3933 = vld [vmem:[#allocation9 + $0x118] sm:$0xff]
    %v3934 = vld [vmem:[#allocation9 + $0x120] sm:$0xff]
    %v3935 = vld [vmem:[#allocation9 + $0x128] sm:$0xff]
    %v3936 = vld [vmem:[#allocation9 + $0x130] sm:$0xff]
    %v3937 = vld [vmem:[#allocation9 + $0x138] sm:$0xff]
    %v3938 = vld [vmem:[#allocation9 + $0x140] sm:$0xff]
    %v3939 = vld [vmem:[#allocation9 + $0x148] sm:$0xff]
    %v3940 = vld [vmem:[#allocation9 + $0x150] sm:$0xff]
    %v3941 = vld [vmem:[#allocation9 + $0x158] sm:$0xff]
    %v3942 = vld [vmem:[#allocation9 + $0x160] sm:$0xff]
    %v3943 = vld [vmem:[#allocation9 + $0x168] sm:$0xff]
    %v3944 = vld [vmem:[#allocation9 + $0x170] sm:$0xff]
    %v3945 = vld [vmem:[#allocation9 + $0x178] sm:$0xff]
    %v3946 = vld [vmem:[#allocation9 + $0x180] sm:$0xff]
    %v3947 = vld [vmem:[#allocation9 + $0x188] sm:$0xff]
    %v3948 = vld [vmem:[#allocation9 + $0x190] sm:$0xff]
    %v3949 = vld [vmem:[#allocation9 + $0x198] sm:$0xff]
    %v3950 = vld [vmem:[#allocation9 + $0x1a0] sm:$0xff]
    %v3951 = vld [vmem:[#allocation9 + $0x1a8] sm:$0xff]
    %v3952 = vld [vmem:[#allocation9 + $0x1b0] sm:$0xff]
    %v3953 = vld [vmem:[#allocation9 + $0x1b8] sm:$0xff]
    %v3954 = vld [vmem:[#allocation9 + $0x1c0] sm:$0xff]
    %v3955 = vld [vmem:[#allocation9 + $0x1c8] sm:$0xff]
    %v3956 = vld [vmem:[#allocation9 + $0x1d0] sm:$0xff]
    %v3957 = vld [vmem:[#allocation9 + $0x1d8] sm:$0xff]
    %v3958 = vld [vmem:[#allocation9 + $0x1e0] sm:$0xff]
    %v3959 = vld [vmem:[#allocation9 + $0x1e8] sm:$0xff]
    %v3960 = vld [vmem:[#allocation9 + $0x1f0] sm:$0xff]
    %v3961 = vld [vmem:[#allocation9 + $0x1f8] sm:$0xff]
    %v3962 = vld [vmem:[#allocation9 + $0x200] sm:$0xff]
    %v3963 = vld [vmem:[#allocation9 + $0x208] sm:$0xff]
    %v3964 = vld [vmem:[#allocation9 + $0x210] sm:$0xff]
    %v3965 = vld [vmem:[#allocation9 + $0x218] sm:$0xff]
    %v3966 = vld [vmem:[#allocation9 + $0x220] sm:$0xff]
    %v3967 = vld [vmem:[#allocation9 + $0x228] sm:$0xff]
    %v3968 = vld [vmem:[#allocation9 + $0x230] sm:$0xff]
    %v3969 = vld [vmem:[#allocation9 + $0x238] sm:$0xff]
    %v3970 = vld [vmem:[#allocation9 + $0x240] sm:$0xff]
    %v3971 = vld [vmem:[#allocation9 + $0x248] sm:$0xff]
    %v3972 = vld [vmem:[#allocation9 + $0x250] sm:$0xff]
    %v3973 = vld [vmem:[#allocation9 + $0x258] sm:$0xff]
    %v3974 = vld [vmem:[#allocation9 + $0x260] sm:$0xff]
    %v3975 = vld [vmem:[#allocation9 + $0x268] sm:$0xff]
    %v3976 = vld [vmem:[#allocation9 + $0x270] sm:$0xff]
    %v3977 = vld [vmem:[#allocation9 + $0x278] sm:$0xff]
    %v3978 = vld [vmem:[#allocation9 + $0x280] sm:$0xff]
    %v3979 = vld [vmem:[#allocation9 + $0x288] sm:$0xff]
    %v3980 = vld [vmem:[#allocation9 + $0x290] sm:$0xff]
    %v3981 = vld [vmem:[#allocation9 + $0x298] sm:$0xff]
    %v3982 = vld [vmem:[#allocation9 + $0x2a0] sm:$0xff]
    %v3983 = vld [vmem:[#allocation9 + $0x2a8] sm:$0xff]
    %v3984 = vld [vmem:[#allocation9 + $0x2b0] sm:$0xff]
    %v3985 = vld [vmem:[#allocation9 + $0x2b8] sm:$0xff]
    %v3986 = vld [vmem:[#allocation9 + $0x2c0] sm:$0xff]
    %v3987 = vld [vmem:[#allocation9 + $0x2c8] sm:$0xff]
    %v3988 = vld [vmem:[#allocation9 + $0x2d0] sm:$0xff]
    %v3989 = vld [vmem:[#allocation9 + $0x2d8] sm:$0xff]
    %v3990 = vld [vmem:[#allocation9 + $0x2e0] sm:$0xff]
    %v3991 = vld [vmem:[#allocation9 + $0x2e8] sm:$0xff]
    %v3992 = vld [vmem:[#allocation9 + $0x2f0] sm:$0xff]
    %v3993 = vld [vmem:[#allocation9 + $0x2f8] sm:$0xff]
    %v3994 = vld [vmem:[#allocation9 + $0x300] sm:$0xff]
    %v3995 = vld [vmem:[#allocation9 + $0x308] sm:$0xff]
    %v3996 = vld [vmem:[#allocation9 + $0x310] sm:$0xff]
    %v3997 = vld [vmem:[#allocation9 + $0x318] sm:$0xff]
    %v3998 = vld [vmem:[#allocation9 + $0x320] sm:$0xff]
    %v3999 = vld [vmem:[#allocation9 + $0x328] sm:$0xff]
    %v4000 = vld [vmem:[#allocation9 + $0x330] sm:$0xff]
    %v4001 = vld [vmem:[#allocation9 + $0x338] sm:$0xff]
    %v4002 = vld [vmem:[#allocation9 + $0x340] sm:$0xff]
    %v4003 = vld [vmem:[#allocation9 + $0x348] sm:$0xff]
    %v4004 = vld [vmem:[#allocation9 + $0x350] sm:$0xff]
    %v4005 = vld [vmem:[#allocation9 + $0x358] sm:$0xff]
    %v4006 = vld [vmem:[#allocation9 + $0x360] sm:$0xff]
    %v4007 = vld [vmem:[#allocation9 + $0x368] sm:$0xff]
    %v4008 = vld [vmem:[#allocation9 + $0x370] sm:$0xff]
    %v4009 = vld [vmem:[#allocation9 + $0x378] sm:$0xff]
    %v4010 = vld [vmem:[#allocation9 + $0x380] sm:$0xff]
    %v4011 = vld [vmem:[#allocation9 + $0x388] sm:$0xff]
    %v4012 = vld [vmem:[#allocation9 + $0x390] sm:$0xff]
    %v4013 = vld [vmem:[#allocation9 + $0x398] sm:$0xff]
    %v4014 = vld [vmem:[#allocation9 + $0x3a0] sm:$0xff]
    %v4015 = vld [vmem:[#allocation9 + $0x3a8] sm:$0xff]
    %v4016 = vld [vmem:[#allocation9 + $0x3b0] sm:$0xff]
    %v4017 = vld [vmem:[#allocation9 + $0x3b8] sm:$0xff]
    %v4018 = vld [vmem:[#allocation9 + $0x3c0] sm:$0xff]
    %v4019 = vld [vmem:[#allocation9 + $0x3c8] sm:$0xff]
    %v4020 = vld [vmem:[#allocation9 + $0x3d0] sm:$0xff]
    %v4021 = vld [vmem:[#allocation9 + $0x3d8] sm:$0xff]
    %v4022 = vld [vmem:[#allocation9 + $0x3e0] sm:$0xff]
    %v4023 = vld [vmem:[#allocation9 + $0x3e8] sm:$0xff]
    %v4024 = vld [vmem:[#allocation9 + $0x3f0] sm:$0xff]
    %v4025 = vld [vmem:[#allocation9 + $0x3f8] sm:$0xff]
    %v4154 = vunpack.c.l.b16 %v3898
    %v4155 = vunpack.c.h.b16 %v3898
    %v4156 = vunpack.c.l.b16 %v3899
    %v4157 = vunpack.c.h.b16 %v3899
    %v4158 = vunpack.c.l.b16 %v3900
    %v4159 = vunpack.c.h.b16 %v3900
    %v4160 = vunpack.c.l.b16 %v3901
    %v4161 = vunpack.c.h.b16 %v3901
    %v4162 = vunpack.c.l.b16 %v3902
    %v4163 = vunpack.c.h.b16 %v3902
    %v4164 = vunpack.c.l.b16 %v3903
    %v4165 = vunpack.c.h.b16 %v3903
    %v4166 = vunpack.c.l.b16 %v3904
    %v4167 = vunpack.c.h.b16 %v3904
    %v4168 = vunpack.c.l.b16 %v3905
    %v4169 = vunpack.c.h.b16 %v3905
    %v4170 = vunpack.c.l.b16 %v3906
    %v4171 = vunpack.c.h.b16 %v3906
    %v4172 = vunpack.c.l.b16 %v3907
    %v4173 = vunpack.c.h.b16 %v3907
    %v4174 = vunpack.c.l.b16 %v3908
    %v4175 = vunpack.c.h.b16 %v3908
    %v4176 = vunpack.c.l.b16 %v3909
    %v4177 = vunpack.c.h.b16 %v3909
    %v4178 = vunpack.c.l.b16 %v3910
    %v4179 = vunpack.c.h.b16 %v3910
    %v4180 = vunpack.c.l.b16 %v3911
    %v4181 = vunpack.c.h.b16 %v3911
    %v4182 = vunpack.c.l.b16 %v3912
    %v4183 = vunpack.c.h.b16 %v3912
    %v4184 = vunpack.c.l.b16 %v3913
    %v4185 = vunpack.c.h.b16 %v3913
    %v4186 = vunpack.c.l.b16 %v3914
    %v4187 = vunpack.c.h.b16 %v3914
    %v4188 = vunpack.c.l.b16 %v3915
    %v4189 = vunpack.c.h.b16 %v3915
    %v4190 = vunpack.c.l.b16 %v3916
    %v4191 = vunpack.c.h.b16 %v3916
    %v4192 = vunpack.c.l.b16 %v3917
    %v4193 = vunpack.c.h.b16 %v3917
    %v4194 = vunpack.c.l.b16 %v3918
    %v4195 = vunpack.c.h.b16 %v3918
    %v4196 = vunpack.c.l.b16 %v3919
    %v4197 = vunpack.c.h.b16 %v3919
    %v4198 = vunpack.c.l.b16 %v3920
    %v4199 = vunpack.c.h.b16 %v3920
    %v4200 = vunpack.c.l.b16 %v3921
    %v4201 = vunpack.c.h.b16 %v3921
    %v4202 = vunpack.c.l.b16 %v3922
    %v4203 = vunpack.c.h.b16 %v3922
    %v4204 = vunpack.c.l.b16 %v3923
    %v4205 = vunpack.c.h.b16 %v3923
    %v4206 = vunpack.c.l.b16 %v3924
    %v4207 = vunpack.c.h.b16 %v3924
    %v4208 = vunpack.c.l.b16 %v3925
    %v4209 = vunpack.c.h.b16 %v3925
    %v4210 = vunpack.c.l.b16 %v3926
    %v4211 = vunpack.c.h.b16 %v3926
    %v4212 = vunpack.c.l.b16 %v3927
    %v4213 = vunpack.c.h.b16 %v3927
    %v4214 = vunpack.c.l.b16 %v3928
    %v4215 = vunpack.c.h.b16 %v3928
    %v4216 = vunpack.c.l.b16 %v3929
    %v4217 = vunpack.c.h.b16 %v3929
    %v4218 = vunpack.c.l.b16 %v3930
    %v4219 = vunpack.c.h.b16 %v3930
    %v4220 = vunpack.c.l.b16 %v3931
    %v4221 = vunpack.c.h.b16 %v3931
    %v4222 = vunpack.c.l.b16 %v3932
    %v4223 = vunpack.c.h.b16 %v3932
    %v4224 = vunpack.c.l.b16 %v3933
    %v4225 = vunpack.c.h.b16 %v3933
    %v4226 = vunpack.c.l.b16 %v3934
    %v4227 = vunpack.c.h.b16 %v3934
    %v4228 = vunpack.c.l.b16 %v3935
    %v4229 = vunpack.c.h.b16 %v3935
    %v4230 = vunpack.c.l.b16 %v3936
    %v4231 = vunpack.c.h.b16 %v3936
    %v4232 = vunpack.c.l.b16 %v3937
    %v4233 = vunpack.c.h.b16 %v3937
    %v4234 = vunpack.c.l.b16 %v3938
    %v4235 = vunpack.c.h.b16 %v3938
    %v4236 = vunpack.c.l.b16 %v3939
    %v4237 = vunpack.c.h.b16 %v3939
    %v4238 = vunpack.c.l.b16 %v3940
    %v4239 = vunpack.c.h.b16 %v3940
    %v4240 = vunpack.c.l.b16 %v3941
    %v4241 = vunpack.c.h.b16 %v3941
    %v4242 = vunpack.c.l.b16 %v3942
    %v4243 = vunpack.c.h.b16 %v3942
    %v4244 = vunpack.c.l.b16 %v3943
    %v4245 = vunpack.c.h.b16 %v3943
    %v4246 = vunpack.c.l.b16 %v3944
    %v4247 = vunpack.c.h.b16 %v3944
    %v4248 = vunpack.c.l.b16 %v3945
    %v4249 = vunpack.c.h.b16 %v3945
    %v4250 = vunpack.c.l.b16 %v3946
    %v4251 = vunpack.c.h.b16 %v3946
    %v4252 = vunpack.c.l.b16 %v3947
    %v4253 = vunpack.c.h.b16 %v3947
    %v4254 = vunpack.c.l.b16 %v3948
    %v4255 = vunpack.c.h.b16 %v3948
    %v4256 = vunpack.c.l.b16 %v3949
    %v4257 = vunpack.c.h.b16 %v3949
    %v4258 = vunpack.c.l.b16 %v3950
    %v4259 = vunpack.c.h.b16 %v3950
    %v4260 = vunpack.c.l.b16 %v3951
    %v4261 = vunpack.c.h.b16 %v3951
    %v4262 = vunpack.c.l.b16 %v3952
    %v4263 = vunpack.c.h.b16 %v3952
    %v4264 = vunpack.c.l.b16 %v3953
    %v4265 = vunpack.c.h.b16 %v3953
    %v4266 = vunpack.c.l.b16 %v3954
    %v4267 = vunpack.c.h.b16 %v3954
    %v4268 = vunpack.c.l.b16 %v3955
    %v4269 = vunpack.c.h.b16 %v3955
    %v4270 = vunpack.c.l.b16 %v3956
    %v4271 = vunpack.c.h.b16 %v3956
    %v4272 = vunpack.c.l.b16 %v3957
    %v4273 = vunpack.c.h.b16 %v3957
    %v4274 = vunpack.c.l.b16 %v3958
    %v4275 = vunpack.c.h.b16 %v3958
    %v4276 = vunpack.c.l.b16 %v3959
    %v4277 = vunpack.c.h.b16 %v3959
    %v4278 = vunpack.c.l.b16 %v3960
    %v4279 = vunpack.c.h.b16 %v3960
    %v4280 = vunpack.c.l.b16 %v3961
    %v4281 = vunpack.c.h.b16 %v3961
    %v4282 = vunpack.c.l.b16 %v3962
    %v4283 = vunpack.c.h.b16 %v3962
    %v4284 = vunpack.c.l.b16 %v3963
    %v4285 = vunpack.c.h.b16 %v3963
    %v4286 = vunpack.c.l.b16 %v3964
    %v4287 = vunpack.c.h.b16 %v3964
    %v4288 = vunpack.c.l.b16 %v3965
    %v4289 = vunpack.c.h.b16 %v3965
    %v4290 = vunpack.c.l.b16 %v3966
    %v4291 = vunpack.c.h.b16 %v3966
    %v4292 = vunpack.c.l.b16 %v3967
    %v4293 = vunpack.c.h.b16 %v3967
    %v4294 = vunpack.c.l.b16 %v3968
    %v4295 = vunpack.c.h.b16 %v3968
    %v4296 = vunpack.c.l.b16 %v3969
    %v4297 = vunpack.c.h.b16 %v3969
    %v4298 = vunpack.c.l.b16 %v3970
    %v4299 = vunpack.c.h.b16 %v3970
    %v4300 = vunpack.c.l.b16 %v3971
    %v4301 = vunpack.c.h.b16 %v3971
    %v4302 = vunpack.c.l.b16 %v3972
    %v4303 = vunpack.c.h.b16 %v3972
    %v4304 = vunpack.c.l.b16 %v3973
    %v4305 = vunpack.c.h.b16 %v3973
    %v4306 = vunpack.c.l.b16 %v3974
    %v4307 = vunpack.c.h.b16 %v3974
    %v4308 = vunpack.c.l.b16 %v3975
    %v4309 = vunpack.c.h.b16 %v3975
    %v4310 = vunpack.c.l.b16 %v3976
    %v4311 = vunpack.c.h.b16 %v3976
    %v4312 = vunpack.c.l.b16 %v3977
    %v4313 = vunpack.c.h.b16 %v3977
    %v4314 = vunpack.c.l.b16 %v3978
    %v4315 = vunpack.c.h.b16 %v3978
    %v4316 = vunpack.c.l.b16 %v3979
    %v4317 = vunpack.c.h.b16 %v3979
    %v4318 = vunpack.c.l.b16 %v3980
    %v4319 = vunpack.c.h.b16 %v3980
    %v4320 = vunpack.c.l.b16 %v3981
    %v4321 = vunpack.c.h.b16 %v3981
    %v4322 = vunpack.c.l.b16 %v3982
    %v4323 = vunpack.c.h.b16 %v3982
    %v4324 = vunpack.c.l.b16 %v3983
    %v4325 = vunpack.c.h.b16 %v3983
    %v4326 = vunpack.c.l.b16 %v3984
    %v4327 = vunpack.c.h.b16 %v3984
    %v4328 = vunpack.c.l.b16 %v3985
    %v4329 = vunpack.c.h.b16 %v3985
    %v4330 = vunpack.c.l.b16 %v3986
    %v4331 = vunpack.c.h.b16 %v3986
    %v4332 = vunpack.c.l.b16 %v3987
    %v4333 = vunpack.c.h.b16 %v3987
    %v4334 = vunpack.c.l.b16 %v3988
    %v4335 = vunpack.c.h.b16 %v3988
    %v4336 = vunpack.c.l.b16 %v3989
    %v4337 = vunpack.c.h.b16 %v3989
    %v4338 = vunpack.c.l.b16 %v3990
    %v4339 = vunpack.c.h.b16 %v3990
    %v4340 = vunpack.c.l.b16 %v3991
    %v4341 = vunpack.c.h.b16 %v3991
    %v4342 = vunpack.c.l.b16 %v3992
    %v4343 = vunpack.c.h.b16 %v3992
    %v4344 = vunpack.c.l.b16 %v3993
    %v4345 = vunpack.c.h.b16 %v3993
    %v4346 = vunpack.c.l.b16 %v3994
    %v4347 = vunpack.c.h.b16 %v3994
    %v4348 = vunpack.c.l.b16 %v3995
    %v4349 = vunpack.c.h.b16 %v3995
    %v4350 = vunpack.c.l.b16 %v3996
    %v4351 = vunpack.c.h.b16 %v3996
    %v4352 = vunpack.c.l.b16 %v3997
    %v4353 = vunpack.c.h.b16 %v3997
    %v4354 = vunpack.c.l.b16 %v3998
    %v4355 = vunpack.c.h.b16 %v3998
    %v4356 = vunpack.c.l.b16 %v3999
    %v4357 = vunpack.c.h.b16 %v3999
    %v4358 = vunpack.c.l.b16 %v4000
    %v4359 = vunpack.c.h.b16 %v4000
    %v4360 = vunpack.c.l.b16 %v4001
    %v4361 = vunpack.c.h.b16 %v4001
    %v4362 = vunpack.c.l.b16 %v4002
    %v4363 = vunpack.c.h.b16 %v4002
    %v4364 = vunpack.c.l.b16 %v4003
    %v4365 = vunpack.c.h.b16 %v4003
    %v4366 = vunpack.c.l.b16 %v4004
    %v4367 = vunpack.c.h.b16 %v4004
    %v4368 = vunpack.c.l.b16 %v4005
    %v4369 = vunpack.c.h.b16 %v4005
    %v4370 = vunpack.c.l.b16 %v4006
    %v4371 = vunpack.c.h.b16 %v4006
    %v4372 = vunpack.c.l.b16 %v4007
    %v4373 = vunpack.c.h.b16 %v4007
    %v4374 = vunpack.c.l.b16 %v4008
    %v4375 = vunpack.c.h.b16 %v4008
    %v4376 = vunpack.c.l.b16 %v4009
    %v4377 = vunpack.c.h.b16 %v4009
    %v4378 = vunpack.c.l.b16 %v4010
    %v4379 = vunpack.c.h.b16 %v4010
    %v4380 = vunpack.c.l.b16 %v4011
    %v4381 = vunpack.c.h.b16 %v4011
    %v4382 = vunpack.c.l.b16 %v4012
    %v4383 = vunpack.c.h.b16 %v4012
    %v4384 = vunpack.c.l.b16 %v4013
    %v4385 = vunpack.c.h.b16 %v4013
    %v4386 = vunpack.c.l.b16 %v4014
    %v4387 = vunpack.c.h.b16 %v4014
    %v4388 = vunpack.c.l.b16 %v4015
    %v4389 = vunpack.c.h.b16 %v4015
    %v4390 = vunpack.c.l.b16 %v4016
    %v4391 = vunpack.c.h.b16 %v4016
    %v4392 = vunpack.c.l.b16 %v4017
    %v4393 = vunpack.c.h.b16 %v4017
    %v4394 = vunpack.c.l.b16 %v4018
    %v4395 = vunpack.c.h.b16 %v4018
    %v4396 = vunpack.c.l.b16 %v4019
    %v4397 = vunpack.c.h.b16 %v4019
    %v4398 = vunpack.c.l.b16 %v4020
    %v4399 = vunpack.c.h.b16 %v4020
    %v4400 = vunpack.c.l.b16 %v4021
    %v4401 = vunpack.c.h.b16 %v4021
    %v4402 = vunpack.c.l.b16 %v4022
    %v4403 = vunpack.c.h.b16 %v4022
    %v4404 = vunpack.c.l.b16 %v4023
    %v4405 = vunpack.c.h.b16 %v4023
    %v4406 = vunpack.c.l.b16 %v4024
    %v4407 = vunpack.c.h.b16 %v4024
    %v4408 = vunpack.c.l.b16 %v4025
    %v4409 = vunpack.c.h.b16 %v4025
    %v4410 = vpack.c.b16 %v4162, %v4154
    %v4411 = vpack.c.b16 %v4163, %v4155
    %v4412 = vpack.c.b16 %v4164, %v4156
    %v4413 = vpack.c.b16 %v4165, %v4157
    %v4414 = vpack.c.b16 %v4166, %v4158
    %v4415 = vpack.c.b16 %v4167, %v4159
    %v4416 = vpack.c.b16 %v4168, %v4160
    %v4417 = vpack.c.b16 %v4169, %v4161
    %v4418 = vpack.c.b16 %v4178, %v4170
    %v4419 = vpack.c.b16 %v4179, %v4171
    %v4420 = vpack.c.b16 %v4180, %v4172
    %v4421 = vpack.c.b16 %v4181, %v4173
    %v4422 = vpack.c.b16 %v4182, %v4174
    %v4423 = vpack.c.b16 %v4183, %v4175
    %v4424 = vpack.c.b16 %v4184, %v4176
    %v4425 = vpack.c.b16 %v4185, %v4177
    %v4426 = vpack.c.b16 %v4194, %v4186
    %v4427 = vpack.c.b16 %v4195, %v4187
    %v4428 = vpack.c.b16 %v4196, %v4188
    %v4429 = vpack.c.b16 %v4197, %v4189
    %v4430 = vpack.c.b16 %v4198, %v4190
    %v4431 = vpack.c.b16 %v4199, %v4191
    %v4432 = vpack.c.b16 %v4200, %v4192
    %v4433 = vpack.c.b16 %v4201, %v4193
    %v4434 = vpack.c.b16 %v4210, %v4202
    %v4435 = vpack.c.b16 %v4211, %v4203
    %v4436 = vpack.c.b16 %v4212, %v4204
    %v4437 = vpack.c.b16 %v4213, %v4205
    %v4438 = vpack.c.b16 %v4214, %v4206
    %v4439 = vpack.c.b16 %v4215, %v4207
    %v4440 = vpack.c.b16 %v4216, %v4208
    %v4441 = vpack.c.b16 %v4217, %v4209
    %v4442 = vpack.c.b16 %v4226, %v4218
    %v4443 = vpack.c.b16 %v4227, %v4219
    %v4444 = vpack.c.b16 %v4228, %v4220
    %v4445 = vpack.c.b16 %v4229, %v4221
    %v4446 = vpack.c.b16 %v4230, %v4222
    %v4447 = vpack.c.b16 %v4231, %v4223
    %v4448 = vpack.c.b16 %v4232, %v4224
    %v4449 = vpack.c.b16 %v4233, %v4225
    %v4450 = vpack.c.b16 %v4242, %v4234
    %v4451 = vpack.c.b16 %v4243, %v4235
    %v4452 = vpack.c.b16 %v4244, %v4236
    %v4453 = vpack.c.b16 %v4245, %v4237
    %v4454 = vpack.c.b16 %v4246, %v4238
    %v4455 = vpack.c.b16 %v4247, %v4239
    %v4456 = vpack.c.b16 %v4248, %v4240
    %v4457 = vpack.c.b16 %v4249, %v4241
    %v4458 = vpack.c.b16 %v4258, %v4250
    %v4459 = vpack.c.b16 %v4259, %v4251
    %v4460 = vpack.c.b16 %v4260, %v4252
    %v4461 = vpack.c.b16 %v4261, %v4253
    %v4462 = vpack.c.b16 %v4262, %v4254
    %v4463 = vpack.c.b16 %v4263, %v4255
    %v4464 = vpack.c.b16 %v4264, %v4256
    %v4465 = vpack.c.b16 %v4265, %v4257
    %v4466 = vpack.c.b16 %v4274, %v4266
    %v4467 = vpack.c.b16 %v4275, %v4267
    %v4468 = vpack.c.b16 %v4276, %v4268
    %v4469 = vpack.c.b16 %v4277, %v4269
    %v4470 = vpack.c.b16 %v4278, %v4270
    %v4471 = vpack.c.b16 %v4279, %v4271
    %v4472 = vpack.c.b16 %v4280, %v4272
    %v4473 = vpack.c.b16 %v4281, %v4273
    %v4474 = vpack.c.b16 %v4290, %v4282
    %v4475 = vpack.c.b16 %v4291, %v4283
    %v4476 = vpack.c.b16 %v4292, %v4284
    %v4477 = vpack.c.b16 %v4293, %v4285
    %v4478 = vpack.c.b16 %v4294, %v4286
    %v4479 = vpack.c.b16 %v4295, %v4287
    %v4480 = vpack.c.b16 %v4296, %v4288
    %v4481 = vpack.c.b16 %v4297, %v4289
    %v4482 = vpack.c.b16 %v4306, %v4298
    %v4483 = vpack.c.b16 %v4307, %v4299
    %v4484 = vpack.c.b16 %v4308, %v4300
    %v4485 = vpack.c.b16 %v4309, %v4301
    %v4486 = vpack.c.b16 %v4310, %v4302
    %v4487 = vpack.c.b16 %v4311, %v4303
    %v4488 = vpack.c.b16 %v4312, %v4304
    %v4489 = vpack.c.b16 %v4313, %v4305
    %v4490 = vpack.c.b16 %v4322, %v4314
    %v4491 = vpack.c.b16 %v4323, %v4315
    %v4492 = vpack.c.b16 %v4324, %v4316
    %v4493 = vpack.c.b16 %v4325, %v4317
    %v4494 = vpack.c.b16 %v4326, %v4318
    %v4495 = vpack.c.b16 %v4327, %v4319
    %v4496 = vpack.c.b16 %v4328, %v4320
    %v4497 = vpack.c.b16 %v4329, %v4321
    %v4498 = vpack.c.b16 %v4338, %v4330
    %v4499 = vpack.c.b16 %v4339, %v4331
    %v4500 = vpack.c.b16 %v4340, %v4332
    %v4501 = vpack.c.b16 %v4341, %v4333
    %v4502 = vpack.c.b16 %v4342, %v4334
    %v4503 = vpack.c.b16 %v4343, %v4335
    %v4504 = vpack.c.b16 %v4344, %v4336
    %v4505 = vpack.c.b16 %v4345, %v4337
    %v4506 = vpack.c.b16 %v4354, %v4346
    %v4507 = vpack.c.b16 %v4355, %v4347
    %v4508 = vpack.c.b16 %v4356, %v4348
    %v4509 = vpack.c.b16 %v4357, %v4349
    %v4510 = vpack.c.b16 %v4358, %v4350
    %v4511 = vpack.c.b16 %v4359, %v4351
    %v4512 = vpack.c.b16 %v4360, %v4352
    %v4513 = vpack.c.b16 %v4361, %v4353
    %v4514 = vpack.c.b16 %v4370, %v4362
    %v4515 = vpack.c.b16 %v4371, %v4363
    %v4516 = vpack.c.b16 %v4372, %v4364
    %v4517 = vpack.c.b16 %v4373, %v4365
    %v4518 = vpack.c.b16 %v4374, %v4366
    %v4519 = vpack.c.b16 %v4375, %v4367
    %v4520 = vpack.c.b16 %v4376, %v4368
    %v4521 = vpack.c.b16 %v4377, %v4369
    %v4522 = vpack.c.b16 %v4386, %v4378
    %v4523 = vpack.c.b16 %v4387, %v4379
    %v4524 = vpack.c.b16 %v4388, %v4380
    %v4525 = vpack.c.b16 %v4389, %v4381
    %v4526 = vpack.c.b16 %v4390, %v4382
    %v4527 = vpack.c.b16 %v4391, %v4383
    %v4528 = vpack.c.b16 %v4392, %v4384
    %v4529 = vpack.c.b16 %v4393, %v4385
    %v4530 = vpack.c.b16 %v4402, %v4394
    %v4531 = vpack.c.b16 %v4403, %v4395
    %v4532 = vpack.c.b16 %v4404, %v4396
    %v4533 = vpack.c.b16 %v4405, %v4397
    %v4534 = vpack.c.b16 %v4406, %v4398
    %v4535 = vpack.c.b16 %v4407, %v4399
    %v4536 = vpack.c.b16 %v4408, %v4400
    %v4537 = vpack.c.b16 %v4409, %v4401
    %4666 = vmatprep.subr.bf16.mxu0 %v4411
    %4667 = vmatpush1.bf16.msra.mxu0 %v4410
    %4668 = vmatprep.subr.bf16.mxu0 %v4419
    %4669 = vmatpush1.bf16.msra.mxu0 %v4418
    %4670 = vmatprep.subr.bf16.mxu0 %v4427
    %4671 = vmatpush1.bf16.msra.mxu0 %v4426
    %4672 = vmatprep.subr.bf16.mxu0 %v4435
    %4673 = vmatpush1.bf16.msra.mxu0 %v4434
    %4674 = vmatprep.subr.bf16.mxu0 %v4443
    %4675 = vmatpush1.bf16.msra.mxu0 %v4442
    %4676 = vmatprep.subr.bf16.mxu0 %v4451
    %4677 = vmatpush1.bf16.msra.mxu0 %v4450
    %4678 = vmatprep.subr.bf16.mxu0 %v4459
    %4679 = vmatpush1.bf16.msra.mxu0 %v4458
    %4680 = vmatprep.subr.bf16.mxu0 %v4467
    %4681 = vmatpush1.bf16.msra.mxu0 %v4466
    %4682 = vmatprep.subr.bf16.mxu0 %v4475
    %4683 = vmatpush1.bf16.msra.mxu0 %v4474
    %4684 = vmatprep.subr.bf16.mxu0 %v4483
    %4685 = vmatpush1.bf16.msra.mxu0 %v4482
    %4686 = vmatprep.subr.bf16.mxu0 %v4491
    %4687 = vmatpush1.bf16.msra.mxu0 %v4490
    %4688 = vmatprep.subr.bf16.mxu0 %v4499
    %4689 = vmatpush1.bf16.msra.mxu0 %v4498
    %4690 = vmatprep.subr.bf16.mxu0 %v4507
    %4691 = vmatpush1.bf16.msra.mxu0 %v4506
    %4692 = vmatprep.subr.bf16.mxu0 %v4515
    %4693 = vmatpush1.bf16.msra.mxu0 %v4514
    %4694 = vmatprep.subr.bf16.mxu0 %v4523
    %4695 = vmatpush1.bf16.msra.mxu0 %v4522
    %4696 = vmatprep.subr.bf16.mxu0 %v4531
    %4697 = vmatpush1.bf16.msra.mxu0 %v4530
    %4698 = vmatprep.mubr.bf16.mxu0 %v3897
    %4699 = vmatmul.mubr.bf16.gmra.mrb[0].mxu0 %v3896
    %v4700 = vpop.f32.mrb[0].mxu0
    %v4701 = vadd.f32 0.0, %v4700
    %v4702 = vpop.f32.mrb[0].mxu0
    %v4703 = vadd.f32 0.0, %v4702
    %v4704 = vpop.f32.mrb[0].mxu0
    %v4705 = vpop.f32.mrb[0].mxu0
    %4706 = vdwg.mxu0
    %4707 = vmatprep.subr.bf16.mxu0 %v4413
    %4708 = vmatpush1.bf16.msra.mxu0 %v4412
    %4709 = vmatprep.subr.bf16.mxu0 %v4421
    %4710 = vmatpush1.bf16.msra.mxu0 %v4420
    %4711 = vmatprep.subr.bf16.mxu0 %v4429
    %4712 = vmatpush1.bf16.msra.mxu0 %v4428
    %4713 = vmatprep.subr.bf16.mxu0 %v4437
    %4714 = vmatpush1.bf16.msra.mxu0 %v4436
    %4715 = vmatprep.subr.bf16.mxu0 %v4445
    %4716 = vmatpush1.bf16.msra.mxu0 %v4444
    %4717 = vmatprep.subr.bf16.mxu0 %v4453
    %4718 = vmatpush1.bf16.msra.mxu0 %v4452
    %4719 = vmatprep.subr.bf16.mxu0 %v4461
    %4720 = vmatpush1.bf16.msra.mxu0 %v4460
    %4721 = vmatprep.subr.bf16.mxu0 %v4469
    %4722 = vmatpush1.bf16.msra.mxu0 %v4468
    %4723 = vmatprep.subr.bf16.mxu0 %v4477
    %4724 = vmatpush1.bf16.msra.mxu0 %v4476
    %4725 = vmatprep.subr.bf16.mxu0 %v4485
    %4726 = vmatpush1.bf16.msra.mxu0 %v4484
    %4727 = vmatprep.subr.bf16.mxu0 %v4493
    %4728 = vmatpush1.bf16.msra.mxu0 %v4492
    %4729 = vmatprep.subr.bf16.mxu0 %v4501
    %4730 = vmatpush1.bf16.msra.mxu0 %v4500
    %4731 = vmatprep.subr.bf16.mxu0 %v4509
    %4732 = vmatpush1.bf16.msra.mxu0 %v4508
    %4733 = vmatprep.subr.bf16.mxu0 %v4517
    %4734 = vmatpush1.bf16.msra.mxu0 %v4516
    %4735 = vmatprep.subr.bf16.mxu0 %v4525
    %4736 = vmatpush1.bf16.msra.mxu0 %v4524
    %4737 = vmatprep.subr.bf16.mxu0 %v4533
    %4738 = vmatpush1.bf16.msra.mxu0 %v4532
    %4739 = vmatprep.mubr.bf16.mxu0 %v3897
    %4740 = vmatmul.mubr.bf16.gmra.mrb[0].mxu0 %v3896
    %v4741 = vpop.f32.mrb[0].mxu0
    %v4742 = vadd.f32 0.0, %v4741
    %v4743 = vpop.f32.mrb[0].mxu0
    %v4744 = vadd.f32 0.0, %v4743
    %v4745 = vpop.f32.mrb[0].mxu0
    %v4746 = vpop.f32.mrb[0].mxu0
    %4747 = vdwg.mxu0
    %4748 = vmatprep.subr.bf16.mxu0 %v4415
    %4749 = vmatpush1.bf16.msra.mxu0 %v4414
    %4750 = vmatprep.subr.bf16.mxu0 %v4423
    %4751 = vmatpush1.bf16.msra.mxu0 %v4422
    %4752 = vmatprep.subr.bf16.mxu0 %v4431
    %4753 = vmatpush1.bf16.msra.mxu0 %v4430
    %4754 = vmatprep.subr.bf16.mxu0 %v4439
    %4755 = vmatpush1.bf16.msra.mxu0 %v4438
    %4756 = vmatprep.subr.bf16.mxu0 %v4447
    %4757 = vmatpush1.bf16.msra.mxu0 %v4446
    %4758 = vmatprep.subr.bf16.mxu0 %v4455
    %4759 = vmatpush1.bf16.msra.mxu0 %v4454
    %4760 = vmatprep.subr.bf16.mxu0 %v4463
    %4761 = vmatpush1.bf16.msra.mxu0 %v4462
    %4762 = vmatprep.subr.bf16.mxu0 %v4471
    %4763 = vmatpush1.bf16.msra.mxu0 %v4470
    %4764 = vmatprep.subr.bf16.mxu0 %v4479
    %4765 = vmatpush1.bf16.msra.mxu0 %v4478
    %4766 = vmatprep.subr.bf16.mxu0 %v4487
    %4767 = vmatpush1.bf16.msra.mxu0 %v4486
    %4768 = vmatprep.subr.bf16.mxu0 %v4495
    %4769 = vmatpush1.bf16.msra.mxu0 %v4494
    %4770 = vmatprep.subr.bf16.mxu0 %v4503
    %4771 = vmatpush1.bf16.msra.mxu0 %v4502
    %4772 = vmatprep.subr.bf16.mxu0 %v4511
    %4773 = vmatpush1.bf16.msra.mxu0 %v4510
    %4774 = vmatprep.subr.bf16.mxu0 %v4519
    %4775 = vmatpush1.bf16.msra.mxu0 %v4518
    %4776 = vmatprep.subr.bf16.mxu0 %v4527
    %4777 = vmatpush1.bf16.msra.mxu0 %v4526
    %4778 = vmatprep.subr.bf16.mxu0 %v4535
    %4779 = vmatpush1.bf16.msra.mxu0 %v4534
    %4780 = vmatprep.mubr.bf16.mxu0 %v3897
    %4781 = vmatmul.mubr.bf16.gmra.mrb[0].mxu0 %v3896
    %v4782 = vpop.f32.mrb[0].mxu0
    %v4783 = vadd.f32 0.0, %v4782
    %v4784 = vpop.f32.mrb[0].mxu0
    %v4785 = vadd.f32 0.0, %v4784
    %v4786 = vpop.f32.mrb[0].mxu0
    %v4787 = vpop.f32.mrb[0].mxu0
    %4788 = vdwg.mxu0
    %4789 = vmatprep.subr.bf16.mxu0 %v4417
    %4790 = vmatpush1.bf16.msra.mxu0 %v4416
    %4791 = vmatprep.subr.bf16.mxu0 %v4425
    %4792 = vmatpush1.bf16.msra.mxu0 %v4424
    %4793 = vmatprep.subr.bf16.mxu0 %v4433
    %4794 = vmatpush1.bf16.msra.mxu0 %v4432
    %4795 = vmatprep.subr.bf16.mxu0 %v4441
    %4796 = vmatpush1.bf16.msra.mxu0 %v4440
    %4797 = vmatprep.subr.bf16.mxu0 %v4449
    %4798 = vmatpush1.bf16.msra.mxu0 %v4448
    %4799 = vmatprep.subr.bf16.mxu0 %v4457
    %4800 = vmatpush1.bf16.msra.mxu0 %v4456
    %4801 = vmatprep.subr.bf16.mxu0 %v4465
    %4802 = vmatpush1.bf16.msra.mxu0 %v4464
    %4803 = vmatprep.subr.bf16.mxu0 %v4473
    %4804 = vmatpush1.bf16.msra.mxu0 %v4472
    %4805 = vmatprep.subr.bf16.mxu0 %v4481
    %4806 = vmatpush1.bf16.msra.mxu0 %v4480
    %4807 = vmatprep.subr.bf16.mxu0 %v4489
    %4808 = vmatpush1.bf16.msra.mxu0 %v4488
    %4809 = vmatprep.subr.bf16.mxu0 %v4497
    %4810 = vmatpush1.bf16.msra.mxu0 %v4496
    %4811 = vmatprep.subr.bf16.mxu0 %v4505
    %4812 = vmatpush1.bf16.msra.mxu0 %v4504
    %4813 = vmatprep.subr.bf16.mxu0 %v4513
    %4814 = vmatpush1.bf16.msra.mxu0 %v4512
    %4815 = vmatprep.subr.bf16.mxu0 %v4521
    %4816 = vmatpush1.bf16.msra.mxu0 %v4520
    %4817 = vmatprep.subr.bf16.mxu0 %v4529
    %4818 = vmatpush1.bf16.msra.mxu0 %v4528
    %4819 = vmatprep.subr.bf16.mxu0 %v4537
    %4820 = vmatpush1.bf16.msra.mxu0 %v4536
    %4821 = vmatprep.mubr.bf16.mxu0 %v3897
    %4822 = vmatmul.mubr.bf16.gmra.mrb[0].mxu0 %v3896
    %v4823 = vpop.f32.mrb[0].mxu0
    %v4824 = vadd.f32 0.0, %v4823
    %v4825 = vpop.f32.mrb[0].mxu0
    %v4826 = vadd.f32 0.0, %v4825
    %v4827 = vpop.f32.mrb[0].mxu0
    %v4828 = vpop.f32.mrb[0].mxu0
    %4829 = vdwg.mxu0
    %v4830 = vadd.f32 %v3888, %v4701
    %v4831 = vadd.f32 %v3889, %v4703
    %v4832 = vadd.f32 %v3890, %v4742
    %v4833 = vadd.f32 %v3891, %v4744
    %v4834 = vadd.f32 %v3892, %v4783
    %v4835 = vadd.f32 %v3893, %v4785
    %v4836 = vadd.f32 %v3894, %v4824
    %v4837 = vadd.f32 %v3895, %v4826
    %v4838 = vxor.u32 %v4830, 2147483648
    %v4839 = vxor.u32 %v4831, 2147483648
    %v4840 = vxor.u32 %v4832, 2147483648
    %v4841 = vxor.u32 %v4833, 2147483648
    %v4842 = vxor.u32 %v4834, 2147483648
    %v4843 = vxor.u32 %v4835, 2147483648
    %v4844 = vmul.f32 %v4838, 1.442695
    %v4845 = vpow.pop %v4844
    %v4846 = vmul.f32 %v4839, 1.442695
    %v4847 = vpow.pop %v4846
    %v4848 = vmul.f32 %v4840, 1.442695
    %v4849 = vpow.pop %v4848
    %v4850 = vmul.f32 %v4841, 1.442695
    %v4851 = vpow.pop %v4850
    %v4852 = vmul.f32 %v4842, 1.442695
    %v4853 = vpow.pop %v4852
    %v4854 = vmul.f32 %v4843, 1.442695
    %v4855 = vpow.pop %v4854
    %v4856 = vadd.f32 %v4845, 1.0
    %v4857 = vadd.f32 %v4847, 1.0
    %v4858 = vadd.f32 %v4849, 1.0
    %v4859 = vadd.f32 %v4851, 1.0
    %v4860 = vadd.f32 %v4853, 1.0
    %v4861 = vadd.f32 %v4855, 1.0
    %v4862 = vrcp.pop %v4856
    %v4863 = vmul.f32 1.0, %v4862
    %v4864 = vrcp.pop %v4857
    %v4865 = vmul.f32 1.0, %v4864
    %v4866 = vrcp.pop %v4858
    %v4867 = vmul.f32 1.0, %v4866
    %v4868 = vrcp.pop %v4859
    %v4869 = vmul.f32 1.0, %v4868
    %v4870 = vrcp.pop %v4860
    %v4871 = vmul.f32 1.0, %v4870
    %v4872 = vrcp.pop %v4861
    %v4873 = vmul.f32 1.0, %v4872
    %v4874 = vtanh.pop %v4836
    %v4875 = vtanh.pop %v4837
    %v4876 = vmul.f32 %v4867, %v3878
    %v4877 = vmul.f32 %v4869, %v3879
    %v4878 = vmul.f32 %v4863, %v4874
    %v4879 = vmul.f32 %v4865, %v4875
    %v4880 = vadd.f32 %v4876, %v4878
    %v4881 = vadd.f32 %v4877, %v4879
    %v4882 = vtanh.pop %v4880
    %v4883 = vtanh.pop %v4881
    %v4884 = vmul.f32 %v4871, %v4882
    %v4885 = vmul.f32 %v4873, %v4883
    %s4886 = scalar_lea.vmem [#allocation5], 48
    %4887 = vst [vmem:[%s4886] sm:$0xff] %v4884
    %4888 = vst [vmem:[%s4886 + $0x8] sm:$0xff] %v4885
    %s4889 = scalar_lea.vmem [#allocation4], 256
    %v4890 = vld [vmem:[%s4889] sm:$0xff]
    %v4891 = vld [vmem:[%s4889 + $0x8] sm:$0xff]
    %v4892 = vld [vmem:[%s4889 + $0x10] sm:$0xff]
    %v4893 = vld [vmem:[%s4889 + $0x18] sm:$0xff]
    %v4894 = vld [vmem:[%s4889 + $0x20] sm:$0xff]
    %v4895 = vld [vmem:[%s4889 + $0x28] sm:$0xff]
    %v4896 = vld [vmem:[%s4889 + $0x30] sm:$0xff]
    %v4897 = vld [vmem:[%s4889 + $0x38] sm:$0xff]
    %v4898 = vpack.c.bf16 %v4884, %v4884
    %v4899 = vpack.c.bf16 %v4885, %v4885
    %v4900 = vld [vmem:[#allocation9] sm:$0xff]
    %v4901 = vld [vmem:[#allocation9 + $0x8] sm:$0xff]
    %v4902 = vld [vmem:[#allocation9 + $0x10] sm:$0xff]
    %v4903 = vld [vmem:[#allocation9 + $0x18] sm:$0xff]
    %v4904 = vld [vmem:[#allocation9 + $0x20] sm:$0xff]
    %v4905 = vld [vmem:[#allocation9 + $0x28] sm:$0xff]
    %v4906 = vld [vmem:[#allocation9 + $0x30] sm:$0xff]
    %v4907 = vld [vmem:[#allocation9 + $0x38] sm:$0xff]
    %v4908 = vld [vmem:[#allocation9 + $0x40] sm:$0xff]
    %v4909 = vld [vmem:[#allocation9 + $0x48] sm:$0xff]
    %v4910 = vld [vmem:[#allocation9 + $0x50] sm:$0xff]
    %v4911 = vld [vmem:[#allocation9 + $0x58] sm:$0xff]
    %v4912 = vld [vmem:[#allocation9 + $0x60] sm:$0xff]
    %v4913 = vld [vmem:[#allocation9 + $0x68] sm:$0xff]
    %v4914 = vld [vmem:[#allocation9 + $0x70] sm:$0xff]
    %v4915 = vld [vmem:[#allocation9 + $0x78] sm:$0xff]
    %v4916 = vld [vmem:[#allocation9 + $0x80] sm:$0xff]
    %v4917 = vld [vmem:[#allocation9 + $0x88] sm:$0xff]
    %v4918 = vld [vmem:[#allocation9 + $0x90] sm:$0xff]
    %v4919 = vld [vmem:[#allocation9 + $0x98] sm:$0xff]
    %v4920 = vld [vmem:[#allocation9 + $0xa0] sm:$0xff]
    %v4921 = vld [vmem:[#allocation9 + $0xa8] sm:$0xff]
    %v4922 = vld [vmem:[#allocation9 + $0xb0] sm:$0xff]
    %v4923 = vld [vmem:[#allocation9 + $0xb8] sm:$0xff]
    %v4924 = vld [vmem:[#allocation9 + $0xc0] sm:$0xff]
    %v4925 = vld [vmem:[#allocation9 + $0xc8] sm:$0xff]
    %v4926 = vld [vmem:[#allocation9 + $0xd0] sm:$0xff]
    %v4927 = vld [vmem:[#allocation9 + $0xd8] sm:$0xff]
    %v4928 = vld [vmem:[#allocation9 + $0xe0] sm:$0xff]
    %v4929 = vld [vmem:[#allocation9 + $0xe8] sm:$0xff]
    %v4930 = vld [vmem:[#allocation9 + $0xf0] sm:$0xff]
    %v4931 = vld [vmem:[#allocation9 + $0xf8] sm:$0xff]
    %v4932 = vld [vmem:[#allocation9 + $0x100] sm:$0xff]
    %v4933 = vld [vmem:[#allocation9 + $0x108] sm:$0xff]
    %v4934 = vld [vmem:[#allocation9 + $0x110] sm:$0xff]
    %v4935 = vld [vmem:[#allocation9 + $0x118] sm:$0xff]
    %v4936 = vld [vmem:[#allocation9 + $0x120] sm:$0xff]
    %v4937 = vld [vmem:[#allocation9 + $0x128] sm:$0xff]
    %v4938 = vld [vmem:[#allocation9 + $0x130] sm:$0xff]
    %v4939 = vld [vmem:[#allocation9 + $0x138] sm:$0xff]
    %v4940 = vld [vmem:[#allocation9 + $0x140] sm:$0xff]
    %v4941 = vld [vmem:[#allocation9 + $0x148] sm:$0xff]
    %v4942 = vld [vmem:[#allocation9 + $0x150] sm:$0xff]
    %v4943 = vld [vmem:[#allocation9 + $0x158] sm:$0xff]
    %v4944 = vld [vmem:[#allocation9 + $0x160] sm:$0xff]
    %v4945 = vld [vmem:[#allocation9 + $0x168] sm:$0xff]
    %v4946 = vld [vmem:[#allocation9 + $0x170] sm:$0xff]
    %v4947 = vld [vmem:[#allocation9 + $0x178] sm:$0xff]
    %v4948 = vld [vmem:[#allocation9 + $0x180] sm:$0xff]
    %v4949 = vld [vmem:[#allocation9 + $0x188] sm:$0xff]
    %v4950 = vld [vmem:[#allocation9 + $0x190] sm:$0xff]
    %v4951 = vld [vmem:[#allocation9 + $0x198] sm:$0xff]
    %v4952 = vld [vmem:[#allocation9 + $0x1a0] sm:$0xff]
    %v4953 = vld [vmem:[#allocation9 + $0x1a8] sm:$0xff]
    %v4954 = vld [vmem:[#allocation9 + $0x1b0] sm:$0xff]
    %v4955 = vld [vmem:[#allocation9 + $0x1b8] sm:$0xff]
    %v4956 = vld [vmem:[#allocation9 + $0x1c0] sm:$0xff]
    %v4957 = vld [vmem:[#allocation9 + $0x1c8] sm:$0xff]
    %v4958 = vld [vmem:[#allocation9 + $0x1d0] sm:$0xff]
    %v4959 = vld [vmem:[#allocation9 + $0x1d8] sm:$0xff]
    %v4960 = vld [vmem:[#allocation9 + $0x1e0] sm:$0xff]
    %v4961 = vld [vmem:[#allocation9 + $0x1e8] sm:$0xff]
    %v4962 = vld [vmem:[#allocation9 + $0x1f0] sm:$0xff]
    %v4963 = vld [vmem:[#allocation9 + $0x1f8] sm:$0xff]
    %v4964 = vld [vmem:[#allocation9 + $0x200] sm:$0xff]
    %v4965 = vld [vmem:[#allocation9 + $0x208] sm:$0xff]
    %v4966 = vld [vmem:[#allocation9 + $0x210] sm:$0xff]
    %v4967 = vld [vmem:[#allocation9 + $0x218] sm:$0xff]
    %v4968 = vld [vmem:[#allocation9 + $0x220] sm:$0xff]
    %v4969 = vld [vmem:[#allocation9 + $0x228] sm:$0xff]
    %v4970 = vld [vmem:[#allocation9 + $0x230] sm:$0xff]
    %v4971 = vld [vmem:[#allocation9 + $0x238] sm:$0xff]
    %v4972 = vld [vmem:[#allocation9 + $0x240] sm:$0xff]
    %v4973 = vld [vmem:[#allocation9 + $0x248] sm:$0xff]
    %v4974 = vld [vmem:[#allocation9 + $0x250] sm:$0xff]
    %v4975 = vld [vmem:[#allocation9 + $0x258] sm:$0xff]
    %v4976 = vld [vmem:[#allocation9 + $0x260] sm:$0xff]
    %v4977 = vld [vmem:[#allocation9 + $0x268] sm:$0xff]
    %v4978 = vld [vmem:[#allocation9 + $0x270] sm:$0xff]
    %v4979 = vld [vmem:[#allocation9 + $0x278] sm:$0xff]
    %v4980 = vld [vmem:[#allocation9 + $0x280] sm:$0xff]
    %v4981 = vld [vmem:[#allocation9 + $0x288] sm:$0xff]
    %v4982 = vld [vmem:[#allocation9 + $0x290] sm:$0xff]
    %v4983 = vld [vmem:[#allocation9 + $0x298] sm:$0xff]
    %v4984 = vld [vmem:[#allocation9 + $0x2a0] sm:$0xff]
    %v4985 = vld [vmem:[#allocation9 + $0x2a8] sm:$0xff]
    %v4986 = vld [vmem:[#allocation9 + $0x2b0] sm:$0xff]
    %v4987 = vld [vmem:[#allocation9 + $0x2b8] sm:$0xff]
    %v4988 = vld [vmem:[#allocation9 + $0x2c0] sm:$0xff]
    %v4989 = vld [vmem:[#allocation9 + $0x2c8] sm:$0xff]
    %v4990 = vld [vmem:[#allocation9 + $0x2d0] sm:$0xff]
    %v4991 = vld [vmem:[#allocation9 + $0x2d8] sm:$0xff]
    %v4992 = vld [vmem:[#allocation9 + $0x2e0] sm:$0xff]
    %v4993 = vld [vmem:[#allocation9 + $0x2e8] sm:$0xff]
    %v4994 = vld [vmem:[#allocation9 + $0x2f0] sm:$0xff]
    %v4995 = vld [vmem:[#allocation9 + $0x2f8] sm:$0xff]
    %v4996 = vld [vmem:[#allocation9 + $0x300] sm:$0xff]
    %v4997 = vld [vmem:[#allocation9 + $0x308] sm:$0xff]
    %v4998 = vld [vmem:[#allocation9 + $0x310] sm:$0xff]
    %v4999 = vld [vmem:[#allocation9 + $0x318] sm:$0xff]
    %v5000 = vld [vmem:[#allocation9 + $0x320] sm:$0xff]
    %v5001 = vld [vmem:[#allocation9 + $0x328] sm:$0xff]
    %v5002 = vld [vmem:[#allocation9 + $0x330] sm:$0xff]
    %v5003 = vld [vmem:[#allocation9 + $0x338] sm:$0xff]
    %v5004 = vld [vmem:[#allocation9 + $0x340] sm:$0xff]
    %v5005 = vld [vmem:[#allocation9 + $0x348] sm:$0xff]
    %v5006 = vld [vmem:[#allocation9 + $0x350] sm:$0xff]
    %v5007 = vld [vmem:[#allocation9 + $0x358] sm:$0xff]
    %v5008 = vld [vmem:[#allocation9 + $0x360] sm:$0xff]
    %v5009 = vld [vmem:[#allocation9 + $0x368] sm:$0xff]
    %v5010 = vld [vmem:[#allocation9 + $0x370] sm:$0xff]
    %v5011 = vld [vmem:[#allocation9 + $0x378] sm:$0xff]
    %v5012 = vld [vmem:[#allocation9 + $0x380] sm:$0xff]
    %v5013 = vld [vmem:[#allocation9 + $0x388] sm:$0xff]
    %v5014 = vld [vmem:[#allocation9 + $0x390] sm:$0xff]
    %v5015 = vld [vmem:[#allocation9 + $0x398] sm:$0xff]
    %v5016 = vld [vmem:[#allocation9 + $0x3a0] sm:$0xff]
    %v5017 = vld [vmem:[#allocation9 + $0x3a8] sm:$0xff]
    %v5018 = vld [vmem:[#allocation9 + $0x3b0] sm:$0xff]
    %v5019 = vld [vmem:[#allocation9 + $0x3b8] sm:$0xff]
    %v5020 = vld [vmem:[#allocation9 + $0x3c0] sm:$0xff]
    %v5021 = vld [vmem:[#allocation9 + $0x3c8] sm:$0xff]
    %v5022 = vld [vmem:[#allocation9 + $0x3d0] sm:$0xff]
    %v5023 = vld [vmem:[#allocation9 + $0x3d8] sm:$0xff]
    %v5024 = vld [vmem:[#allocation9 + $0x3e0] sm:$0xff]
    %v5025 = vld [vmem:[#allocation9 + $0x3e8] sm:$0xff]
    %v5026 = vld [vmem:[#allocation9 + $0x3f0] sm:$0xff]
    %v5027 = vld [vmem:[#allocation9 + $0x3f8] sm:$0xff]
    %v5156 = vunpack.c.l.b16 %v4900
    %v5157 = vunpack.c.h.b16 %v4900
    %v5158 = vunpack.c.l.b16 %v4901
    %v5159 = vunpack.c.h.b16 %v4901
    %v5160 = vunpack.c.l.b16 %v4902
    %v5161 = vunpack.c.h.b16 %v4902
    %v5162 = vunpack.c.l.b16 %v4903
    %v5163 = vunpack.c.h.b16 %v4903
    %v5164 = vunpack.c.l.b16 %v4904
    %v5165 = vunpack.c.h.b16 %v4904
    %v5166 = vunpack.c.l.b16 %v4905
    %v5167 = vunpack.c.h.b16 %v4905
    %v5168 = vunpack.c.l.b16 %v4906
    %v5169 = vunpack.c.h.b16 %v4906
    %v5170 = vunpack.c.l.b16 %v4907
    %v5171 = vunpack.c.h.b16 %v4907
    %v5172 = vunpack.c.l.b16 %v4908
    %v5173 = vunpack.c.h.b16 %v4908
    %v5174 = vunpack.c.l.b16 %v4909
    %v5175 = vunpack.c.h.b16 %v4909
    %v5176 = vunpack.c.l.b16 %v4910
    %v5177 = vunpack.c.h.b16 %v4910
    %v5178 = vunpack.c.l.b16 %v4911
    %v5179 = vunpack.c.h.b16 %v4911
    %v5180 = vunpack.c.l.b16 %v4912
    %v5181 = vunpack.c.h.b16 %v4912
    %v5182 = vunpack.c.l.b16 %v4913
    %v5183 = vunpack.c.h.b16 %v4913
    %v5184 = vunpack.c.l.b16 %v4914
    %v5185 = vunpack.c.h.b16 %v4914
    %v5186 = vunpack.c.l.b16 %v4915
    %v5187 = vunpack.c.h.b16 %v4915
    %v5188 = vunpack.c.l.b16 %v4916
    %v5189 = vunpack.c.h.b16 %v4916
    %v5190 = vunpack.c.l.b16 %v4917
    %v5191 = vunpack.c.h.b16 %v4917
    %v5192 = vunpack.c.l.b16 %v4918
    %v5193 = vunpack.c.h.b16 %v4918
    %v5194 = vunpack.c.l.b16 %v4919
    %v5195 = vunpack.c.h.b16 %v4919
    %v5196 = vunpack.c.l.b16 %v4920
    %v5197 = vunpack.c.h.b16 %v4920
    %v5198 = vunpack.c.l.b16 %v4921
    %v5199 = vunpack.c.h.b16 %v4921
    %v5200 = vunpack.c.l.b16 %v4922
    %v5201 = vunpack.c.h.b16 %v4922
    %v5202 = vunpack.c.l.b16 %v4923
    %v5203 = vunpack.c.h.b16 %v4923
    %v5204 = vunpack.c.l.b16 %v4924
    %v5205 = vunpack.c.h.b16 %v4924
    %v5206 = vunpack.c.l.b16 %v4925
    %v5207 = vunpack.c.h.b16 %v4925
    %v5208 = vunpack.c.l.b16 %v4926
    %v5209 = vunpack.c.h.b16 %v4926
    %v5210 = vunpack.c.l.b16 %v4927
    %v5211 = vunpack.c.h.b16 %v4927
    %v5212 = vunpack.c.l.b16 %v4928
    %v5213 = vunpack.c.h.b16 %v4928
    %v5214 = vunpack.c.l.b16 %v4929
    %v5215 = vunpack.c.h.b16 %v4929
    %v5216 = vunpack.c.l.b16 %v4930
    %v5217 = vunpack.c.h.b16 %v4930
    %v5218 = vunpack.c.l.b16 %v4931
    %v5219 = vunpack.c.h.b16 %v4931
    %v5220 = vunpack.c.l.b16 %v4932
    %v5221 = vunpack.c.h.b16 %v4932
    %v5222 = vunpack.c.l.b16 %v4933
    %v5223 = vunpack.c.h.b16 %v4933
    %v5224 = vunpack.c.l.b16 %v4934
    %v5225 = vunpack.c.h.b16 %v4934
    %v5226 = vunpack.c.l.b16 %v4935
    %v5227 = vunpack.c.h.b16 %v4935
    %v5228 = vunpack.c.l.b16 %v4936
    %v5229 = vunpack.c.h.b16 %v4936
    %v5230 = vunpack.c.l.b16 %v4937
    %v5231 = vunpack.c.h.b16 %v4937
    %v5232 = vunpack.c.l.b16 %v4938
    %v5233 = vunpack.c.h.b16 %v4938
    %v5234 = vunpack.c.l.b16 %v4939
    %v5235 = vunpack.c.h.b16 %v4939
    %v5236 = vunpack.c.l.b16 %v4940
    %v5237 = vunpack.c.h.b16 %v4940
    %v5238 = vunpack.c.l.b16 %v4941
    %v5239 = vunpack.c.h.b16 %v4941
    %v5240 = vunpack.c.l.b16 %v4942
    %v5241 = vunpack.c.h.b16 %v4942
    %v5242 = vunpack.c.l.b16 %v4943
    %v5243 = vunpack.c.h.b16 %v4943
    %v5244 = vunpack.c.l.b16 %v4944
    %v5245 = vunpack.c.h.b16 %v4944
    %v5246 = vunpack.c.l.b16 %v4945
    %v5247 = vunpack.c.h.b16 %v4945
    %v5248 = vunpack.c.l.b16 %v4946
    %v5249 = vunpack.c.h.b16 %v4946
    %v5250 = vunpack.c.l.b16 %v4947
    %v5251 = vunpack.c.h.b16 %v4947
    %v5252 = vunpack.c.l.b16 %v4948
    %v5253 = vunpack.c.h.b16 %v4948
    %v5254 = vunpack.c.l.b16 %v4949
    %v5255 = vunpack.c.h.b16 %v4949
    %v5256 = vunpack.c.l.b16 %v4950
    %v5257 = vunpack.c.h.b16 %v4950
    %v5258 = vunpack.c.l.b16 %v4951
    %v5259 = vunpack.c.h.b16 %v4951
    %v5260 = vunpack.c.l.b16 %v4952
    %v5261 = vunpack.c.h.b16 %v4952
    %v5262 = vunpack.c.l.b16 %v4953
    %v5263 = vunpack.c.h.b16 %v4953
    %v5264 = vunpack.c.l.b16 %v4954
    %v5265 = vunpack.c.h.b16 %v4954
    %v5266 = vunpack.c.l.b16 %v4955
    %v5267 = vunpack.c.h.b16 %v4955
    %v5268 = vunpack.c.l.b16 %v4956
    %v5269 = vunpack.c.h.b16 %v4956
    %v5270 = vunpack.c.l.b16 %v4957
    %v5271 = vunpack.c.h.b16 %v4957
    %v5272 = vunpack.c.l.b16 %v4958
    %v5273 = vunpack.c.h.b16 %v4958
    %v5274 = vunpack.c.l.b16 %v4959
    %v5275 = vunpack.c.h.b16 %v4959
    %v5276 = vunpack.c.l.b16 %v4960
    %v5277 = vunpack.c.h.b16 %v4960
    %v5278 = vunpack.c.l.b16 %v4961
    %v5279 = vunpack.c.h.b16 %v4961
    %v5280 = vunpack.c.l.b16 %v4962
    %v5281 = vunpack.c.h.b16 %v4962
    %v5282 = vunpack.c.l.b16 %v4963
    %v5283 = vunpack.c.h.b16 %v4963
    %v5284 = vunpack.c.l.b16 %v4964
    %v5285 = vunpack.c.h.b16 %v4964
    %v5286 = vunpack.c.l.b16 %v4965
    %v5287 = vunpack.c.h.b16 %v4965
    %v5288 = vunpack.c.l.b16 %v4966
    %v5289 = vunpack.c.h.b16 %v4966
    %v5290 = vunpack.c.l.b16 %v4967
    %v5291 = vunpack.c.h.b16 %v4967
    %v5292 = vunpack.c.l.b16 %v4968
    %v5293 = vunpack.c.h.b16 %v4968
    %v5294 = vunpack.c.l.b16 %v4969
    %v5295 = vunpack.c.h.b16 %v4969
    %v5296 = vunpack.c.l.b16 %v4970
    %v5297 = vunpack.c.h.b16 %v4970
    %v5298 = vunpack.c.l.b16 %v4971
    %v5299 = vunpack.c.h.b16 %v4971
    %v5300 = vunpack.c.l.b16 %v4972
    %v5301 = vunpack.c.h.b16 %v4972
    %v5302 = vunpack.c.l.b16 %v4973
    %v5303 = vunpack.c.h.b16 %v4973
    %v5304 = vunpack.c.l.b16 %v4974
    %v5305 = vunpack.c.h.b16 %v4974
    %v5306 = vunpack.c.l.b16 %v4975
    %v5307 = vunpack.c.h.b16 %v4975
    %v5308 = vunpack.c.l.b16 %v4976
    %v5309 = vunpack.c.h.b16 %v4976
    %v5310 = vunpack.c.l.b16 %v4977
    %v5311 = vunpack.c.h.b16 %v4977
    %v5312 = vunpack.c.l.b16 %v4978
    %v5313 = vunpack.c.h.b16 %v4978
    %v5314 = vunpack.c.l.b16 %v4979
    %v5315 = vunpack.c.h.b16 %v4979
    %v5316 = vunpack.c.l.b16 %v4980
    %v5317 = vunpack.c.h.b16 %v4980
    %v5318 = vunpack.c.l.b16 %v4981
    %v5319 = vunpack.c.h.b16 %v4981
    %v5320 = vunpack.c.l.b16 %v4982
    %v5321 = vunpack.c.h.b16 %v4982
    %v5322 = vunpack.c.l.b16 %v4983
    %v5323 = vunpack.c.h.b16 %v4983
    %v5324 = vunpack.c.l.b16 %v4984
    %v5325 = vunpack.c.h.b16 %v4984
    %v5326 = vunpack.c.l.b16 %v4985
    %v5327 = vunpack.c.h.b16 %v4985
    %v5328 = vunpack.c.l.b16 %v4986
    %v5329 = vunpack.c.h.b16 %v4986
    %v5330 = vunpack.c.l.b16 %v4987
    %v5331 = vunpack.c.h.b16 %v4987
    %v5332 = vunpack.c.l.b16 %v4988
    %v5333 = vunpack.c.h.b16 %v4988
    %v5334 = vunpack.c.l.b16 %v4989
    %v5335 = vunpack.c.h.b16 %v4989
    %v5336 = vunpack.c.l.b16 %v4990
    %v5337 = vunpack.c.h.b16 %v4990
    %v5338 = vunpack.c.l.b16 %v4991
    %v5339 = vunpack.c.h.b16 %v4991
    %v5340 = vunpack.c.l.b16 %v4992
    %v5341 = vunpack.c.h.b16 %v4992
    %v5342 = vunpack.c.l.b16 %v4993
    %v5343 = vunpack.c.h.b16 %v4993
    %v5344 = vunpack.c.l.b16 %v4994
    %v5345 = vunpack.c.h.b16 %v4994
    %v5346 = vunpack.c.l.b16 %v4995
    %v5347 = vunpack.c.h.b16 %v4995
    %v5348 = vunpack.c.l.b16 %v4996
    %v5349 = vunpack.c.h.b16 %v4996
    %v5350 = vunpack.c.l.b16 %v4997
    %v5351 = vunpack.c.h.b16 %v4997
    %v5352 = vunpack.c.l.b16 %v4998
    %v5353 = vunpack.c.h.b16 %v4998
    %v5354 = vunpack.c.l.b16 %v4999
    %v5355 = vunpack.c.h.b16 %v4999
    %v5356 = vunpack.c.l.b16 %v5000
    %v5357 = vunpack.c.h.b16 %v5000
    %v5358 = vunpack.c.l.b16 %v5001
    %v5359 = vunpack.c.h.b16 %v5001
    %v5360 = vunpack.c.l.b16 %v5002
    %v5361 = vunpack.c.h.b16 %v5002
    %v5362 = vunpack.c.l.b16 %v5003
    %v5363 = vunpack.c.h.b16 %v5003
    %v5364 = vunpack.c.l.b16 %v5004
    %v5365 = vunpack.c.h.b16 %v5004
    %v5366 = vunpack.c.l.b16 %v5005
    %v5367 = vunpack.c.h.b16 %v5005
    %v5368 = vunpack.c.l.b16 %v5006
    %v5369 = vunpack.c.h.b16 %v5006
    %v5370 = vunpack.c.l.b16 %v5007
    %v5371 = vunpack.c.h.b16 %v5007
    %v5372 = vunpack.c.l.b16 %v5008
    %v5373 = vunpack.c.h.b16 %v5008
    %v5374 = vunpack.c.l.b16 %v5009
    %v5375 = vunpack.c.h.b16 %v5009
    %v5376 = vunpack.c.l.b16 %v5010
    %v5377 = vunpack.c.h.b16 %v5010
    %v5378 = vunpack.c.l.b16 %v5011
    %v5379 = vunpack.c.h.b16 %v5011
    %v5380 = vunpack.c.l.b16 %v5012
    %v5381 = vunpack.c.h.b16 %v5012
    %v5382 = vunpack.c.l.b16 %v5013
    %v5383 = vunpack.c.h.b16 %v5013
    %v5384 = vunpack.c.l.b16 %v5014
    %v5385 = vunpack.c.h.b16 %v5014
    %v5386 = vunpack.c.l.b16 %v5015
    %v5387 = vunpack.c.h.b16 %v5015
    %v5388 = vunpack.c.l.b16 %v5016
    %v5389 = vunpack.c.h.b16 %v5016
    %v5390 = vunpack.c.l.b16 %v5017
    %v5391 = vunpack.c.h.b16 %v5017
    %v5392 = vunpack.c.l.b16 %v5018
    %v5393 = vunpack.c.h.b16 %v5018
    %v5394 = vunpack.c.l.b16 %v5019
    %v5395 = vunpack.c.h.b16 %v5019
    %v5396 = vunpack.c.l.b16 %v5020
    %v5397 = vunpack.c.h.b16 %v5020
    %v5398 = vunpack.c.l.b16 %v5021
    %v5399 = vunpack.c.h.b16 %v5021
    %v5400 = vunpack.c.l.b16 %v5022
    %v5401 = vunpack.c.h.b16 %v5022
    %v5402 = vunpack.c.l.b16 %v5023
    %v5403 = vunpack.c.h.b16 %v5023
    %v5404 = vunpack.c.l.b16 %v5024
    %v5405 = vunpack.c.h.b16 %v5024
    %v5406 = vunpack.c.l.b16 %v5025
    %v5407 = vunpack.c.h.b16 %v5025
    %v5408 = vunpack.c.l.b16 %v5026
    %v5409 = vunpack.c.h.b16 %v5026
    %v5410 = vunpack.c.l.b16 %v5027
    %v5411 = vunpack.c.h.b16 %v5027
    %v5412 = vpack.c.b16 %v5164, %v5156
    %v5413 = vpack.c.b16 %v5165, %v5157
    %v5414 = vpack.c.b16 %v5166, %v5158
    %v5415 = vpack.c.b16 %v5167, %v5159
    %v5416 = vpack.c.b16 %v5168, %v5160
    %v5417 = vpack.c.b16 %v5169, %v5161
    %v5418 = vpack.c.b16 %v5170, %v5162
    %v5419 = vpack.c.b16 %v5171, %v5163
    %v5420 = vpack.c.b16 %v5180, %v5172
    %v5421 = vpack.c.b16 %v5181, %v5173
    %v5422 = vpack.c.b16 %v5182, %v5174
    %v5423 = vpack.c.b16 %v5183, %v5175
    %v5424 = vpack.c.b16 %v5184, %v5176
    %v5425 = vpack.c.b16 %v5185, %v5177
    %v5426 = vpack.c.b16 %v5186, %v5178
    %v5427 = vpack.c.b16 %v5187, %v5179
    %v5428 = vpack.c.b16 %v5196, %v5188
    %v5429 = vpack.c.b16 %v5197, %v5189
    %v5430 = vpack.c.b16 %v5198, %v5190
    %v5431 = vpack.c.b16 %v5199, %v5191
    %v5432 = vpack.c.b16 %v5200, %v5192
    %v5433 = vpack.c.b16 %v5201, %v5193
    %v5434 = vpack.c.b16 %v5202, %v5194
    %v5435 = vpack.c.b16 %v5203, %v5195
    %v5436 = vpack.c.b16 %v5212, %v5204
    %v5437 = vpack.c.b16 %v5213, %v5205
    %v5438 = vpack.c.b16 %v5214, %v5206
    %v5439 = vpack.c.b16 %v5215, %v5207
    %v5440 = vpack.c.b16 %v5216, %v5208
    %v5441 = vpack.c.b16 %v5217, %v5209
    %v5442 = vpack.c.b16 %v5218, %v5210
    %v5443 = vpack.c.b16 %v5219, %v5211
    %v5444 = vpack.c.b16 %v5228, %v5220
    %v5445 = vpack.c.b16 %v5229, %v5221
    %v5446 = vpack.c.b16 %v5230, %v5222
    %v5447 = vpack.c.b16 %v5231, %v5223
    %v5448 = vpack.c.b16 %v5232, %v5224
    %v5449 = vpack.c.b16 %v5233, %v5225
    %v5450 = vpack.c.b16 %v5234, %v5226
    %v5451 = vpack.c.b16 %v5235, %v5227
    %v5452 = vpack.c.b16 %v5244, %v5236
    %v5453 = vpack.c.b16 %v5245, %v5237
    %v5454 = vpack.c.b16 %v5246, %v5238
    %v5455 = vpack.c.b16 %v5247, %v5239
    %v5456 = vpack.c.b16 %v5248, %v5240
    %v5457 = vpack.c.b16 %v5249, %v5241
    %v5458 = vpack.c.b16 %v5250, %v5242
    %v5459 = vpack.c.b16 %v5251, %v5243
    %v5460 = vpack.c.b16 %v5260, %v5252
    %v5461 = vpack.c.b16 %v5261, %v5253
    %v5462 = vpack.c.b16 %v5262, %v5254
    %v5463 = vpack.c.b16 %v5263, %v5255
    %v5464 = vpack.c.b16 %v5264, %v5256
    %v5465 = vpack.c.b16 %v5265, %v5257
    %v5466 = vpack.c.b16 %v5266, %v5258
    %v5467 = vpack.c.b16 %v5267, %v5259
    %v5468 = vpack.c.b16 %v5276, %v5268
    %v5469 = vpack.c.b16 %v5277, %v5269
    %v5470 = vpack.c.b16 %v5278, %v5270
    %v5471 = vpack.c.b16 %v5279, %v5271
    %v5472 = vpack.c.b16 %v5280, %v5272
    %v5473 = vpack.c.b16 %v5281, %v5273
    %v5474 = vpack.c.b16 %v5282, %v5274
    %v5475 = vpack.c.b16 %v5283, %v5275
    %v5476 = vpack.c.b16 %v5292, %v5284
    %v5477 = vpack.c.b16 %v5293, %v5285
    %v5478 = vpack.c.b16 %v5294, %v5286
    %v5479 = vpack.c.b16 %v5295, %v5287
    %v5480 = vpack.c.b16 %v5296, %v5288
    %v5481 = vpack.c.b16 %v5297, %v5289
    %v5482 = vpack.c.b16 %v5298, %v5290
    %v5483 = vpack.c.b16 %v5299, %v5291
    %v5484 = vpack.c.b16 %v5308, %v5300
    %v5485 = vpack.c.b16 %v5309, %v5301
    %v5486 = vpack.c.b16 %v5310, %v5302
    %v5487 = vpack.c.b16 %v5311, %v5303
    %v5488 = vpack.c.b16 %v5312, %v5304
    %v5489 = vpack.c.b16 %v5313, %v5305
    %v5490 = vpack.c.b16 %v5314, %v5306
    %v5491 = vpack.c.b16 %v5315, %v5307
    %v5492 = vpack.c.b16 %v5324, %v5316
    %v5493 = vpack.c.b16 %v5325, %v5317
    %v5494 = vpack.c.b16 %v5326, %v5318
    %v5495 = vpack.c.b16 %v5327, %v5319
    %v5496 = vpack.c.b16 %v5328, %v5320
    %v5497 = vpack.c.b16 %v5329, %v5321
    %v5498 = vpack.c.b16 %v5330, %v5322
    %v5499 = vpack.c.b16 %v5331, %v5323
    %v5500 = vpack.c.b16 %v5340, %v5332
    %v5501 = vpack.c.b16 %v5341, %v5333
    %v5502 = vpack.c.b16 %v5342, %v5334
    %v5503 = vpack.c.b16 %v5343, %v5335
    %v5504 = vpack.c.b16 %v5344, %v5336
    %v5505 = vpack.c.b16 %v5345, %v5337
    %v5506 = vpack.c.b16 %v5346, %v5338
    %v5507 = vpack.c.b16 %v5347, %v5339
    %v5508 = vpack.c.b16 %v5356, %v5348
    %v5509 = vpack.c.b16 %v5357, %v5349
    %v5510 = vpack.c.b16 %v5358, %v5350
    %v5511 = vpack.c.b16 %v5359, %v5351
    %v5512 = vpack.c.b16 %v5360, %v5352
    %v5513 = vpack.c.b16 %v5361, %v5353
    %v5514 = vpack.c.b16 %v5362, %v5354
    %v5515 = vpack.c.b16 %v5363, %v5355
    %v5516 = vpack.c.b16 %v5372, %v5364
    %v5517 = vpack.c.b16 %v5373, %v5365
    %v5518 = vpack.c.b16 %v5374, %v5366
    %v5519 = vpack.c.b16 %v5375, %v5367
    %v5520 = vpack.c.b16 %v5376, %v5368
    %v5521 = vpack.c.b16 %v5377, %v5369
    %v5522 = vpack.c.b16 %v5378, %v5370
    %v5523 = vpack.c.b16 %v5379, %v5371
    %v5524 = vpack.c.b16 %v5388, %v5380
    %v5525 = vpack.c.b16 %v5389, %v5381
    %v5526 = vpack.c.b16 %v5390, %v5382
    %v5527 = vpack.c.b16 %v5391, %v5383
    %v5528 = vpack.c.b16 %v5392, %v5384
    %v5529 = vpack.c.b16 %v5393, %v5385
    %v5530 = vpack.c.b16 %v5394, %v5386
    %v5531 = vpack.c.b16 %v5395, %v5387
    %v5532 = vpack.c.b16 %v5404, %v5396
    %v5533 = vpack.c.b16 %v5405, %v5397
    %v5534 = vpack.c.b16 %v5406, %v5398
    %v5535 = vpack.c.b16 %v5407, %v5399
    %v5536 = vpack.c.b16 %v5408, %v5400
    %v5537 = vpack.c.b16 %v5409, %v5401
    %v5538 = vpack.c.b16 %v5410, %v5402
    %v5539 = vpack.c.b16 %v5411, %v5403
    %5668 = vmatprep.subr.bf16.mxu0 %v5413
    %5669 = vmatpush1.bf16.msra.mxu0 %v5412
    %5670 = vmatprep.subr.bf16.mxu0 %v5421
    %5671 = vmatpush1.bf16.msra.mxu0 %v5420
    %5672 = vmatprep.subr.bf16.mxu0 %v5429
    %5673 = vmatpush1.bf16.msra.mxu0 %v5428
    %5674 = vmatprep.subr.bf16.mxu0 %v5437
    %5675 = vmatpush1.bf16.msra.mxu0 %v5436
    %5676 = vmatprep.subr.bf16.mxu0 %v5445
    %5677 = vmatpush1.bf16.msra.mxu0 %v5444
    %5678 = vmatprep.subr.bf16.mxu0 %v5453
    %5679 = vmatpush1.bf16.msra.mxu0 %v5452
    %5680 = vmatprep.subr.bf16.mxu0 %v5461
    %5681 = vmatpush1.bf16.msra.mxu0 %v5460
    %5682 = vmatprep.subr.bf16.mxu0 %v5469
    %5683 = vmatpush1.bf16.msra.mxu0 %v5468
    %5684 = vmatprep.subr.bf16.mxu0 %v5477
    %5685 = vmatpush1.bf16.msra.mxu0 %v5476
    %5686 = vmatprep.subr.bf16.mxu0 %v5485
    %5687 = vmatpush1.bf16.msra.mxu0 %v5484
    %5688 = vmatprep.subr.bf16.mxu0 %v5493
    %5689 = vmatpush1.bf16.msra.mxu0 %v5492
    %5690 = vmatprep.subr.bf16.mxu0 %v5501
    %5691 = vmatpush1.bf16.msra.mxu0 %v5500
    %5692 = vmatprep.subr.bf16.mxu0 %v5509
    %5693 = vmatpush1.bf16.msra.mxu0 %v5508
    %5694 = vmatprep.subr.bf16.mxu0 %v5517
    %5695 = vmatpush1.bf16.msra.mxu0 %v5516
    %5696 = vmatprep.subr.bf16.mxu0 %v5525
    %5697 = vmatpush1.bf16.msra.mxu0 %v5524
    %5698 = vmatprep.subr.bf16.mxu0 %v5533
    %5699 = vmatpush1.bf16.msra.mxu0 %v5532
    %5700 = vmatprep.mubr.bf16.mxu0 %v4899
    %5701 = vmatmul.mubr.bf16.gmra.mrb[0].mxu0 %v4898
    %v5702 = vpop.f32.mrb[0].mxu0
    %v5703 = vadd.f32 0.0, %v5702
    %v5704 = vpop.f32.mrb[0].mxu0
    %v5705 = vadd.f32 0.0, %v5704
    %v5706 = vpop.f32.mrb[0].mxu0
    %v5707 = vpop.f32.mrb[0].mxu0
    %5708 = vdwg.mxu0
    %5709 = vmatprep.subr.bf16.mxu0 %v5415
    %5710 = vmatpush1.bf16.msra.mxu0 %v5414
    %5711 = vmatprep.subr.bf16.mxu0 %v5423
    %5712 = vmatpush1.bf16.msra.mxu0 %v5422
    %5713 = vmatprep.subr.bf16.mxu0 %v5431
    %5714 = vmatpush1.bf16.msra.mxu0 %v5430
    %5715 = vmatprep.subr.bf16.mxu0 %v5439
    %5716 = vmatpush1.bf16.msra.mxu0 %v5438
    %5717 = vmatprep.subr.bf16.mxu0 %v5447
    %5718 = vmatpush1.bf16.msra.mxu0 %v5446
    %5719 = vmatprep.subr.bf16.mxu0 %v5455
    %5720 = vmatpush1.bf16.msra.mxu0 %v5454
    %5721 = vmatprep.subr.bf16.mxu0 %v5463
    %5722 = vmatpush1.bf16.msra.mxu0 %v5462
    %5723 = vmatprep.subr.bf16.mxu0 %v5471
    %5724 = vmatpush1.bf16.msra.mxu0 %v5470
    %5725 = vmatprep.subr.bf16.mxu0 %v5479
    %5726 = vmatpush1.bf16.msra.mxu0 %v5478
    %5727 = vmatprep.subr.bf16.mxu0 %v5487
    %5728 = vmatpush1.bf16.msra.mxu0 %v5486
    %5729 = vmatprep.subr.bf16.mxu0 %v5495
    %5730 = vmatpush1.bf16.msra.mxu0 %v5494
    %5731 = vmatprep.subr.bf16.mxu0 %v5503
    %5732 = vmatpush1.bf16.msra.mxu0 %v5502
    %5733 = vmatprep.subr.bf16.mxu0 %v5511
    %5734 = vmatpush1.bf16.msra.mxu0 %v5510
    %5735 = vmatprep.subr.bf16.mxu0 %v5519
    %5736 = vmatpush1.bf16.msra.mxu0 %v5518
    %5737 = vmatprep.subr.bf16.mxu0 %v5527
    %5738 = vmatpush1.bf16.msra.mxu0 %v5526
    %5739 = vmatprep.subr.bf16.mxu0 %v5535
    %5740 = vmatpush1.bf16.msra.mxu0 %v5534
    %5741 = vmatprep.mubr.bf16.mxu0 %v4899
    %5742 = vmatmul.mubr.bf16.gmra.mrb[0].mxu0 %v4898
    %v5743 = vpop.f32.mrb[0].mxu0
    %v5744 = vadd.f32 0.0, %v5743
    %v5745 = vpop.f32.mrb[0].mxu0
    %v5746 = vadd.f32 0.0, %v5745
    %v5747 = vpop.f32.mrb[0].mxu0
    %v5748 = vpop.f32.mrb[0].mxu0
    %5749 = vdwg.mxu0
    %5750 = vmatprep.subr.bf16.mxu0 %v5417
    %5751 = vmatpush1.bf16.msra.mxu0 %v5416
    %5752 = vmatprep.subr.bf16.mxu0 %v5425
    %5753 = vmatpush1.bf16.msra.mxu0 %v5424
    %5754 = vmatprep.subr.bf16.mxu0 %v5433
    %5755 = vmatpush1.bf16.msra.mxu0 %v5432
    %5756 = vmatprep.subr.bf16.mxu0 %v5441
    %5757 = vmatpush1.bf16.msra.mxu0 %v5440
    %5758 = vmatprep.subr.bf16.mxu0 %v5449
    %5759 = vmatpush1.bf16.msra.mxu0 %v5448
    %5760 = vmatprep.subr.bf16.mxu0 %v5457
    %5761 = vmatpush1.bf16.msra.mxu0 %v5456
    %5762 = vmatprep.subr.bf16.mxu0 %v5465
    %5763 = vmatpush1.bf16.msra.mxu0 %v5464
    %5764 = vmatprep.subr.bf16.mxu0 %v5473
    %5765 = vmatpush1.bf16.msra.mxu0 %v5472
    %5766 = vmatprep.subr.bf16.mxu0 %v5481
    %5767 = vmatpush1.bf16.msra.mxu0 %v5480
    %5768 = vmatprep.subr.bf16.mxu0 %v5489
    %5769 = vmatpush1.bf16.msra.mxu0 %v5488
    %5770 = vmatprep.subr.bf16.mxu0 %v5497
    %5771 = vmatpush1.bf16.msra.mxu0 %v5496
    %5772 = vmatprep.subr.bf16.mxu0 %v5505
    %5773 = vmatpush1.bf16.msra.mxu0 %v5504
    %5774 = vmatprep.subr.bf16.mxu0 %v5513
    %5775 = vmatpush1.bf16.msra.mxu0 %v5512
    %5776 = vmatprep.subr.bf16.mxu0 %v5521
    %5777 = vmatpush1.bf16.msra.mxu0 %v5520
    %5778 = vmatprep.subr.bf16.mxu0 %v5529
    %5779 = vmatpush1.bf16.msra.mxu0 %v5528
    %5780 = vmatprep.subr.bf16.mxu0 %v5537
    %5781 = vmatpush1.bf16.msra.mxu0 %v5536
    %5782 = vmatprep.mubr.bf16.mxu0 %v4899
    %5783 = vmatmul.mubr.bf16.gmra.mrb[0].mxu0 %v4898
    %v5784 = vpop.f32.mrb[0].mxu0
    %v5785 = vadd.f32 0.0, %v5784
    %v5786 = vpop.f32.mrb[0].mxu0
    %v5787 = vadd.f32 0.0, %v5786
    %v5788 = vpop.f32.mrb[0].mxu0
    %v5789 = vpop.f32.mrb[0].mxu0
    %5790 = vdwg.mxu0
    %5791 = vmatprep.subr.bf16.mxu0 %v5419
    %5792 = vmatpush1.bf16.msra.mxu0 %v5418
    %5793 = vmatprep.subr.bf16.mxu0 %v5427
    %5794 = vmatpush1.bf16.msra.mxu0 %v5426
    %5795 = vmatprep.subr.bf16.mxu0 %v5435
    %5796 = vmatpush1.bf16.msra.mxu0 %v5434
    %5797 = vmatprep.subr.bf16.mxu0 %v5443
    %5798 = vmatpush1.bf16.msra.mxu0 %v5442
    %5799 = vmatprep.subr.bf16.mxu0 %v5451
    %5800 = vmatpush1.bf16.msra.mxu0 %v5450
    %5801 = vmatprep.subr.bf16.mxu0 %v5459
    %5802 = vmatpush1.bf16.msra.mxu0 %v5458
    %5803 = vmatprep.subr.bf16.mxu0 %v5467
    %5804 = vmatpush1.bf16.msra.mxu0 %v5466
    %5805 = vmatprep.subr.bf16.mxu0 %v5475
    %5806 = vmatpush1.bf16.msra.mxu0 %v5474
    %5807 = vmatprep.subr.bf16.mxu0 %v5483
    %5808 = vmatpush1.bf16.msra.mxu0 %v5482
    %5809 = vmatprep.subr.bf16.mxu0 %v5491
    %5810 = vmatpush1.bf16.msra.mxu0 %v5490
    %5811 = vmatprep.subr.bf16.mxu0 %v5499
    %5812 = vmatpush1.bf16.msra.mxu0 %v5498
    %5813 = vmatprep.subr.bf16.mxu0 %v5507
    %5814 = vmatpush1.bf16.msra.mxu0 %v5506
    %5815 = vmatprep.subr.bf16.mxu0 %v5515
    %5816 = vmatpush1.bf16.msra.mxu0 %v5514
    %5817 = vmatprep.subr.bf16.mxu0 %v5523
    %5818 = vmatpush1.bf16.msra.mxu0 %v5522
    %5819 = vmatprep.subr.bf16.mxu0 %v5531
    %5820 = vmatpush1.bf16.msra.mxu0 %v5530
    %5821 = vmatprep.subr.bf16.mxu0 %v5539
    %5822 = vmatpush1.bf16.msra.mxu0 %v5538
    %5823 = vmatprep.mubr.bf16.mxu0 %v4899
    %5824 = vmatmul.mubr.bf16.gmra.mrb[0].mxu0 %v4898
    %v5825 = vpop.f32.mrb[0].mxu0
    %v5826 = vadd.f32 0.0, %v5825
    %v5827 = vpop.f32.mrb[0].mxu0
    %v5828 = vadd.f32 0.0, %v5827
    %v5829 = vpop.f32.mrb[0].mxu0
    %v5830 = vpop.f32.mrb[0].mxu0
    %5831 = vdwg.mxu0
    %v5832 = vadd.f32 %v4890, %v5703
    %v5833 = vadd.f32 %v4891, %v5705
    %v5834 = vadd.f32 %v4892, %v5744
    %v5835 = vadd.f32 %v4893, %v5746
    %v5836 = vadd.f32 %v4894, %v5785
    %v5837 = vadd.f32 %v4895, %v5787
    %v5838 = vadd.f32 %v4896, %v5826
    %v5839 = vadd.f32 %v4897, %v5828
    %v5840 = vxor.u32 %v5832, 2147483648
    %v5841 = vxor.u32 %v5833, 2147483648
    %v5842 = vxor.u32 %v5834, 2147483648
    %v5843 = vxor.u32 %v5835, 2147483648
    %v5844 = vxor.u32 %v5836, 2147483648
    %v5845 = vxor.u32 %v5837, 2147483648
    %v5846 = vmul.f32 %v5840, 1.442695
    %v5847 = vpow.pop %v5846
    %v5848 = vmul.f32 %v5841, 1.442695
    %v5849 = vpow.pop %v5848
    %v5850 = vmul.f32 %v5842, 1.442695
    %v5851 = vpow.pop %v5850
    %v5852 = vmul.f32 %v5843, 1.442695
    %v5853 = vpow.pop %v5852
    %v5854 = vmul.f32 %v5844, 1.442695
    %v5855 = vpow.pop %v5854
    %v5856 = vmul.f32 %v5845, 1.442695
    %v5857 = vpow.pop %v5856
    %v5858 = vadd.f32 %v5847, 1.0
    %v5859 = vadd.f32 %v5849, 1.0
    %v5860 = vadd.f32 %v5851, 1.0
    %v5861 = vadd.f32 %v5853, 1.0
    %v5862 = vadd.f32 %v5855, 1.0
    %v5863 = vadd.f32 %v5857, 1.0
    %v5864 = vrcp.pop %v5858
    %v5865 = vmul.f32 1.0, %v5864
    %v5866 = vrcp.pop %v5859
    %v5867 = vmul.f32 1.0, %v5866
    %v5868 = vrcp.pop %v5860
    %v5869 = vmul.f32 1.0, %v5868
    %v5870 = vrcp.pop %v5861
    %v5871 = vmul.f32 1.0, %v5870
    %v5872 = vrcp.pop %v5862
    %v5873 = vmul.f32 1.0, %v5872
    %v5874 = vrcp.pop %v5863
    %v5875 = vmul.f32 1.0, %v5874
    %v5876 = vtanh.pop %v5838
    %v5877 = vtanh.pop %v5839
    %v5878 = vmul.f32 %v5869, %v4880
    %v5879 = vmul.f32 %v5871, %v4881
    %v5880 = vmul.f32 %v5865, %v5876
    %v5881 = vmul.f32 %v5867, %v5877
    %v5882 = vadd.f32 %v5878, %v5880
    %v5883 = vadd.f32 %v5879, %v5881
    %v5884 = vtanh.pop %v5882
    %v5885 = vtanh.pop %v5883
    %v5886 = vmul.f32 %v5873, %v5884
    %v5887 = vmul.f32 %v5875, %v5885
    %s5888 = scalar_lea.vmem [#allocation5], 64
    %5889 = vst [vmem:[%s5888] sm:$0xff] %v5886
    %5890 = vst [vmem:[%s5888 + $0x8] sm:$0xff] %v5887
    %s5891 = scalar_lea.vmem [#allocation4], 320
    %v5892 = vld [vmem:[%s5891] sm:$0xff]
    %v5893 = vld [vmem:[%s5891 + $0x8] sm:$0xff]
    %v5894 = vld [vmem:[%s5891 + $0x10] sm:$0xff]
    %v5895 = vld [vmem:[%s5891 + $0x18] sm:$0xff]
    %v5896 = vld [vmem:[%s5891 + $0x20] sm:$0xff]
    %v5897 = vld [vmem:[%s5891 + $0x28] sm:$0xff]
    %v5898 = vld [vmem:[%s5891 + $0x30] sm:$0xff]
    %v5899 = vld [vmem:[%s5891 + $0x38] sm:$0xff]
    %v5900 = vpack.c.bf16 %v5886, %v5886
    %v5901 = vpack.c.bf16 %v5887, %v5887
    %v5902 = vld [vmem:[#allocation9] sm:$0xff]
    %v5903 = vld [vmem:[#allocation9 + $0x8] sm:$0xff]
    %v5904 = vld [vmem:[#allocation9 + $0x10] sm:$0xff]
    %v5905 = vld [vmem:[#allocation9 + $0x18] sm:$0xff]
    %v5906 = vld [vmem:[#allocation9 + $0x20] sm:$0xff]
    %v5907 = vld [vmem:[#allocation9 + $0x28] sm:$0xff]
    %v5908 = vld [vmem:[#allocation9 + $0x30] sm:$0xff]
    %v5909 = vld [vmem:[#allocation9 + $0x38] sm:$0xff]
    %v5910 = vld [vmem:[#allocation9 + $0x40] sm:$0xff]
    %v5911 = vld [vmem:[#allocation9 + $0x48] sm:$0xff]
    %v5912 = vld [vmem:[#allocation9 + $0x50] sm:$0xff]
    %v5913 = vld [vmem:[#allocation9 + $0x58] sm:$0xff]
    %v5914 = vld [vmem:[#allocation9 + $0x60] sm:$0xff]
    %v5915 = vld [vmem:[#allocation9 + $0x68] sm:$0xff]
    %v5916 = vld [vmem:[#allocation9 + $0x70] sm:$0xff]
    %v5917 = vld [vmem:[#allocation9 + $0x78] sm:$0xff]
    %v5918 = vld [vmem:[#allocation9 + $0x80] sm:$0xff]
    %v5919 = vld [vmem:[#allocation9 + $0x88] sm:$0xff]
    %v5920 = vld [vmem:[#allocation9 + $0x90] sm:$0xff]
    %v5921 = vld [vmem:[#allocation9 + $0x98] sm:$0xff]
    %v5922 = vld [vmem:[#allocation9 + $0xa0] sm:$0xff]
    %v5923 = vld [vmem:[#allocation9 + $0xa8] sm:$0xff]
    %v5924 = vld [vmem:[#allocation9 + $0xb0] sm:$0xff]
    %v5925 = vld [vmem:[#allocation9 + $0xb8] sm:$0xff]
    %v5926 = vld [vmem:[#allocation9 + $0xc0] sm:$0xff]
    %v5927 = vld [vmem:[#allocation9 + $0xc8] sm:$0xff]
    %v5928 = vld [vmem:[#allocation9 + $0xd0] sm:$0xff]
    %v5929 = vld [vmem:[#allocation9 + $0xd8] sm:$0xff]
    %v5930 = vld [vmem:[#allocation9 + $0xe0] sm:$0xff]
    %v5931 = vld [vmem:[#allocation9 + $0xe8] sm:$0xff]
    %v5932 = vld [vmem:[#allocation9 + $0xf0] sm:$0xff]
    %v5933 = vld [vmem:[#allocation9 + $0xf8] sm:$0xff]
    %v5934 = vld [vmem:[#allocation9 + $0x100] sm:$0xff]
    %v5935 = vld [vmem:[#allocation9 + $0x108] sm:$0xff]
    %v5936 = vld [vmem:[#allocation9 + $0x110] sm:$0xff]
    %v5937 = vld [vmem:[#allocation9 + $0x118] sm:$0xff]
    %v5938 = vld [vmem:[#allocation9 + $0x120] sm:$0xff]
    %v5939 = vld [vmem:[#allocation9 + $0x128] sm:$0xff]
    %v5940 = vld [vmem:[#allocation9 + $0x130] sm:$0xff]
    %v5941 = vld [vmem:[#allocation9 + $0x138] sm:$0xff]
    %v5942 = vld [vmem:[#allocation9 + $0x140] sm:$0xff]
    %v5943 = vld [vmem:[#allocation9 + $0x148] sm:$0xff]
    %v5944 = vld [vmem:[#allocation9 + $0x150] sm:$0xff]
    %v5945 = vld [vmem:[#allocation9 + $0x158] sm:$0xff]
    %v5946 = vld [vmem:[#allocation9 + $0x160] sm:$0xff]
    %v5947 = vld [vmem:[#allocation9 + $0x168] sm:$0xff]
    %v5948 = vld [vmem:[#allocation9 + $0x170] sm:$0xff]
    %v5949 = vld [vmem:[#allocation9 + $0x178] sm:$0xff]
    %v5950 = vld [vmem:[#allocation9 + $0x180] sm:$0xff]
    %v5951 = vld [vmem:[#allocation9 + $0x188] sm:$0xff]
    %v5952 = vld [vmem:[#allocation9 + $0x190] sm:$0xff]
    %v5953 = vld [vmem:[#allocation9 + $0x198] sm:$0xff]
    %v5954 = vld [vmem:[#allocation9 + $0x1a0] sm:$0xff]
    %v5955 = vld [vmem:[#allocation9 + $0x1a8] sm:$0xff]
    %v5956 = vld [vmem:[#allocation9 + $0x1b0] sm:$0xff]
    %v5957 = vld [vmem:[#allocation9 + $0x1b8] sm:$0xff]
    %v5958 = vld [vmem:[#allocation9 + $0x1c0] sm:$0xff]
    %v5959 = vld [vmem:[#allocation9 + $0x1c8] sm:$0xff]
    %v5960 = vld [vmem:[#allocation9 + $0x1d0] sm:$0xff]
    %v5961 = vld [vmem:[#allocation9 + $0x1d8] sm:$0xff]
    %v5962 = vld [vmem:[#allocation9 + $0x1e0] sm:$0xff]
    %v5963 = vld [vmem:[#allocation9 + $0x1e8] sm:$0xff]
    %v5964 = vld [vmem:[#allocation9 + $0x1f0] sm:$0xff]
    %v5965 = vld [vmem:[#allocation9 + $0x1f8] sm:$0xff]
    %v5966 = vld [vmem:[#allocation9 + $0x200] sm:$0xff]
    %v5967 = vld [vmem:[#allocation9 + $0x208] sm:$0xff]
    %v5968 = vld [vmem:[#allocation9 + $0x210] sm:$0xff]
    %v5969 = vld [vmem:[#allocation9 + $0x218] sm:$0xff]
    %v5970 = vld [vmem:[#allocation9 + $0x220] sm:$0xff]
    %v5971 = vld [vmem:[#allocation9 + $0x228] sm:$0xff]
    %v5972 = vld [vmem:[#allocation9 + $0x230] sm:$0xff]
    %v5973 = vld [vmem:[#allocation9 + $0x238] sm:$0xff]
    %v5974 = vld [vmem:[#allocation9 + $0x240] sm:$0xff]
    %v5975 = vld [vmem:[#allocation9 + $0x248] sm:$0xff]
    %v5976 = vld [vmem:[#allocation9 + $0x250] sm:$0xff]
    %v5977 = vld [vmem:[#allocation9 + $0x258] sm:$0xff]
    %v5978 = vld [vmem:[#allocation9 + $0x260] sm:$0xff]
    %v5979 = vld [vmem:[#allocation9 + $0x268] sm:$0xff]
    %v5980 = vld [vmem:[#allocation9 + $0x270] sm:$0xff]
    %v5981 = vld [vmem:[#allocation9 + $0x278] sm:$0xff]
    %v5982 = vld [vmem:[#allocation9 + $0x280] sm:$0xff]
    %v5983 = vld [vmem:[#allocation9 + $0x288] sm:$0xff]
    %v5984 = vld [vmem:[#allocation9 + $0x290] sm:$0xff]
    %v5985 = vld [vmem:[#allocation9 + $0x298] sm:$0xff]
    %v5986 = vld [vmem:[#allocation9 + $0x2a0] sm:$0xff]
    %v5987 = vld [vmem:[#allocation9 + $0x2a8] sm:$0xff]
    %v5988 = vld [vmem:[#allocation9 + $0x2b0] sm:$0xff]
    %v5989 = vld [vmem:[#allocation9 + $0x2b8] sm:$0xff]
    %v5990 = vld [vmem:[#allocation9 + $0x2c0] sm:$0xff]
    %v5991 = vld [vmem:[#allocation9 + $0x2c8] sm:$0xff]
    %v5992 = vld [vmem:[#allocation9 + $0x2d0] sm:$0xff]
    %v5993 = vld [vmem:[#allocation9 + $0x2d8] sm:$0xff]
    %v5994 = vld [vmem:[#allocation9 + $0x2e0] sm:$0xff]
    %v5995 = vld [vmem:[#allocation9 + $0x2e8] sm:$0xff]
    %v5996 = vld [vmem:[#allocation9 + $0x2f0] sm:$0xff]
    %v5997 = vld [vmem:[#allocation9 + $0x2f8] sm:$0xff]
    %v5998 = vld [vmem:[#allocation9 + $0x300] sm:$0xff]
    %v5999 = vld [vmem:[#allocation9 + $0x308] sm:$0xff]
    %v6000 = vld [vmem:[#allocation9 + $0x310] sm:$0xff]
    %v6001 = vld [vmem:[#allocation9 + $0x318] sm:$0xff]
    %v6002 = vld [vmem:[#allocation9 + $0x320] sm:$0xff]
    %v6003 = vld [vmem:[#allocation9 + $0x328] sm:$0xff]
    %v6004 = vld [vmem:[#allocation9 + $0x330] sm:$0xff]
    %v6005 = vld [vmem:[#allocation9 + $0x338] sm:$0xff]
    %v6006 = vld [vmem:[#allocation9 + $0x340] sm:$0xff]
    %v6007 = vld [vmem:[#allocation9 + $0x348] sm:$0xff]
    %v6008 = vld [vmem:[#allocation9 + $0x350] sm:$0xff]
    %v6009 = vld [vmem:[#allocation9 + $0x358] sm:$0xff]
    %v6010 = vld [vmem:[#allocation9 + $0x360] sm:$0xff]
    %v6011 = vld [vmem:[#allocation9 + $0x368] sm:$0xff]
    %v6012 = vld [vmem:[#allocation9 + $0x370] sm:$0xff]
    %v6013 = vld [vmem:[#allocation9 + $0x378] sm:$0xff]
    %v6014 = vld [vmem:[#allocation9 + $0x380] sm:$0xff]
    %v6015 = vld [vmem:[#allocation9 + $0x388] sm:$0xff]
    %v6016 = vld [vmem:[#allocation9 + $0x390] sm:$0xff]
    %v6017 = vld [vmem:[#allocation9 + $0x398] sm:$0xff]
    %v6018 = vld [vmem:[#allocation9 + $0x3a0] sm:$0xff]
    %v6019 = vld [vmem:[#allocation9 + $0x3a8] sm:$0xff]
    %v6020 = vld [vmem:[#allocation9 + $0x3b0] sm:$0xff]
    %v6021 = vld [vmem:[#allocation9 + $0x3b8] sm:$0xff]
    %v6022 = vld [vmem:[#allocation9 + $0x3c0] sm:$0xff]
    %v6023 = vld [vmem:[#allocation9 + $0x3c8] sm:$0xff]
    %v6024 = vld [vmem:[#allocation9 + $0x3d0] sm:$0xff]
    %v6025 = vld [vmem:[#allocation9 + $0x3d8] sm:$0xff]
    %v6026 = vld [vmem:[#allocation9 + $0x3e0] sm:$0xff]
    %v6027 = vld [vmem:[#allocation9 + $0x3e8] sm:$0xff]
    %v6028 = vld [vmem:[#allocation9 + $0x3f0] sm:$0xff]
    %v6029 = vld [vmem:[#allocation9 + $0x3f8] sm:$0xff]
    %v6158 = vunpack.c.l.b16 %v5902
    %v6159 = vunpack.c.h.b16 %v5902
    %v6160 = vunpack.c.l.b16 %v5903
    %v6161 = vunpack.c.h.b16 %v5903
    %v6162 = vunpack.c.l.b16 %v5904
    %v6163 = vunpack.c.h.b16 %v5904
    %v6164 = vunpack.c.l.b16 %v5905
    %v6165 = vunpack.c.h.b16 %v5905
    %v6166 = vunpack.c.l.b16 %v5906
    %v6167 = vunpack.c.h.b16 %v5906
    %v6168 = vunpack.c.l.b16 %v5907
    %v6169 = vunpack.c.h.b16 %v5907
    %v6170 = vunpack.c.l.b16 %v5908
    %v6171 = vunpack.c.h.b16 %v5908
    %v6172 = vunpack.c.l.b16 %v5909
    %v6173 = vunpack.c.h.b16 %v5909
    %v6174 = vunpack.c.l.b16 %v5910
    %v6175 = vunpack.c.h.b16 %v5910
    %v6176 = vunpack.c.l.b16 %v5911
    %v6177 = vunpack.c.h.b16 %v5911
    %v6178 = vunpack.c.l.b16 %v5912
    %v6179 = vunpack.c.h.b16 %v5912
    %v6180 = vunpack.c.l.b16 %v5913
    %v6181 = vunpack.c.h.b16 %v5913
    %v6182 = vunpack.c.l.b16 %v5914
    %v6183 = vunpack.c.h.b16 %v5914
    %v6184 = vunpack.c.l.b16 %v5915
    %v6185 = vunpack.c.h.b16 %v5915
    %v6186 = vunpack.c.l.b16 %v5916
    %v6187 = vunpack.c.h.b16 %v5916
    %v6188 = vunpack.c.l.b16 %v5917
    %v6189 = vunpack.c.h.b16 %v5917
    %v6190 = vunpack.c.l.b16 %v5918
    %v6191 = vunpack.c.h.b16 %v5918
    %v6192 = vunpack.c.l.b16 %v5919
    %v6193 = vunpack.c.h.b16 %v5919
    %v6194 = vunpack.c.l.b16 %v5920
    %v6195 = vunpack.c.h.b16 %v5920
    %v6196 = vunpack.c.l.b16 %v5921
    %v6197 = vunpack.c.h.b16 %v5921
    %v6198 = vunpack.c.l.b16 %v5922
    %v6199 = vunpack.c.h.b16 %v5922
    %v6200 = vunpack.c.l.b16 %v5923
    %v6201 = vunpack.c.h.b16 %v5923
    %v6202 = vunpack.c.l.b16 %v5924
    %v6203 = vunpack.c.h.b16 %v5924
    %v6204 = vunpack.c.l.b16 %v5925
    %v6205 = vunpack.c.h.b16 %v5925
    %v6206 = vunpack.c.l.b16 %v5926
    %v6207 = vunpack.c.h.b16 %v5926
    %v6208 = vunpack.c.l.b16 %v5927
    %v6209 = vunpack.c.h.b16 %v5927
    %v6210 = vunpack.c.l.b16 %v5928
    %v6211 = vunpack.c.h.b16 %v5928
    %v6212 = vunpack.c.l.b16 %v5929
    %v6213 = vunpack.c.h.b16 %v5929
    %v6214 = vunpack.c.l.b16 %v5930
    %v6215 = vunpack.c.h.b16 %v5930
    %v6216 = vunpack.c.l.b16 %v5931
    %v6217 = vunpack.c.h.b16 %v5931
    %v6218 = vunpack.c.l.b16 %v5932
    %v6219 = vunpack.c.h.b16 %v5932
    %v6220 = vunpack.c.l.b16 %v5933
    %v6221 = vunpack.c.h.b16 %v5933
    %v6222 = vunpack.c.l.b16 %v5934
    %v6223 = vunpack.c.h.b16 %v5934
    %v6224 = vunpack.c.l.b16 %v5935
    %v6225 = vunpack.c.h.b16 %v5935
    %v6226 = vunpack.c.l.b16 %v5936
    %v6227 = vunpack.c.h.b16 %v5936
    %v6228 = vunpack.c.l.b16 %v5937
    %v6229 = vunpack.c.h.b16 %v5937
    %v6230 = vunpack.c.l.b16 %v5938
    %v6231 = vunpack.c.h.b16 %v5938
    %v6232 = vunpack.c.l.b16 %v5939
    %v6233 = vunpack.c.h.b16 %v5939
    %v6234 = vunpack.c.l.b16 %v5940
    %v6235 = vunpack.c.h.b16 %v5940
    %v6236 = vunpack.c.l.b16 %v5941
    %v6237 = vunpack.c.h.b16 %v5941
    %v6238 = vunpack.c.l.b16 %v5942
    %v6239 = vunpack.c.h.b16 %v5942
    %v6240 = vunpack.c.l.b16 %v5943
    %v6241 = vunpack.c.h.b16 %v5943
    %v6242 = vunpack.c.l.b16 %v5944
    %v6243 = vunpack.c.h.b16 %v5944
    %v6244 = vunpack.c.l.b16 %v5945
    %v6245 = vunpack.c.h.b16 %v5945
    %v6246 = vunpack.c.l.b16 %v5946
    %v6247 = vunpack.c.h.b16 %v5946
    %v6248 = vunpack.c.l.b16 %v5947
    %v6249 = vunpack.c.h.b16 %v5947
    %v6250 = vunpack.c.l.b16 %v5948
    %v6251 = vunpack.c.h.b16 %v5948
    %v6252 = vunpack.c.l.b16 %v5949
    %v6253 = vunpack.c.h.b16 %v5949
    %v6254 = vunpack.c.l.b16 %v5950
    %v6255 = vunpack.c.h.b16 %v5950
    %v6256 = vunpack.c.l.b16 %v5951
    %v6257 = vunpack.c.h.b16 %v5951
    %v6258 = vunpack.c.l.b16 %v5952
    %v6259 = vunpack.c.h.b16 %v5952
    %v6260 = vunpack.c.l.b16 %v5953
    %v6261 = vunpack.c.h.b16 %v5953
    %v6262 = vunpack.c.l.b16 %v5954
    %v6263 = vunpack.c.h.b16 %v5954
    %v6264 = vunpack.c.l.b16 %v5955
    %v6265 = vunpack.c.h.b16 %v5955
    %v6266 = vunpack.c.l.b16 %v5956
    %v6267 = vunpack.c.h.b16 %v5956
    %v6268 = vunpack.c.l.b16 %v5957
    %v6269 = vunpack.c.h.b16 %v5957
    %v6270 = vunpack.c.l.b16 %v5958
    %v6271 = vunpack.c.h.b16 %v5958
    %v6272 = vunpack.c.l.b16 %v5959
    %v6273 = vunpack.c.h.b16 %v5959
    %v6274 = vunpack.c.l.b16 %v5960
    %v6275 = vunpack.c.h.b16 %v5960
    %v6276 = vunpack.c.l.b16 %v5961
    %v6277 = vunpack.c.h.b16 %v5961
    %v6278 = vunpack.c.l.b16 %v5962
    %v6279 = vunpack.c.h.b16 %v5962
    %v6280 = vunpack.c.l.b16 %v5963
    %v6281 = vunpack.c.h.b16 %v5963
    %v6282 = vunpack.c.l.b16 %v5964
    %v6283 = vunpack.c.h.b16 %v5964
    %v6284 = vunpack.c.l.b16 %v5965
    %v6285 = vunpack.c.h.b16 %v5965
    %v6286 = vunpack.c.l.b16 %v5966
    %v6287 = vunpack.c.h.b16 %v5966
    %v6288 = vunpack.c.l.b16 %v5967
    %v6289 = vunpack.c.h.b16 %v5967
    %v6290 = vunpack.c.l.b16 %v5968
    %v6291 = vunpack.c.h.b16 %v5968
    %v6292 = vunpack.c.l.b16 %v5969
    %v6293 = vunpack.c.h.b16 %v5969
    %v6294 = vunpack.c.l.b16 %v5970
    %v6295 = vunpack.c.h.b16 %v5970
    %v6296 = vunpack.c.l.b16 %v5971
    %v6297 = vunpack.c.h.b16 %v5971
    %v6298 = vunpack.c.l.b16 %v5972
    %v6299 = vunpack.c.h.b16 %v5972
    %v6300 = vunpack.c.l.b16 %v5973
    %v6301 = vunpack.c.h.b16 %v5973
    %v6302 = vunpack.c.l.b16 %v5974
    %v6303 = vunpack.c.h.b16 %v5974
    %v6304 = vunpack.c.l.b16 %v5975
    %v6305 = vunpack.c.h.b16 %v5975
    %v6306 = vunpack.c.l.b16 %v5976
    %v6307 = vunpack.c.h.b16 %v5976
    %v6308 = vunpack.c.l.b16 %v5977
    %v6309 = vunpack.c.h.b16 %v5977
    %v6310 = vunpack.c.l.b16 %v5978
    %v6311 = vunpack.c.h.b16 %v5978
    %v6312 = vunpack.c.l.b16 %v5979
    %v6313 = vunpack.c.h.b16 %v5979
    %v6314 = vunpack.c.l.b16 %v5980
    %v6315 = vunpack.c.h.b16 %v5980
    %v6316 = vunpack.c.l.b16 %v5981
    %v6317 = vunpack.c.h.b16 %v5981
    %v6318 = vunpack.c.l.b16 %v5982
    %v6319 = vunpack.c.h.b16 %v5982
    %v6320 = vunpack.c.l.b16 %v5983
    %v6321 = vunpack.c.h.b16 %v5983
    %v6322 = vunpack.c.l.b16 %v5984
    %v6323 = vunpack.c.h.b16 %v5984
    %v6324 = vunpack.c.l.b16 %v5985
    %v6325 = vunpack.c.h.b16 %v5985
    %v6326 = vunpack.c.l.b16 %v5986
    %v6327 = vunpack.c.h.b16 %v5986
    %v6328 = vunpack.c.l.b16 %v5987
    %v6329 = vunpack.c.h.b16 %v5987
    %v6330 = vunpack.c.l.b16 %v5988
    %v6331 = vunpack.c.h.b16 %v5988
    %v6332 = vunpack.c.l.b16 %v5989
    %v6333 = vunpack.c.h.b16 %v5989
    %v6334 = vunpack.c.l.b16 %v5990
    %v6335 = vunpack.c.h.b16 %v5990
    %v6336 = vunpack.c.l.b16 %v5991
    %v6337 = vunpack.c.h.b16 %v5991
    %v6338 = vunpack.c.l.b16 %v5992
    %v6339 = vunpack.c.h.b16 %v5992
    %v6340 = vunpack.c.l.b16 %v5993
    %v6341 = vunpack.c.h.b16 %v5993
    %v6342 = vunpack.c.l.b16 %v5994
    %v6343 = vunpack.c.h.b16 %v5994
    %v6344 = vunpack.c.l.b16 %v5995
    %v6345 = vunpack.c.h.b16 %v5995
    %v6346 = vunpack.c.l.b16 %v5996
    %v6347 = vunpack.c.h.b16 %v5996
    %v6348 = vunpack.c.l.b16 %v5997
    %v6349 = vunpack.c.h.b16 %v5997
    %v6350 = vunpack.c.l.b16 %v5998
    %v6351 = vunpack.c.h.b16 %v5998
    %v6352 = vunpack.c.l.b16 %v5999
    %v6353 = vunpack.c.h.b16 %v5999
    %v6354 = vunpack.c.l.b16 %v6000
    %v6355 = vunpack.c.h.b16 %v6000
    %v6356 = vunpack.c.l.b16 %v6001
    %v6357 = vunpack.c.h.b16 %v6001
    %v6358 = vunpack.c.l.b16 %v6002
    %v6359 = vunpack.c.h.b16 %v6002
    %v6360 = vunpack.c.l.b16 %v6003
    %v6361 = vunpack.c.h.b16 %v6003
    %v6362 = vunpack.c.l.b16 %v6004
    %v6363 = vunpack.c.h.b16 %v6004
    %v6364 = vunpack.c.l.b16 %v6005
    %v6365 = vunpack.c.h.b16 %v6005
    %v6366 = vunpack.c.l.b16 %v6006
    %v6367 = vunpack.c.h.b16 %v6006
    %v6368 = vunpack.c.l.b16 %v6007
    %v6369 = vunpack.c.h.b16 %v6007
    %v6370 = vunpack.c.l.b16 %v6008
    %v6371 = vunpack.c.h.b16 %v6008
    %v6372 = vunpack.c.l.b16 %v6009
    %v6373 = vunpack.c.h.b16 %v6009
    %v6374 = vunpack.c.l.b16 %v6010
    %v6375 = vunpack.c.h.b16 %v6010
    %v6376 = vunpack.c.l.b16 %v6011
    %v6377 = vunpack.c.h.b16 %v6011
    %v6378 = vunpack.c.l.b16 %v6012
    %v6379 = vunpack.c.h.b16 %v6012
    %v6380 = vunpack.c.l.b16 %v6013
    %v6381 = vunpack.c.h.b16 %v6013
    %v6382 = vunpack.c.l.b16 %v6014
    %v6383 = vunpack.c.h.b16 %v6014
    %v6384 = vunpack.c.l.b16 %v6015
    %v6385 = vunpack.c.h.b16 %v6015
    %v6386 = vunpack.c.l.b16 %v6016
    %v6387 = vunpack.c.h.b16 %v6016
    %v6388 = vunpack.c.l.b16 %v6017
    %v6389 = vunpack.c.h.b16 %v6017
    %v6390 = vunpack.c.l.b16 %v6018
    %v6391 = vunpack.c.h.b16 %v6018
    %v6392 = vunpack.c.l.b16 %v6019
    %v6393 = vunpack.c.h.b16 %v6019
    %v6394 = vunpack.c.l.b16 %v6020
    %v6395 = vunpack.c.h.b16 %v6020
    %v6396 = vunpack.c.l.b16 %v6021
    %v6397 = vunpack.c.h.b16 %v6021
    %v6398 = vunpack.c.l.b16 %v6022
    %v6399 = vunpack.c.h.b16 %v6022
    %v6400 = vunpack.c.l.b16 %v6023
    %v6401 = vunpack.c.h.b16 %v6023
    %v6402 = vunpack.c.l.b16 %v6024
    %v6403 = vunpack.c.h.b16 %v6024
    %v6404 = vunpack.c.l.b16 %v6025
    %v6405 = vunpack.c.h.b16 %v6025
    %v6406 = vunpack.c.l.b16 %v6026
    %v6407 = vunpack.c.h.b16 %v6026
    %v6408 = vunpack.c.l.b16 %v6027
    %v6409 = vunpack.c.h.b16 %v6027
    %v6410 = vunpack.c.l.b16 %v6028
    %v6411 = vunpack.c.h.b16 %v6028
    %v6412 = vunpack.c.l.b16 %v6029
    %v6413 = vunpack.c.h.b16 %v6029
    %v6414 = vpack.c.b16 %v6166, %v6158
    %v6415 = vpack.c.b16 %v6167, %v6159
    %v6416 = vpack.c.b16 %v6168, %v6160
    %v6417 = vpack.c.b16 %v6169, %v6161
    %v6418 = vpack.c.b16 %v6170, %v6162
    %v6419 = vpack.c.b16 %v6171, %v6163
    %v6420 = vpack.c.b16 %v6172, %v6164
    %v6421 = vpack.c.b16 %v6173, %v6165
    %v6422 = vpack.c.b16 %v6182, %v6174
    %v6423 = vpack.c.b16 %v6183, %v6175
    %v6424 = vpack.c.b16 %v6184, %v6176
    %v6425 = vpack.c.b16 %v6185, %v6177
    %v6426 = vpack.c.b16 %v6186, %v6178
    %v6427 = vpack.c.b16 %v6187, %v6179
    %v6428 = vpack.c.b16 %v6188, %v6180
    %v6429 = vpack.c.b16 %v6189, %v6181
    %v6430 = vpack.c.b16 %v6198, %v6190
    %v6431 = vpack.c.b16 %v6199, %v6191
    %v6432 = vpack.c.b16 %v6200, %v6192
    %v6433 = vpack.c.b16 %v6201, %v6193
    %v6434 = vpack.c.b16 %v6202, %v6194
    %v6435 = vpack.c.b16 %v6203, %v6195
    %v6436 = vpack.c.b16 %v6204, %v6196
    %v6437 = vpack.c.b16 %v6205, %v6197
    %v6438 = vpack.c.b16 %v6214, %v6206
    %v6439 = vpack.c.b16 %v6215, %v6207
    %v6440 = vpack.c.b16 %v6216, %v6208
    %v6441 = vpack.c.b16 %v6217, %v6209
    %v6442 = vpack.c.b16 %v6218, %v6210
    %v6443 = vpack.c.b16 %v6219, %v6211
    %v6444 = vpack.c.b16 %v6220, %v6212
    %v6445 = vpack.c.b16 %v6221, %v6213
    %v6446 = vpack.c.b16 %v6230, %v6222
    %v6447 = vpack.c.b16 %v6231, %v6223
    %v6448 = vpack.c.b16 %v6232, %v6224
    %v6449 = vpack.c.b16 %v6233, %v6225
    %v6450 = vpack.c.b16 %v6234, %v6226
    %v6451 = vpack.c.b16 %v6235, %v6227
    %v6452 = vpack.c.b16 %v6236, %v6228
    %v6453 = vpack.c.b16 %v6237, %v6229
    %v6454 = vpack.c.b16 %v6246, %v6238
    %v6455 = vpack.c.b16 %v6247, %v6239
    %v6456 = vpack.c.b16 %v6248, %v6240
    %v6457 = vpack.c.b16 %v6249, %v6241
    %v6458 = vpack.c.b16 %v6250, %v6242
    %v6459 = vpack.c.b16 %v6251, %v6243
    %v6460 = vpack.c.b16 %v6252, %v6244
    %v6461 = vpack.c.b16 %v6253, %v6245
    %v6462 = vpack.c.b16 %v6262, %v6254
    %v6463 = vpack.c.b16 %v6263, %v6255
    %v6464 = vpack.c.b16 %v6264, %v6256
    %v6465 = vpack.c.b16 %v6265, %v6257
    %v6466 = vpack.c.b16 %v6266, %v6258
    %v6467 = vpack.c.b16 %v6267, %v6259
    %v6468 = vpack.c.b16 %v6268, %v6260
    %v6469 = vpack.c.b16 %v6269, %v6261
    %v6470 = vpack.c.b16 %v6278, %v6270
    %v6471 = vpack.c.b16 %v6279, %v6271
    %v6472 = vpack.c.b16 %v6280, %v6272
    %v6473 = vpack.c.b16 %v6281, %v6273
    %v6474 = vpack.c.b16 %v6282, %v6274
    %v6475 = vpack.c.b16 %v6283, %v6275
    %v6476 = vpack.c.b16 %v6284, %v6276
    %v6477 = vpack.c.b16 %v6285, %v6277
    %v6478 = vpack.c.b16 %v6294, %v6286
    %v6479 = vpack.c.b16 %v6295, %v6287
    %v6480 = vpack.c.b16 %v6296, %v6288
    %v6481 = vpack.c.b16 %v6297, %v6289
    %v6482 = vpack.c.b16 %v6298, %v6290
    %v6483 = vpack.c.b16 %v6299, %v6291
    %v6484 = vpack.c.b16 %v6300, %v6292
    %v6485 = vpack.c.b16 %v6301, %v6293
    %v6486 = vpack.c.b16 %v6310, %v6302
    %v6487 = vpack.c.b16 %v6311, %v6303
    %v6488 = vpack.c.b16 %v6312, %v6304
    %v6489 = vpack.c.b16 %v6313, %v6305
    %v6490 = vpack.c.b16 %v6314, %v6306
    %v6491 = vpack.c.b16 %v6315, %v6307
    %v6492 = vpack.c.b16 %v6316, %v6308
    %v6493 = vpack.c.b16 %v6317, %v6309
    %v6494 = vpack.c.b16 %v6326, %v6318
    %v6495 = vpack.c.b16 %v6327, %v6319
    %v6496 = vpack.c.b16 %v6328, %v6320
    %v6497 = vpack.c.b16 %v6329, %v6321
    %v6498 = vpack.c.b16 %v6330, %v6322
    %v6499 = vpack.c.b16 %v6331, %v6323
    %v6500 = vpack.c.b16 %v6332, %v6324
    %v6501 = vpack.c.b16 %v6333, %v6325
    %v6502 = vpack.c.b16 %v6342, %v6334
    %v6503 = vpack.c.b16 %v6343, %v6335
    %v6504 = vpack.c.b16 %v6344, %v6336
    %v6505 = vpack.c.b16 %v6345, %v6337
    %v6506 = vpack.c.b16 %v6346, %v6338
    %v6507 = vpack.c.b16 %v6347, %v6339
    %v6508 = vpack.c.b16 %v6348, %v6340
    %v6509 = vpack.c.b16 %v6349, %v6341
    %v6510 = vpack.c.b16 %v6358, %v6350
    %v6511 = vpack.c.b16 %v6359, %v6351
    %v6512 = vpack.c.b16 %v6360, %v6352
    %v6513 = vpack.c.b16 %v6361, %v6353
    %v6514 = vpack.c.b16 %v6362, %v6354
    %v6515 = vpack.c.b16 %v6363, %v6355
    %v6516 = vpack.c.b16 %v6364, %v6356
    %v6517 = vpack.c.b16 %v6365, %v6357
    %v6518 = vpack.c.b16 %v6374, %v6366
    %v6519 = vpack.c.b16 %v6375, %v6367
    %v6520 = vpack.c.b16 %v6376, %v6368
    %v6521 = vpack.c.b16 %v6377, %v6369
    %v6522 = vpack.c.b16 %v6378, %v6370
    %v6523 = vpack.c.b16 %v6379, %v6371
    %v6524 = vpack.c.b16 %v6380, %v6372
    %v6525 = vpack.c.b16 %v6381, %v6373
    %v6526 = vpack.c.b16 %v6390, %v6382
    %v6527 = vpack.c.b16 %v6391, %v6383
    %v6528 = vpack.c.b16 %v6392, %v6384
    %v6529 = vpack.c.b16 %v6393, %v6385
    %v6530 = vpack.c.b16 %v6394, %v6386
    %v6531 = vpack.c.b16 %v6395, %v6387
    %v6532 = vpack.c.b16 %v6396, %v6388
    %v6533 = vpack.c.b16 %v6397, %v6389
    %v6534 = vpack.c.b16 %v6406, %v6398
    %v6535 = vpack.c.b16 %v6407, %v6399
    %v6536 = vpack.c.b16 %v6408, %v6400
    %v6537 = vpack.c.b16 %v6409, %v6401
    %v6538 = vpack.c.b16 %v6410, %v6402
    %v6539 = vpack.c.b16 %v6411, %v6403
    %v6540 = vpack.c.b16 %v6412, %v6404
    %v6541 = vpack.c.b16 %v6413, %v6405
    %6670 = vmatprep.subr.bf16.mxu0 %v6415
    %6671 = vmatpush1.bf16.msra.mxu0 %v6414
    %6672 = vmatprep.subr.bf16.mxu0 %v6423
    %6673 = vmatpush1.bf16.msra.mxu0 %v6422
    %6674 = vmatprep.subr.bf16.mxu0 %v6431
    %6675 = vmatpush1.bf16.msra.mxu0 %v6430
    %6676 = vmatprep.subr.bf16.mxu0 %v6439
    %6677 = vmatpush1.bf16.msra.mxu0 %v6438
    %6678 = vmatprep.subr.bf16.mxu0 %v6447
    %6679 = vmatpush1.bf16.msra.mxu0 %v6446
    %6680 = vmatprep.subr.bf16.mxu0 %v6455
    %6681 = vmatpush1.bf16.msra.mxu0 %v6454
    %6682 = vmatprep.subr.bf16.mxu0 %v6463
    %6683 = vmatpush1.bf16.msra.mxu0 %v6462
    %6684 = vmatprep.subr.bf16.mxu0 %v6471
    %6685 = vmatpush1.bf16.msra.mxu0 %v6470
    %6686 = vmatprep.subr.bf16.mxu0 %v6479
    %6687 = vmatpush1.bf16.msra.mxu0 %v6478
    %6688 = vmatprep.subr.bf16.mxu0 %v6487
    %6689 = vmatpush1.bf16.msra.mxu0 %v6486
    %6690 = vmatprep.subr.bf16.mxu0 %v6495
    %6691 = vmatpush1.bf16.msra.mxu0 %v6494
    %6692 = vmatprep.subr.bf16.mxu0 %v6503
    %6693 = vmatpush1.bf16.msra.mxu0 %v6502
    %6694 = vmatprep.subr.bf16.mxu0 %v6511
    %6695 = vmatpush1.bf16.msra.mxu0 %v6510
    %6696 = vmatprep.subr.bf16.mxu0 %v6519
    %6697 = vmatpush1.bf16.msra.mxu0 %v6518
    %6698 = vmatprep.subr.bf16.mxu0 %v6527
    %6699 = vmatpush1.bf16.msra.mxu0 %v6526
    %6700 = vmatprep.subr.bf16.mxu0 %v6535
    %6701 = vmatpush1.bf16.msra.mxu0 %v6534
    %6702 = vmatprep.mubr.bf16.mxu0 %v5901
    %6703 = vmatmul.mubr.bf16.gmra.mrb[0].mxu0 %v5900
    %v6704 = vpop.f32.mrb[0].mxu0
    %v6705 = vadd.f32 0.0, %v6704
    %v6706 = vpop.f32.mrb[0].mxu0
    %v6707 = vadd.f32 0.0, %v6706
    %v6708 = vpop.f32.mrb[0].mxu0
    %v6709 = vpop.f32.mrb[0].mxu0
    %6710 = vdwg.mxu0
    %6711 = vmatprep.subr.bf16.mxu0 %v6417
    %6712 = vmatpush1.bf16.msra.mxu0 %v6416
    %6713 = vmatprep.subr.bf16.mxu0 %v6425
    %6714 = vmatpush1.bf16.msra.mxu0 %v6424
    %6715 = vmatprep.subr.bf16.mxu0 %v6433
    %6716 = vmatpush1.bf16.msra.mxu0 %v6432
    %6717 = vmatprep.subr.bf16.mxu0 %v6441
    %6718 = vmatpush1.bf16.msra.mxu0 %v6440
    %6719 = vmatprep.subr.bf16.mxu0 %v6449
    %6720 = vmatpush1.bf16.msra.mxu0 %v6448
    %6721 = vmatprep.subr.bf16.mxu0 %v6457
    %6722 = vmatpush1.bf16.msra.mxu0 %v6456
    %6723 = vmatprep.subr.bf16.mxu0 %v6465
    %6724 = vmatpush1.bf16.msra.mxu0 %v6464
    %6725 = vmatprep.subr.bf16.mxu0 %v6473
    %6726 = vmatpush1.bf16.msra.mxu0 %v6472
    %6727 = vmatprep.subr.bf16.mxu0 %v6481
    %6728 = vmatpush1.bf16.msra.mxu0 %v6480
    %6729 = vmatprep.subr.bf16.mxu0 %v6489
    %6730 = vmatpush1.bf16.msra.mxu0 %v6488
    %6731 = vmatprep.subr.bf16.mxu0 %v6497
    %6732 = vmatpush1.bf16.msra.mxu0 %v6496
    %6733 = vmatprep.subr.bf16.mxu0 %v6505
    %6734 = vmatpush1.bf16.msra.mxu0 %v6504
    %6735 = vmatprep.subr.bf16.mxu0 %v6513
    %6736 = vmatpush1.bf16.msra.mxu0 %v6512
    %6737 = vmatprep.subr.bf16.mxu0 %v6521
    %6738 = vmatpush1.bf16.msra.mxu0 %v6520
    %6739 = vmatprep.subr.bf16.mxu0 %v6529
    %6740 = vmatpush1.bf16.msra.mxu0 %v6528
    %6741 = vmatprep.subr.bf16.mxu0 %v6537
    %6742 = vmatpush1.bf16.msra.mxu0 %v6536
    %6743 = vmatprep.mubr.bf16.mxu0 %v5901
    %6744 = vmatmul.mubr.bf16.gmra.mrb[0].mxu0 %v5900
    %v6745 = vpop.f32.mrb[0].mxu0
    %v6746 = vadd.f32 0.0, %v6745
    %v6747 = vpop.f32.mrb[0].mxu0
    %v6748 = vadd.f32 0.0, %v6747
    %v6749 = vpop.f32.mrb[0].mxu0
    %v6750 = vpop.f32.mrb[0].mxu0
    %6751 = vdwg.mxu0
    %6752 = vmatprep.subr.bf16.mxu0 %v6419
    %6753 = vmatpush1.bf16.msra.mxu0 %v6418
    %6754 = vmatprep.subr.bf16.mxu0 %v6427
    %6755 = vmatpush1.bf16.msra.mxu0 %v6426
    %6756 = vmatprep.subr.bf16.mxu0 %v6435
    %6757 = vmatpush1.bf16.msra.mxu0 %v6434
    %6758 = vmatprep.subr.bf16.mxu0 %v6443
    %6759 = vmatpush1.bf16.msra.mxu0 %v6442
    %6760 = vmatprep.subr.bf16.mxu0 %v6451
    %6761 = vmatpush1.bf16.msra.mxu0 %v6450
    %6762 = vmatprep.subr.bf16.mxu0 %v6459
    %6763 = vmatpush1.bf16.msra.mxu0 %v6458
    %6764 = vmatprep.subr.bf16.mxu0 %v6467
    %6765 = vmatpush1.bf16.msra.mxu0 %v6466
    %6766 = vmatprep.subr.bf16.mxu0 %v6475
    %6767 = vmatpush1.bf16.msra.mxu0 %v6474
    %6768 = vmatprep.subr.bf16.mxu0 %v6483
    %6769 = vmatpush1.bf16.msra.mxu0 %v6482
    %6770 = vmatprep.subr.bf16.mxu0 %v6491
    %6771 = vmatpush1.bf16.msra.mxu0 %v6490
    %6772 = vmatprep.subr.bf16.mxu0 %v6499
    %6773 = vmatpush1.bf16.msra.mxu0 %v6498
    %6774 = vmatprep.subr.bf16.mxu0 %v6507
    %6775 = vmatpush1.bf16.msra.mxu0 %v6506
    %6776 = vmatprep.subr.bf16.mxu0 %v6515
    %6777 = vmatpush1.bf16.msra.mxu0 %v6514
    %6778 = vmatprep.subr.bf16.mxu0 %v6523
    %6779 = vmatpush1.bf16.msra.mxu0 %v6522
    %6780 = vmatprep.subr.bf16.mxu0 %v6531
    %6781 = vmatpush1.bf16.msra.mxu0 %v6530
    %6782 = vmatprep.subr.bf16.mxu0 %v6539
    %6783 = vmatpush1.bf16.msra.mxu0 %v6538
    %6784 = vmatprep.mubr.bf16.mxu0 %v5901
    %6785 = vmatmul.mubr.bf16.gmra.mrb[0].mxu0 %v5900
    %v6786 = vpop.f32.mrb[0].mxu0
    %v6787 = vadd.f32 0.0, %v6786
    %v6788 = vpop.f32.mrb[0].mxu0
    %v6789 = vadd.f32 0.0, %v6788
    %v6790 = vpop.f32.mrb[0].mxu0
    %v6791 = vpop.f32.mrb[0].mxu0
    %6792 = vdwg.mxu0
    %6793 = vmatprep.subr.bf16.mxu0 %v6421
    %6794 = vmatpush1.bf16.msra.mxu0 %v6420
    %6795 = vmatprep.subr.bf16.mxu0 %v6429
    %6796 = vmatpush1.bf16.msra.mxu0 %v6428
    %6797 = vmatprep.subr.bf16.mxu0 %v6437
    %6798 = vmatpush1.bf16.msra.mxu0 %v6436
    %6799 = vmatprep.subr.bf16.mxu0 %v6445
    %6800 = vmatpush1.bf16.msra.mxu0 %v6444
    %6801 = vmatprep.subr.bf16.mxu0 %v6453
    %6802 = vmatpush1.bf16.msra.mxu0 %v6452
    %6803 = vmatprep.subr.bf16.mxu0 %v6461
    %6804 = vmatpush1.bf16.msra.mxu0 %v6460
    %6805 = vmatprep.subr.bf16.mxu0 %v6469
    %6806 = vmatpush1.bf16.msra.mxu0 %v6468
    %6807 = vmatprep.subr.bf16.mxu0 %v6477
    %6808 = vmatpush1.bf16.msra.mxu0 %v6476
    %6809 = vmatprep.subr.bf16.mxu0 %v6485
    %6810 = vmatpush1.bf16.msra.mxu0 %v6484
    %6811 = vmatprep.subr.bf16.mxu0 %v6493
    %6812 = vmatpush1.bf16.msra.mxu0 %v6492
    %6813 = vmatprep.subr.bf16.mxu0 %v6501
    %6814 = vmatpush1.bf16.msra.mxu0 %v6500
    %6815 = vmatprep.subr.bf16.mxu0 %v6509
    %6816 = vmatpush1.bf16.msra.mxu0 %v6508
    %6817 = vmatprep.subr.bf16.mxu0 %v6517
    %6818 = vmatpush1.bf16.msra.mxu0 %v6516
    %6819 = vmatprep.subr.bf16.mxu0 %v6525
    %6820 = vmatpush1.bf16.msra.mxu0 %v6524
    %6821 = vmatprep.subr.bf16.mxu0 %v6533
    %6822 = vmatpush1.bf16.msra.mxu0 %v6532
    %6823 = vmatprep.subr.bf16.mxu0 %v6541
    %6824 = vmatpush1.bf16.msra.mxu0 %v6540
    %6825 = vmatprep.mubr.bf16.mxu0 %v5901
    %6826 = vmatmul.mubr.bf16.gmra.mrb[0].mxu0 %v5900
    %v6827 = vpop.f32.mrb[0].mxu0
    %v6828 = vadd.f32 0.0, %v6827
    %v6829 = vpop.f32.mrb[0].mxu0
    %v6830 = vadd.f32 0.0, %v6829
    %v6831 = vpop.f32.mrb[0].mxu0
    %v6832 = vpop.f32.mrb[0].mxu0
    %6833 = vdwg.mxu0
    %v6834 = vadd.f32 %v5892, %v6705
    %v6835 = vadd.f32 %v5893, %v6707
    %v6836 = vadd.f32 %v5894, %v6746
    %v6837 = vadd.f32 %v5895, %v6748
    %v6838 = vadd.f32 %v5896, %v6787
    %v6839 = vadd.f32 %v5897, %v6789
    %v6840 = vadd.f32 %v5898, %v6828
    %v6841 = vadd.f32 %v5899, %v6830
    %v6842 = vxor.u32 %v6834, 2147483648
    %v6843 = vxor.u32 %v6835, 2147483648
    %v6844 = vxor.u32 %v6836, 2147483648
    %v6845 = vxor.u32 %v6837, 2147483648
    %v6846 = vxor.u32 %v6838, 2147483648
    %v6847 = vxor.u32 %v6839, 2147483648
    %v6848 = vmul.f32 %v6842, 1.442695
    %v6849 = vpow.pop %v6848
    %v6850 = vmul.f32 %v6843, 1.442695
    %v6851 = vpow.pop %v6850
    %v6852 = vmul.f32 %v6844, 1.442695
    %v6853 = vpow.pop %v6852
    %v6854 = vmul.f32 %v6845, 1.442695
    %v6855 = vpow.pop %v6854
    %v6856 = vmul.f32 %v6846, 1.442695
    %v6857 = vpow.pop %v6856
    %v6858 = vmul.f32 %v6847, 1.442695
    %v6859 = vpow.pop %v6858
    %v6860 = vadd.f32 %v6849, 1.0
    %v6861 = vadd.f32 %v6851, 1.0
    %v6862 = vadd.f32 %v6853, 1.0
    %v6863 = vadd.f32 %v6855, 1.0
    %v6864 = vadd.f32 %v6857, 1.0
    %v6865 = vadd.f32 %v6859, 1.0
    %v6866 = vrcp.pop %v6860
    %v6867 = vmul.f32 1.0, %v6866
    %v6868 = vrcp.pop %v6861
    %v6869 = vmul.f32 1.0, %v6868
    %v6870 = vrcp.pop %v6862
    %v6871 = vmul.f32 1.0, %v6870
    %v6872 = vrcp.pop %v6863
    %v6873 = vmul.f32 1.0, %v6872
    %v6874 = vrcp.pop %v6864
    %v6875 = vmul.f32 1.0, %v6874
    %v6876 = vrcp.pop %v6865
    %v6877 = vmul.f32 1.0, %v6876
    %v6878 = vtanh.pop %v6840
    %v6879 = vtanh.pop %v6841
    %v6880 = vmul.f32 %v6871, %v5882
    %v6881 = vmul.f32 %v6873, %v5883
    %v6882 = vmul.f32 %v6867, %v6878
    %v6883 = vmul.f32 %v6869, %v6879
    %v6884 = vadd.f32 %v6880, %v6882
    %v6885 = vadd.f32 %v6881, %v6883
    %v6886 = vtanh.pop %v6884
    %v6887 = vtanh.pop %v6885
    %v6888 = vmul.f32 %v6875, %v6886
    %v6889 = vmul.f32 %v6877, %v6887
    %s6890 = scalar_lea.vmem [#allocation5], 80
    %6891 = vst [vmem:[%s6890] sm:$0xff] %v6888
    %6892 = vst [vmem:[%s6890 + $0x8] sm:$0xff] %v6889
    %s6893 = scalar_lea.vmem [#allocation4], 384
    %v6894 = vld [vmem:[%s6893] sm:$0xff]
    %v6895 = vld [vmem:[%s6893 + $0x8] sm:$0xff]
    %v6896 = vld [vmem:[%s6893 + $0x10] sm:$0xff]
    %v6897 = vld [vmem:[%s6893 + $0x18] sm:$0xff]
    %v6898 = vld [vmem:[%s6893 + $0x20] sm:$0xff]
    %v6899 = vld [vmem:[%s6893 + $0x28] sm:$0xff]
    %v6900 = vld [vmem:[%s6893 + $0x30] sm:$0xff]
    %v6901 = vld [vmem:[%s6893 + $0x38] sm:$0xff]
    %v6902 = vpack.c.bf16 %v6888, %v6888
    %v6903 = vpack.c.bf16 %v6889, %v6889
    %v6904 = vld [vmem:[#allocation9] sm:$0xff]
    %v6905 = vld [vmem:[#allocation9 + $0x8] sm:$0xff]
    %v6906 = vld [vmem:[#allocation9 + $0x10] sm:$0xff]
    %v6907 = vld [vmem:[#allocation9 + $0x18] sm:$0xff]
    %v6908 = vld [vmem:[#allocation9 + $0x20] sm:$0xff]
    %v6909 = vld [vmem:[#allocation9 + $0x28] sm:$0xff]
    %v6910 = vld [vmem:[#allocation9 + $0x30] sm:$0xff]
    %v6911 = vld [vmem:[#allocation9 + $0x38] sm:$0xff]
    %v6912 = vld [vmem:[#allocation9 + $0x40] sm:$0xff]
    %v6913 = vld [vmem:[#allocation9 + $0x48] sm:$0xff]
    %v6914 = vld [vmem:[#allocation9 + $0x50] sm:$0xff]
    %v6915 = vld [vmem:[#allocation9 + $0x58] sm:$0xff]
    %v6916 = vld [vmem:[#allocation9 + $0x60] sm:$0xff]
    %v6917 = vld [vmem:[#allocation9 + $0x68] sm:$0xff]
    %v6918 = vld [vmem:[#allocation9 + $0x70] sm:$0xff]
    %v6919 = vld [vmem:[#allocation9 + $0x78] sm:$0xff]
    %v6920 = vld [vmem:[#allocation9 + $0x80] sm:$0xff]
    %v6921 = vld [vmem:[#allocation9 + $0x88] sm:$0xff]
    %v6922 = vld [vmem:[#allocation9 + $0x90] sm:$0xff]
    %v6923 = vld [vmem:[#allocation9 + $0x98] sm:$0xff]
    %v6924 = vld [vmem:[#allocation9 + $0xa0] sm:$0xff]
    %v6925 = vld [vmem:[#allocation9 + $0xa8] sm:$0xff]
    %v6926 = vld [vmem:[#allocation9 + $0xb0] sm:$0xff]
    %v6927 = vld [vmem:[#allocation9 + $0xb8] sm:$0xff]
    %v6928 = vld [vmem:[#allocation9 + $0xc0] sm:$0xff]
    %v6929 = vld [vmem:[#allocation9 + $0xc8] sm:$0xff]
    %v6930 = vld [vmem:[#allocation9 + $0xd0] sm:$0xff]
    %v6931 = vld [vmem:[#allocation9 + $0xd8] sm:$0xff]
    %v6932 = vld [vmem:[#allocation9 + $0xe0] sm:$0xff]
    %v6933 = vld [vmem:[#allocation9 + $0xe8] sm:$0xff]
    %v6934 = vld [vmem:[#allocation9 + $0xf0] sm:$0xff]
    %v6935 = vld [vmem:[#allocation9 + $0xf8] sm:$0xff]
    %v6936 = vld [vmem:[#allocation9 + $0x100] sm:$0xff]
    %v6937 = vld [vmem:[#allocation9 + $0x108] sm:$0xff]
    %v6938 = vld [vmem:[#allocation9 + $0x110] sm:$0xff]
    %v6939 = vld [vmem:[#allocation9 + $0x118] sm:$0xff]
    %v6940 = vld [vmem:[#allocation9 + $0x120] sm:$0xff]
    %v6941 = vld [vmem:[#allocation9 + $0x128] sm:$0xff]
    %v6942 = vld [vmem:[#allocation9 + $0x130] sm:$0xff]
    %v6943 = vld [vmem:[#allocation9 + $0x138] sm:$0xff]
    %v6944 = vld [vmem:[#allocation9 + $0x140] sm:$0xff]
    %v6945 = vld [vmem:[#allocation9 + $0x148] sm:$0xff]
    %v6946 = vld [vmem:[#allocation9 + $0x150] sm:$0xff]
    %v6947 = vld [vmem:[#allocation9 + $0x158] sm:$0xff]
    %v6948 = vld [vmem:[#allocation9 + $0x160] sm:$0xff]
    %v6949 = vld [vmem:[#allocation9 + $0x168] sm:$0xff]
    %v6950 = vld [vmem:[#allocation9 + $0x170] sm:$0xff]
    %v6951 = vld [vmem:[#allocation9 + $0x178] sm:$0xff]
    %v6952 = vld [vmem:[#allocation9 + $0x180] sm:$0xff]
    %v6953 = vld [vmem:[#allocation9 + $0x188] sm:$0xff]
    %v6954 = vld [vmem:[#allocation9 + $0x190] sm:$0xff]
    %v6955 = vld [vmem:[#allocation9 + $0x198] sm:$0xff]
    %v6956 = vld [vmem:[#allocation9 + $0x1a0] sm:$0xff]
    %v6957 = vld [vmem:[#allocation9 + $0x1a8] sm:$0xff]
    %v6958 = vld [vmem:[#allocation9 + $0x1b0] sm:$0xff]
    %v6959 = vld [vmem:[#allocation9 + $0x1b8] sm:$0xff]
    %v6960 = vld [vmem:[#allocation9 + $0x1c0] sm:$0xff]
    %v6961 = vld [vmem:[#allocation9 + $0x1c8] sm:$0xff]
    %v6962 = vld [vmem:[#allocation9 + $0x1d0] sm:$0xff]
    %v6963 = vld [vmem:[#allocation9 + $0x1d8] sm:$0xff]
    %v6964 = vld [vmem:[#allocation9 + $0x1e0] sm:$0xff]
    %v6965 = vld [vmem:[#allocation9 + $0x1e8] sm:$0xff]
    %v6966 = vld [vmem:[#allocation9 + $0x1f0] sm:$0xff]
    %v6967 = vld [vmem:[#allocation9 + $0x1f8] sm:$0xff]
    %v6968 = vld [vmem:[#allocation9 + $0x200] sm:$0xff]
    %v6969 = vld [vmem:[#allocation9 + $0x208] sm:$0xff]
    %v6970 = vld [vmem:[#allocation9 + $0x210] sm:$0xff]
    %v6971 = vld [vmem:[#allocation9 + $0x218] sm:$0xff]
    %v6972 = vld [vmem:[#allocation9 + $0x220] sm:$0xff]
    %v6973 = vld [vmem:[#allocation9 + $0x228] sm:$0xff]
    %v6974 = vld [vmem:[#allocation9 + $0x230] sm:$0xff]
    %v6975 = vld [vmem:[#allocation9 + $0x238] sm:$0xff]
    %v6976 = vld [vmem:[#allocation9 + $0x240] sm:$0xff]
    %v6977 = vld [vmem:[#allocation9 + $0x248] sm:$0xff]
    %v6978 = vld [vmem:[#allocation9 + $0x250] sm:$0xff]
    %v6979 = vld [vmem:[#allocation9 + $0x258] sm:$0xff]
    %v6980 = vld [vmem:[#allocation9 + $0x260] sm:$0xff]
    %v6981 = vld [vmem:[#allocation9 + $0x268] sm:$0xff]
    %v6982 = vld [vmem:[#allocation9 + $0x270] sm:$0xff]
    %v6983 = vld [vmem:[#allocation9 + $0x278] sm:$0xff]
    %v6984 = vld [vmem:[#allocation9 + $0x280] sm:$0xff]
    %v6985 = vld [vmem:[#allocation9 + $0x288] sm:$0xff]
    %v6986 = vld [vmem:[#allocation9 + $0x290] sm:$0xff]
    %v6987 = vld [vmem:[#allocation9 + $0x298] sm:$0xff]
    %v6988 = vld [vmem:[#allocation9 + $0x2a0] sm:$0xff]
    %v6989 = vld [vmem:[#allocation9 + $0x2a8] sm:$0xff]
    %v6990 = vld [vmem:[#allocation9 + $0x2b0] sm:$0xff]
    %v6991 = vld [vmem:[#allocation9 + $0x2b8] sm:$0xff]
    %v6992 = vld [vmem:[#allocation9 + $0x2c0] sm:$0xff]
    %v6993 = vld [vmem:[#allocation9 + $0x2c8] sm:$0xff]
    %v6994 = vld [vmem:[#allocation9 + $0x2d0] sm:$0xff]
    %v6995 = vld [vmem:[#allocation9 + $0x2d8] sm:$0xff]
    %v6996 = vld [vmem:[#allocation9 + $0x2e0] sm:$0xff]
    %v6997 = vld [vmem:[#allocation9 + $0x2e8] sm:$0xff]
    %v6998 = vld [vmem:[#allocation9 + $0x2f0] sm:$0xff]
    %v6999 = vld [vmem:[#allocation9 + $0x2f8] sm:$0xff]
    %v7000 = vld [vmem:[#allocation9 + $0x300] sm:$0xff]
    %v7001 = vld [vmem:[#allocation9 + $0x308] sm:$0xff]
    %v7002 = vld [vmem:[#allocation9 + $0x310] sm:$0xff]
    %v7003 = vld [vmem:[#allocation9 + $0x318] sm:$0xff]
    %v7004 = vld [vmem:[#allocation9 + $0x320] sm:$0xff]
    %v7005 = vld [vmem:[#allocation9 + $0x328] sm:$0xff]
    %v7006 = vld [vmem:[#allocation9 + $0x330] sm:$0xff]
    %v7007 = vld [vmem:[#allocation9 + $0x338] sm:$0xff]
    %v7008 = vld [vmem:[#allocation9 + $0x340] sm:$0xff]
    %v7009 = vld [vmem:[#allocation9 + $0x348] sm:$0xff]
    %v7010 = vld [vmem:[#allocation9 + $0x350] sm:$0xff]
    %v7011 = vld [vmem:[#allocation9 + $0x358] sm:$0xff]
    %v7012 = vld [vmem:[#allocation9 + $0x360] sm:$0xff]
    %v7013 = vld [vmem:[#allocation9 + $0x368] sm:$0xff]
    %v7014 = vld [vmem:[#allocation9 + $0x370] sm:$0xff]
    %v7015 = vld [vmem:[#allocation9 + $0x378] sm:$0xff]
    %v7016 = vld [vmem:[#allocation9 + $0x380] sm:$0xff]
    %v7017 = vld [vmem:[#allocation9 + $0x388] sm:$0xff]
    %v7018 = vld [vmem:[#allocation9 + $0x390] sm:$0xff]
    %v7019 = vld [vmem:[#allocation9 + $0x398] sm:$0xff]
    %v7020 = vld [vmem:[#allocation9 + $0x3a0] sm:$0xff]
    %v7021 = vld [vmem:[#allocation9 + $0x3a8] sm:$0xff]
    %v7022 = vld [vmem:[#allocation9 + $0x3b0] sm:$0xff]
    %v7023 = vld [vmem:[#allocation9 + $0x3b8] sm:$0xff]
    %v7024 = vld [vmem:[#allocation9 + $0x3c0] sm:$0xff]
    %v7025 = vld [vmem:[#allocation9 + $0x3c8] sm:$0xff]
    %v7026 = vld [vmem:[#allocation9 + $0x3d0] sm:$0xff]
    %v7027 = vld [vmem:[#allocation9 + $0x3d8] sm:$0xff]
    %v7028 = vld [vmem:[#allocation9 + $0x3e0] sm:$0xff]
    %v7029 = vld [vmem:[#allocation9 + $0x3e8] sm:$0xff]
    %v7030 = vld [vmem:[#allocation9 + $0x3f0] sm:$0xff]
    %v7031 = vld [vmem:[#allocation9 + $0x3f8] sm:$0xff]
    %v7160 = vunpack.c.l.b16 %v6904
    %v7161 = vunpack.c.h.b16 %v6904
    %v7162 = vunpack.c.l.b16 %v6905
    %v7163 = vunpack.c.h.b16 %v6905
    %v7164 = vunpack.c.l.b16 %v6906
    %v7165 = vunpack.c.h.b16 %v6906
    %v7166 = vunpack.c.l.b16 %v6907
    %v7167 = vunpack.c.h.b16 %v6907
    %v7168 = vunpack.c.l.b16 %v6908
    %v7169 = vunpack.c.h.b16 %v6908
    %v7170 = vunpack.c.l.b16 %v6909
    %v7171 = vunpack.c.h.b16 %v6909
    %v7172 = vunpack.c.l.b16 %v6910
    %v7173 = vunpack.c.h.b16 %v6910
    %v7174 = vunpack.c.l.b16 %v6911
    %v7175 = vunpack.c.h.b16 %v6911
    %v7176 = vunpack.c.l.b16 %v6912
    %v7177 = vunpack.c.h.b16 %v6912
    %v7178 = vunpack.c.l.b16 %v6913
    %v7179 = vunpack.c.h.b16 %v6913
    %v7180 = vunpack.c.l.b16 %v6914
    %v7181 = vunpack.c.h.b16 %v6914
    %v7182 = vunpack.c.l.b16 %v6915
    %v7183 = vunpack.c.h.b16 %v6915
    %v7184 = vunpack.c.l.b16 %v6916
    %v7185 = vunpack.c.h.b16 %v6916
    %v7186 = vunpack.c.l.b16 %v6917
    %v7187 = vunpack.c.h.b16 %v6917
    %v7188 = vunpack.c.l.b16 %v6918
    %v7189 = vunpack.c.h.b16 %v6918
    %v7190 = vunpack.c.l.b16 %v6919
    %v7191 = vunpack.c.h.b16 %v6919
    %v7192 = vunpack.c.l.b16 %v6920
    %v7193 = vunpack.c.h.b16 %v6920
    %v7194 = vunpack.c.l.b16 %v6921
    %v7195 = vunpack.c.h.b16 %v6921
    %v7196 = vunpack.c.l.b16 %v6922
    %v7197 = vunpack.c.h.b16 %v6922
    %v7198 = vunpack.c.l.b16 %v6923
    %v7199 = vunpack.c.h.b16 %v6923
    %v7200 = vunpack.c.l.b16 %v6924
    %v7201 = vunpack.c.h.b16 %v6924
    %v7202 = vunpack.c.l.b16 %v6925
    %v7203 = vunpack.c.h.b16 %v6925
    %v7204 = vunpack.c.l.b16 %v6926
    %v7205 = vunpack.c.h.b16 %v6926
    %v7206 = vunpack.c.l.b16 %v6927
    %v7207 = vunpack.c.h.b16 %v6927
    %v7208 = vunpack.c.l.b16 %v6928
    %v7209 = vunpack.c.h.b16 %v6928
    %v7210 = vunpack.c.l.b16 %v6929
    %v7211 = vunpack.c.h.b16 %v6929
    %v7212 = vunpack.c.l.b16 %v6930
    %v7213 = vunpack.c.h.b16 %v6930
    %v7214 = vunpack.c.l.b16 %v6931
    %v7215 = vunpack.c.h.b16 %v6931
    %v7216 = vunpack.c.l.b16 %v6932
    %v7217 = vunpack.c.h.b16 %v6932
    %v7218 = vunpack.c.l.b16 %v6933
    %v7219 = vunpack.c.h.b16 %v6933
    %v7220 = vunpack.c.l.b16 %v6934
    %v7221 = vunpack.c.h.b16 %v6934
    %v7222 = vunpack.c.l.b16 %v6935
    %v7223 = vunpack.c.h.b16 %v6935
    %v7224 = vunpack.c.l.b16 %v6936
    %v7225 = vunpack.c.h.b16 %v6936
    %v7226 = vunpack.c.l.b16 %v6937
    %v7227 = vunpack.c.h.b16 %v6937
    %v7228 = vunpack.c.l.b16 %v6938
    %v7229 = vunpack.c.h.b16 %v6938
    %v7230 = vunpack.c.l.b16 %v6939
    %v7231 = vunpack.c.h.b16 %v6939
    %v7232 = vunpack.c.l.b16 %v6940
    %v7233 = vunpack.c.h.b16 %v6940
    %v7234 = vunpack.c.l.b16 %v6941
    %v7235 = vunpack.c.h.b16 %v6941
    %v7236 = vunpack.c.l.b16 %v6942
    %v7237 = vunpack.c.h.b16 %v6942
    %v7238 = vunpack.c.l.b16 %v6943
    %v7239 = vunpack.c.h.b16 %v6943
    %v7240 = vunpack.c.l.b16 %v6944
    %v7241 = vunpack.c.h.b16 %v6944
    %v7242 = vunpack.c.l.b16 %v6945
    %v7243 = vunpack.c.h.b16 %v6945
    %v7244 = vunpack.c.l.b16 %v6946
    %v7245 = vunpack.c.h.b16 %v6946
    %v7246 = vunpack.c.l.b16 %v6947
    %v7247 = vunpack.c.h.b16 %v6947
    %v7248 = vunpack.c.l.b16 %v6948
    %v7249 = vunpack.c.h.b16 %v6948
    %v7250 = vunpack.c.l.b16 %v6949
    %v7251 = vunpack.c.h.b16 %v6949
    %v7252 = vunpack.c.l.b16 %v6950
    %v7253 = vunpack.c.h.b16 %v6950
    %v7254 = vunpack.c.l.b16 %v6951
    %v7255 = vunpack.c.h.b16 %v6951
    %v7256 = vunpack.c.l.b16 %v6952
    %v7257 = vunpack.c.h.b16 %v6952
    %v7258 = vunpack.c.l.b16 %v6953
    %v7259 = vunpack.c.h.b16 %v6953
    %v7260 = vunpack.c.l.b16 %v6954
    %v7261 = vunpack.c.h.b16 %v6954
    %v7262 = vunpack.c.l.b16 %v6955
    %v7263 = vunpack.c.h.b16 %v6955
    %v7264 = vunpack.c.l.b16 %v6956
    %v7265 = vunpack.c.h.b16 %v6956
    %v7266 = vunpack.c.l.b16 %v6957
    %v7267 = vunpack.c.h.b16 %v6957
    %v7268 = vunpack.c.l.b16 %v6958
    %v7269 = vunpack.c.h.b16 %v6958
    %v7270 = vunpack.c.l.b16 %v6959
    %v7271 = vunpack.c.h.b16 %v6959
    %v7272 = vunpack.c.l.b16 %v6960
    %v7273 = vunpack.c.h.b16 %v6960
    %v7274 = vunpack.c.l.b16 %v6961
    %v7275 = vunpack.c.h.b16 %v6961
    %v7276 = vunpack.c.l.b16 %v6962
    %v7277 = vunpack.c.h.b16 %v6962
    %v7278 = vunpack.c.l.b16 %v6963
    %v7279 = vunpack.c.h.b16 %v6963
    %v7280 = vunpack.c.l.b16 %v6964
    %v7281 = vunpack.c.h.b16 %v6964
    %v7282 = vunpack.c.l.b16 %v6965
    %v7283 = vunpack.c.h.b16 %v6965
    %v7284 = vunpack.c.l.b16 %v6966
    %v7285 = vunpack.c.h.b16 %v6966
    %v7286 = vunpack.c.l.b16 %v6967
    %v7287 = vunpack.c.h.b16 %v6967
    %v7288 = vunpack.c.l.b16 %v6968
    %v7289 = vunpack.c.h.b16 %v6968
    %v7290 = vunpack.c.l.b16 %v6969
    %v7291 = vunpack.c.h.b16 %v6969
    %v7292 = vunpack.c.l.b16 %v6970
    %v7293 = vunpack.c.h.b16 %v6970
    %v7294 = vunpack.c.l.b16 %v6971
    %v7295 = vunpack.c.h.b16 %v6971
    %v7296 = vunpack.c.l.b16 %v6972
    %v7297 = vunpack.c.h.b16 %v6972
    %v7298 = vunpack.c.l.b16 %v6973
    %v7299 = vunpack.c.h.b16 %v6973
    %v7300 = vunpack.c.l.b16 %v6974
    %v7301 = vunpack.c.h.b16 %v6974
    %v7302 = vunpack.c.l.b16 %v6975
    %v7303 = vunpack.c.h.b16 %v6975
    %v7304 = vunpack.c.l.b16 %v6976
    %v7305 = vunpack.c.h.b16 %v6976
    %v7306 = vunpack.c.l.b16 %v6977
    %v7307 = vunpack.c.h.b16 %v6977
    %v7308 = vunpack.c.l.b16 %v6978
    %v7309 = vunpack.c.h.b16 %v6978
    %v7310 = vunpack.c.l.b16 %v6979
    %v7311 = vunpack.c.h.b16 %v6979
    %v7312 = vunpack.c.l.b16 %v6980
    %v7313 = vunpack.c.h.b16 %v6980
    %v7314 = vunpack.c.l.b16 %v6981
    %v7315 = vunpack.c.h.b16 %v6981
    %v7316 = vunpack.c.l.b16 %v6982
    %v7317 = vunpack.c.h.b16 %v6982
    %v7318 = vunpack.c.l.b16 %v6983
    %v7319 = vunpack.c.h.b16 %v6983
    %v7320 = vunpack.c.l.b16 %v6984
    %v7321 = vunpack.c.h.b16 %v6984
    %v7322 = vunpack.c.l.b16 %v6985
    %v7323 = vunpack.c.h.b16 %v6985
    %v7324 = vunpack.c.l.b16 %v6986
    %v7325 = vunpack.c.h.b16 %v6986
    %v7326 = vunpack.c.l.b16 %v6987
    %v7327 = vunpack.c.h.b16 %v6987
    %v7328 = vunpack.c.l.b16 %v6988
    %v7329 = vunpack.c.h.b16 %v6988
    %v7330 = vunpack.c.l.b16 %v6989
    %v7331 = vunpack.c.h.b16 %v6989
    %v7332 = vunpack.c.l.b16 %v6990
    %v7333 = vunpack.c.h.b16 %v6990
    %v7334 = vunpack.c.l.b16 %v6991
    %v7335 = vunpack.c.h.b16 %v6991
    %v7336 = vunpack.c.l.b16 %v6992
    %v7337 = vunpack.c.h.b16 %v6992
    %v7338 = vunpack.c.l.b16 %v6993
    %v7339 = vunpack.c.h.b16 %v6993
    %v7340 = vunpack.c.l.b16 %v6994
    %v7341 = vunpack.c.h.b16 %v6994
    %v7342 = vunpack.c.l.b16 %v6995
    %v7343 = vunpack.c.h.b16 %v6995
    %v7344 = vunpack.c.l.b16 %v6996
    %v7345 = vunpack.c.h.b16 %v6996
    %v7346 = vunpack.c.l.b16 %v6997
    %v7347 = vunpack.c.h.b16 %v6997
    %v7348 = vunpack.c.l.b16 %v6998
    %v7349 = vunpack.c.h.b16 %v6998
    %v7350 = vunpack.c.l.b16 %v6999
    %v7351 = vunpack.c.h.b16 %v6999
    %v7352 = vunpack.c.l.b16 %v7000
    %v7353 = vunpack.c.h.b16 %v7000
    %v7354 = vunpack.c.l.b16 %v7001
    %v7355 = vunpack.c.h.b16 %v7001
    %v7356 = vunpack.c.l.b16 %v7002
    %v7357 = vunpack.c.h.b16 %v7002
    %v7358 = vunpack.c.l.b16 %v7003
    %v7359 = vunpack.c.h.b16 %v7003
    %v7360 = vunpack.c.l.b16 %v7004
    %v7361 = vunpack.c.h.b16 %v7004
    %v7362 = vunpack.c.l.b16 %v7005
    %v7363 = vunpack.c.h.b16 %v7005
    %v7364 = vunpack.c.l.b16 %v7006
    %v7365 = vunpack.c.h.b16 %v7006
    %v7366 = vunpack.c.l.b16 %v7007
    %v7367 = vunpack.c.h.b16 %v7007
    %v7368 = vunpack.c.l.b16 %v7008
    %v7369 = vunpack.c.h.b16 %v7008
    %v7370 = vunpack.c.l.b16 %v7009
    %v7371 = vunpack.c.h.b16 %v7009
    %v7372 = vunpack.c.l.b16 %v7010
    %v7373 = vunpack.c.h.b16 %v7010
    %v7374 = vunpack.c.l.b16 %v7011
    %v7375 = vunpack.c.h.b16 %v7011
    %v7376 = vunpack.c.l.b16 %v7012
    %v7377 = vunpack.c.h.b16 %v7012
    %v7378 = vunpack.c.l.b16 %v7013
    %v7379 = vunpack.c.h.b16 %v7013
    %v7380 = vunpack.c.l.b16 %v7014
    %v7381 = vunpack.c.h.b16 %v7014
    %v7382 = vunpack.c.l.b16 %v7015
    %v7383 = vunpack.c.h.b16 %v7015
    %v7384 = vunpack.c.l.b16 %v7016
    %v7385 = vunpack.c.h.b16 %v7016
    %v7386 = vunpack.c.l.b16 %v7017
    %v7387 = vunpack.c.h.b16 %v7017
    %v7388 = vunpack.c.l.b16 %v7018
    %v7389 = vunpack.c.h.b16 %v7018
    %v7390 = vunpack.c.l.b16 %v7019
    %v7391 = vunpack.c.h.b16 %v7019
    %v7392 = vunpack.c.l.b16 %v7020
    %v7393 = vunpack.c.h.b16 %v7020
    %v7394 = vunpack.c.l.b16 %v7021
    %v7395 = vunpack.c.h.b16 %v7021
    %v7396 = vunpack.c.l.b16 %v7022
    %v7397 = vunpack.c.h.b16 %v7022
    %v7398 = vunpack.c.l.b16 %v7023
    %v7399 = vunpack.c.h.b16 %v7023
    %v7400 = vunpack.c.l.b16 %v7024
    %v7401 = vunpack.c.h.b16 %v7024
    %v7402 = vunpack.c.l.b16 %v7025
    %v7403 = vunpack.c.h.b16 %v7025
    %v7404 = vunpack.c.l.b16 %v7026
    %v7405 = vunpack.c.h.b16 %v7026
    %v7406 = vunpack.c.l.b16 %v7027
    %v7407 = vunpack.c.h.b16 %v7027
    %v7408 = vunpack.c.l.b16 %v7028
    %v7409 = vunpack.c.h.b16 %v7028
    %v7410 = vunpack.c.l.b16 %v7029
    %v7411 = vunpack.c.h.b16 %v7029
    %v7412 = vunpack.c.l.b16 %v7030
    %v7413 = vunpack.c.h.b16 %v7030
    %v7414 = vunpack.c.l.b16 %v7031
    %v7415 = vunpack.c.h.b16 %v7031
    %v7416 = vpack.c.b16 %v7168, %v7160
    %v7417 = vpack.c.b16 %v7169, %v7161
    %v7418 = vpack.c.b16 %v7170, %v7162
    %v7419 = vpack.c.b16 %v7171, %v7163
    %v7420 = vpack.c.b16 %v7172, %v7164
    %v7421 = vpack.c.b16 %v7173, %v7165
    %v7422 = vpack.c.b16 %v7174, %v7166
    %v7423 = vpack.c.b16 %v7175, %v7167
    %v7424 = vpack.c.b16 %v7184, %v7176
    %v7425 = vpack.c.b16 %v7185, %v7177
    %v7426 = vpack.c.b16 %v7186, %v7178
    %v7427 = vpack.c.b16 %v7187, %v7179
    %v7428 = vpack.c.b16 %v7188, %v7180
    %v7429 = vpack.c.b16 %v7189, %v7181
    %v7430 = vpack.c.b16 %v7190, %v7182
    %v7431 = vpack.c.b16 %v7191, %v7183
    %v7432 = vpack.c.b16 %v7200, %v7192
    %v7433 = vpack.c.b16 %v7201, %v7193
    %v7434 = vpack.c.b16 %v7202, %v7194
    %v7435 = vpack.c.b16 %v7203, %v7195
    %v7436 = vpack.c.b16 %v7204, %v7196
    %v7437 = vpack.c.b16 %v7205, %v7197
    %v7438 = vpack.c.b16 %v7206, %v7198
    %v7439 = vpack.c.b16 %v7207, %v7199
    %v7440 = vpack.c.b16 %v7216, %v7208
    %v7441 = vpack.c.b16 %v7217, %v7209
    %v7442 = vpack.c.b16 %v7218, %v7210
    %v7443 = vpack.c.b16 %v7219, %v7211
    %v7444 = vpack.c.b16 %v7220, %v7212
    %v7445 = vpack.c.b16 %v7221, %v7213
    %v7446 = vpack.c.b16 %v7222, %v7214
    %v7447 = vpack.c.b16 %v7223, %v7215
    %v7448 = vpack.c.b16 %v7232, %v7224
    %v7449 = vpack.c.b16 %v7233, %v7225
    %v7450 = vpack.c.b16 %v7234, %v7226
    %v7451 = vpack.c.b16 %v7235, %v7227
    %v7452 = vpack.c.b16 %v7236, %v7228
    %v7453 = vpack.c.b16 %v7237, %v7229
    %v7454 = vpack.c.b16 %v7238, %v7230
    %v7455 = vpack.c.b16 %v7239, %v7231
    %v7456 = vpack.c.b16 %v7248, %v7240
    %v7457 = vpack.c.b16 %v7249, %v7241
    %v7458 = vpack.c.b16 %v7250, %v7242
    %v7459 = vpack.c.b16 %v7251, %v7243
    %v7460 = vpack.c.b16 %v7252, %v7244
    %v7461 = vpack.c.b16 %v7253, %v7245
    %v7462 = vpack.c.b16 %v7254, %v7246
    %v7463 = vpack.c.b16 %v7255, %v7247
    %v7464 = vpack.c.b16 %v7264, %v7256
    %v7465 = vpack.c.b16 %v7265, %v7257
    %v7466 = vpack.c.b16 %v7266, %v7258
    %v7467 = vpack.c.b16 %v7267, %v7259
    %v7468 = vpack.c.b16 %v7268, %v7260
    %v7469 = vpack.c.b16 %v7269, %v7261
    %v7470 = vpack.c.b16 %v7270, %v7262
    %v7471 = vpack.c.b16 %v7271, %v7263
    %v7472 = vpack.c.b16 %v7280, %v7272
    %v7473 = vpack.c.b16 %v7281, %v7273
    %v7474 = vpack.c.b16 %v7282, %v7274
    %v7475 = vpack.c.b16 %v7283, %v7275
    %v7476 = vpack.c.b16 %v7284, %v7276
    %v7477 = vpack.c.b16 %v7285, %v7277
    %v7478 = vpack.c.b16 %v7286, %v7278
    %v7479 = vpack.c.b16 %v7287, %v7279
    %v7480 = vpack.c.b16 %v7296, %v7288
    %v7481 = vpack.c.b16 %v7297, %v7289
    %v7482 = vpack.c.b16 %v7298, %v7290
    %v7483 = vpack.c.b16 %v7299, %v7291
    %v7484 = vpack.c.b16 %v7300, %v7292
    %v7485 = vpack.c.b16 %v7301, %v7293
    %v7486 = vpack.c.b16 %v7302, %v7294
    %v7487 = vpack.c.b16 %v7303, %v7295
    %v7488 = vpack.c.b16 %v7312, %v7304
    %v7489 = vpack.c.b16 %v7313, %v7305
    %v7490 = vpack.c.b16 %v7314, %v7306
    %v7491 = vpack.c.b16 %v7315, %v7307
    %v7492 = vpack.c.b16 %v7316, %v7308
    %v7493 = vpack.c.b16 %v7317, %v7309
    %v7494 = vpack.c.b16 %v7318, %v7310
    %v7495 = vpack.c.b16 %v7319, %v7311
    %v7496 = vpack.c.b16 %v7328, %v7320
    %v7497 = vpack.c.b16 %v7329, %v7321
    %v7498 = vpack.c.b16 %v7330, %v7322
    %v7499 = vpack.c.b16 %v7331, %v7323
    %v7500 = vpack.c.b16 %v7332, %v7324
    %v7501 = vpack.c.b16 %v7333, %v7325
    %v7502 = vpack.c.b16 %v7334, %v7326
    %v7503 = vpack.c.b16 %v7335, %v7327
    %v7504 = vpack.c.b16 %v7344, %v7336
    %v7505 = vpack.c.b16 %v7345, %v7337
    %v7506 = vpack.c.b16 %v7346, %v7338
    %v7507 = vpack.c.b16 %v7347, %v7339
    %v7508 = vpack.c.b16 %v7348, %v7340
    %v7509 = vpack.c.b16 %v7349, %v7341
    %v7510 = vpack.c.b16 %v7350, %v7342
    %v7511 = vpack.c.b16 %v7351, %v7343
    %v7512 = vpack.c.b16 %v7360, %v7352
    %v7513 = vpack.c.b16 %v7361, %v7353
    %v7514 = vpack.c.b16 %v7362, %v7354
    %v7515 = vpack.c.b16 %v7363, %v7355
    %v7516 = vpack.c.b16 %v7364, %v7356
    %v7517 = vpack.c.b16 %v7365, %v7357
    %v7518 = vpack.c.b16 %v7366, %v7358
    %v7519 = vpack.c.b16 %v7367, %v7359
    %v7520 = vpack.c.b16 %v7376, %v7368
    %v7521 = vpack.c.b16 %v7377, %v7369
    %v7522 = vpack.c.b16 %v7378, %v7370
    %v7523 = vpack.c.b16 %v7379, %v7371
    %v7524 = vpack.c.b16 %v7380, %v7372
    %v7525 = vpack.c.b16 %v7381, %v7373
    %v7526 = vpack.c.b16 %v7382, %v7374
    %v7527 = vpack.c.b16 %v7383, %v7375
    %v7528 = vpack.c.b16 %v7392, %v7384
    %v7529 = vpack.c.b16 %v7393, %v7385
    %v7530 = vpack.c.b16 %v7394, %v7386
    %v7531 = vpack.c.b16 %v7395, %v7387
    %v7532 = vpack.c.b16 %v7396, %v7388
    %v7533 = vpack.c.b16 %v7397, %v7389
    %v7534 = vpack.c.b16 %v7398, %v7390
    %v7535 = vpack.c.b16 %v7399, %v7391
    %v7536 = vpack.c.b16 %v7408, %v7400
    %v7537 = vpack.c.b16 %v7409, %v7401
    %v7538 = vpack.c.b16 %v7410, %v7402
    %v7539 = vpack.c.b16 %v7411, %v7403
    %v7540 = vpack.c.b16 %v7412, %v7404
    %v7541 = vpack.c.b16 %v7413, %v7405
    %v7542 = vpack.c.b16 %v7414, %v7406
    %v7543 = vpack.c.b16 %v7415, %v7407
    %7672 = vmatprep.subr.bf16.mxu0 %v7417
    %7673 = vmatpush1.bf16.msra.mxu0 %v7416
    %7674 = vmatprep.subr.bf16.mxu0 %v7425
    %7675 = vmatpush1.bf16.msra.mxu0 %v7424
    %7676 = vmatprep.subr.bf16.mxu0 %v7433
    %7677 = vmatpush1.bf16.msra.mxu0 %v7432
    %7678 = vmatprep.subr.bf16.mxu0 %v7441
    %7679 = vmatpush1.bf16.msra.mxu0 %v7440
    %7680 = vmatprep.subr.bf16.mxu0 %v7449
    %7681 = vmatpush1.bf16.msra.mxu0 %v7448
    %7682 = vmatprep.subr.bf16.mxu0 %v7457
    %7683 = vmatpush1.bf16.msra.mxu0 %v7456
    %7684 = vmatprep.subr.bf16.mxu0 %v7465
    %7685 = vmatpush1.bf16.msra.mxu0 %v7464
    %7686 = vmatprep.subr.bf16.mxu0 %v7473
    %7687 = vmatpush1.bf16.msra.mxu0 %v7472
    %7688 = vmatprep.subr.bf16.mxu0 %v7481
    %7689 = vmatpush1.bf16.msra.mxu0 %v7480
    %7690 = vmatprep.subr.bf16.mxu0 %v7489
    %7691 = vmatpush1.bf16.msra.mxu0 %v7488
    %7692 = vmatprep.subr.bf16.mxu0 %v7497
    %7693 = vmatpush1.bf16.msra.mxu0 %v7496
    %7694 = vmatprep.subr.bf16.mxu0 %v7505
    %7695 = vmatpush1.bf16.msra.mxu0 %v7504
    %7696 = vmatprep.subr.bf16.mxu0 %v7513
    %7697 = vmatpush1.bf16.msra.mxu0 %v7512
    %7698 = vmatprep.subr.bf16.mxu0 %v7521
    %7699 = vmatpush1.bf16.msra.mxu0 %v7520
    %7700 = vmatprep.subr.bf16.mxu0 %v7529
    %7701 = vmatpush1.bf16.msra.mxu0 %v7528
    %7702 = vmatprep.subr.bf16.mxu0 %v7537
    %7703 = vmatpush1.bf16.msra.mxu0 %v7536
    %7704 = vmatprep.mubr.bf16.mxu0 %v6903
    %7705 = vmatmul.mubr.bf16.gmra.mrb[0].mxu0 %v6902
    %v7706 = vpop.f32.mrb[0].mxu0
    %v7707 = vadd.f32 0.0, %v7706
    %v7708 = vpop.f32.mrb[0].mxu0
    %v7709 = vadd.f32 0.0, %v7708
    %v7710 = vpop.f32.mrb[0].mxu0
    %v7711 = vpop.f32.mrb[0].mxu0
    %7712 = vdwg.mxu0
    %7713 = vmatprep.subr.bf16.mxu0 %v7419
    %7714 = vmatpush1.bf16.msra.mxu0 %v7418
    %7715 = vmatprep.subr.bf16.mxu0 %v7427
    %7716 = vmatpush1.bf16.msra.mxu0 %v7426
    %7717 = vmatprep.subr.bf16.mxu0 %v7435
    %7718 = vmatpush1.bf16.msra.mxu0 %v7434
    %7719 = vmatprep.subr.bf16.mxu0 %v7443
    %7720 = vmatpush1.bf16.msra.mxu0 %v7442
    %7721 = vmatprep.subr.bf16.mxu0 %v7451
    %7722 = vmatpush1.bf16.msra.mxu0 %v7450
    %7723 = vmatprep.subr.bf16.mxu0 %v7459
    %7724 = vmatpush1.bf16.msra.mxu0 %v7458
    %7725 = vmatprep.subr.bf16.mxu0 %v7467
    %7726 = vmatpush1.bf16.msra.mxu0 %v7466
    %7727 = vmatprep.subr.bf16.mxu0 %v7475
    %7728 = vmatpush1.bf16.msra.mxu0 %v7474
    %7729 = vmatprep.subr.bf16.mxu0 %v7483
    %7730 = vmatpush1.bf16.msra.mxu0 %v7482
    %7731 = vmatprep.subr.bf16.mxu0 %v7491
    %7732 = vmatpush1.bf16.msra.mxu0 %v7490
    %7733 = vmatprep.subr.bf16.mxu0 %v7499
    %7734 = vmatpush1.bf16.msra.mxu0 %v7498
    %7735 = vmatprep.subr.bf16.mxu0 %v7507
    %7736 = vmatpush1.bf16.msra.mxu0 %v7506
    %7737 = vmatprep.subr.bf16.mxu0 %v7515
    %7738 = vmatpush1.bf16.msra.mxu0 %v7514
    %7739 = vmatprep.subr.bf16.mxu0 %v7523
    %7740 = vmatpush1.bf16.msra.mxu0 %v7522
    %7741 = vmatprep.subr.bf16.mxu0 %v7531
    %7742 = vmatpush1.bf16.msra.mxu0 %v7530
    %7743 = vmatprep.subr.bf16.mxu0 %v7539
    %7744 = vmatpush1.bf16.msra.mxu0 %v7538
    %7745 = vmatprep.mubr.bf16.mxu0 %v6903
    %7746 = vmatmul.mubr.bf16.gmra.mrb[0].mxu0 %v6902
    %v7747 = vpop.f32.mrb[0].mxu0
    %v7748 = vadd.f32 0.0, %v7747
    %v7749 = vpop.f32.mrb[0].mxu0
    %v7750 = vadd.f32 0.0, %v7749
    %v7751 = vpop.f32.mrb[0].mxu0
    %v7752 = vpop.f32.mrb[0].mxu0
    %7753 = vdwg.mxu0
    %7754 = vmatprep.subr.bf16.mxu0 %v7421
    %7755 = vmatpush1.bf16.msra.mxu0 %v7420
    %7756 = vmatprep.subr.bf16.mxu0 %v7429
    %7757 = vmatpush1.bf16.msra.mxu0 %v7428
    %7758 = vmatprep.subr.bf16.mxu0 %v7437
    %7759 = vmatpush1.bf16.msra.mxu0 %v7436
    %7760 = vmatprep.subr.bf16.mxu0 %v7445
    %7761 = vmatpush1.bf16.msra.mxu0 %v7444
    %7762 = vmatprep.subr.bf16.mxu0 %v7453
    %7763 = vmatpush1.bf16.msra.mxu0 %v7452
    %7764 = vmatprep.subr.bf16.mxu0 %v7461
    %7765 = vmatpush1.bf16.msra.mxu0 %v7460
    %7766 = vmatprep.subr.bf16.mxu0 %v7469
    %7767 = vmatpush1.bf16.msra.mxu0 %v7468
    %7768 = vmatprep.subr.bf16.mxu0 %v7477
    %7769 = vmatpush1.bf16.msra.mxu0 %v7476
    %7770 = vmatprep.subr.bf16.mxu0 %v7485
    %7771 = vmatpush1.bf16.msra.mxu0 %v7484
    %7772 = vmatprep.subr.bf16.mxu0 %v7493
    %7773 = vmatpush1.bf16.msra.mxu0 %v7492
    %7774 = vmatprep.subr.bf16.mxu0 %v7501
    %7775 = vmatpush1.bf16.msra.mxu0 %v7500
    %7776 = vmatprep.subr.bf16.mxu0 %v7509
    %7777 = vmatpush1.bf16.msra.mxu0 %v7508
    %7778 = vmatprep.subr.bf16.mxu0 %v7517
    %7779 = vmatpush1.bf16.msra.mxu0 %v7516
    %7780 = vmatprep.subr.bf16.mxu0 %v7525
    %7781 = vmatpush1.bf16.msra.mxu0 %v7524
    %7782 = vmatprep.subr.bf16.mxu0 %v7533
    %7783 = vmatpush1.bf16.msra.mxu0 %v7532
    %7784 = vmatprep.subr.bf16.mxu0 %v7541
    %7785 = vmatpush1.bf16.msra.mxu0 %v7540
    %7786 = vmatprep.mubr.bf16.mxu0 %v6903
    %7787 = vmatmul.mubr.bf16.gmra.mrb[0].mxu0 %v6902
    %v7788 = vpop.f32.mrb[0].mxu0
    %v7789 = vadd.f32 0.0, %v7788
    %v7790 = vpop.f32.mrb[0].mxu0
    %v7791 = vadd.f32 0.0, %v7790
    %v7792 = vpop.f32.mrb[0].mxu0
    %v7793 = vpop.f32.mrb[0].mxu0
    %7794 = vdwg.mxu0
    %7795 = vmatprep.subr.bf16.mxu0 %v7423
    %7796 = vmatpush1.bf16.msra.mxu0 %v7422
    %7797 = vmatprep.subr.bf16.mxu0 %v7431
    %7798 = vmatpush1.bf16.msra.mxu0 %v7430
    %7799 = vmatprep.subr.bf16.mxu0 %v7439
    %7800 = vmatpush1.bf16.msra.mxu0 %v7438
    %7801 = vmatprep.subr.bf16.mxu0 %v7447
    %7802 = vmatpush1.bf16.msra.mxu0 %v7446
    %7803 = vmatprep.subr.bf16.mxu0 %v7455
    %7804 = vmatpush1.bf16.msra.mxu0 %v7454
    %7805 = vmatprep.subr.bf16.mxu0 %v7463
    %7806 = vmatpush1.bf16.msra.mxu0 %v7462
    %7807 = vmatprep.subr.bf16.mxu0 %v7471
    %7808 = vmatpush1.bf16.msra.mxu0 %v7470
    %7809 = vmatprep.subr.bf16.mxu0 %v7479
    %7810 = vmatpush1.bf16.msra.mxu0 %v7478
    %7811 = vmatprep.subr.bf16.mxu0 %v7487
    %7812 = vmatpush1.bf16.msra.mxu0 %v7486
    %7813 = vmatprep.subr.bf16.mxu0 %v7495
    %7814 = vmatpush1.bf16.msra.mxu0 %v7494
    %7815 = vmatprep.subr.bf16.mxu0 %v7503
    %7816 = vmatpush1.bf16.msra.mxu0 %v7502
    %7817 = vmatprep.subr.bf16.mxu0 %v7511
    %7818 = vmatpush1.bf16.msra.mxu0 %v7510
    %7819 = vmatprep.subr.bf16.mxu0 %v7519
    %7820 = vmatpush1.bf16.msra.mxu0 %v7518
    %7821 = vmatprep.subr.bf16.mxu0 %v7527
    %7822 = vmatpush1.bf16.msra.mxu0 %v7526
    %7823 = vmatprep.subr.bf16.mxu0 %v7535
    %7824 = vmatpush1.bf16.msra.mxu0 %v7534
    %7825 = vmatprep.subr.bf16.mxu0 %v7543
    %7826 = vmatpush1.bf16.msra.mxu0 %v7542
    %7827 = vmatprep.mubr.bf16.mxu0 %v6903
    %7828 = vmatmul.mubr.bf16.gmra.mrb[0].mxu0 %v6902
    %v7829 = vpop.f32.mrb[0].mxu0
    %v7830 = vadd.f32 0.0, %v7829
    %v7831 = vpop.f32.mrb[0].mxu0
    %v7832 = vadd.f32 0.0, %v7831
    %v7833 = vpop.f32.mrb[0].mxu0
    %v7834 = vpop.f32.mrb[0].mxu0
    %7835 = vdwg.mxu0
    %v7836 = vadd.f32 %v6894, %v7707
    %v7837 = vadd.f32 %v6895, %v7709
    %v7838 = vadd.f32 %v6896, %v7748
    %v7839 = vadd.f32 %v6897, %v7750
    %v7840 = vadd.f32 %v6898, %v7789
    %v7841 = vadd.f32 %v6899, %v7791
    %v7842 = vadd.f32 %v6900, %v7830
    %v7843 = vadd.f32 %v6901, %v7832
    %v7844 = vxor.u32 %v7836, 2147483648
    %v7845 = vxor.u32 %v7837, 2147483648
    %v7846 = vxor.u32 %v7838, 2147483648
    %v7847 = vxor.u32 %v7839, 2147483648
    %v7848 = vxor.u32 %v7840, 2147483648
    %v7849 = vxor.u32 %v7841, 2147483648
    %v7850 = vmul.f32 %v7844, 1.442695
    %v7851 = vpow.pop %v7850
    %v7852 = vmul.f32 %v7845, 1.442695
    %v7853 = vpow.pop %v7852
    %v7854 = vmul.f32 %v7846, 1.442695
    %v7855 = vpow.pop %v7854
    %v7856 = vmul.f32 %v7847, 1.442695
    %v7857 = vpow.pop %v7856
    %v7858 = vmul.f32 %v7848, 1.442695
    %v7859 = vpow.pop %v7858
    %v7860 = vmul.f32 %v7849, 1.442695
    %v7861 = vpow.pop %v7860
    %v7862 = vadd.f32 %v7851, 1.0
    %v7863 = vadd.f32 %v7853, 1.0
    %v7864 = vadd.f32 %v7855, 1.0
    %v7865 = vadd.f32 %v7857, 1.0
    %v7866 = vadd.f32 %v7859, 1.0
    %v7867 = vadd.f32 %v7861, 1.0
    %v7868 = vrcp.pop %v7862
    %v7869 = vmul.f32 1.0, %v7868
    %v7870 = vrcp.pop %v7863
    %v7871 = vmul.f32 1.0, %v7870
    %v7872 = vrcp.pop %v7864
    %v7873 = vmul.f32 1.0, %v7872
    %v7874 = vrcp.pop %v7865
    %v7875 = vmul.f32 1.0, %v7874
    %v7876 = vrcp.pop %v7866
    %v7877 = vmul.f32 1.0, %v7876
    %v7878 = vrcp.pop %v7867
    %v7879 = vmul.f32 1.0, %v7878
    %v7880 = vtanh.pop %v7842
    %v7881 = vtanh.pop %v7843
    %v7882 = vmul.f32 %v7873, %v6884
    %v7883 = vmul.f32 %v7875, %v6885
    %v7884 = vmul.f32 %v7869, %v7880
    %v7885 = vmul.f32 %v7871, %v7881
    %v7886 = vadd.f32 %v7882, %v7884
    %v7887 = vadd.f32 %v7883, %v7885
    %v7888 = vtanh.pop %v7886
    %v7889 = vtanh.pop %v7887
    %v7890 = vmul.f32 %v7877, %v7888
    %v7891 = vmul.f32 %v7879, %v7889
    %s7892 = scalar_lea.vmem [#allocation5], 96
    %7893 = vst [vmem:[%s7892] sm:$0xff] %v7890
    %7894 = vst [vmem:[%s7892 + $0x8] sm:$0xff] %v7891
    %s7895 = scalar_lea.vmem [#allocation4], 448
    %v7896 = vld [vmem:[%s7895] sm:$0xff]
    %v7897 = vld [vmem:[%s7895 + $0x8] sm:$0xff]
    %v7898 = vld [vmem:[%s7895 + $0x10] sm:$0xff]
    %v7899 = vld [vmem:[%s7895 + $0x18] sm:$0xff]
    %v7900 = vld [vmem:[%s7895 + $0x20] sm:$0xff]
    %v7901 = vld [vmem:[%s7895 + $0x28] sm:$0xff]
    %v7902 = vld [vmem:[%s7895 + $0x30] sm:$0xff]
    %v7903 = vld [vmem:[%s7895 + $0x38] sm:$0xff]
    %v7904 = vpack.c.bf16 %v7890, %v7890
    %v7905 = vpack.c.bf16 %v7891, %v7891
    %v7906 = vld [vmem:[#allocation9] sm:$0xff]
    %v7907 = vld [vmem:[#allocation9 + $0x8] sm:$0xff]
    %v7908 = vld [vmem:[#allocation9 + $0x10] sm:$0xff]
    %v7909 = vld [vmem:[#allocation9 + $0x18] sm:$0xff]
    %v7910 = vld [vmem:[#allocation9 + $0x20] sm:$0xff]
    %v7911 = vld [vmem:[#allocation9 + $0x28] sm:$0xff]
    %v7912 = vld [vmem:[#allocation9 + $0x30] sm:$0xff]
    %v7913 = vld [vmem:[#allocation9 + $0x38] sm:$0xff]
    %v7914 = vld [vmem:[#allocation9 + $0x40] sm:$0xff]
    %v7915 = vld [vmem:[#allocation9 + $0x48] sm:$0xff]
    %v7916 = vld [vmem:[#allocation9 + $0x50] sm:$0xff]
    %v7917 = vld [vmem:[#allocation9 + $0x58] sm:$0xff]
    %v7918 = vld [vmem:[#allocation9 + $0x60] sm:$0xff]
    %v7919 = vld [vmem:[#allocation9 + $0x68] sm:$0xff]
    %v7920 = vld [vmem:[#allocation9 + $0x70] sm:$0xff]
    %v7921 = vld [vmem:[#allocation9 + $0x78] sm:$0xff]
    %v7922 = vld [vmem:[#allocation9 + $0x80] sm:$0xff]
    %v7923 = vld [vmem:[#allocation9 + $0x88] sm:$0xff]
    %v7924 = vld [vmem:[#allocation9 + $0x90] sm:$0xff]
    %v7925 = vld [vmem:[#allocation9 + $0x98] sm:$0xff]
    %v7926 = vld [vmem:[#allocation9 + $0xa0] sm:$0xff]
    %v7927 = vld [vmem:[#allocation9 + $0xa8] sm:$0xff]
    %v7928 = vld [vmem:[#allocation9 + $0xb0] sm:$0xff]
    %v7929 = vld [vmem:[#allocation9 + $0xb8] sm:$0xff]
    %v7930 = vld [vmem:[#allocation9 + $0xc0] sm:$0xff]
    %v7931 = vld [vmem:[#allocation9 + $0xc8] sm:$0xff]
    %v7932 = vld [vmem:[#allocation9 + $0xd0] sm:$0xff]
    %v7933 = vld [vmem:[#allocation9 + $0xd8] sm:$0xff]
    %v7934 = vld [vmem:[#allocation9 + $0xe0] sm:$0xff]
    %v7935 = vld [vmem:[#allocation9 + $0xe8] sm:$0xff]
    %v7936 = vld [vmem:[#allocation9 + $0xf0] sm:$0xff]
    %v7937 = vld [vmem:[#allocation9 + $0xf8] sm:$0xff]
    %v7938 = vld [vmem:[#allocation9 + $0x100] sm:$0xff]
    %v7939 = vld [vmem:[#allocation9 + $0x108] sm:$0xff]
    %v7940 = vld [vmem:[#allocation9 + $0x110] sm:$0xff]
    %v7941 = vld [vmem:[#allocation9 + $0x118] sm:$0xff]
    %v7942 = vld [vmem:[#allocation9 + $0x120] sm:$0xff]
    %v7943 = vld [vmem:[#allocation9 + $0x128] sm:$0xff]
    %v7944 = vld [vmem:[#allocation9 + $0x130] sm:$0xff]
    %v7945 = vld [vmem:[#allocation9 + $0x138] sm:$0xff]
    %v7946 = vld [vmem:[#allocation9 + $0x140] sm:$0xff]
    %v7947 = vld [vmem:[#allocation9 + $0x148] sm:$0xff]
    %v7948 = vld [vmem:[#allocation9 + $0x150] sm:$0xff]
    %v7949 = vld [vmem:[#allocation9 + $0x158] sm:$0xff]
    %v7950 = vld [vmem:[#allocation9 + $0x160] sm:$0xff]
    %v7951 = vld [vmem:[#allocation9 + $0x168] sm:$0xff]
    %v7952 = vld [vmem:[#allocation9 + $0x170] sm:$0xff]
    %v7953 = vld [vmem:[#allocation9 + $0x178] sm:$0xff]
    %v7954 = vld [vmem:[#allocation9 + $0x180] sm:$0xff]
    %v7955 = vld [vmem:[#allocation9 + $0x188] sm:$0xff]
    %v7956 = vld [vmem:[#allocation9 + $0x190] sm:$0xff]
    %v7957 = vld [vmem:[#allocation9 + $0x198] sm:$0xff]
    %v7958 = vld [vmem:[#allocation9 + $0x1a0] sm:$0xff]
    %v7959 = vld [vmem:[#allocation9 + $0x1a8] sm:$0xff]
    %v7960 = vld [vmem:[#allocation9 + $0x1b0] sm:$0xff]
    %v7961 = vld [vmem:[#allocation9 + $0x1b8] sm:$0xff]
    %v7962 = vld [vmem:[#allocation9 + $0x1c0] sm:$0xff]
    %v7963 = vld [vmem:[#allocation9 + $0x1c8] sm:$0xff]
    %v7964 = vld [vmem:[#allocation9 + $0x1d0] sm:$0xff]
    %v7965 = vld [vmem:[#allocation9 + $0x1d8] sm:$0xff]
    %v7966 = vld [vmem:[#allocation9 + $0x1e0] sm:$0xff]
    %v7967 = vld [vmem:[#allocation9 + $0x1e8] sm:$0xff]
    %v7968 = vld [vmem:[#allocation9 + $0x1f0] sm:$0xff]
    %v7969 = vld [vmem:[#allocation9 + $0x1f8] sm:$0xff]
    %v7970 = vld [vmem:[#allocation9 + $0x200] sm:$0xff]
    %v7971 = vld [vmem:[#allocation9 + $0x208] sm:$0xff]
    %v7972 = vld [vmem:[#allocation9 + $0x210] sm:$0xff]
    %v7973 = vld [vmem:[#allocation9 + $0x218] sm:$0xff]
    %v7974 = vld [vmem:[#allocation9 + $0x220] sm:$0xff]
    %v7975 = vld [vmem:[#allocation9 + $0x228] sm:$0xff]
    %v7976 = vld [vmem:[#allocation9 + $0x230] sm:$0xff]
    %v7977 = vld [vmem:[#allocation9 + $0x238] sm:$0xff]
    %v7978 = vld [vmem:[#allocation9 + $0x240] sm:$0xff]
    %v7979 = vld [vmem:[#allocation9 + $0x248] sm:$0xff]
    %v7980 = vld [vmem:[#allocation9 + $0x250] sm:$0xff]
    %v7981 = vld [vmem:[#allocation9 + $0x258] sm:$0xff]
    %v7982 = vld [vmem:[#allocation9 + $0x260] sm:$0xff]
    %v7983 = vld [vmem:[#allocation9 + $0x268] sm:$0xff]
    %v7984 = vld [vmem:[#allocation9 + $0x270] sm:$0xff]
    %v7985 = vld [vmem:[#allocation9 + $0x278] sm:$0xff]
    %v7986 = vld [vmem:[#allocation9 + $0x280] sm:$0xff]
    %v7987 = vld [vmem:[#allocation9 + $0x288] sm:$0xff]
    %v7988 = vld [vmem:[#allocation9 + $0x290] sm:$0xff]
    %v7989 = vld [vmem:[#allocation9 + $0x298] sm:$0xff]
    %v7990 = vld [vmem:[#allocation9 + $0x2a0] sm:$0xff]
    %v7991 = vld [vmem:[#allocation9 + $0x2a8] sm:$0xff]
    %v7992 = vld [vmem:[#allocation9 + $0x2b0] sm:$0xff]
    %v7993 = vld [vmem:[#allocation9 + $0x2b8] sm:$0xff]
    %v7994 = vld [vmem:[#allocation9 + $0x2c0] sm:$0xff]
    %v7995 = vld [vmem:[#allocation9 + $0x2c8] sm:$0xff]
    %v7996 = vld [vmem:[#allocation9 + $0x2d0] sm:$0xff]
    %v7997 = vld [vmem:[#allocation9 + $0x2d8] sm:$0xff]
    %v7998 = vld [vmem:[#allocation9 + $0x2e0] sm:$0xff]
    %v7999 = vld [vmem:[#allocation9 + $0x2e8] sm:$0xff]
    %v8000 = vld [vmem:[#allocation9 + $0x2f0] sm:$0xff]
    %v8001 = vld [vmem:[#allocation9 + $0x2f8] sm:$0xff]
    %v8002 = vld [vmem:[#allocation9 + $0x300] sm:$0xff]
    %v8003 = vld [vmem:[#allocation9 + $0x308] sm:$0xff]
    %v8004 = vld [vmem:[#allocation9 + $0x310] sm:$0xff]
    %v8005 = vld [vmem:[#allocation9 + $0x318] sm:$0xff]
    %v8006 = vld [vmem:[#allocation9 + $0x320] sm:$0xff]
    %v8007 = vld [vmem:[#allocation9 + $0x328] sm:$0xff]
    %v8008 = vld [vmem:[#allocation9 + $0x330] sm:$0xff]
    %v8009 = vld [vmem:[#allocation9 + $0x338] sm:$0xff]
    %v8010 = vld [vmem:[#allocation9 + $0x340] sm:$0xff]
    %v8011 = vld [vmem:[#allocation9 + $0x348] sm:$0xff]
    %v8012 = vld [vmem:[#allocation9 + $0x350] sm:$0xff]
    %v8013 = vld [vmem:[#allocation9 + $0x358] sm:$0xff]
    %v8014 = vld [vmem:[#allocation9 + $0x360] sm:$0xff]
    %v8015 = vld [vmem:[#allocation9 + $0x368] sm:$0xff]
    %v8016 = vld [vmem:[#allocation9 + $0x370] sm:$0xff]
    %v8017 = vld [vmem:[#allocation9 + $0x378] sm:$0xff]
    %v8018 = vld [vmem:[#allocation9 + $0x380] sm:$0xff]
    %v8019 = vld [vmem:[#allocation9 + $0x388] sm:$0xff]
    %v8020 = vld [vmem:[#allocation9 + $0x390] sm:$0xff]
    %v8021 = vld [vmem:[#allocation9 + $0x398] sm:$0xff]
    %v8022 = vld [vmem:[#allocation9 + $0x3a0] sm:$0xff]
    %v8023 = vld [vmem:[#allocation9 + $0x3a8] sm:$0xff]
    %v8024 = vld [vmem:[#allocation9 + $0x3b0] sm:$0xff]
    %v8025 = vld [vmem:[#allocation9 + $0x3b8] sm:$0xff]
    %v8026 = vld [vmem:[#allocation9 + $0x3c0] sm:$0xff]
    %v8027 = vld [vmem:[#allocation9 + $0x3c8] sm:$0xff]
    %v8028 = vld [vmem:[#allocation9 + $0x3d0] sm:$0xff]
    %v8029 = vld [vmem:[#allocation9 + $0x3d8] sm:$0xff]
    %v8030 = vld [vmem:[#allocation9 + $0x3e0] sm:$0xff]
    %v8031 = vld [vmem:[#allocation9 + $0x3e8] sm:$0xff]
    %v8032 = vld [vmem:[#allocation9 + $0x3f0] sm:$0xff]
    %v8033 = vld [vmem:[#allocation9 + $0x3f8] sm:$0xff]
    %v8162 = vunpack.c.l.b16 %v7906
    %v8163 = vunpack.c.h.b16 %v7906
    %v8164 = vunpack.c.l.b16 %v7907
    %v8165 = vunpack.c.h.b16 %v7907
    %v8166 = vunpack.c.l.b16 %v7908
    %v8167 = vunpack.c.h.b16 %v7908
    %v8168 = vunpack.c.l.b16 %v7909
    %v8169 = vunpack.c.h.b16 %v7909
    %v8170 = vunpack.c.l.b16 %v7910
    %v8171 = vunpack.c.h.b16 %v7910
    %v8172 = vunpack.c.l.b16 %v7911
    %v8173 = vunpack.c.h.b16 %v7911
    %v8174 = vunpack.c.l.b16 %v7912
    %v8175 = vunpack.c.h.b16 %v7912
    %v8176 = vunpack.c.l.b16 %v7913
    %v8177 = vunpack.c.h.b16 %v7913
    %v8178 = vunpack.c.l.b16 %v7914
    %v8179 = vunpack.c.h.b16 %v7914
    %v8180 = vunpack.c.l.b16 %v7915
    %v8181 = vunpack.c.h.b16 %v7915
    %v8182 = vunpack.c.l.b16 %v7916
    %v8183 = vunpack.c.h.b16 %v7916
    %v8184 = vunpack.c.l.b16 %v7917
    %v8185 = vunpack.c.h.b16 %v7917
    %v8186 = vunpack.c.l.b16 %v7918
    %v8187 = vunpack.c.h.b16 %v7918
    %v8188 = vunpack.c.l.b16 %v7919
    %v8189 = vunpack.c.h.b16 %v7919
    %v8190 = vunpack.c.l.b16 %v7920
    %v8191 = vunpack.c.h.b16 %v7920
    %v8192 = vunpack.c.l.b16 %v7921
    %v8193 = vunpack.c.h.b16 %v7921
    %v8194 = vunpack.c.l.b16 %v7922
    %v8195 = vunpack.c.h.b16 %v7922
    %v8196 = vunpack.c.l.b16 %v7923
    %v8197 = vunpack.c.h.b16 %v7923
    %v8198 = vunpack.c.l.b16 %v7924
    %v8199 = vunpack.c.h.b16 %v7924
    %v8200 = vunpack.c.l.b16 %v7925
    %v8201 = vunpack.c.h.b16 %v7925
    %v8202 = vunpack.c.l.b16 %v7926
    %v8203 = vunpack.c.h.b16 %v7926
    %v8204 = vunpack.c.l.b16 %v7927
    %v8205 = vunpack.c.h.b16 %v7927
    %v8206 = vunpack.c.l.b16 %v7928
    %v8207 = vunpack.c.h.b16 %v7928
    %v8208 = vunpack.c.l.b16 %v7929
    %v8209 = vunpack.c.h.b16 %v7929
    %v8210 = vunpack.c.l.b16 %v7930
    %v8211 = vunpack.c.h.b16 %v7930
    %v8212 = vunpack.c.l.b16 %v7931
    %v8213 = vunpack.c.h.b16 %v7931
    %v8214 = vunpack.c.l.b16 %v7932
    %v8215 = vunpack.c.h.b16 %v7932
    %v8216 = vunpack.c.l.b16 %v7933
    %v8217 = vunpack.c.h.b16 %v7933
    %v8218 = vunpack.c.l.b16 %v7934
    %v8219 = vunpack.c.h.b16 %v7934
    %v8220 = vunpack.c.l.b16 %v7935
    %v8221 = vunpack.c.h.b16 %v7935
    %v8222 = vunpack.c.l.b16 %v7936
    %v8223 = vunpack.c.h.b16 %v7936
    %v8224 = vunpack.c.l.b16 %v7937
    %v8225 = vunpack.c.h.b16 %v7937
    %v8226 = vunpack.c.l.b16 %v7938
    %v8227 = vunpack.c.h.b16 %v7938
    %v8228 = vunpack.c.l.b16 %v7939
    %v8229 = vunpack.c.h.b16 %v7939
    %v8230 = vunpack.c.l.b16 %v7940
    %v8231 = vunpack.c.h.b16 %v7940
    %v8232 = vunpack.c.l.b16 %v7941
    %v8233 = vunpack.c.h.b16 %v7941
    %v8234 = vunpack.c.l.b16 %v7942
    %v8235 = vunpack.c.h.b16 %v7942
    %v8236 = vunpack.c.l.b16 %v7943
    %v8237 = vunpack.c.h.b16 %v7943
    %v8238 = vunpack.c.l.b16 %v7944
    %v8239 = vunpack.c.h.b16 %v7944
    %v8240 = vunpack.c.l.b16 %v7945
    %v8241 = vunpack.c.h.b16 %v7945
    %v8242 = vunpack.c.l.b16 %v7946
    %v8243 = vunpack.c.h.b16 %v7946
    %v8244 = vunpack.c.l.b16 %v7947
    %v8245 = vunpack.c.h.b16 %v7947
    %v8246 = vunpack.c.l.b16 %v7948
    %v8247 = vunpack.c.h.b16 %v7948
    %v8248 = vunpack.c.l.b16 %v7949
    %v8249 = vunpack.c.h.b16 %v7949
    %v8250 = vunpack.c.l.b16 %v7950
    %v8251 = vunpack.c.h.b16 %v7950
    %v8252 = vunpack.c.l.b16 %v7951
    %v8253 = vunpack.c.h.b16 %v7951
    %v8254 = vunpack.c.l.b16 %v7952
    %v8255 = vunpack.c.h.b16 %v7952
    %v8256 = vunpack.c.l.b16 %v7953
    %v8257 = vunpack.c.h.b16 %v7953
    %v8258 = vunpack.c.l.b16 %v7954
    %v8259 = vunpack.c.h.b16 %v7954
    %v8260 = vunpack.c.l.b16 %v7955
    %v8261 = vunpack.c.h.b16 %v7955
    %v8262 = vunpack.c.l.b16 %v7956
    %v8263 = vunpack.c.h.b16 %v7956
    %v8264 = vunpack.c.l.b16 %v7957
    %v8265 = vunpack.c.h.b16 %v7957
    %v8266 = vunpack.c.l.b16 %v7958
    %v8267 = vunpack.c.h.b16 %v7958
    %v8268 = vunpack.c.l.b16 %v7959
    %v8269 = vunpack.c.h.b16 %v7959
    %v8270 = vunpack.c.l.b16 %v7960
    %v8271 = vunpack.c.h.b16 %v7960
    %v8272 = vunpack.c.l.b16 %v7961
    %v8273 = vunpack.c.h.b16 %v7961
    %v8274 = vunpack.c.l.b16 %v7962
    %v8275 = vunpack.c.h.b16 %v7962
    %v8276 = vunpack.c.l.b16 %v7963
    %v8277 = vunpack.c.h.b16 %v7963
    %v8278 = vunpack.c.l.b16 %v7964
    %v8279 = vunpack.c.h.b16 %v7964
    %v8280 = vunpack.c.l.b16 %v7965
    %v8281 = vunpack.c.h.b16 %v7965
    %v8282 = vunpack.c.l.b16 %v7966
    %v8283 = vunpack.c.h.b16 %v7966
    %v8284 = vunpack.c.l.b16 %v7967
    %v8285 = vunpack.c.h.b16 %v7967
    %v8286 = vunpack.c.l.b16 %v7968
    %v8287 = vunpack.c.h.b16 %v7968
    %v8288 = vunpack.c.l.b16 %v7969
    %v8289 = vunpack.c.h.b16 %v7969
    %v8290 = vunpack.c.l.b16 %v7970
    %v8291 = vunpack.c.h.b16 %v7970
    %v8292 = vunpack.c.l.b16 %v7971
    %v8293 = vunpack.c.h.b16 %v7971
    %v8294 = vunpack.c.l.b16 %v7972
    %v8295 = vunpack.c.h.b16 %v7972
    %v8296 = vunpack.c.l.b16 %v7973
    %v8297 = vunpack.c.h.b16 %v7973
    %v8298 = vunpack.c.l.b16 %v7974
    %v8299 = vunpack.c.h.b16 %v7974
    %v8300 = vunpack.c.l.b16 %v7975
    %v8301 = vunpack.c.h.b16 %v7975
    %v8302 = vunpack.c.l.b16 %v7976
    %v8303 = vunpack.c.h.b16 %v7976
    %v8304 = vunpack.c.l.b16 %v7977
    %v8305 = vunpack.c.h.b16 %v7977
    %v8306 = vunpack.c.l.b16 %v7978
    %v8307 = vunpack.c.h.b16 %v7978
    %v8308 = vunpack.c.l.b16 %v7979
    %v8309 = vunpack.c.h.b16 %v7979
    %v8310 = vunpack.c.l.b16 %v7980
    %v8311 = vunpack.c.h.b16 %v7980
    %v8312 = vunpack.c.l.b16 %v7981
    %v8313 = vunpack.c.h.b16 %v7981
    %v8314 = vunpack.c.l.b16 %v7982
    %v8315 = vunpack.c.h.b16 %v7982
    %v8316 = vunpack.c.l.b16 %v7983
    %v8317 = vunpack.c.h.b16 %v7983
    %v8318 = vunpack.c.l.b16 %v7984
    %v8319 = vunpack.c.h.b16 %v7984
    %v8320 = vunpack.c.l.b16 %v7985
    %v8321 = vunpack.c.h.b16 %v7985
    %v8322 = vunpack.c.l.b16 %v7986
    %v8323 = vunpack.c.h.b16 %v7986
    %v8324 = vunpack.c.l.b16 %v7987
    %v8325 = vunpack.c.h.b16 %v7987
    %v8326 = vunpack.c.l.b16 %v7988
    %v8327 = vunpack.c.h.b16 %v7988
    %v8328 = vunpack.c.l.b16 %v7989
    %v8329 = vunpack.c.h.b16 %v7989
    %v8330 = vunpack.c.l.b16 %v7990
    %v8331 = vunpack.c.h.b16 %v7990
    %v8332 = vunpack.c.l.b16 %v7991
    %v8333 = vunpack.c.h.b16 %v7991
    %v8334 = vunpack.c.l.b16 %v7992
    %v8335 = vunpack.c.h.b16 %v7992
    %v8336 = vunpack.c.l.b16 %v7993
    %v8337 = vunpack.c.h.b16 %v7993
    %v8338 = vunpack.c.l.b16 %v7994
    %v8339 = vunpack.c.h.b16 %v7994
    %v8340 = vunpack.c.l.b16 %v7995
    %v8341 = vunpack.c.h.b16 %v7995
    %v8342 = vunpack.c.l.b16 %v7996
    %v8343 = vunpack.c.h.b16 %v7996
    %v8344 = vunpack.c.l.b16 %v7997
    %v8345 = vunpack.c.h.b16 %v7997
    %v8346 = vunpack.c.l.b16 %v7998
    %v8347 = vunpack.c.h.b16 %v7998
    %v8348 = vunpack.c.l.b16 %v7999
    %v8349 = vunpack.c.h.b16 %v7999
    %v8350 = vunpack.c.l.b16 %v8000
    %v8351 = vunpack.c.h.b16 %v8000
    %v8352 = vunpack.c.l.b16 %v8001
    %v8353 = vunpack.c.h.b16 %v8001
    %v8354 = vunpack.c.l.b16 %v8002
    %v8355 = vunpack.c.h.b16 %v8002
    %v8356 = vunpack.c.l.b16 %v8003
    %v8357 = vunpack.c.h.b16 %v8003
    %v8358 = vunpack.c.l.b16 %v8004
    %v8359 = vunpack.c.h.b16 %v8004
    %v8360 = vunpack.c.l.b16 %v8005
    %v8361 = vunpack.c.h.b16 %v8005
    %v8362 = vunpack.c.l.b16 %v8006
    %v8363 = vunpack.c.h.b16 %v8006
    %v8364 = vunpack.c.l.b16 %v8007
    %v8365 = vunpack.c.h.b16 %v8007
    %v8366 = vunpack.c.l.b16 %v8008
    %v8367 = vunpack.c.h.b16 %v8008
    %v8368 = vunpack.c.l.b16 %v8009
    %v8369 = vunpack.c.h.b16 %v8009
    %v8370 = vunpack.c.l.b16 %v8010
    %v8371 = vunpack.c.h.b16 %v8010
    %v8372 = vunpack.c.l.b16 %v8011
    %v8373 = vunpack.c.h.b16 %v8011
    %v8374 = vunpack.c.l.b16 %v8012
    %v8375 = vunpack.c.h.b16 %v8012
    %v8376 = vunpack.c.l.b16 %v8013
    %v8377 = vunpack.c.h.b16 %v8013
    %v8378 = vunpack.c.l.b16 %v8014
    %v8379 = vunpack.c.h.b16 %v8014
    %v8380 = vunpack.c.l.b16 %v8015
    %v8381 = vunpack.c.h.b16 %v8015
    %v8382 = vunpack.c.l.b16 %v8016
    %v8383 = vunpack.c.h.b16 %v8016
    %v8384 = vunpack.c.l.b16 %v8017
    %v8385 = vunpack.c.h.b16 %v8017
    %v8386 = vunpack.c.l.b16 %v8018
    %v8387 = vunpack.c.h.b16 %v8018
    %v8388 = vunpack.c.l.b16 %v8019
    %v8389 = vunpack.c.h.b16 %v8019
    %v8390 = vunpack.c.l.b16 %v8020
    %v8391 = vunpack.c.h.b16 %v8020
    %v8392 = vunpack.c.l.b16 %v8021
    %v8393 = vunpack.c.h.b16 %v8021
    %v8394 = vunpack.c.l.b16 %v8022
    %v8395 = vunpack.c.h.b16 %v8022
    %v8396 = vunpack.c.l.b16 %v8023
    %v8397 = vunpack.c.h.b16 %v8023
    %v8398 = vunpack.c.l.b16 %v8024
    %v8399 = vunpack.c.h.b16 %v8024
    %v8400 = vunpack.c.l.b16 %v8025
    %v8401 = vunpack.c.h.b16 %v8025
    %v8402 = vunpack.c.l.b16 %v8026
    %v8403 = vunpack.c.h.b16 %v8026
    %v8404 = vunpack.c.l.b16 %v8027
    %v8405 = vunpack.c.h.b16 %v8027
    %v8406 = vunpack.c.l.b16 %v8028
    %v8407 = vunpack.c.h.b16 %v8028
    %v8408 = vunpack.c.l.b16 %v8029
    %v8409 = vunpack.c.h.b16 %v8029
    %v8410 = vunpack.c.l.b16 %v8030
    %v8411 = vunpack.c.h.b16 %v8030
    %v8412 = vunpack.c.l.b16 %v8031
    %v8413 = vunpack.c.h.b16 %v8031
    %v8414 = vunpack.c.l.b16 %v8032
    %v8415 = vunpack.c.h.b16 %v8032
    %v8416 = vunpack.c.l.b16 %v8033
    %v8417 = vunpack.c.h.b16 %v8033
    %v8418 = vpack.c.b16 %v8170, %v8162
    %v8419 = vpack.c.b16 %v8171, %v8163
    %v8420 = vpack.c.b16 %v8172, %v8164
    %v8421 = vpack.c.b16 %v8173, %v8165
    %v8422 = vpack.c.b16 %v8174, %v8166
    %v8423 = vpack.c.b16 %v8175, %v8167
    %v8424 = vpack.c.b16 %v8176, %v8168
    %v8425 = vpack.c.b16 %v8177, %v8169
    %v8426 = vpack.c.b16 %v8186, %v8178
    %v8427 = vpack.c.b16 %v8187, %v8179
    %v8428 = vpack.c.b16 %v8188, %v8180
    %v8429 = vpack.c.b16 %v8189, %v8181
    %v8430 = vpack.c.b16 %v8190, %v8182
    %v8431 = vpack.c.b16 %v8191, %v8183
    %v8432 = vpack.c.b16 %v8192, %v8184
    %v8433 = vpack.c.b16 %v8193, %v8185
    %v8434 = vpack.c.b16 %v8202, %v8194
    %v8435 = vpack.c.b16 %v8203, %v8195
    %v8436 = vpack.c.b16 %v8204, %v8196
    %v8437 = vpack.c.b16 %v8205, %v8197
    %v8438 = vpack.c.b16 %v8206, %v8198
    %v8439 = vpack.c.b16 %v8207, %v8199
    %v8440 = vpack.c.b16 %v8208, %v8200
    %v8441 = vpack.c.b16 %v8209, %v8201
    %v8442 = vpack.c.b16 %v8218, %v8210
    %v8443 = vpack.c.b16 %v8219, %v8211
    %v8444 = vpack.c.b16 %v8220, %v8212
    %v8445 = vpack.c.b16 %v8221, %v8213
    %v8446 = vpack.c.b16 %v8222, %v8214
    %v8447 = vpack.c.b16 %v8223, %v8215
    %v8448 = vpack.c.b16 %v8224, %v8216
    %v8449 = vpack.c.b16 %v8225, %v8217
    %v8450 = vpack.c.b16 %v8234, %v8226
    %v8451 = vpack.c.b16 %v8235, %v8227
    %v8452 = vpack.c.b16 %v8236, %v8228
    %v8453 = vpack.c.b16 %v8237, %v8229
    %v8454 = vpack.c.b16 %v8238, %v8230
    %v8455 = vpack.c.b16 %v8239, %v8231
    %v8456 = vpack.c.b16 %v8240, %v8232
    %v8457 = vpack.c.b16 %v8241, %v8233
    %v8458 = vpack.c.b16 %v8250, %v8242
    %v8459 = vpack.c.b16 %v8251, %v8243
    %v8460 = vpack.c.b16 %v8252, %v8244
    %v8461 = vpack.c.b16 %v8253, %v8245
    %v8462 = vpack.c.b16 %v8254, %v8246
    %v8463 = vpack.c.b16 %v8255, %v8247
    %v8464 = vpack.c.b16 %v8256, %v8248
    %v8465 = vpack.c.b16 %v8257, %v8249
    %v8466 = vpack.c.b16 %v8266, %v8258
    %v8467 = vpack.c.b16 %v8267, %v8259
    %v8468 = vpack.c.b16 %v8268, %v8260
    %v8469 = vpack.c.b16 %v8269, %v8261
    %v8470 = vpack.c.b16 %v8270, %v8262
    %v8471 = vpack.c.b16 %v8271, %v8263
    %v8472 = vpack.c.b16 %v8272, %v8264
    %v8473 = vpack.c.b16 %v8273, %v8265
    %v8474 = vpack.c.b16 %v8282, %v8274
    %v8475 = vpack.c.b16 %v8283, %v8275
    %v8476 = vpack.c.b16 %v8284, %v8276
    %v8477 = vpack.c.b16 %v8285, %v8277
    %v8478 = vpack.c.b16 %v8286, %v8278
    %v8479 = vpack.c.b16 %v8287, %v8279
    %v8480 = vpack.c.b16 %v8288, %v8280
    %v8481 = vpack.c.b16 %v8289, %v8281
    %v8482 = vpack.c.b16 %v8298, %v8290
    %v8483 = vpack.c.b16 %v8299, %v8291
    %v8484 = vpack.c.b16 %v8300, %v8292
    %v8485 = vpack.c.b16 %v8301, %v8293
    %v8486 = vpack.c.b16 %v8302, %v8294
    %v8487 = vpack.c.b16 %v8303, %v8295
    %v8488 = vpack.c.b16 %v8304, %v8296
    %v8489 = vpack.c.b16 %v8305, %v8297
    %v8490 = vpack.c.b16 %v8314, %v8306
    %v8491 = vpack.c.b16 %v8315, %v8307
    %v8492 = vpack.c.b16 %v8316, %v8308
    %v8493 = vpack.c.b16 %v8317, %v8309
    %v8494 = vpack.c.b16 %v8318, %v8310
    %v8495 = vpack.c.b16 %v8319, %v8311
    %v8496 = vpack.c.b16 %v8320, %v8312
    %v8497 = vpack.c.b16 %v8321, %v8313
    %v8498 = vpack.c.b16 %v8330, %v8322
    %v8499 = vpack.c.b16 %v8331, %v8323
    %v8500 = vpack.c.b16 %v8332, %v8324
    %v8501 = vpack.c.b16 %v8333, %v8325
    %v8502 = vpack.c.b16 %v8334, %v8326
    %v8503 = vpack.c.b16 %v8335, %v8327
    %v8504 = vpack.c.b16 %v8336, %v8328
    %v8505 = vpack.c.b16 %v8337, %v8329
    %v8506 = vpack.c.b16 %v8346, %v8338
    %v8507 = vpack.c.b16 %v8347, %v8339
    %v8508 = vpack.c.b16 %v8348, %v8340
    %v8509 = vpack.c.b16 %v8349, %v8341
    %v8510 = vpack.c.b16 %v8350, %v8342
    %v8511 = vpack.c.b16 %v8351, %v8343
    %v8512 = vpack.c.b16 %v8352, %v8344
    %v8513 = vpack.c.b16 %v8353, %v8345
    %v8514 = vpack.c.b16 %v8362, %v8354
    %v8515 = vpack.c.b16 %v8363, %v8355
    %v8516 = vpack.c.b16 %v8364, %v8356
    %v8517 = vpack.c.b16 %v8365, %v8357
    %v8518 = vpack.c.b16 %v8366, %v8358
    %v8519 = vpack.c.b16 %v8367, %v8359
    %v8520 = vpack.c.b16 %v8368, %v8360
    %v8521 = vpack.c.b16 %v8369, %v8361
    %v8522 = vpack.c.b16 %v8378, %v8370
    %v8523 = vpack.c.b16 %v8379, %v8371
    %v8524 = vpack.c.b16 %v8380, %v8372
    %v8525 = vpack.c.b16 %v8381, %v8373
    %v8526 = vpack.c.b16 %v8382, %v8374
    %v8527 = vpack.c.b16 %v8383, %v8375
    %v8528 = vpack.c.b16 %v8384, %v8376
    %v8529 = vpack.c.b16 %v8385, %v8377
    %v8530 = vpack.c.b16 %v8394, %v8386
    %v8531 = vpack.c.b16 %v8395, %v8387
    %v8532 = vpack.c.b16 %v8396, %v8388
    %v8533 = vpack.c.b16 %v8397, %v8389
    %v8534 = vpack.c.b16 %v8398, %v8390
    %v8535 = vpack.c.b16 %v8399, %v8391
    %v8536 = vpack.c.b16 %v8400, %v8392
    %v8537 = vpack.c.b16 %v8401, %v8393
    %v8538 = vpack.c.b16 %v8410, %v8402
    %v8539 = vpack.c.b16 %v8411, %v8403
    %v8540 = vpack.c.b16 %v8412, %v8404
    %v8541 = vpack.c.b16 %v8413, %v8405
    %v8542 = vpack.c.b16 %v8414, %v8406
    %v8543 = vpack.c.b16 %v8415, %v8407
    %v8544 = vpack.c.b16 %v8416, %v8408
    %v8545 = vpack.c.b16 %v8417, %v8409
    %8674 = vmatprep.subr.bf16.mxu0 %v8419
    %8675 = vmatpush1.bf16.msra.mxu0 %v8418
    %8676 = vmatprep.subr.bf16.mxu0 %v8427
    %8677 = vmatpush1.bf16.msra.mxu0 %v8426
    %8678 = vmatprep.subr.bf16.mxu0 %v8435
    %8679 = vmatpush1.bf16.msra.mxu0 %v8434
    %8680 = vmatprep.subr.bf16.mxu0 %v8443
    %8681 = vmatpush1.bf16.msra.mxu0 %v8442
    %8682 = vmatprep.subr.bf16.mxu0 %v8451
    %8683 = vmatpush1.bf16.msra.mxu0 %v8450
    %8684 = vmatprep.subr.bf16.mxu0 %v8459
    %8685 = vmatpush1.bf16.msra.mxu0 %v8458
    %8686 = vmatprep.subr.bf16.mxu0 %v8467
    %8687 = vmatpush1.bf16.msra.mxu0 %v8466
    %8688 = vmatprep.subr.bf16.mxu0 %v8475
    %8689 = vmatpush1.bf16.msra.mxu0 %v8474
    %8690 = vmatprep.subr.bf16.mxu0 %v8483
    %8691 = vmatpush1.bf16.msra.mxu0 %v8482
    %8692 = vmatprep.subr.bf16.mxu0 %v8491
    %8693 = vmatpush1.bf16.msra.mxu0 %v8490
    %8694 = vmatprep.subr.bf16.mxu0 %v8499
    %8695 = vmatpush1.bf16.msra.mxu0 %v8498
    %8696 = vmatprep.subr.bf16.mxu0 %v8507
    %8697 = vmatpush1.bf16.msra.mxu0 %v8506
    %8698 = vmatprep.subr.bf16.mxu0 %v8515
    %8699 = vmatpush1.bf16.msra.mxu0 %v8514
    %8700 = vmatprep.subr.bf16.mxu0 %v8523
    %8701 = vmatpush1.bf16.msra.mxu0 %v8522
    %8702 = vmatprep.subr.bf16.mxu0 %v8531
    %8703 = vmatpush1.bf16.msra.mxu0 %v8530
    %8704 = vmatprep.subr.bf16.mxu0 %v8539
    %8705 = vmatpush1.bf16.msra.mxu0 %v8538
    %8706 = vmatprep.mubr.bf16.mxu0 %v7905
    %8707 = vmatmul.mubr.bf16.gmra.mrb[0].mxu0 %v7904
    %v8708 = vpop.f32.mrb[0].mxu0
    %v8709 = vadd.f32 0.0, %v8708
    %v8710 = vpop.f32.mrb[0].mxu0
    %v8711 = vadd.f32 0.0, %v8710
    %v8712 = vpop.f32.mrb[0].mxu0
    %v8713 = vpop.f32.mrb[0].mxu0
    %8714 = vdwg.mxu0
    %8715 = vmatprep.subr.bf16.mxu0 %v8421
    %8716 = vmatpush1.bf16.msra.mxu0 %v8420
    %8717 = vmatprep.subr.bf16.mxu0 %v8429
    %8718 = vmatpush1.bf16.msra.mxu0 %v8428
    %8719 = vmatprep.subr.bf16.mxu0 %v8437
    %8720 = vmatpush1.bf16.msra.mxu0 %v8436
    %8721 = vmatprep.subr.bf16.mxu0 %v8445
    %8722 = vmatpush1.bf16.msra.mxu0 %v8444
    %8723 = vmatprep.subr.bf16.mxu0 %v8453
    %8724 = vmatpush1.bf16.msra.mxu0 %v8452
    %8725 = vmatprep.subr.bf16.mxu0 %v8461
    %8726 = vmatpush1.bf16.msra.mxu0 %v8460
    %8727 = vmatprep.subr.bf16.mxu0 %v8469
    %8728 = vmatpush1.bf16.msra.mxu0 %v8468
    %8729 = vmatprep.subr.bf16.mxu0 %v8477
    %8730 = vmatpush1.bf16.msra.mxu0 %v8476
    %8731 = vmatprep.subr.bf16.mxu0 %v8485
    %8732 = vmatpush1.bf16.msra.mxu0 %v8484
    %8733 = vmatprep.subr.bf16.mxu0 %v8493
    %8734 = vmatpush1.bf16.msra.mxu0 %v8492
    %8735 = vmatprep.subr.bf16.mxu0 %v8501
    %8736 = vmatpush1.bf16.msra.mxu0 %v8500
    %8737 = vmatprep.subr.bf16.mxu0 %v8509
    %8738 = vmatpush1.bf16.msra.mxu0 %v8508
    %8739 = vmatprep.subr.bf16.mxu0 %v8517
    %8740 = vmatpush1.bf16.msra.mxu0 %v8516
    %8741 = vmatprep.subr.bf16.mxu0 %v8525
    %8742 = vmatpush1.bf16.msra.mxu0 %v8524
    %8743 = vmatprep.subr.bf16.mxu0 %v8533
    %8744 = vmatpush1.bf16.msra.mxu0 %v8532
    %8745 = vmatprep.subr.bf16.mxu0 %v8541
    %8746 = vmatpush1.bf16.msra.mxu0 %v8540
    %8747 = vmatprep.mubr.bf16.mxu0 %v7905
    %8748 = vmatmul.mubr.bf16.gmra.mrb[0].mxu0 %v7904
    %v8749 = vpop.f32.mrb[0].mxu0
    %v8750 = vadd.f32 0.0, %v8749
    %v8751 = vpop.f32.mrb[0].mxu0
    %v8752 = vadd.f32 0.0, %v8751
    %v8753 = vpop.f32.mrb[0].mxu0
    %v8754 = vpop.f32.mrb[0].mxu0
    %8755 = vdwg.mxu0
    %8756 = vmatprep.subr.bf16.mxu0 %v8423
    %8757 = vmatpush1.bf16.msra.mxu0 %v8422
    %8758 = vmatprep.subr.bf16.mxu0 %v8431
    %8759 = vmatpush1.bf16.msra.mxu0 %v8430
    %8760 = vmatprep.subr.bf16.mxu0 %v8439
    %8761 = vmatpush1.bf16.msra.mxu0 %v8438
    %8762 = vmatprep.subr.bf16.mxu0 %v8447
    %8763 = vmatpush1.bf16.msra.mxu0 %v8446
    %8764 = vmatprep.subr.bf16.mxu0 %v8455
    %8765 = vmatpush1.bf16.msra.mxu0 %v8454
    %8766 = vmatprep.subr.bf16.mxu0 %v8463
    %8767 = vmatpush1.bf16.msra.mxu0 %v8462
    %8768 = vmatprep.subr.bf16.mxu0 %v8471
    %8769 = vmatpush1.bf16.msra.mxu0 %v8470
    %8770 = vmatprep.subr.bf16.mxu0 %v8479
    %8771 = vmatpush1.bf16.msra.mxu0 %v8478
    %8772 = vmatprep.subr.bf16.mxu0 %v8487
    %8773 = vmatpush1.bf16.msra.mxu0 %v8486
    %8774 = vmatprep.subr.bf16.mxu0 %v8495
    %8775 = vmatpush1.bf16.msra.mxu0 %v8494
    %8776 = vmatprep.subr.bf16.mxu0 %v8503
    %8777 = vmatpush1.bf16.msra.mxu0 %v8502
    %8778 = vmatprep.subr.bf16.mxu0 %v8511
    %8779 = vmatpush1.bf16.msra.mxu0 %v8510
    %8780 = vmatprep.subr.bf16.mxu0 %v8519
    %8781 = vmatpush1.bf16.msra.mxu0 %v8518
    %8782 = vmatprep.subr.bf16.mxu0 %v8527
    %8783 = vmatpush1.bf16.msra.mxu0 %v8526
    %8784 = vmatprep.subr.bf16.mxu0 %v8535
    %8785 = vmatpush1.bf16.msra.mxu0 %v8534
    %8786 = vmatprep.subr.bf16.mxu0 %v8543
    %8787 = vmatpush1.bf16.msra.mxu0 %v8542
    %8788 = vmatprep.mubr.bf16.mxu0 %v7905
    %8789 = vmatmul.mubr.bf16.gmra.mrb[0].mxu0 %v7904
    %v8790 = vpop.f32.mrb[0].mxu0
    %v8791 = vadd.f32 0.0, %v8790
    %v8792 = vpop.f32.mrb[0].mxu0
    %v8793 = vadd.f32 0.0, %v8792
    %v8794 = vpop.f32.mrb[0].mxu0
    %v8795 = vpop.f32.mrb[0].mxu0
    %8796 = vdwg.mxu0
    %8797 = vmatprep.subr.bf16.mxu0 %v8425
    %8798 = vmatpush1.bf16.msra.mxu0 %v8424
    %8799 = vmatprep.subr.bf16.mxu0 %v8433
    %8800 = vmatpush1.bf16.msra.mxu0 %v8432
    %8801 = vmatprep.subr.bf16.mxu0 %v8441
    %8802 = vmatpush1.bf16.msra.mxu0 %v8440
    %8803 = vmatprep.subr.bf16.mxu0 %v8449
    %8804 = vmatpush1.bf16.msra.mxu0 %v8448
    %8805 = vmatprep.subr.bf16.mxu0 %v8457
    %8806 = vmatpush1.bf16.msra.mxu0 %v8456
    %8807 = vmatprep.subr.bf16.mxu0 %v8465
    %8808 = vmatpush1.bf16.msra.mxu0 %v8464
    %8809 = vmatprep.subr.bf16.mxu0 %v8473
    %8810 = vmatpush1.bf16.msra.mxu0 %v8472
    %8811 = vmatprep.subr.bf16.mxu0 %v8481
    %8812 = vmatpush1.bf16.msra.mxu0 %v8480
    %8813 = vmatprep.subr.bf16.mxu0 %v8489
    %8814 = vmatpush1.bf16.msra.mxu0 %v8488
    %8815 = vmatprep.subr.bf16.mxu0 %v8497
    %8816 = vmatpush1.bf16.msra.mxu0 %v8496
    %8817 = vmatprep.subr.bf16.mxu0 %v8505
    %8818 = vmatpush1.bf16.msra.mxu0 %v8504
    %8819 = vmatprep.subr.bf16.mxu0 %v8513
    %8820 = vmatpush1.bf16.msra.mxu0 %v8512
    %8821 = vmatprep.subr.bf16.mxu0 %v8521
    %8822 = vmatpush1.bf16.msra.mxu0 %v8520
    %8823 = vmatprep.subr.bf16.mxu0 %v8529
    %8824 = vmatpush1.bf16.msra.mxu0 %v8528
    %8825 = vmatprep.subr.bf16.mxu0 %v8537
    %8826 = vmatpush1.bf16.msra.mxu0 %v8536
    %8827 = vmatprep.subr.bf16.mxu0 %v8545
    %8828 = vmatpush1.bf16.msra.mxu0 %v8544
    %8829 = vmatprep.mubr.bf16.mxu0 %v7905
    %8830 = vmatmul.mubr.bf16.gmra.mrb[0].mxu0 %v7904
    %v8831 = vpop.f32.mrb[0].mxu0
    %v8832 = vadd.f32 0.0, %v8831
    %v8833 = vpop.f32.mrb[0].mxu0
    %v8834 = vadd.f32 0.0, %v8833
    %v8835 = vpop.f32.mrb[0].mxu0
    %v8836 = vpop.f32.mrb[0].mxu0
    %8837 = vdwg.mxu0
    %v8838 = vadd.f32 %v7896, %v8709
    %v8839 = vadd.f32 %v7897, %v8711
    %v8840 = vadd.f32 %v7898, %v8750
    %v8841 = vadd.f32 %v7899, %v8752
    %v8842 = vadd.f32 %v7900, %v8791
    %v8843 = vadd.f32 %v7901, %v8793
    %v8844 = vadd.f32 %v7902, %v8832
    %v8845 = vadd.f32 %v7903, %v8834
    %v8846 = vxor.u32 %v8838, 2147483648
    %v8847 = vxor.u32 %v8839, 2147483648
    %v8848 = vxor.u32 %v8840, 2147483648
    %v8849 = vxor.u32 %v8841, 2147483648
    %v8850 = vxor.u32 %v8842, 2147483648
    %v8851 = vxor.u32 %v8843, 2147483648
    %v8852 = vmul.f32 %v8846, 1.442695
    %v8853 = vpow.pop %v8852
    %v8854 = vmul.f32 %v8847, 1.442695
    %v8855 = vpow.pop %v8854
    %v8856 = vmul.f32 %v8848, 1.442695
    %v8857 = vpow.pop %v8856
    %v8858 = vmul.f32 %v8849, 1.442695
    %v8859 = vpow.pop %v8858
    %v8860 = vmul.f32 %v8850, 1.442695
    %v8861 = vpow.pop %v8860
    %v8862 = vmul.f32 %v8851, 1.442695
    %v8863 = vpow.pop %v8862
    %v8864 = vadd.f32 %v8853, 1.0
    %v8865 = vadd.f32 %v8855, 1.0
    %v8866 = vadd.f32 %v8857, 1.0
    %v8867 = vadd.f32 %v8859, 1.0
    %v8868 = vadd.f32 %v8861, 1.0
    %v8869 = vadd.f32 %v8863, 1.0
    %v8870 = vrcp.pop %v8864
    %v8871 = vmul.f32 1.0, %v8870
    %v8872 = vrcp.pop %v8865
    %v8873 = vmul.f32 1.0, %v8872
    %v8874 = vrcp.pop %v8866
    %v8875 = vmul.f32 1.0, %v8874
    %v8876 = vrcp.pop %v8867
    %v8877 = vmul.f32 1.0, %v8876
    %v8878 = vrcp.pop %v8868
    %v8879 = vmul.f32 1.0, %v8878
    %v8880 = vrcp.pop %v8869
    %v8881 = vmul.f32 1.0, %v8880
    %v8882 = vtanh.pop %v8844
    %v8883 = vtanh.pop %v8845
    %v8884 = vmul.f32 %v8875, %v7886
    %v8885 = vmul.f32 %v8877, %v7887
    %v8886 = vmul.f32 %v8871, %v8882
    %v8887 = vmul.f32 %v8873, %v8883
    %v8888 = vadd.f32 %v8884, %v8886
    %v8889 = vadd.f32 %v8885, %v8887
    %v8890 = vtanh.pop %v8888
    %v8891 = vtanh.pop %v8889
    %v8892 = vmul.f32 %v8879, %v8890
    %v8893 = vmul.f32 %v8881, %v8891
    %s8894 = scalar_lea.vmem [#allocation5], 112
    %8895 = vst [vmem:[%s8894] sm:$0xff] %v8892
    %8896 = vst [vmem:[%s8894 + $0x8] sm:$0xff] %v8893
    %8897 = vst [vmem:[#allocation2] sm:$0xff] %v8892
    %8898 = vst [vmem:[#allocation2 + $0x8] sm:$0xff] %v8893
    %8899 = vst [vmem:[#allocation3] sm:$0xff] %v8888
    %8900 = vst [vmem:[#allocation3 + $0x8] sm:$0xff] %v8889
    %v8901 = vld [vmem:[#allocation5] sm:$0xff]
    %v8902 = vld [vmem:[#allocation5 + $0x8] sm:$0xff]
    %v8903 = vld [vmem:[#allocation5 + $0x10] sm:$0xff]
    %v8904 = vld [vmem:[#allocation5 + $0x18] sm:$0xff]
    %v8905 = vld [vmem:[#allocation5 + $0x20] sm:$0xff]
    %v8906 = vld [vmem:[#allocation5 + $0x28] sm:$0xff]
    %v8907 = vld [vmem:[#allocation5 + $0x30] sm:$0xff]
    %v8908 = vld [vmem:[#allocation5 + $0x38] sm:$0xff]
    %v8909 = vld [vmem:[#allocation5 + $0x40] sm:$0xff]
    %v8910 = vld [vmem:[#allocation5 + $0x48] sm:$0xff]
    %v8911 = vld [vmem:[#allocation5 + $0x50] sm:$0xff]
    %v8912 = vld [vmem:[#allocation5 + $0x58] sm:$0xff]
    %v8913 = vld [vmem:[#allocation5 + $0x60] sm:$0xff]
    %v8914 = vld [vmem:[#allocation5 + $0x68] sm:$0xff]
    %v8915 = vld [vmem:[#allocation5 + $0x70] sm:$0xff]
    %v8916 = vld [vmem:[#allocation5 + $0x78] sm:$0xff]
    %v8917 = vpack.c.bf16 %v8903, %v8901
    %v8918 = vpack.c.bf16 %v8904, %v8902
    %v8919 = vpack.c.bf16 %v8907, %v8905
    %v8920 = vpack.c.bf16 %v8908, %v8906
    %v8921 = vpack.c.bf16 %v8911, %v8909
    %v8922 = vpack.c.bf16 %v8912, %v8910
    %v8923 = vpack.c.bf16 %v8915, %v8913
    %v8924 = vpack.c.bf16 %v8916, %v8914
    %v8925 = vld [vmem:[%s4] sm:$0xf]
    %v8926 = vld [vmem:[%s4 + $0x4] sm:$0xf]
    %v8927 = vld [vmem:[%s4 + $0x8] sm:$0xf]
    %v8928 = vld [vmem:[%s4 + $0xc] sm:$0xf]
    %v8929 = vld [vmem:[%s4 + $0x10] sm:$0xf]
    %v8930 = vld [vmem:[%s4 + $0x14] sm:$0xf]
    %v8931 = vld [vmem:[%s4 + $0x18] sm:$0xf]
    %v8932 = vld [vmem:[%s4 + $0x1c] sm:$0xf]
    %v8933 = vld [vmem:[%s4 + $0x20] sm:$0xf]
    %v8934 = vld [vmem:[%s4 + $0x24] sm:$0xf]
    %v8935 = vld [vmem:[%s4 + $0x28] sm:$0xf]
    %v8936 = vld [vmem:[%s4 + $0x2c] sm:$0xf]
    %v8937 = vld [vmem:[%s4 + $0x30] sm:$0xf]
    %v8938 = vld [vmem:[%s4 + $0x34] sm:$0xf]
    %v8939 = vld [vmem:[%s4 + $0x38] sm:$0xf]
    %v8940 = vld [vmem:[%s4 + $0x3c] sm:$0xf]
    %v8941 = vld [vmem:[%s4 + $0x40] sm:$0xf]
    %v8942 = vld [vmem:[%s4 + $0x44] sm:$0xf]
    %v8943 = vld [vmem:[%s4 + $0x48] sm:$0xf]
    %v8944 = vld [vmem:[%s4 + $0x4c] sm:$0xf]
    %v8945 = vld [vmem:[%s4 + $0x50] sm:$0xf]
    %v8946 = vld [vmem:[%s4 + $0x54] sm:$0xf]
    %v8947 = vld [vmem:[%s4 + $0x58] sm:$0xf]
    %v8948 = vld [vmem:[%s4 + $0x5c] sm:$0xf]
    %v8949 = vld [vmem:[%s4 + $0x60] sm:$0xf]
    %v8950 = vld [vmem:[%s4 + $0x64] sm:$0xf]
    %v8951 = vld [vmem:[%s4 + $0x68] sm:$0xf]
    %v8952 = vld [vmem:[%s4 + $0x6c] sm:$0xf]
    %v8953 = vld [vmem:[%s4 + $0x70] sm:$0xf]
    %v8954 = vld [vmem:[%s4 + $0x74] sm:$0xf]
    %v8955 = vld [vmem:[%s4 + $0x78] sm:$0xf]
    %v8956 = vld [vmem:[%s4 + $0x7c] sm:$0xf]
    %v8957 = vld [vmem:[%s5] sm:$0x1]
    %v8959 = vlaneseq
    %v8960 = vshrl.u32 %v8959, 7
    %v8961 = vsub.s32 0, %v8960
    %v8962 = vrot.slane %v8957, %v8961
    %v8996 = vunpack.c.l.b16 %v8925
    %v8997 = vunpack.c.l.b16 %v8926
    %v8998 = vunpack.c.l.b16 %v8927
    %v8999 = vunpack.c.l.b16 %v8928
    %v9000 = vunpack.c.l.b16 %v8929
    %v9001 = vunpack.c.l.b16 %v8930
    %v9002 = vunpack.c.l.b16 %v8931
    %v9003 = vunpack.c.l.b16 %v8932
    %v9004 = vunpack.c.l.b16 %v8933
    %v9005 = vunpack.c.l.b16 %v8934
    %v9006 = vunpack.c.l.b16 %v8935
    %v9007 = vunpack.c.l.b16 %v8936
    %v9008 = vunpack.c.l.b16 %v8937
    %v9009 = vunpack.c.l.b16 %v8938
    %v9010 = vunpack.c.l.b16 %v8939
    %v9011 = vunpack.c.l.b16 %v8940
    %v9012 = vunpack.c.l.b16 %v8941
    %v9013 = vunpack.c.l.b16 %v8942
    %v9014 = vunpack.c.l.b16 %v8943
    %v9015 = vunpack.c.l.b16 %v8944
    %v9016 = vunpack.c.l.b16 %v8945
    %v9017 = vunpack.c.l.b16 %v8946
    %v9018 = vunpack.c.l.b16 %v8947
    %v9019 = vunpack.c.l.b16 %v8948
    %v9020 = vunpack.c.l.b16 %v8949
    %v9021 = vunpack.c.l.b16 %v8950
    %v9022 = vunpack.c.l.b16 %v8951
    %v9023 = vunpack.c.l.b16 %v8952
    %v9024 = vunpack.c.l.b16 %v8953
    %v9025 = vunpack.c.l.b16 %v8954
    %v9026 = vunpack.c.l.b16 %v8955
    %v9027 = vunpack.c.l.b16 %v8956
    %v9028 = vpack.c.b16 %v8997, %v8996
    %v9029 = vpack.c.b16 %v8999, %v8998
    %v9030 = vpack.c.b16 %v9001, %v9000
    %v9031 = vpack.c.b16 %v9003, %v9002
    %v9032 = vpack.c.b16 %v9005, %v9004
    %v9033 = vpack.c.b16 %v9007, %v9006
    %v9034 = vpack.c.b16 %v9009, %v9008
    %v9035 = vpack.c.b16 %v9011, %v9010
    %v9036 = vpack.c.b16 %v9013, %v9012
    %v9037 = vpack.c.b16 %v9015, %v9014
    %v9038 = vpack.c.b16 %v9017, %v9016
    %v9039 = vpack.c.b16 %v9019, %v9018
    %v9040 = vpack.c.b16 %v9021, %v9020
    %v9041 = vpack.c.b16 %v9023, %v9022
    %v9042 = vpack.c.b16 %v9025, %v9024
    %v9043 = vpack.c.b16 %v9027, %v9026
    %9060 = vmatprep.subr.bf16.mxu0 0
    %9061 = vmatpush1.bf16.msra.mxu0 %v9028
    %9062 = vmatprep.subr.bf16.mxu0 0
    %9063 = vmatpush1.bf16.msra.mxu0 %v9029
    %9064 = vmatprep.subr.bf16.mxu0 0
    %9065 = vmatpush1.bf16.msra.mxu0 %v9030
    %9066 = vmatprep.subr.bf16.mxu0 0
    %9067 = vmatpush1.bf16.msra.mxu0 %v9031
    %9068 = vmatprep.subr.bf16.mxu0 0
    %9069 = vmatpush1.bf16.msra.mxu0 %v9032
    %9070 = vmatprep.subr.bf16.mxu0 0
    %9071 = vmatpush1.bf16.msra.mxu0 %v9033
    %9072 = vmatprep.subr.bf16.mxu0 0
    %9073 = vmatpush1.bf16.msra.mxu0 %v9034
    %9074 = vmatprep.subr.bf16.mxu0 0
    %9075 = vmatpush1.bf16.msra.mxu0 %v9035
    %9076 = vmatprep.subr.bf16.mxu0 0
    %9077 = vmatpush1.bf16.msra.mxu0 %v9036
    %9078 = vmatprep.subr.bf16.mxu0 0
    %9079 = vmatpush1.bf16.msra.mxu0 %v9037
    %9080 = vmatprep.subr.bf16.mxu0 0
    %9081 = vmatpush1.bf16.msra.mxu0 %v9038
    %9082 = vmatprep.subr.bf16.mxu0 0
    %9083 = vmatpush1.bf16.msra.mxu0 %v9039
    %9084 = vmatprep.subr.bf16.mxu0 0
    %9085 = vmatpush1.bf16.msra.mxu0 %v9040
    %9086 = vmatprep.subr.bf16.mxu0 0
    %9087 = vmatpush1.bf16.msra.mxu0 %v9041
    %9088 = vmatprep.subr.bf16.mxu0 0
    %9089 = vmatpush1.bf16.msra.mxu0 %v9042
    %9090 = vmatprep.subr.bf16.mxu0 0
    %9091 = vmatpush1.bf16.msra.mxu0 %v9043
    %9092 = vmatprep.mubr.bf16.mxu0 %v8918
    %9093 = vmatmul.mubr.bf16.gmra.mrb[0].mxu0 %v8917
    %v9094 = vpop.f32.mrb[0].mxu0
    %v9095 = vadd.f32 %v8962, %v9094
    %v9096 = vpop.f32.mrb[0].mxu0
    %v9097 = vpop.f32.mrb[0].mxu0
    %v9098 = vadd.f32 %v8962, %v9097
    %v9099 = vpop.f32.mrb[0].mxu0
    %9100 = vmatprep.mubr.bf16.mxu0 %v8920
    %9101 = vmatmul.mubr.bf16.gmra.mrb[0].mxu0 %v8919
    %v9102 = vpop.f32.mrb[0].mxu0
    %v9103 = vadd.f32 %v8962, %v9102
    %v9104 = vpop.f32.mrb[0].mxu0
    %v9105 = vpop.f32.mrb[0].mxu0
    %v9106 = vadd.f32 %v8962, %v9105
    %v9107 = vpop.f32.mrb[0].mxu0
    %9108 = vmatprep.mubr.bf16.mxu0 %v8922
    %9109 = vmatmul.mubr.bf16.gmra.mrb[0].mxu0 %v8921
    %v9110 = vpop.f32.mrb[0].mxu0
    %v9111 = vadd.f32 %v8962, %v9110
    %v9112 = vpop.f32.mrb[0].mxu0
    %v9113 = vpop.f32.mrb[0].mxu0
    %v9114 = vadd.f32 %v8962, %v9113
    %v9115 = vpop.f32.mrb[0].mxu0
    %9116 = vmatprep.mubr.bf16.mxu0 %v8924
    %9117 = vmatmul.mubr.bf16.gmra.mrb[0].mxu0 %v8923
    %v9118 = vpop.f32.mrb[0].mxu0
    %v9119 = vadd.f32 %v8962, %v9118
    %v9120 = vpop.f32.mrb[0].mxu0
    %v9121 = vpop.f32.mrb[0].mxu0
    %v9122 = vadd.f32 %v8962, %v9121
    %v9123 = vpop.f32.mrb[0].mxu0
    %9124 = vdwg.mxu0
    %9125 = vst [vmem:[%s6] sm:$0xff] %v9095
    %9126 = vst [vmem:[%s6 + $0x8] sm:$0xff] %v9098
    %9127 = vst [vmem:[%s6 + $0x10] sm:$0xff] %v9103
    %9128 = vst [vmem:[%s6 + $0x18] sm:$0xff] %v9106
    %9129 = vst [vmem:[%s6 + $0x20] sm:$0xff] %v9111
    %9130 = vst [vmem:[%s6 + $0x28] sm:$0xff] %v9114
    %9131 = vst [vmem:[%s6 + $0x30] sm:$0xff] %v9119
    %9132 = vst [vmem:[%s6 + $0x38] sm:$0xff] %v9122
    // Predicated region
    $region38: #{lstm_poet_forward.1} parent=1 // pred_check
      %p9133 = pneg %p57
    $region39: #{lstm_poet_forward.1} parent=1 // pred_check_branch
      %9135 = sbr.rel (%p9133) target = $region41
    $region40: #{lstm_poet_forward.1} parent=1 // pred_region
      %9136 = vst [vmem:[#allocation11] sm:$0xff] %v8892
      %9137 = vst [vmem:[#allocation11 + $0x8] sm:$0xff] %v8893
      %9138 = vst [vmem:[#allocation12] sm:$0xff] %v8888
      %9139 = vst [vmem:[#allocation12 + $0x8] sm:$0xff] %v8889
    $region41: #{lstm_poet_forward.1} parent=1 // pred_fallthru
      _
    // Predicated region
    $region42: #{lstm_poet_forward.1} parent=1 // pred_check
      _
    $region43: #{lstm_poet_forward.1} parent=1 // pred_check_branch
      %9141 = sbr.rel (0) target = $region45
    $region44: #{lstm_poet_forward.1} parent=1 // pred_region
      _
    $region45: #{lstm_poet_forward.1} parent=1 // pred_fallthru
      _
    // Predicated region
    $region46: #{lstm_poet_forward.1} parent=1 // pred_check
      _
    $region47: #{lstm_poet_forward.1} parent=1 // pred_check_branch
      %9143 = sbr.rel (0) target = $region49
    $region48: #{lstm_poet_forward.1} parent=1 // pred_region
      %s9145 = ssub.s32 256, 256
      %9146 = vsyncadd [#allocation8], %s9145
      %s9148 = sshll.u32 [#allocation11], 4
      %s9149 = int_to_ptr.vmem [resolvable:$true] %s9148
      %9151 = dma.vmem_to_hbm [thread:$0]  %s9149, 256, %s7, [#allocation8]
    $region49: #{lstm_poet_forward.1} parent=1 // pred_fallthru
      _
    // Predicated region
    $region50: #{lstm_poet_forward.1} parent=1 // pred_check
      _
    $region51: #{lstm_poet_forward.1} parent=1 // pred_check_branch
      %9153 = sbr.rel (0) target = $region53
    $region52: #{lstm_poet_forward.1} parent=1 // pred_region
      %s9155 = ssub.s32 256, 256
      %9156 = vsyncadd [#allocation13], %s9155
      %s9158 = sshll.u32 [#allocation12], 4
      %s9159 = int_to_ptr.vmem [resolvable:$true] %s9158
      %9161 = dma.vmem_to_hbm [thread:$0]  %s9159, 256, %s8, [#allocation13]
    $region53: #{lstm_poet_forward.1} parent=1 // pred_fallthru
      _
    // Predicated region
    $region54: #{lstm_poet_forward.1} parent=1 // pred_check
      _
    $region55: #{lstm_poet_forward.1} parent=1 // pred_check_branch
      %9163 = sbr.rel (0) target = $region57
    $region56: #{lstm_poet_forward.1} parent=1 // pred_region
      _
    $region57: #{lstm_poet_forward.1} parent=1 // pred_fallthru
      _
    // Predicated region
    $region58: #{lstm_poet_forward.1} parent=1 // pred_check
      _
    $region59: #{lstm_poet_forward.1} parent=1 // pred_check_branch
      %9165 = sbr.rel (0) target = $region61
    $region60: #{lstm_poet_forward.1} parent=1 // pred_region
      %9166 = dma.done [#allocation8], 256
    $region61: #{lstm_poet_forward.1} parent=1 // pred_fallthru
      _
    // Predicated region
    $region62: #{lstm_poet_forward.1} parent=1 // pred_check
      _
    $region63: #{lstm_poet_forward.1} parent=1 // pred_check_branch
      %9168 = sbr.rel (0) target = $region65
    $region64: #{lstm_poet_forward.1} parent=1 // pred_region
      %9169 = dma.done [#allocation13], 256
    $region65: #{lstm_poet_forward.1} parent=1 // pred_fallthru
      _
    %9170 = vsyncpa [#allocation7], 1
    %9171 = vsyncpa [#allocation10], 1
    %9172 = vsyncpa [#allocation8], 1
    %9173 = vsyncpa [#allocation13], 1

</llo_original>
